<compile_context>
chip_gen: v7x
topology: tpu7x:2x2x1
jax: 0.10.0
libtpu: 0.0.40
codegen_flags: <defaults>
</compile_context>

<pallas_src>
import functools
import numpy as np

import jax
import jax.numpy as jnp
from jax import lax
from jax.experimental import pallas as pl
from jax.experimental.pallas import tpu as pltpu


def _round_up(x, m):
    return (x + m - 1) // m * m


def _vmem_limit_bytes():
    # v7x: 64 MiB physical -> leave ~16 MiB headroom (=> ~48 MiB).
    # v5e/v6e: 128 MiB physical -> allow up to 100 MiB.
    try:
        cap = pltpu.get_tpu_info().vmem_capacity_bytes
    except Exception:
        cap = 64 * 1024 * 1024
    return int(min(cap - 16 * 1024 * 1024, 100 * 1024 * 1024))


def _layer_norm(v, g, b, eps=1e-5):
    mu = jnp.mean(v, axis=-1, keepdims=True)
    var = jnp.mean((v - mu) ** 2, axis=-1, keepdims=True)
    return (v - mu) * jax.lax.rsqrt(var + eps) * g + b


# ---------------------------------------------------------------------------
# Main kernel: ONE universal-transformer step per grid iteration.
# grid = (B, num_steps); the output block (index constant over the step axis)
# acts as the resident per-batch-element state carried across steps.
# ---------------------------------------------------------------------------
def ut_step_kernel(x_ref, mask_ref, time_ref,
                   wq_ref, wk_ref, wv_ref, bq_ref, bk_ref, bv_ref,
                   wo_ref, bo_ref, ln1g_ref, ln1b_ref,
                   w1_ref, b1_ref, w2_ref, b2_ref, ln2g_ref, ln2b_ref,
                   out_ref, *, num_heads, head_pad, q_tile):
    step = pl.program_id(1)

    @pl.when(step == 0)
    def _():                                   # initialise the resident state
        out_ref[...] = x_ref[...]

    xc = out_ref[0] + time_ref[pl.ds(step, 1), :]        # (L, D) f32
    L, D = xc.shape
    H, HP = num_heads, head_pad
    n_qt = L // q_tile
    neg = jnp.float32(-1e30)
    pad_bad = mask_ref[0] < 0.5                           # (1, L) True = padded key

    # ---- self-attention (post-norm TransformerEncoderLayer, no dropout) ----
    xb = xc.astype(jnp.bfloat16)
    # Three narrower projections: bias + bf16 cast applied immediately so no
    # (L, 3*H*HP) f32 slab stays live during attention.  1/sqrt(hd) is folded
    # into Wq/bq in the wrapper.
    qp = (jnp.dot(xb, wq_ref[...], preferred_element_type=jnp.float32)
          + bq_ref[0]).astype(jnp.bfloat16)               # (L, H*HP)
    kp = (jnp.dot(xb, wk_ref[...], preferred_element_type=jnp.float32)
          + bk_ref[0]).astype(jnp.bfloat16)
    vp = (jnp.dot(xb, wv_ref[...], preferred_element_type=jnp.float32)
          + bv_ref[0]).astype(jnp.bfloat16)

    o_tiles = []
    for t in range(n_qt):                                 # static query tiling
        # causal + key-padding mask recomputed per tile (cheap VPU filler that
        # hides under the MXU-bound score matmul; no O(L^2) f32 kept live).
        row = lax.broadcasted_iota(jnp.int32, (q_tile, L), 0) + t * q_tile
        col = lax.broadcasted_iota(jnp.int32, (q_tile, L), 1)
        bad = jnp.logical_or(col > row, pad_bad)          # (q_tile, L)
        head_outs = []
        for h in range(H):                                # 128-lane-aligned heads
            q_t = qp[t * q_tile:(t + 1) * q_tile, h * HP:(h + 1) * HP]
            k_h = kp[:, h * HP:(h + 1) * HP]
            v_h = vp[:, h * HP:(h + 1) * HP]
            s = lax.dot_general(q_t, k_h, (((1,), (1,)), ((), ())),
                                preferred_element_type=jnp.float32)
            s = jnp.where(bad, neg, s)                    # f32 masking
            s = s - jnp.max(s, axis=-1, keepdims=True)
            p = jnp.exp(s)
            p = p * pl.reciprocal(jnp.sum(p, axis=-1, keepdims=True),
                                  approx=True)            # EUP, not VALU
            head_outs.append(
                jnp.dot(p.astype(jnp.bfloat16), v_h,
                        preferred_element_type=jnp.float32).astype(jnp.bfloat16))
        o_tiles.append(head_outs[0] if H == 1
                       else jnp.concatenate(head_outs, axis=-1))
    o = o_tiles[0] if n_qt == 1 else jnp.concatenate(o_tiles, axis=0)  # (L, H*HP)

    # concat-then-project: ONE (L, H*HP) @ (H*HP, D) MXU matmul
    attn = jnp.dot(o, wo_ref[...], preferred_element_type=jnp.float32) + bo_ref[0]
    x1 = _layer_norm(xc + attn, ln1g_ref[0], ln1b_ref[0])

    # ---- feed-forward (ReLU) ----
    hid = jnp.maximum(
        jnp.dot(x1.astype(jnp.bfloat16), w1_ref[...],
                preferred_element_type=jnp.float32) + b1_ref[0], 0.0)
    ff = jnp.dot(hid.astype(jnp.bfloat16), w2_ref[...],
                 preferred_element_type=jnp.float32) + b2_ref[0]
    out_ref[0] = _layer_norm(x1 + ff, ln2g_ref[0], ln2b_ref[0])


# ---------------------------------------------------------------------------
# Vocab projection: V is the OUTER grid axis (rows inner) so the W_out tile's
# block index is constant across the inner axis -> W_out streamed from HBM
# exactly once.  V padded to a multiple of 128 for lane-dense stores.
# ---------------------------------------------------------------------------
def _vocab_proj_kernel(x_ref, w_ref, b_ref, o_ref):
    o_ref[...] = (jnp.dot(x_ref[...], w_ref[...],
                          preferred_element_type=jnp.float32) + b_ref[0])


def _vocab_projection(x, w_out_p, b_out_p):
    M, D = x.shape                         # M = B * L_pad (multiple of 128)
    V_pad = w_out_p.shape[1]
    tile_v = max(t for t in (1024, 512, 256, 128) if V_pad % t == 0)
    tile_m = 256 if M % 256 == 0 else 128
    xb = x.astype(jnp.bfloat16)

    n_v = V_pad // tile_v
    cost = pl.CostEstimate(
        flops=int(2 * M * D * V_pad), transcendentals=0,
        bytes_accessed=int(M * D * 2 * n_v + D * V_pad * 2 + M * V_pad * 4))

    return pl.pallas_call(
        _vocab_proj_kernel,
        grid=(n_v, M // tile_m),                       # V outer, rows inner
        in_specs=[pl.BlockSpec((tile_m, D), lambda j, i: (i, 0)),
                  pl.BlockSpec((D, tile_v), lambda j, i: (0, j)),
                  pl.BlockSpec((1, tile_v), lambda j, i: (0, j))],
        out_specs=pl.BlockSpec((tile_m, tile_v), lambda j, i: (i, j)),
        out_shape=jax.ShapeDtypeStruct((M, V_pad), jnp.float32),
        compiler_params=pltpu.CompilerParams(
            dimension_semantics=("parallel", "parallel"),
            vmem_limit_bytes=_vmem_limit_bytes()),
        cost_estimate=cost,
    )(xb, w_out_p, b_out_p)


# ---------------------------------------------------------------------------
# One-time weight preprocessing (do this at parameter-load time, not per call):
# head padding to 128-lane slots, 1/sqrt(hd) folded into Q, bf16 casts,
# vocab padding.
# ---------------------------------------------------------------------------
def prepare_params(params, num_heads):
    D = params['embedding'].shape[1]
    V = params['w_out'].shape[1]
    H = num_heads
    hd = D // H
    HP = _round_up(hd, 128)
    V_pad = _round_up(V, 128)
    scale = 1.0 / float(np.sqrt(hd))

    def pad_cols(w):   # (X, H*hd) -> (X, H*HP): head h at 128-aligned offset h*HP
        X = w.shape[0]
        out = jnp.zeros((X, H, HP), w.dtype)
        out = out.at[:, :, :hd].set(w.reshape(X, H, hd))
        return out.reshape(X, H * HP)

    def pad_rows(w):   # (H*hd, X) -> (H*HP, X): zero rows in the pad slots
        X = w.shape[1]
        out = jnp.zeros((H, HP, X), w.dtype)
        out = out.at[:, :hd, :].set(w.reshape(H, hd, X))
        return out.reshape(H * HP, X)

    wq = params['w_qkv'][:, :D] * scale
    wk = params['w_qkv'][:, D:2 * D]
    wv = params['w_qkv'][:, 2 * D:]
    bq = params['b_qkv'][:, :D] * scale
    bk = params['b_qkv'][:, D:2 * D]
    bv = params['b_qkv'][:, 2 * D:]

    return {
        'head_pad': HP, 'vocab': V,
        'embedding': params['embedding'].astype(jnp.float32),
        'pos_embedding': params['pos_embedding'].astype(jnp.float32),
        'time_embedding': params['time_embedding'].astype(jnp.float32),
        'wq': pad_cols(wq).astype(jnp.bfloat16),
        'wk': pad_cols(wk).astype(jnp.bfloat16),
        'wv': pad_cols(wv).astype(jnp.bfloat16),
        'bq': pad_cols(bq).astype(jnp.float32),
        'bk': pad_cols(bk).astype(jnp.float32),
        'bv': pad_cols(bv).astype(jnp.float32),
        'wo': pad_rows(params['w_o']).astype(jnp.bfloat16),
        'bo': params['b_o'].astype(jnp.float32),
        'ln1_g': params['ln1_g'].astype(jnp.float32),
        'ln1_b': params['ln1_b'].astype(jnp.float32),
        'w_ff1': params['w_ff1'].astype(jnp.bfloat16),
        'b_ff1': params['b_ff1'].astype(jnp.float32),
        'w_ff2': params['w_ff2'].astype(jnp.bfloat16),
        'b_ff2': params['b_ff2'].astype(jnp.float32),
        'ln2_g': params['ln2_g'].astype(jnp.float32),
        'ln2_b': params['ln2_b'].astype(jnp.float32),
        'w_out': jnp.pad(params['w_out'],
                         ((0, 0), (0, V_pad - V))).astype(jnp.bfloat16),
        'b_out': jnp.pad(params['b_out'],
                         ((0, 0), (0, V_pad - V))).astype(jnp.float32),
    }


_WEIGHT_KEYS = ['wq', 'wk', 'wv', 'bq', 'bk', 'bv', 'wo', 'bo',
                'ln1_g', 'ln1_b', 'w_ff1', 'b_ff1', 'w_ff2', 'b_ff2',
                'ln2_g', 'ln2_b']


def universal_transformer_forward(tokens, attention_mask, prep, *,
                                  num_heads, num_steps):
    B, L = tokens.shape                     # NOTE: choose B even on v7x (2 TCs)
    D = prep['embedding'].shape[1]
    HP = prep['head_pad']
    HHP = num_heads * HP
    V = prep['vocab']
    dff = prep['w_ff1'].shape[1]
    L_pad = _round_up(L, 128)               # padded keys masked; rows sliced off
    q_tile = 256 if L_pad % 256 == 0 else 128

    # glue: embedding gather + positional embedding (data-dependent gather in JAX)
    x = (prep['embedding'][tokens]
         + prep['pos_embedding'][:L][None, :, :]).astype(jnp.float32)
    mask = attention_mask.astype(jnp.float32)
    if L_pad != L:
        x = jnp.pad(x, ((0, 0), (0, L_pad - L), (0, 0)))
        mask = jnp.pad(mask, ((0, 0), (0, L_pad - L)))
    mask3 = mask.reshape(B, 1, L_pad)

    weights = [prep[k] for k in _WEIGHT_KEYS]
    time_emb = prep['time_embedding']

    kernel = functools.partial(ut_step_kernel, num_heads=num_heads,
                               head_pad=HP, q_tile=q_tile)

    flops = B * num_steps * (2 * L_pad * D * 3 * HHP            # QKV projections
                             + 4 * num_heads * L_pad * L_pad * HP   # scores + PV
                             + 2 * L_pad * HHP * D               # output proj
                             + 4 * L_pad * D * dff)              # feed-forward
    cost = pl.CostEstimate(
        flops=int(flops),
        transcendentals=int(B * num_steps * num_heads * L_pad * L_pad),
        bytes_accessed=int(2 * x.size * 4 + mask3.size * 4 + time_emb.size * 4
                           + sum(int(w.size) * w.dtype.itemsize for w in weights)))
    vmem_limit = _vmem_limit_bytes()

    def run(use_buffered):
        def rep_spec(a):  # weight replicated across the whole grid
            nd = a.ndim
            idx = lambda b, s, _n=nd: (0,) * _n
            if use_buffered:
                # constant index_map -> single buffer halves weight-resident VMEM
                return pl.BlockSpec(a.shape, idx, pipeline_mode=pl.Buffered(1))
            return pl.BlockSpec(a.shape, idx)

        in_specs = ([pl.BlockSpec((1, L_pad, D), lambda b, s: (b, 0, 0)),
                     pl.BlockSpec((1, 1, L_pad), lambda b, s: (b, 0, 0)),
                     rep_spec(time_emb)]
                    + [rep_spec(w) for w in weights])
        out = pl.pallas_call(
            kernel,
            grid=(B, num_steps),            # steps: trailing "arbitrary" axis
            in_specs=in_specs,
            out_specs=pl.BlockSpec((1, L_pad, D), lambda b, s: (b, 0, 0)),
            out_shape=jax.ShapeDtypeStruct((B, L_pad, D), jnp.float32),
            compiler_params=pltpu.CompilerParams(
                dimension_semantics=("parallel", "arbitrary"),
                vmem_limit_bytes=vmem_limit),
            cost_estimate=cost,
        )(x, mask3, time_emb, *weights)
        return jax.block_until_ready(out)

    try:
        xf = run(True)
    except Exception:
        # fallback if this JAX build rejects pipeline_mode=pl.Buffered(1)
        xf = run(False)

    logits = _vocab_projection(xf.reshape(B * L_pad, D),
                               prep['w_out'], prep['b_out'])
    V_pad = prep['b_out'].shape[1]
    logits = logits.reshape(B, L_pad, V_pad)
    return logits[:, :L, :V]


# ---------------------------------------------------------------------------
# Pure-JAX reference mirroring the PyTorch module (eval mode), f32 throughout.
# ---------------------------------------------------------------------------
def reference_forward(tokens, attention_mask, params, *, num_heads, num_steps):
    B, L = tokens.shape
    D = params['embedding'].shape[1]
    H = num_heads
    hd = D // H
    neg = -1e30

    x = params['embedding'][tokens] + params['pos_embedding'][:L][None]
    causal = jnp.where(jnp.triu(jnp.ones((L, L)), k=1) > 0, neg, 0.0)
    pad = jnp.where(attention_mask.astype(jnp.float32) > 0.5, 0.0, neg)[:, None, :]
    add_mask = causal[None] + pad

    def ln(v, g, b):
        mu = v.mean(-1, keepdims=True)
        var = ((v - mu) ** 2).mean(-1, keepdims=True)
        return (v - mu) / jnp.sqrt(var + 1e-5) * g + b

    for step in range(num_steps):
        x = x + params['time_embedding'][step][None, None, :]
        qkv = x @ params['w_qkv'] + params['b_qkv'][0]
        q, k, v = qkv[..., :D], qkv[..., D:2 * D], qkv[..., 2 * D:]
        q = q.reshape(B, L, H, hd).transpose(0, 2, 1, 3)
        k = k.reshape(B, L, H, hd).transpose(0, 2, 1, 3)
        v = v.reshape(B, L, H, hd).transpose(0, 2, 1, 3)
        s = jnp.einsum('bhqd,bhkd->bhqk', q, k) / np.sqrt(hd)
        s = s + add_mask[:, None]
        p = jax.nn.softmax(s, axis=-1)
        o = jnp.einsum('bhqk,bhkd->bhqd', p, v).transpose(0, 2, 1, 3).reshape(B, L, D)
        o = o @ params['w_o'] + params['b_o'][0]
        x = ln(x + o, params['ln1_g'][0], params['ln1_b'][0])
        h = jax.nn.relu(x @ params['w_ff1'] + params['b_ff1'][0])
        f = h @ params['w_ff2'] + params['b_ff2'][0]
        x = ln(x + f, params['ln2_g'][0], params['ln2_b'][0])
    return x @ params['w_out'] + params['b_out'][0]


def init_params(key, vocab_size, d_model, dff, num_steps, max_len=1024):
    ks = jax.random.split(key, 10)
    s = 0.02
    nrm = lambda k, shape: jax.random.normal(k, shape, jnp.float32) * s
    return {
        'embedding': nrm(ks[0], (vocab_size, d_model)),
        'pos_embedding': nrm(ks[1], (max_len, d_model)),
        'time_embedding': nrm(ks[2], (num_steps, d_model)),
        'w_qkv': nrm(ks[3], (d_model, 3 * d_model)),
        'b_qkv': nrm(ks[4], (1, 3 * d_model)),
        'w_o': nrm(ks[5], (d_model, d_model)),
        'b_o': jnp.zeros((1, d_model), jnp.float32),
        'ln1_g': jnp.ones((1, d_model), jnp.float32),
        'ln1_b': jnp.zeros((1, d_model), jnp.float32),
        'w_ff1': nrm(ks[6], (d_model, dff)),
        'b_ff1': jnp.zeros((1, dff), jnp.float32),
        'w_ff2': nrm(ks[7], (dff, d_model)),
        'b_ff2': jnp.zeros((1, d_model), jnp.float32),
        'ln2_g': jnp.ones((1, d_model), jnp.float32),
        'ln2_b': jnp.zeros((1, d_model), jnp.float32),
        'w_out': nrm(ks[8], (d_model, vocab_size)),
        'b_out': jnp.zeros((1, vocab_size), jnp.float32),
    }


if __name__ == "__main__":
    vocab_size = 64
    d_model = 32          # small stand-in for 384
    num_heads = 4         # d_model % num_heads == 0
    num_steps = 3         # small stand-in for 6
    B, L = 2, 8

    key = jax.random.PRNGKey(0)
    pkey, tkey = jax.random.split(key)
    params = init_params(pkey, vocab_size, d_model, d_model, num_steps)
    prep = prepare_params(params, num_heads)   # one-time prep at "load time"

    tokens = jax.random.randint(tkey, (B, L), 0, vocab_size, dtype=jnp.int32)
    attention_mask = jnp.ones((B, L), jnp.int32)   # all valid (no padding)

    out = universal_transformer_forward(tokens, attention_mask, prep,
                                        num_heads=num_heads,
                                        num_steps=num_steps)
    out = jax.block_until_ready(out)

    ref = reference_forward(tokens, attention_mask, params,
                            num_heads=num_heads, num_steps=num_steps)
    ref = jax.block_until_ready(ref)

    assert out.shape == (B, L, vocab_size)
    assert bool(jnp.all(jnp.isfinite(out)))
    err = float(jnp.max(jnp.abs(out - ref)))
    assert err < 5e-2, err
    print("KERNEL_OK")
</pallas_src>

<mosaic_0001>
module attributes {stable_mosaic.version = 11 : i64} {
  func.func @ut_step_kernel(%arg0: i32, %arg1: i32, %arg2: memref<1x128x32xf32, #tpu.memory_space<vmem>>, %arg3: memref<1x1x128xf32, #tpu.memory_space<vmem>>, %arg4: memref<3x32xf32, #tpu.memory_space<vmem>>, %arg5: memref<32x512xbf16, #tpu.memory_space<vmem>>, %arg6: memref<32x512xbf16, #tpu.memory_space<vmem>>, %arg7: memref<32x512xbf16, #tpu.memory_space<vmem>>, %arg8: memref<1x512xf32, #tpu.memory_space<vmem>>, %arg9: memref<1x512xf32, #tpu.memory_space<vmem>>, %arg10: memref<1x512xf32, #tpu.memory_space<vmem>>, %arg11: memref<512x32xbf16, #tpu.memory_space<vmem>>, %arg12: memref<1x32xf32, #tpu.memory_space<vmem>>, %arg13: memref<1x32xf32, #tpu.memory_space<vmem>>, %arg14: memref<1x32xf32, #tpu.memory_space<vmem>>, %arg15: memref<32x32xbf16, #tpu.memory_space<vmem>>, %arg16: memref<1x32xf32, #tpu.memory_space<vmem>>, %arg17: memref<32x32xbf16, #tpu.memory_space<vmem>>, %arg18: memref<1x32xf32, #tpu.memory_space<vmem>>, %arg19: memref<1x32xf32, #tpu.memory_space<vmem>>, %arg20: memref<1x32xf32, #tpu.memory_space<vmem>>, %arg21: memref<1x128x32xf32, #tpu.memory_space<vmem>>) attributes {dimension_semantics = [#tpu.dimension_semantics<parallel>, #tpu.dimension_semantics<arbitrary>], iteration_bounds = array<i64: 2, 3>, scalar_prefetch = 0 : i64, scratch_operands = 0 : i64, tpu.core_type = #tpu.core_type<tc>, window_params = [{transform_indices = @transform_0, window_bounds = array<i64: 1, 128, 32>}, {transform_indices = @transform_1, window_bounds = array<i64: 1, 1, 128>}, {pipeline_mode = #tpu.pipeline_mode<synchronous>, transform_indices = @transform_2, window_bounds = array<i64: 3, 32>}, {pipeline_mode = #tpu.pipeline_mode<synchronous>, transform_indices = @transform_3, window_bounds = array<i64: 32, 512>}, {pipeline_mode = #tpu.pipeline_mode<synchronous>, transform_indices = @transform_4, window_bounds = array<i64: 32, 512>}, {pipeline_mode = #tpu.pipeline_mode<synchronous>, transform_indices = @transform_5, window_bounds = array<i64: 32, 512>}, {pipeline_mode = #tpu.pipeline_mode<synchronous>, transform_indices = @transform_6, window_bounds = array<i64: 1, 512>}, {pipeline_mode = #tpu.pipeline_mode<synchronous>, transform_indices = @transform_7, window_bounds = array<i64: 1, 512>}, {pipeline_mode = #tpu.pipeline_mode<synchronous>, transform_indices = @transform_8, window_bounds = array<i64: 1, 512>}, {pipeline_mode = #tpu.pipeline_mode<synchronous>, transform_indices = @transform_9, window_bounds = array<i64: 512, 32>}, {pipeline_mode = #tpu.pipeline_mode<synchronous>, transform_indices = @transform_10, window_bounds = array<i64: 1, 32>}, {pipeline_mode = #tpu.pipeline_mode<synchronous>, transform_indices = @transform_11, window_bounds = array<i64: 1, 32>}, {pipeline_mode = #tpu.pipeline_mode<synchronous>, transform_indices = @transform_12, window_bounds = array<i64: 1, 32>}, {pipeline_mode = #tpu.pipeline_mode<synchronous>, transform_indices = @transform_13, window_bounds = array<i64: 32, 32>}, {pipeline_mode = #tpu.pipeline_mode<synchronous>, transform_indices = @transform_14, window_bounds = array<i64: 1, 32>}, {pipeline_mode = #tpu.pipeline_mode<synchronous>, transform_indices = @transform_15, window_bounds = array<i64: 32, 32>}, {pipeline_mode = #tpu.pipeline_mode<synchronous>, transform_indices = @transform_16, window_bounds = array<i64: 1, 32>}, {pipeline_mode = #tpu.pipeline_mode<synchronous>, transform_indices = @transform_17, window_bounds = array<i64: 1, 32>}, {pipeline_mode = #tpu.pipeline_mode<synchronous>, transform_indices = @transform_18, window_bounds = array<i64: 1, 32>}, {transform_indices = @transform_19, window_bounds = array<i64: 1, 128, 32>}]} {
    %c0_i32 = arith.constant 0 : i32
    %0 = arith.cmpi eq, %arg1, %c0_i32 : i32
    %1 = arith.extui %0 : i1 to i32
    %c0_i32_0 = arith.constant 0 : i32
    %2 = arith.cmpi ne, %1, %c0_i32_0 : i32
    scf.if %2 {
      %c0_80 = arith.constant 0 : index
      %c0_81 = arith.constant 0 : index
      %c0_82 = arith.constant 0 : index
      %208 = vector.load %arg2[%c0_80, %c0_81, %c0_82] : memref<1x128x32xf32, #tpu.memory_space<vmem>>, vector<1x128x32xf32>
      %c0_83 = arith.constant 0 : index
      %c0_84 = arith.constant 0 : index
      %c0_85 = arith.constant 0 : index
      %209 = vector.load %arg21[%c0_83, %c0_84, %c0_85] : memref<1x128x32xf32, #tpu.memory_space<vmem>>, vector<1x128x32xf32>
      tpu.vector_store %arg21[%c0_83, %c0_84, %c0_85], %208 {strides = array<i32>} : memref<1x128x32xf32, #tpu.memory_space<vmem>>, vector<1x128x32xf32>,
    } else {
    }
    %c0 = arith.constant 0 : index
    %c0_1 = arith.constant 0 : index
    %c0_2 = arith.constant 0 : index
    %3 = vector.load %arg21[%c0, %c0_1, %c0_2] : memref<1x128x32xf32, #tpu.memory_space<vmem>>, vector<1x128x32xf32>
    %4 = vector.shape_cast %3 : vector<1x128x32xf32> to vector<128x32xf32>
    %5 = arith.index_cast %arg1 : i32 to index
    %c0_3 = arith.constant 0 : index
    %6 = vector.load %arg4[%5, %c0_3] : memref<3x32xf32, #tpu.memory_space<vmem>>, vector<1x32xf32>
    %7 = vector.broadcast %6 : vector<1x32xf32> to vector<128x32xf32>
    %8 = arith.addf %4, %7 : vector<128x32xf32>
    %c0_4 = arith.constant 0 : index
    %c0_5 = arith.constant 0 : index
    %c0_6 = arith.constant 0 : index
    %9 = vector.load %arg3[%c0_4, %c0_5, %c0_6] : memref<1x1x128xf32, #tpu.memory_space<vmem>>, vector<1x1x128xf32>
    %10 = vector.shape_cast %9 : vector<1x1x128xf32> to vector<1x128xf32>
    %cst = arith.constant 5.000000e-01 : f32
    %11 = vector.broadcast %cst : f32 to vector<1x128xf32>
    %12 = arith.cmpf olt, %10, %11 : vector<1x128xf32>
    %13 = arith.truncf %8 : vector<128x32xf32> to vector<128x32xbf16>
    %c0_7 = arith.constant 0 : index
    %c0_8 = arith.constant 0 : index
    %14 = vector.load %arg5[%c0_7, %c0_8] : memref<32x512xbf16, #tpu.memory_space<vmem>>, vector<32x512xbf16>
    %cst_9 = arith.constant dense<0.000000e+00> : vector<128x512xf32>
    %15 = tpu.matmul %13, %14, %cst_9 {dimension_numbers = #tpu.dot_dimension_numbers<[1], [0], [0], [1], [0, 0, 1, 1], [], []>} : vector<128x32xbf16>, vector<32x512xbf16>, vector<128x512xf32> -> vector<128x512xf32>
    %c0_10 = arith.constant 0 : index
    %c0_11 = arith.constant 0 : index
    %16 = vector.load %arg8[%c0_10, %c0_11] : memref<1x512xf32, #tpu.memory_space<vmem>>, vector<1x512xf32>
    %17 = vector.shape_cast %16 : vector<1x512xf32> to vector<512xf32>
    %18 = vector.shape_cast %17 : vector<512xf32> to vector<1x512xf32>
    %19 = vector.broadcast %18 : vector<1x512xf32> to vector<128x512xf32>
    %20 = arith.addf %15, %19 : vector<128x512xf32>
    %21 = arith.truncf %20 : vector<128x512xf32> to vector<128x512xbf16>
    %c0_12 = arith.constant 0 : index
    %c0_13 = arith.constant 0 : index
    %22 = vector.load %arg6[%c0_12, %c0_13] : memref<32x512xbf16, #tpu.memory_space<vmem>>, vector<32x512xbf16>
    %cst_14 = arith.constant dense<0.000000e+00> : vector<128x512xf32>
    %23 = tpu.matmul %13, %22, %cst_14 {dimension_numbers = #tpu.dot_dimension_numbers<[1], [0], [0], [1], [0, 0, 1, 1], [], []>} : vector<128x32xbf16>, vector<32x512xbf16>, vector<128x512xf32> -> vector<128x512xf32>
    %c0_15 = arith.constant 0 : index
    %c0_16 = arith.constant 0 : index
    %24 = vector.load %arg9[%c0_15, %c0_16] : memref<1x512xf32, #tpu.memory_space<vmem>>, vector<1x512xf32>
    %25 = vector.shape_cast %24 : vector<1x512xf32> to vector<512xf32>
    %26 = vector.shape_cast %25 : vector<512xf32> to vector<1x512xf32>
    %27 = vector.broadcast %26 : vector<1x512xf32> to vector<128x512xf32>
    %28 = arith.addf %23, %27 : vector<128x512xf32>
    %29 = arith.truncf %28 : vector<128x512xf32> to vector<128x512xbf16>
    %c0_17 = arith.constant 0 : index
    %c0_18 = arith.constant 0 : index
    %30 = vector.load %arg7[%c0_17, %c0_18] : memref<32x512xbf16, #tpu.memory_space<vmem>>, vector<32x512xbf16>
    %cst_19 = arith.constant dense<0.000000e+00> : vector<128x512xf32>
    %31 = tpu.matmul %13, %30, %cst_19 {dimension_numbers = #tpu.dot_dimension_numbers<[1], [0], [0], [1], [0, 0, 1, 1], [], []>} : vector<128x32xbf16>, vector<32x512xbf16>, vector<128x512xf32> -> vector<128x512xf32>
    %c0_20 = arith.constant 0 : index
    %c0_21 = arith.constant 0 : index
    %32 = vector.load %arg10[%c0_20, %c0_21] : memref<1x512xf32, #tpu.memory_space<vmem>>, vector<1x512xf32>
    %33 = vector.shape_cast %32 : vector<1x512xf32> to vector<512xf32>
    %34 = vector.shape_cast %33 : vector<512xf32> to vector<1x512xf32>
    %35 = vector.broadcast %34 : vector<1x512xf32> to vector<128x512xf32>
    %36 = arith.addf %31, %35 : vector<128x512xf32>
    %37 = arith.truncf %36 : vector<128x512xf32> to vector<128x512xbf16>
    %38 = tpu.iota {dimensions = array<i32: 0>} : vector<128x128xi32>
    %c0_i32_22 = arith.constant 0 : i32
    %39 = vector.broadcast %c0_i32_22 : i32 to vector<128x128xi32>
    %40 = arith.addi %38, %39 : vector<128x128xi32>
    %41 = tpu.iota {dimensions = array<i32: 1>} : vector<128x128xi32>
    %42 = arith.cmpi sgt, %41, %40 : vector<128x128xi32>
    %43 = vector.broadcast %12 : vector<1x128xi1> to vector<128x128xi1>
    %44 = arith.ori %42, %43 : vector<128x128xi1>
    %45 = vector.extract_strided_slice %21 {offsets = [0, 0], sizes = [128, 128], strides = [1, 1]} : vector<128x512xbf16> to vector<128x128xbf16>
    %46 = vector.extract_strided_slice %29 {offsets = [0, 0], sizes = [128, 128], strides = [1, 1]} : vector<128x512xbf16> to vector<128x128xbf16>
    %47 = vector.extract_strided_slice %37 {offsets = [0, 0], sizes = [128, 128], strides = [1, 1]} : vector<128x512xbf16> to vector<128x128xbf16>
    %cst_23 = arith.constant dense<0.000000e+00> : vector<128x128xf32>
    %48 = tpu.matmul %45, %46, %cst_23 {dimension_numbers = #tpu.dot_dimension_numbers<[1], [1], [0], [0], [0, 0, 1, 0], [], []>} : vector<128x128xbf16>, vector<128x128xbf16>, vector<128x128xf32> -> vector<128x128xf32>
    %cst_24 = arith.constant -1.000000e+30 : f32
    %49 = vector.broadcast %cst_24 : f32 to vector<128x128xf32>
    %50 = arith.select %44, %49, %48 : vector<128x128xi1>, vector<128x128xf32>
    %cst_25 = arith.constant dense<0xFF800000> : vector<128xf32>
    %51 = vector.multi_reduction <maximumf>, %50, %cst_25 [1] : vector<128x128xf32> to vector<128xf32>
    %52 = vector.shape_cast %51 : vector<128xf32> to vector<128x1xf32>
    %53 = vector.broadcast %52 : vector<128x1xf32> to vector<128x128xf32>
    %54 = arith.subf %50, %53 : vector<128x128xf32>
    %55 = math.exp %54 : vector<128x128xf32>
    %cst_26 = arith.constant dense<0.000000e+00> : vector<128xf32>
    %56 = vector.multi_reduction <add>, %55, %cst_26 [1] : vector<128x128xf32> to vector<128xf32>
    %57 = vector.shape_cast %56 : vector<128xf32> to vector<128x1xf32>
    %58 = tpu.reciprocal %57 {approx = true} : vector<128x1xf32> -> vector<128x1xf32>
    %59 = vector.broadcast %58 : vector<128x1xf32> to vector<128x128xf32>
    %60 = arith.mulf %55, %59 : vector<128x128xf32>
    %61 = arith.truncf %60 : vector<128x128xf32> to vector<128x128xbf16>
    %cst_27 = arith.constant dense<0.000000e+00> : vector<128x128xf32>
    %62 = tpu.matmul %61, %47, %cst_27 {dimension_numbers = #tpu.dot_dimension_numbers<[1], [0], [0], [1], [0, 0, 1, 1], [], []>} : vector<128x128xbf16>, vector<128x128xbf16>, vector<128x128xf32> -> vector<128x128xf32>
    %63 = arith.truncf %62 : vector<128x128xf32> to vector<128x128xbf16>
    %64 = vector.extract_strided_slice %21 {offsets = [0, 128], sizes = [128, 128], strides = [1, 1]} : vector<128x512xbf16> to vector<128x128xbf16>
    %65 = vector.extract_strided_slice %29 {offsets = [0, 128], sizes = [128, 128], strides = [1, 1]} : vector<128x512xbf16> to vector<128x128xbf16>
    %66 = vector.extract_strided_slice %37 {offsets = [0, 128], sizes = [128, 128], strides = [1, 1]} : vector<128x512xbf16> to vector<128x128xbf16>
    %cst_28 = arith.constant dense<0.000000e+00> : vector<128x128xf32>
    %67 = tpu.matmul %64, %65, %cst_28 {dimension_numbers = #tpu.dot_dimension_numbers<[1], [1], [0], [0], [0, 0, 1, 0], [], []>} : vector<128x128xbf16>, vector<128x128xbf16>, vector<128x128xf32> -> vector<128x128xf32>
    %cst_29 = arith.constant -1.000000e+30 : f32
    %68 = vector.broadcast %cst_29 : f32 to vector<128x128xf32>
    %69 = arith.select %44, %68, %67 : vector<128x128xi1>, vector<128x128xf32>
    %cst_30 = arith.constant dense<0xFF800000> : vector<128xf32>
    %70 = vector.multi_reduction <maximumf>, %69, %cst_30 [1] : vector<128x128xf32> to vector<128xf32>
    %71 = vector.shape_cast %70 : vector<128xf32> to vector<128x1xf32>
    %72 = vector.broadcast %71 : vector<128x1xf32> to vector<128x128xf32>
    %73 = arith.subf %69, %72 : vector<128x128xf32>
    %74 = math.exp %73 : vector<128x128xf32>
    %cst_31 = arith.constant dense<0.000000e+00> : vector<128xf32>
    %75 = vector.multi_reduction <add>, %74, %cst_31 [1] : vector<128x128xf32> to vector<128xf32>
    %76 = vector.shape_cast %75 : vector<128xf32> to vector<128x1xf32>
    %77 = tpu.reciprocal %76 {approx = true} : vector<128x1xf32> -> vector<128x1xf32>
    %78 = vector.broadcast %77 : vector<128x1xf32> to vector<128x128xf32>
    %79 = arith.mulf %74, %78 : vector<128x128xf32>
    %80 = arith.truncf %79 : vector<128x128xf32> to vector<128x128xbf16>
    %cst_32 = arith.constant dense<0.000000e+00> : vector<128x128xf32>
    %81 = tpu.matmul %80, %66, %cst_32 {dimension_numbers = #tpu.dot_dimension_numbers<[1], [0], [0], [1], [0, 0, 1, 1], [], []>} : vector<128x128xbf16>, vector<128x128xbf16>, vector<128x128xf32> -> vector<128x128xf32>
    %82 = arith.truncf %81 : vector<128x128xf32> to vector<128x128xbf16>
    %83 = vector.extract_strided_slice %21 {offsets = [0, 256], sizes = [128, 128], strides = [1, 1]} : vector<128x512xbf16> to vector<128x128xbf16>
    %84 = vector.extract_strided_slice %29 {offsets = [0, 256], sizes = [128, 128], strides = [1, 1]} : vector<128x512xbf16> to vector<128x128xbf16>
    %85 = vector.extract_strided_slice %37 {offsets = [0, 256], sizes = [128, 128], strides = [1, 1]} : vector<128x512xbf16> to vector<128x128xbf16>
    %cst_33 = arith.constant dense<0.000000e+00> : vector<128x128xf32>
    %86 = tpu.matmul %83, %84, %cst_33 {dimension_numbers = #tpu.dot_dimension_numbers<[1], [1], [0], [0], [0, 0, 1, 0], [], []>} : vector<128x128xbf16>, vector<128x128xbf16>, vector<128x128xf32> -> vector<128x128xf32>
    %cst_34 = arith.constant -1.000000e+30 : f32
    %87 = vector.broadcast %cst_34 : f32 to vector<128x128xf32>
    %88 = arith.select %44, %87, %86 : vector<128x128xi1>, vector<128x128xf32>
    %cst_35 = arith.constant dense<0xFF800000> : vector<128xf32>
    %89 = vector.multi_reduction <maximumf>, %88, %cst_35 [1] : vector<128x128xf32> to vector<128xf32>
    %90 = vector.shape_cast %89 : vector<128xf32> to vector<128x1xf32>
    %91 = vector.broadcast %90 : vector<128x1xf32> to vector<128x128xf32>
    %92 = arith.subf %88, %91 : vector<128x128xf32>
    %93 = math.exp %92 : vector<128x128xf32>
    %cst_36 = arith.constant dense<0.000000e+00> : vector<128xf32>
    %94 = vector.multi_reduction <add>, %93, %cst_36 [1] : vector<128x128xf32> to vector<128xf32>
    %95 = vector.shape_cast %94 : vector<128xf32> to vector<128x1xf32>
    %96 = tpu.reciprocal %95 {approx = true} : vector<128x1xf32> -> vector<128x1xf32>
    %97 = vector.broadcast %96 : vector<128x1xf32> to vector<128x128xf32>
    %98 = arith.mulf %93, %97 : vector<128x128xf32>
    %99 = arith.truncf %98 : vector<128x128xf32> to vector<128x128xbf16>
    %cst_37 = arith.constant dense<0.000000e+00> : vector<128x128xf32>
    %100 = tpu.matmul %99, %85, %cst_37 {dimension_numbers = #tpu.dot_dimension_numbers<[1], [0], [0], [1], [0, 0, 1, 1], [], []>} : vector<128x128xbf16>, vector<128x128xbf16>, vector<128x128xf32> -> vector<128x128xf32>
    %101 = arith.truncf %100 : vector<128x128xf32> to vector<128x128xbf16>
    %102 = vector.extract_strided_slice %21 {offsets = [0, 384], sizes = [128, 128], strides = [1, 1]} : vector<128x512xbf16> to vector<128x128xbf16>
    %103 = vector.extract_strided_slice %29 {offsets = [0, 384], sizes = [128, 128], strides = [1, 1]} : vector<128x512xbf16> to vector<128x128xbf16>
    %104 = vector.extract_strided_slice %37 {offsets = [0, 384], sizes = [128, 128], strides = [1, 1]} : vector<128x512xbf16> to vector<128x128xbf16>
    %cst_38 = arith.constant dense<0.000000e+00> : vector<128x128xf32>
    %105 = tpu.matmul %102, %103, %cst_38 {dimension_numbers = #tpu.dot_dimension_numbers<[1], [1], [0], [0], [0, 0, 1, 0], [], []>} : vector<128x128xbf16>, vector<128x128xbf16>, vector<128x128xf32> -> vector<128x128xf32>
    %cst_39 = arith.constant -1.000000e+30 : f32
    %106 = vector.broadcast %cst_39 : f32 to vector<128x128xf32>
    %107 = arith.select %44, %106, %105 : vector<128x128xi1>, vector<128x128xf32>
    %cst_40 = arith.constant dense<0xFF800000> : vector<128xf32>
    %108 = vector.multi_reduction <maximumf>, %107, %cst_40 [1] : vector<128x128xf32> to vector<128xf32>
    %109 = vector.shape_cast %108 : vector<128xf32> to vector<128x1xf32>
    %110 = vector.broadcast %109 : vector<128x1xf32> to vector<128x128xf32>
    %111 = arith.subf %107, %110 : vector<128x128xf32>
    %112 = math.exp %111 : vector<128x128xf32>
    %cst_41 = arith.constant dense<0.000000e+00> : vector<128xf32>
    %113 = vector.multi_reduction <add>, %112, %cst_41 [1] : vector<128x128xf32> to vector<128xf32>
    %114 = vector.shape_cast %113 : vector<128xf32> to vector<128x1xf32>
    %115 = tpu.reciprocal %114 {approx = true} : vector<128x1xf32> -> vector<128x1xf32>
    %116 = vector.broadcast %115 : vector<128x1xf32> to vector<128x128xf32>
    %117 = arith.mulf %112, %116 : vector<128x128xf32>
    %118 = arith.truncf %117 : vector<128x128xf32> to vector<128x128xbf16>
    %cst_42 = arith.constant dense<0.000000e+00> : vector<128x128xf32>
    %119 = tpu.matmul %118, %104, %cst_42 {dimension_numbers = #tpu.dot_dimension_numbers<[1], [0], [0], [1], [0, 0, 1, 1], [], []>} : vector<128x128xbf16>, vector<128x128xbf16>, vector<128x128xf32> -> vector<128x128xf32>
    %120 = arith.truncf %119 : vector<128x128xf32> to vector<128x128xbf16>
    %121 = tpu.concatenate %63, %82, %101, %120 in 1 : vector<128x128xbf16>, vector<128x128xbf16>, vector<128x128xbf16>, vector<128x128xbf16> -> vector<128x512xbf16>
    %c0_43 = arith.constant 0 : index
    %c0_44 = arith.constant 0 : index
    %122 = vector.load %arg11[%c0_43, %c0_44] : memref<512x32xbf16, #tpu.memory_space<vmem>>, vector<512x32xbf16>
    %cst_45 = arith.constant dense<0.000000e+00> : vector<128x32xf32>
    %123 = tpu.matmul %121, %122, %cst_45 {dimension_numbers = #tpu.dot_dimension_numbers<[1], [0], [0], [1], [0, 0, 1, 1], [], []>} : vector<128x512xbf16>, vector<512x32xbf16>, vector<128x32xf32> -> vector<128x32xf32>
    %c0_46 = arith.constant 0 : index
    %c0_47 = arith.constant 0 : index
    %124 = vector.load %arg12[%c0_46, %c0_47] : memref<1x32xf32, #tpu.memory_space<vmem>>, vector<1x32xf32>
    %125 = vector.shape_cast %124 : vector<1x32xf32> to vector<32xf32>
    %126 = vector.shape_cast %125 : vector<32xf32> to vector<1x32xf32>
    %127 = vector.broadcast %126 : vector<1x32xf32> to vector<128x32xf32>
    %128 = arith.addf %123, %127 : vector<128x32xf32>
    %129 = arith.addf %8, %128 : vector<128x32xf32>
    %c0_48 = arith.constant 0 : index
    %c0_49 = arith.constant 0 : index
    %130 = vector.load %arg13[%c0_48, %c0_49] : memref<1x32xf32, #tpu.memory_space<vmem>>, vector<1x32xf32>
    %131 = vector.shape_cast %130 : vector<1x32xf32> to vector<32xf32>
    %c0_50 = arith.constant 0 : index
    %c0_51 = arith.constant 0 : index
    %132 = vector.load %arg14[%c0_50, %c0_51] : memref<1x32xf32, #tpu.memory_space<vmem>>, vector<1x32xf32>
    %133 = vector.shape_cast %132 : vector<1x32xf32> to vector<32xf32>
    %cst_52 = arith.constant dense<0.000000e+00> : vector<128xf32>
    %134 = vector.multi_reduction <add>, %129, %cst_52 [1] : vector<128x32xf32> to vector<128xf32>
    %135 = vector.shape_cast %134 : vector<128xf32> to vector<128x1xf32>
    %cst_53 = arith.constant 3.200000e+01 : f32
    %136 = vector.broadcast %cst_53 : f32 to vector<128x1xf32>
    %137 = arith.divf %135, %136 : vector<128x1xf32>
    %138 = vector.broadcast %137 : vector<128x1xf32> to vector<128x32xf32>
    %139 = arith.subf %129, %138 : vector<128x32xf32>
    %140 = arith.mulf %139, %139 : vector<128x32xf32>
    %cst_54 = arith.constant dense<0.000000e+00> : vector<128xf32>
    %141 = vector.multi_reduction <add>, %140, %cst_54 [1] : vector<128x32xf32> to vector<128xf32>
    %142 = vector.shape_cast %141 : vector<128xf32> to vector<128x1xf32>
    %cst_55 = arith.constant 3.200000e+01 : f32
    %143 = vector.broadcast %cst_55 : f32 to vector<128x1xf32>
    %144 = arith.divf %142, %143 : vector<128x1xf32>
    %145 = vector.broadcast %137 : vector<128x1xf32> to vector<128x32xf32>
    %146 = arith.subf %129, %145 : vector<128x32xf32>
    %cst_56 = arith.constant 9.99999974E-6 : f32
    %147 = vector.broadcast %cst_56 : f32 to vector<128x1xf32>
    %148 = arith.addf %144, %147 : vector<128x1xf32>
    %149 = math.rsqrt %148 : vector<128x1xf32>
    %150 = vector.broadcast %149 : vector<128x1xf32> to vector<128x32xf32>
    %151 = arith.mulf %146, %150 : vector<128x32xf32>
    %152 = vector.shape_cast %131 : vector<32xf32> to vector<1x32xf32>
    %153 = vector.broadcast %152 : vector<1x32xf32> to vector<128x32xf32>
    %154 = arith.mulf %151, %153 : vector<128x32xf32>
    %155 = vector.shape_cast %133 : vector<32xf32> to vector<1x32xf32>
    %156 = vector.broadcast %155 : vector<1x32xf32> to vector<128x32xf32>
    %157 = arith.addf %154, %156 : vector<128x32xf32>
    %158 = arith.truncf %157 : vector<128x32xf32> to vector<128x32xbf16>
    %c0_57 = arith.constant 0 : index
    %c0_58 = arith.constant 0 : index
    %159 = vector.load %arg15[%c0_57, %c0_58] : memref<32x32xbf16, #tpu.memory_space<vmem>>, vector<32x32xbf16>
    %cst_59 = arith.constant dense<0.000000e+00> : vector<128x32xf32>
    %160 = tpu.matmul %158, %159, %cst_59 {dimension_numbers = #tpu.dot_dimension_numbers<[1], [0], [0], [1], [0, 0, 1, 1], [], []>} : vector<128x32xbf16>, vector<32x32xbf16>, vector<128x32xf32> -> vector<128x32xf32>
    %c0_60 = arith.constant 0 : index
    %c0_61 = arith.constant 0 : index
    %161 = vector.load %arg16[%c0_60, %c0_61] : memref<1x32xf32, #tpu.memory_space<vmem>>, vector<1x32xf32>
    %162 = vector.shape_cast %161 : vector<1x32xf32> to vector<32xf32>
    %163 = vector.shape_cast %162 : vector<32xf32> to vector<1x32xf32>
    %164 = vector.broadcast %163 : vector<1x32xf32> to vector<128x32xf32>
    %165 = arith.addf %160, %164 : vector<128x32xf32>
    %cst_62 = arith.constant 0.000000e+00 : f32
    %166 = vector.broadcast %cst_62 : f32 to vector<128x32xf32>
    %167 = arith.maximumf %165, %166 : vector<128x32xf32>
    %168 = arith.truncf %167 : vector<128x32xf32> to vector<128x32xbf16>
    %c0_63 = arith.constant 0 : index
    %c0_64 = arith.constant 0 : index
    %169 = vector.load %arg17[%c0_63, %c0_64] : memref<32x32xbf16, #tpu.memory_space<vmem>>, vector<32x32xbf16>
    %cst_65 = arith.constant dense<0.000000e+00> : vector<128x32xf32>
    %170 = tpu.matmul %168, %169, %cst_65 {dimension_numbers = #tpu.dot_dimension_numbers<[1], [0], [0], [1], [0, 0, 1, 1], [], []>} : vector<128x32xbf16>, vector<32x32xbf16>, vector<128x32xf32> -> vector<128x32xf32>
    %c0_66 = arith.constant 0 : index
    %c0_67 = arith.constant 0 : index
    %171 = vector.load %arg18[%c0_66, %c0_67] : memref<1x32xf32, #tpu.memory_space<vmem>>, vector<1x32xf32>
    %172 = vector.shape_cast %171 : vector<1x32xf32> to vector<32xf32>
    %173 = vector.shape_cast %172 : vector<32xf32> to vector<1x32xf32>
    %174 = vector.broadcast %173 : vector<1x32xf32> to vector<128x32xf32>
    %175 = arith.addf %170, %174 : vector<128x32xf32>
    %176 = arith.addf %157, %175 : vector<128x32xf32>
    %c0_68 = arith.constant 0 : index
    %c0_69 = arith.constant 0 : index
    %177 = vector.load %arg19[%c0_68, %c0_69] : memref<1x32xf32, #tpu.memory_space<vmem>>, vector<1x32xf32>
    %178 = vector.shape_cast %177 : vector<1x32xf32> to vector<32xf32>
    %c0_70 = arith.constant 0 : index
    %c0_71 = arith.constant 0 : index
    %179 = vector.load %arg20[%c0_70, %c0_71] : memref<1x32xf32, #tpu.memory_space<vmem>>, vector<1x32xf32>
    %180 = vector.shape_cast %179 : vector<1x32xf32> to vector<32xf32>
    %cst_72 = arith.constant dense<0.000000e+00> : vector<128xf32>
    %181 = vector.multi_reduction <add>, %176, %cst_72 [1] : vector<128x32xf32> to vector<128xf32>
    %182 = vector.shape_cast %181 : vector<128xf32> to vector<128x1xf32>
    %cst_73 = arith.constant 3.200000e+01 : f32
    %183 = vector.broadcast %cst_73 : f32 to vector<128x1xf32>
    %184 = arith.divf %182, %183 : vector<128x1xf32>
    %185 = vector.broadcast %184 : vector<128x1xf32> to vector<128x32xf32>
    %186 = arith.subf %176, %185 : vector<128x32xf32>
    %187 = arith.mulf %186, %186 : vector<128x32xf32>
    %cst_74 = arith.constant dense<0.000000e+00> : vector<128xf32>
    %188 = vector.multi_reduction <add>, %187, %cst_74 [1] : vector<128x32xf32> to vector<128xf32>
    %189 = vector.shape_cast %188 : vector<128xf32> to vector<128x1xf32>
    %cst_75 = arith.constant 3.200000e+01 : f32
    %190 = vector.broadcast %cst_75 : f32 to vector<128x1xf32>
    %191 = arith.divf %189, %190 : vector<128x1xf32>
    %192 = vector.broadcast %184 : vector<128x1xf32> to vector<128x32xf32>
    %193 = arith.subf %176, %192 : vector<128x32xf32>
    %cst_76 = arith.constant 9.99999974E-6 : f32
    %194 = vector.broadcast %cst_76 : f32 to vector<128x1xf32>
    %195 = arith.addf %191, %194 : vector<128x1xf32>
    %196 = math.rsqrt %195 : vector<128x1xf32>
    %197 = vector.broadcast %196 : vector<128x1xf32> to vector<128x32xf32>
    %198 = arith.mulf %193, %197 : vector<128x32xf32>
    %199 = vector.shape_cast %178 : vector<32xf32> to vector<1x32xf32>
    %200 = vector.broadcast %199 : vector<1x32xf32> to vector<128x32xf32>
    %201 = arith.mulf %198, %200 : vector<128x32xf32>
    %202 = vector.shape_cast %180 : vector<32xf32> to vector<1x32xf32>
    %203 = vector.broadcast %202 : vector<1x32xf32> to vector<128x32xf32>
    %204 = arith.addf %201, %203 : vector<128x32xf32>
    %c0_77 = arith.constant 0 : index
    %c0_78 = arith.constant 0 : index
    %c0_79 = arith.constant 0 : index
    %205 = vector.load %arg21[%c0_77, %c0_78, %c0_79] : memref<1x128x32xf32, #tpu.memory_space<vmem>>, vector<1x128x32xf32>
    %206 = vector.shape_cast %205 : vector<1x128x32xf32> to vector<128x32xf32>
    %207 = vector.shape_cast %204 : vector<128x32xf32> to vector<1x128x32xf32>
    tpu.vector_store %arg21[%c0_77, %c0_78, %c0_79], %207 {strides = array<i32>} : memref<1x128x32xf32, #tpu.memory_space<vmem>>, vector<1x128x32xf32>,
    return
  }
  func.func @transform_0(%arg0: i32, %arg1: i32) -> (i32, i32, i32) {
    %c0_i32 = arith.constant 0 : i32
    %c0_i32_0 = arith.constant 0 : i32
    %c0_i32_1 = arith.constant 0 : i32
    return %arg0, %c0_i32, %c0_i32_0 : i32, i32, i32
  }
  func.func @transform_1(%arg0: i32, %arg1: i32) -> (i32, i32, i32) {
    %c0_i32 = arith.constant 0 : i32
    %c0_i32_0 = arith.constant 0 : i32
    %c0_i32_1 = arith.constant 0 : i32
    return %arg0, %c0_i32, %c0_i32_0 : i32, i32, i32
  }
  func.func @transform_2(%arg0: i32, %arg1: i32) -> (i32, i32) {
    %c0_i32 = arith.constant 0 : i32
    %c0_i32_0 = arith.constant 0 : i32
    %c0_i32_1 = arith.constant 0 : i32
    return %c0_i32, %c0_i32_0 : i32, i32
  }
  func.func @transform_3(%arg0: i32, %arg1: i32) -> (i32, i32) {
    %c0_i32 = arith.constant 0 : i32
    %c0_i32_0 = arith.constant 0 : i32
    %c0_i32_1 = arith.constant 0 : i32
    return %c0_i32, %c0_i32_0 : i32, i32
  }
  func.func @transform_4(%arg0: i32, %arg1: i32) -> (i32, i32) {
    %c0_i32 = arith.constant 0 : i32
    %c0_i32_0 = arith.constant 0 : i32
    %c0_i32_1 = arith.constant 0 : i32
    return %c0_i32, %c0_i32_0 : i32, i32
  }
  func.func @transform_5(%arg0: i32, %arg1: i32) -> (i32, i32) {
    %c0_i32 = arith.constant 0 : i32
    %c0_i32_0 = arith.constant 0 : i32
    %c0_i32_1 = arith.constant 0 : i32
    return %c0_i32, %c0_i32_0 : i32, i32
  }
  func.func @transform_6(%arg0: i32, %arg1: i32) -> (i32, i32) {
    %c0_i32 = arith.constant 0 : i32
    %c0_i32_0 = arith.constant 0 : i32
    %c0_i32_1 = arith.constant 0 : i32
    return %c0_i32, %c0_i32_0 : i32, i32
  }
  func.func @transform_7(%arg0: i32, %arg1: i32) -> (i32, i32) {
    %c0_i32 = arith.constant 0 : i32
    %c0_i32_0 = arith.constant 0 : i32
    %c0_i32_1 = arith.constant 0 : i32
    return %c0_i32, %c0_i32_0 : i32, i32
  }
  func.func @transform_8(%arg0: i32, %arg1: i32) -> (i32, i32) {
    %c0_i32 = arith.constant 0 : i32
    %c0_i32_0 = arith.constant 0 : i32
    %c0_i32_1 = arith.constant 0 : i32
    return %c0_i32, %c0_i32_0 : i32, i32
  }
  func.func @transform_9(%arg0: i32, %arg1: i32) -> (i32, i32) {
    %c0_i32 = arith.constant 0 : i32
    %c0_i32_0 = arith.constant 0 : i32
    %c0_i32_1 = arith.constant 0 : i32
    return %c0_i32, %c0_i32_0 : i32, i32
  }
  func.func @transform_10(%arg0: i32, %arg1: i32) -> (i32, i32) {
    %c0_i32 = arith.constant 0 : i32
    %c0_i32_0 = arith.constant 0 : i32
    %c0_i32_1 = arith.constant 0 : i32
    return %c0_i32, %c0_i32_0 : i32, i32
  }
  func.func @transform_11(%arg0: i32, %arg1: i32) -> (i32, i32) {
    %c0_i32 = arith.constant 0 : i32
    %c0_i32_0 = arith.constant 0 : i32
    %c0_i32_1 = arith.constant 0 : i32
    return %c0_i32, %c0_i32_0 : i32, i32
  }
  func.func @transform_12(%arg0: i32, %arg1: i32) -> (i32, i32) {
    %c0_i32 = arith.constant 0 : i32
    %c0_i32_0 = arith.constant 0 : i32
    %c0_i32_1 = arith.constant 0 : i32
    return %c0_i32, %c0_i32_0 : i32, i32
  }
  func.func @transform_13(%arg0: i32, %arg1: i32) -> (i32, i32) {
    %c0_i32 = arith.constant 0 : i32
    %c0_i32_0 = arith.constant 0 : i32
    %c0_i32_1 = arith.constant 0 : i32
    return %c0_i32, %c0_i32_0 : i32, i32
  }
  func.func @transform_14(%arg0: i32, %arg1: i32) -> (i32, i32) {
    %c0_i32 = arith.constant 0 : i32
    %c0_i32_0 = arith.constant 0 : i32
    %c0_i32_1 = arith.constant 0 : i32
    return %c0_i32, %c0_i32_0 : i32, i32
  }
  func.func @transform_15(%arg0: i32, %arg1: i32) -> (i32, i32) {
    %c0_i32 = arith.constant 0 : i32
    %c0_i32_0 = arith.constant 0 : i32
    %c0_i32_1 = arith.constant 0 : i32
    return %c0_i32, %c0_i32_0 : i32, i32
  }
  func.func @transform_16(%arg0: i32, %arg1: i32) -> (i32, i32) {
    %c0_i32 = arith.constant 0 : i32
    %c0_i32_0 = arith.constant 0 : i32
    %c0_i32_1 = arith.constant 0 : i32
    return %c0_i32, %c0_i32_0 : i32, i32
  }
  func.func @transform_17(%arg0: i32, %arg1: i32) -> (i32, i32) {
    %c0_i32 = arith.constant 0 : i32
    %c0_i32_0 = arith.constant 0 : i32
    %c0_i32_1 = arith.constant 0 : i32
    return %c0_i32, %c0_i32_0 : i32, i32
  }
  func.func @transform_18(%arg0: i32, %arg1: i32) -> (i32, i32) {
    %c0_i32 = arith.constant 0 : i32
    %c0_i32_0 = arith.constant 0 : i32
    %c0_i32_1 = arith.constant 0 : i32
    return %c0_i32, %c0_i32_0 : i32, i32
  }
  func.func @transform_19(%arg0: i32, %arg1: i32) -> (i32, i32, i32) {
    %c0_i32 = arith.constant 0 : i32
    %c0_i32_0 = arith.constant 0 : i32
    %c0_i32_1 = arith.constant 0 : i32
    return %arg0, %c0_i32, %c0_i32_0 : i32, i32, i32
  }
}

module attributes {stable_mosaic.version = 11 : i64} {
  func.func @ut_step_kernel(%arg0: i32, %arg1: i32, %arg2: memref<1x128x32xf32, #tpu.memory_space<vmem>>, %arg3: memref<1x1x128xf32, #tpu.memory_space<vmem>>, %arg4: memref<3x32xf32, #tpu.memory_space<vmem>>, %arg5: memref<32x512xbf16, #tpu.memory_space<vmem>>, %arg6: memref<32x512xbf16, #tpu.memory_space<vmem>>, %arg7: memref<32x512xbf16, #tpu.memory_space<vmem>>, %arg8: memref<1x512xf32, #tpu.memory_space<vmem>>, %arg9: memref<1x512xf32, #tpu.memory_space<vmem>>, %arg10: memref<1x512xf32, #tpu.memory_space<vmem>>, %arg11: memref<512x32xbf16, #tpu.memory_space<vmem>>, %arg12: memref<1x32xf32, #tpu.memory_space<vmem>>, %arg13: memref<1x32xf32, #tpu.memory_space<vmem>>, %arg14: memref<1x32xf32, #tpu.memory_space<vmem>>, %arg15: memref<32x32xbf16, #tpu.memory_space<vmem>>, %arg16: memref<1x32xf32, #tpu.memory_space<vmem>>, %arg17: memref<32x32xbf16, #tpu.memory_space<vmem>>, %arg18: memref<1x32xf32, #tpu.memory_space<vmem>>, %arg19: memref<1x32xf32, #tpu.memory_space<vmem>>, %arg20: memref<1x32xf32, #tpu.memory_space<vmem>>, %arg21: memref<1x128x32xf32, #tpu.memory_space<vmem>>) attributes {dimension_semantics = [#tpu.dimension_semantics<parallel>, #tpu.dimension_semantics<arbitrary>], iteration_bounds = array<i64: 2, 3>, scalar_prefetch = 0 : i64, scratch_operands = 0 : i64, tpu.core_type = #tpu.core_type<tc>, window_params = [{transform_indices = @transform_0, window_bounds = array<i64: 1, 128, 32>}, {transform_indices = @transform_1, window_bounds = array<i64: 1, 1, 128>}, {pipeline_mode = #tpu.pipeline_mode<synchronous>, transform_indices = @transform_2, window_bounds = array<i64: 3, 32>}, {pipeline_mode = #tpu.pipeline_mode<synchronous>, transform_indices = @transform_3, window_bounds = array<i64: 32, 512>}, {pipeline_mode = #tpu.pipeline_mode<synchronous>, transform_indices = @transform_4, window_bounds = array<i64: 32, 512>}, {pipeline_mode = #tpu.pipeline_mode<synchronous>, transform_indices = @transform_5, window_bounds = array<i64: 32, 512>}, {pipeline_mode = #tpu.pipeline_mode<synchronous>, transform_indices = @transform_6, window_bounds = array<i64: 1, 512>}, {pipeline_mode = #tpu.pipeline_mode<synchronous>, transform_indices = @transform_7, window_bounds = array<i64: 1, 512>}, {pipeline_mode = #tpu.pipeline_mode<synchronous>, transform_indices = @transform_8, window_bounds = array<i64: 1, 512>}, {pipeline_mode = #tpu.pipeline_mode<synchronous>, transform_indices = @transform_9, window_bounds = array<i64: 512, 32>}, {pipeline_mode = #tpu.pipeline_mode<synchronous>, transform_indices = @transform_10, window_bounds = array<i64: 1, 32>}, {pipeline_mode = #tpu.pipeline_mode<synchronous>, transform_indices = @transform_11, window_bounds = array<i64: 1, 32>}, {pipeline_mode = #tpu.pipeline_mode<synchronous>, transform_indices = @transform_12, window_bounds = array<i64: 1, 32>}, {pipeline_mode = #tpu.pipeline_mode<synchronous>, transform_indices = @transform_13, window_bounds = array<i64: 32, 32>}, {pipeline_mode = #tpu.pipeline_mode<synchronous>, transform_indices = @transform_14, window_bounds = array<i64: 1, 32>}, {pipeline_mode = #tpu.pipeline_mode<synchronous>, transform_indices = @transform_15, window_bounds = array<i64: 32, 32>}, {pipeline_mode = #tpu.pipeline_mode<synchronous>, transform_indices = @transform_16, window_bounds = array<i64: 1, 32>}, {pipeline_mode = #tpu.pipeline_mode<synchronous>, transform_indices = @transform_17, window_bounds = array<i64: 1, 32>}, {pipeline_mode = #tpu.pipeline_mode<synchronous>, transform_indices = @transform_18, window_bounds = array<i64: 1, 32>}, {transform_indices = @transform_19, window_bounds = array<i64: 1, 128, 32>}]} {
    %c0_i32 = arith.constant 0 : i32
    %0 = arith.cmpi eq, %arg1, %c0_i32 : i32
    %1 = arith.extui %0 : i1 to i32
    %c0_i32_0 = arith.constant 0 : i32
    %2 = arith.cmpi ne, %1, %c0_i32_0 : i32
    scf.if %2 {
      %c0_80 = arith.constant 0 : index
      %c0_81 = arith.constant 0 : index
      %c0_82 = arith.constant 0 : index
      %208 = vector.load %arg2[%c0_80, %c0_81, %c0_82] : memref<1x128x32xf32, #tpu.memory_space<vmem>>, vector<1x128x32xf32>
      %c0_83 = arith.constant 0 : index
      %c0_84 = arith.constant 0 : index
      %c0_85 = arith.constant 0 : index
      %209 = vector.load %arg21[%c0_83, %c0_84, %c0_85] : memref<1x128x32xf32, #tpu.memory_space<vmem>>, vector<1x128x32xf32>
      tpu.vector_store %arg21[%c0_83, %c0_84, %c0_85], %208 {strides = array<i32>} : memref<1x128x32xf32, #tpu.memory_space<vmem>>, vector<1x128x32xf32>,
    } else {
    }
    %c0 = arith.constant 0 : index
    %c0_1 = arith.constant 0 : index
    %c0_2 = arith.constant 0 : index
    %3 = vector.load %arg21[%c0, %c0_1, %c0_2] : memref<1x128x32xf32, #tpu.memory_space<vmem>>, vector<1x128x32xf32>
    %4 = vector.shape_cast %3 : vector<1x128x32xf32> to vector<128x32xf32>
    %5 = arith.index_cast %arg1 : i32 to index
    %c0_3 = arith.constant 0 : index
    %6 = vector.load %arg4[%5, %c0_3] : memref<3x32xf32, #tpu.memory_space<vmem>>, vector<1x32xf32>
    %7 = vector.broadcast %6 : vector<1x32xf32> to vector<128x32xf32>
    %8 = arith.addf %4, %7 : vector<128x32xf32>
    %c0_4 = arith.constant 0 : index
    %c0_5 = arith.constant 0 : index
    %c0_6 = arith.constant 0 : index
    %9 = vector.load %arg3[%c0_4, %c0_5, %c0_6] : memref<1x1x128xf32, #tpu.memory_space<vmem>>, vector<1x1x128xf32>
    %10 = vector.shape_cast %9 : vector<1x1x128xf32> to vector<1x128xf32>
    %cst = arith.constant 5.000000e-01 : f32
    %11 = vector.broadcast %cst : f32 to vector<1x128xf32>
    %12 = arith.cmpf olt, %10, %11 : vector<1x128xf32>
    %13 = arith.truncf %8 : vector<128x32xf32> to vector<128x32xbf16>
    %c0_7 = arith.constant 0 : index
    %c0_8 = arith.constant 0 : index
    %14 = vector.load %arg5[%c0_7, %c0_8] : memref<32x512xbf16, #tpu.memory_space<vmem>>, vector<32x512xbf16>
    %cst_9 = arith.constant dense<0.000000e+00> : vector<128x512xf32>
    %15 = tpu.matmul %13, %14, %cst_9 {dimension_numbers = #tpu.dot_dimension_numbers<[1], [0], [0], [1], [0, 0, 1, 1], [], []>} : vector<128x32xbf16>, vector<32x512xbf16>, vector<128x512xf32> -> vector<128x512xf32>
    %c0_10 = arith.constant 0 : index
    %c0_11 = arith.constant 0 : index
    %16 = vector.load %arg8[%c0_10, %c0_11] : memref<1x512xf32, #tpu.memory_space<vmem>>, vector<1x512xf32>
    %17 = vector.shape_cast %16 : vector<1x512xf32> to vector<512xf32>
    %18 = vector.shape_cast %17 : vector<512xf32> to vector<1x512xf32>
    %19 = vector.broadcast %18 : vector<1x512xf32> to vector<128x512xf32>
    %20 = arith.addf %15, %19 : vector<128x512xf32>
    %21 = arith.truncf %20 : vector<128x512xf32> to vector<128x512xbf16>
    %c0_12 = arith.constant 0 : index
    %c0_13 = arith.constant 0 : index
    %22 = vector.load %arg6[%c0_12, %c0_13] : memref<32x512xbf16, #tpu.memory_space<vmem>>, vector<32x512xbf16>
    %cst_14 = arith.constant dense<0.000000e+00> : vector<128x512xf32>
    %23 = tpu.matmul %13, %22, %cst_14 {dimension_numbers = #tpu.dot_dimension_numbers<[1], [0], [0], [1], [0, 0, 1, 1], [], []>} : vector<128x32xbf16>, vector<32x512xbf16>, vector<128x512xf32> -> vector<128x512xf32>
    %c0_15 = arith.constant 0 : index
    %c0_16 = arith.constant 0 : index
    %24 = vector.load %arg9[%c0_15, %c0_16] : memref<1x512xf32, #tpu.memory_space<vmem>>, vector<1x512xf32>
    %25 = vector.shape_cast %24 : vector<1x512xf32> to vector<512xf32>
    %26 = vector.shape_cast %25 : vector<512xf32> to vector<1x512xf32>
    %27 = vector.broadcast %26 : vector<1x512xf32> to vector<128x512xf32>
    %28 = arith.addf %23, %27 : vector<128x512xf32>
    %29 = arith.truncf %28 : vector<128x512xf32> to vector<128x512xbf16>
    %c0_17 = arith.constant 0 : index
    %c0_18 = arith.constant 0 : index
    %30 = vector.load %arg7[%c0_17, %c0_18] : memref<32x512xbf16, #tpu.memory_space<vmem>>, vector<32x512xbf16>
    %cst_19 = arith.constant dense<0.000000e+00> : vector<128x512xf32>
    %31 = tpu.matmul %13, %30, %cst_19 {dimension_numbers = #tpu.dot_dimension_numbers<[1], [0], [0], [1], [0, 0, 1, 1], [], []>} : vector<128x32xbf16>, vector<32x512xbf16>, vector<128x512xf32> -> vector<128x512xf32>
    %c0_20 = arith.constant 0 : index
    %c0_21 = arith.constant 0 : index
    %32 = vector.load %arg10[%c0_20, %c0_21] : memref<1x512xf32, #tpu.memory_space<vmem>>, vector<1x512xf32>
    %33 = vector.shape_cast %32 : vector<1x512xf32> to vector<512xf32>
    %34 = vector.shape_cast %33 : vector<512xf32> to vector<1x512xf32>
    %35 = vector.broadcast %34 : vector<1x512xf32> to vector<128x512xf32>
    %36 = arith.addf %31, %35 : vector<128x512xf32>
    %37 = arith.truncf %36 : vector<128x512xf32> to vector<128x512xbf16>
    %38 = tpu.iota {dimensions = array<i32: 0>} : vector<128x128xi32>
    %c0_i32_22 = arith.constant 0 : i32
    %39 = vector.broadcast %c0_i32_22 : i32 to vector<128x128xi32>
    %40 = arith.addi %38, %39 : vector<128x128xi32>
    %41 = tpu.iota {dimensions = array<i32: 1>} : vector<128x128xi32>
    %42 = arith.cmpi sgt, %41, %40 : vector<128x128xi32>
    %43 = vector.broadcast %12 : vector<1x128xi1> to vector<128x128xi1>
    %44 = arith.ori %42, %43 : vector<128x128xi1>
    %45 = vector.extract_strided_slice %21 {offsets = [0, 0], sizes = [128, 128], strides = [1, 1]} : vector<128x512xbf16> to vector<128x128xbf16>
    %46 = vector.extract_strided_slice %29 {offsets = [0, 0], sizes = [128, 128], strides = [1, 1]} : vector<128x512xbf16> to vector<128x128xbf16>
    %47 = vector.extract_strided_slice %37 {offsets = [0, 0], sizes = [128, 128], strides = [1, 1]} : vector<128x512xbf16> to vector<128x128xbf16>
    %cst_23 = arith.constant dense<0.000000e+00> : vector<128x128xf32>
    %48 = tpu.matmul %45, %46, %cst_23 {dimension_numbers = #tpu.dot_dimension_numbers<[1], [1], [0], [0], [0, 0, 1, 0], [], []>} : vector<128x128xbf16>, vector<128x128xbf16>, vector<128x128xf32> -> vector<128x128xf32>
    %cst_24 = arith.constant -1.000000e+30 : f32
    %49 = vector.broadcast %cst_24 : f32 to vector<128x128xf32>
    %50 = arith.select %44, %49, %48 : vector<128x128xi1>, vector<128x128xf32>
    %cst_25 = arith.constant dense<0xFF800000> : vector<128xf32>
    %51 = vector.multi_reduction <maximumf>, %50, %cst_25 [1] : vector<128x128xf32> to vector<128xf32>
    %52 = vector.shape_cast %51 : vector<128xf32> to vector<128x1xf32>
    %53 = vector.broadcast %52 : vector<128x1xf32> to vector<128x128xf32>
    %54 = arith.subf %50, %53 : vector<128x128xf32>
    %55 = math.exp %54 : vector<128x128xf32>
    %cst_26 = arith.constant dense<0.000000e+00> : vector<128xf32>
    %56 = vector.multi_reduction <add>, %55, %cst_26 [1] : vector<128x128xf32> to vector<128xf32>
    %57 = vector.shape_cast %56 : vector<128xf32> to vector<128x1xf32>
    %58 = tpu.reciprocal %57 {approx = true} : vector<128x1xf32> -> vector<128x1xf32>
    %59 = vector.broadcast %58 : vector<128x1xf32> to vector<128x128xf32>
    %60 = arith.mulf %55, %59 : vector<128x128xf32>
    %61 = arith.truncf %60 : vector<128x128xf32> to vector<128x128xbf16>
    %cst_27 = arith.constant dense<0.000000e+00> : vector<128x128xf32>
    %62 = tpu.matmul %61, %47, %cst_27 {dimension_numbers = #tpu.dot_dimension_numbers<[1], [0], [0], [1], [0, 0, 1, 1], [], []>} : vector<128x128xbf16>, vector<128x128xbf16>, vector<128x128xf32> -> vector<128x128xf32>
    %63 = arith.truncf %62 : vector<128x128xf32> to vector<128x128xbf16>
    %64 = vector.extract_strided_slice %21 {offsets = [0, 128], sizes = [128, 128], strides = [1, 1]} : vector<128x512xbf16> to vector<128x128xbf16>
    %65 = vector.extract_strided_slice %29 {offsets = [0, 128], sizes = [128, 128], strides = [1, 1]} : vector<128x512xbf16> to vector<128x128xbf16>
    %66 = vector.extract_strided_slice %37 {offsets = [0, 128], sizes = [128, 128], strides = [1, 1]} : vector<128x512xbf16> to vector<128x128xbf16>
    %cst_28 = arith.constant dense<0.000000e+00> : vector<128x128xf32>
    %67 = tpu.matmul %64, %65, %cst_28 {dimension_numbers = #tpu.dot_dimension_numbers<[1], [1], [0], [0], [0, 0, 1, 0], [], []>} : vector<128x128xbf16>, vector<128x128xbf16>, vector<128x128xf32> -> vector<128x128xf32>
    %cst_29 = arith.constant -1.000000e+30 : f32
    %68 = vector.broadcast %cst_29 : f32 to vector<128x128xf32>
    %69 = arith.select %44, %68, %67 : vector<128x128xi1>, vector<128x128xf32>
    %cst_30 = arith.constant dense<0xFF800000> : vector<128xf32>
    %70 = vector.multi_reduction <maximumf>, %69, %cst_30 [1] : vector<128x128xf32> to vector<128xf32>
    %71 = vector.shape_cast %70 : vector<128xf32> to vector<128x1xf32>
    %72 = vector.broadcast %71 : vector<128x1xf32> to vector<128x128xf32>
    %73 = arith.subf %69, %72 : vector<128x128xf32>
    %74 = math.exp %73 : vector<128x128xf32>
    %cst_31 = arith.constant dense<0.000000e+00> : vector<128xf32>
    %75 = vector.multi_reduction <add>, %74, %cst_31 [1] : vector<128x128xf32> to vector<128xf32>
    %76 = vector.shape_cast %75 : vector<128xf32> to vector<128x1xf32>
    %77 = tpu.reciprocal %76 {approx = true} : vector<128x1xf32> -> vector<128x1xf32>
    %78 = vector.broadcast %77 : vector<128x1xf32> to vector<128x128xf32>
    %79 = arith.mulf %74, %78 : vector<128x128xf32>
    %80 = arith.truncf %79 : vector<128x128xf32> to vector<128x128xbf16>
    %cst_32 = arith.constant dense<0.000000e+00> : vector<128x128xf32>
    %81 = tpu.matmul %80, %66, %cst_32 {dimension_numbers = #tpu.dot_dimension_numbers<[1], [0], [0], [1], [0, 0, 1, 1], [], []>} : vector<128x128xbf16>, vector<128x128xbf16>, vector<128x128xf32> -> vector<128x128xf32>
    %82 = arith.truncf %81 : vector<128x128xf32> to vector<128x128xbf16>
    %83 = vector.extract_strided_slice %21 {offsets = [0, 256], sizes = [128, 128], strides = [1, 1]} : vector<128x512xbf16> to vector<128x128xbf16>
    %84 = vector.extract_strided_slice %29 {offsets = [0, 256], sizes = [128, 128], strides = [1, 1]} : vector<128x512xbf16> to vector<128x128xbf16>
    %85 = vector.extract_strided_slice %37 {offsets = [0, 256], sizes = [128, 128], strides = [1, 1]} : vector<128x512xbf16> to vector<128x128xbf16>
    %cst_33 = arith.constant dense<0.000000e+00> : vector<128x128xf32>
    %86 = tpu.matmul %83, %84, %cst_33 {dimension_numbers = #tpu.dot_dimension_numbers<[1], [1], [0], [0], [0, 0, 1, 0], [], []>} : vector<128x128xbf16>, vector<128x128xbf16>, vector<128x128xf32> -> vector<128x128xf32>
    %cst_34 = arith.constant -1.000000e+30 : f32
    %87 = vector.broadcast %cst_34 : f32 to vector<128x128xf32>
    %88 = arith.select %44, %87, %86 : vector<128x128xi1>, vector<128x128xf32>
    %cst_35 = arith.constant dense<0xFF800000> : vector<128xf32>
    %89 = vector.multi_reduction <maximumf>, %88, %cst_35 [1] : vector<128x128xf32> to vector<128xf32>
    %90 = vector.shape_cast %89 : vector<128xf32> to vector<128x1xf32>
    %91 = vector.broadcast %90 : vector<128x1xf32> to vector<128x128xf32>
    %92 = arith.subf %88, %91 : vector<128x128xf32>
    %93 = math.exp %92 : vector<128x128xf32>
    %cst_36 = arith.constant dense<0.000000e+00> : vector<128xf32>
    %94 = vector.multi_reduction <add>, %93, %cst_36 [1] : vector<128x128xf32> to vector<128xf32>
    %95 = vector.shape_cast %94 : vector<128xf32> to vector<128x1xf32>
    %96 = tpu.reciprocal %95 {approx = true} : vector<128x1xf32> -> vector<128x1xf32>
    %97 = vector.broadcast %96 : vector<128x1xf32> to vector<128x128xf32>
    %98 = arith.mulf %93, %97 : vector<128x128xf32>
    %99 = arith.truncf %98 : vector<128x128xf32> to vector<128x128xbf16>
    %cst_37 = arith.constant dense<0.000000e+00> : vector<128x128xf32>
    %100 = tpu.matmul %99, %85, %cst_37 {dimension_numbers = #tpu.dot_dimension_numbers<[1], [0], [0], [1], [0, 0, 1, 1], [], []>} : vector<128x128xbf16>, vector<128x128xbf16>, vector<128x128xf32> -> vector<128x128xf32>
    %101 = arith.truncf %100 : vector<128x128xf32> to vector<128x128xbf16>
    %102 = vector.extract_strided_slice %21 {offsets = [0, 384], sizes = [128, 128], strides = [1, 1]} : vector<128x512xbf16> to vector<128x128xbf16>
    %103 = vector.extract_strided_slice %29 {offsets = [0, 384], sizes = [128, 128], strides = [1, 1]} : vector<128x512xbf16> to vector<128x128xbf16>
    %104 = vector.extract_strided_slice %37 {offsets = [0, 384], sizes = [128, 128], strides = [1, 1]} : vector<128x512xbf16> to vector<128x128xbf16>
    %cst_38 = arith.constant dense<0.000000e+00> : vector<128x128xf32>
    %105 = tpu.matmul %102, %103, %cst_38 {dimension_numbers = #tpu.dot_dimension_numbers<[1], [1], [0], [0], [0, 0, 1, 0], [], []>} : vector<128x128xbf16>, vector<128x128xbf16>, vector<128x128xf32> -> vector<128x128xf32>
    %cst_39 = arith.constant -1.000000e+30 : f32
    %106 = vector.broadcast %cst_39 : f32 to vector<128x128xf32>
    %107 = arith.select %44, %106, %105 : vector<128x128xi1>, vector<128x128xf32>
    %cst_40 = arith.constant dense<0xFF800000> : vector<128xf32>
    %108 = vector.multi_reduction <maximumf>, %107, %cst_40 [1] : vector<128x128xf32> to vector<128xf32>
    %109 = vector.shape_cast %108 : vector<128xf32> to vector<128x1xf32>
    %110 = vector.broadcast %109 : vector<128x1xf32> to vector<128x128xf32>
    %111 = arith.subf %107, %110 : vector<128x128xf32>
    %112 = math.exp %111 : vector<128x128xf32>
    %cst_41 = arith.constant dense<0.000000e+00> : vector<128xf32>
    %113 = vector.multi_reduction <add>, %112, %cst_41 [1] : vector<128x128xf32> to vector<128xf32>
    %114 = vector.shape_cast %113 : vector<128xf32> to vector<128x1xf32>
    %115 = tpu.reciprocal %114 {approx = true} : vector<128x1xf32> -> vector<128x1xf32>
    %116 = vector.broadcast %115 : vector<128x1xf32> to vector<128x128xf32>
    %117 = arith.mulf %112, %116 : vector<128x128xf32>
    %118 = arith.truncf %117 : vector<128x128xf32> to vector<128x128xbf16>
    %cst_42 = arith.constant dense<0.000000e+00> : vector<128x128xf32>
    %119 = tpu.matmul %118, %104, %cst_42 {dimension_numbers = #tpu.dot_dimension_numbers<[1], [0], [0], [1], [0, 0, 1, 1], [], []>} : vector<128x128xbf16>, vector<128x128xbf16>, vector<128x128xf32> -> vector<128x128xf32>
    %120 = arith.truncf %119 : vector<128x128xf32> to vector<128x128xbf16>
    %121 = tpu.concatenate %63, %82, %101, %120 in 1 : vector<128x128xbf16>, vector<128x128xbf16>, vector<128x128xbf16>, vector<128x128xbf16> -> vector<128x512xbf16>
    %c0_43 = arith.constant 0 : index
    %c0_44 = arith.constant 0 : index
    %122 = vector.load %arg11[%c0_43, %c0_44] : memref<512x32xbf16, #tpu.memory_space<vmem>>, vector<512x32xbf16>
    %cst_45 = arith.constant dense<0.000000e+00> : vector<128x32xf32>
    %123 = tpu.matmul %121, %122, %cst_45 {dimension_numbers = #tpu.dot_dimension_numbers<[1], [0], [0], [1], [0, 0, 1, 1], [], []>} : vector<128x512xbf16>, vector<512x32xbf16>, vector<128x32xf32> -> vector<128x32xf32>
    %c0_46 = arith.constant 0 : index
    %c0_47 = arith.constant 0 : index
    %124 = vector.load %arg12[%c0_46, %c0_47] : memref<1x32xf32, #tpu.memory_space<vmem>>, vector<1x32xf32>
    %125 = vector.shape_cast %124 : vector<1x32xf32> to vector<32xf32>
    %126 = vector.shape_cast %125 : vector<32xf32> to vector<1x32xf32>
    %127 = vector.broadcast %126 : vector<1x32xf32> to vector<128x32xf32>
    %128 = arith.addf %123, %127 : vector<128x32xf32>
    %129 = arith.addf %8, %128 : vector<128x32xf32>
    %c0_48 = arith.constant 0 : index
    %c0_49 = arith.constant 0 : index
    %130 = vector.load %arg13[%c0_48, %c0_49] : memref<1x32xf32, #tpu.memory_space<vmem>>, vector<1x32xf32>
    %131 = vector.shape_cast %130 : vector<1x32xf32> to vector<32xf32>
    %c0_50 = arith.constant 0 : index
    %c0_51 = arith.constant 0 : index
    %132 = vector.load %arg14[%c0_50, %c0_51] : memref<1x32xf32, #tpu.memory_space<vmem>>, vector<1x32xf32>
    %133 = vector.shape_cast %132 : vector<1x32xf32> to vector<32xf32>
    %cst_52 = arith.constant dense<0.000000e+00> : vector<128xf32>
    %134 = vector.multi_reduction <add>, %129, %cst_52 [1] : vector<128x32xf32> to vector<128xf32>
    %135 = vector.shape_cast %134 : vector<128xf32> to vector<128x1xf32>
    %cst_53 = arith.constant 3.200000e+01 : f32
    %136 = vector.broadcast %cst_53 : f32 to vector<128x1xf32>
    %137 = arith.divf %135, %136 : vector<128x1xf32>
    %138 = vector.broadcast %137 : vector<128x1xf32> to vector<128x32xf32>
    %139 = arith.subf %129, %138 : vector<128x32xf32>
    %140 = arith.mulf %139, %139 : vector<128x32xf32>
    %cst_54 = arith.constant dense<0.000000e+00> : vector<128xf32>
    %141 = vector.multi_reduction <add>, %140, %cst_54 [1] : vector<128x32xf32> to vector<128xf32>
    %142 = vector.shape_cast %141 : vector<128xf32> to vector<128x1xf32>
    %cst_55 = arith.constant 3.200000e+01 : f32
    %143 = vector.broadcast %cst_55 : f32 to vector<128x1xf32>
    %144 = arith.divf %142, %143 : vector<128x1xf32>
    %145 = vector.broadcast %137 : vector<128x1xf32> to vector<128x32xf32>
    %146 = arith.subf %129, %145 : vector<128x32xf32>
    %cst_56 = arith.constant 9.99999974E-6 : f32
    %147 = vector.broadcast %cst_56 : f32 to vector<128x1xf32>
    %148 = arith.addf %144, %147 : vector<128x1xf32>
    %149 = math.rsqrt %148 : vector<128x1xf32>
    %150 = vector.broadcast %149 : vector<128x1xf32> to vector<128x32xf32>
    %151 = arith.mulf %146, %150 : vector<128x32xf32>
    %152 = vector.shape_cast %131 : vector<32xf32> to vector<1x32xf32>
    %153 = vector.broadcast %152 : vector<1x32xf32> to vector<128x32xf32>
    %154 = arith.mulf %151, %153 : vector<128x32xf32>
    %155 = vector.shape_cast %133 : vector<32xf32> to vector<1x32xf32>
    %156 = vector.broadcast %155 : vector<1x32xf32> to vector<128x32xf32>
    %157 = arith.addf %154, %156 : vector<128x32xf32>
    %158 = arith.truncf %157 : vector<128x32xf32> to vector<128x32xbf16>
    %c0_57 = arith.constant 0 : index
    %c0_58 = arith.constant 0 : index
    %159 = vector.load %arg15[%c0_57, %c0_58] : memref<32x32xbf16, #tpu.memory_space<vmem>>, vector<32x32xbf16>
    %cst_59 = arith.constant dense<0.000000e+00> : vector<128x32xf32>
    %160 = tpu.matmul %158, %159, %cst_59 {dimension_numbers = #tpu.dot_dimension_numbers<[1], [0], [0], [1], [0, 0, 1, 1], [], []>} : vector<128x32xbf16>, vector<32x32xbf16>, vector<128x32xf32> -> vector<128x32xf32>
    %c0_60 = arith.constant 0 : index
    %c0_61 = arith.constant 0 : index
    %161 = vector.load %arg16[%c0_60, %c0_61] : memref<1x32xf32, #tpu.memory_space<vmem>>, vector<1x32xf32>
    %162 = vector.shape_cast %161 : vector<1x32xf32> to vector<32xf32>
    %163 = vector.shape_cast %162 : vector<32xf32> to vector<1x32xf32>
    %164 = vector.broadcast %163 : vector<1x32xf32> to vector<128x32xf32>
    %165 = arith.addf %160, %164 : vector<128x32xf32>
    %cst_62 = arith.constant 0.000000e+00 : f32
    %166 = vector.broadcast %cst_62 : f32 to vector<128x32xf32>
    %167 = arith.maximumf %165, %166 : vector<128x32xf32>
    %168 = arith.truncf %167 : vector<128x32xf32> to vector<128x32xbf16>
    %c0_63 = arith.constant 0 : index
    %c0_64 = arith.constant 0 : index
    %169 = vector.load %arg17[%c0_63, %c0_64] : memref<32x32xbf16, #tpu.memory_space<vmem>>, vector<32x32xbf16>
    %cst_65 = arith.constant dense<0.000000e+00> : vector<128x32xf32>
    %170 = tpu.matmul %168, %169, %cst_65 {dimension_numbers = #tpu.dot_dimension_numbers<[1], [0], [0], [1], [0, 0, 1, 1], [], []>} : vector<128x32xbf16>, vector<32x32xbf16>, vector<128x32xf32> -> vector<128x32xf32>
    %c0_66 = arith.constant 0 : index
    %c0_67 = arith.constant 0 : index
    %171 = vector.load %arg18[%c0_66, %c0_67] : memref<1x32xf32, #tpu.memory_space<vmem>>, vector<1x32xf32>
    %172 = vector.shape_cast %171 : vector<1x32xf32> to vector<32xf32>
    %173 = vector.shape_cast %172 : vector<32xf32> to vector<1x32xf32>
    %174 = vector.broadcast %173 : vector<1x32xf32> to vector<128x32xf32>
    %175 = arith.addf %170, %174 : vector<128x32xf32>
    %176 = arith.addf %157, %175 : vector<128x32xf32>
    %c0_68 = arith.constant 0 : index
    %c0_69 = arith.constant 0 : index
    %177 = vector.load %arg19[%c0_68, %c0_69] : memref<1x32xf32, #tpu.memory_space<vmem>>, vector<1x32xf32>
    %178 = vector.shape_cast %177 : vector<1x32xf32> to vector<32xf32>
    %c0_70 = arith.constant 0 : index
    %c0_71 = arith.constant 0 : index
    %179 = vector.load %arg20[%c0_70, %c0_71] : memref<1x32xf32, #tpu.memory_space<vmem>>, vector<1x32xf32>
    %180 = vector.shape_cast %179 : vector<1x32xf32> to vector<32xf32>
    %cst_72 = arith.constant dense<0.000000e+00> : vector<128xf32>
    %181 = vector.multi_reduction <add>, %176, %cst_72 [1] : vector<128x32xf32> to vector<128xf32>
    %182 = vector.shape_cast %181 : vector<128xf32> to vector<128x1xf32>
    %cst_73 = arith.constant 3.200000e+01 : f32
    %183 = vector.broadcast %cst_73 : f32 to vector<128x1xf32>
    %184 = arith.divf %182, %183 : vector<128x1xf32>
    %185 = vector.broadcast %184 : vector<128x1xf32> to vector<128x32xf32>
    %186 = arith.subf %176, %185 : vector<128x32xf32>
    %187 = arith.mulf %186, %186 : vector<128x32xf32>
    %cst_74 = arith.constant dense<0.000000e+00> : vector<128xf32>
    %188 = vector.multi_reduction <add>, %187, %cst_74 [1] : vector<128x32xf32> to vector<128xf32>
    %189 = vector.shape_cast %188 : vector<128xf32> to vector<128x1xf32>
    %cst_75 = arith.constant 3.200000e+01 : f32
    %190 = vector.broadcast %cst_75 : f32 to vector<128x1xf32>
    %191 = arith.divf %189, %190 : vector<128x1xf32>
    %192 = vector.broadcast %184 : vector<128x1xf32> to vector<128x32xf32>
    %193 = arith.subf %176, %192 : vector<128x32xf32>
    %cst_76 = arith.constant 9.99999974E-6 : f32
    %194 = vector.broadcast %cst_76 : f32 to vector<128x1xf32>
    %195 = arith.addf %191, %194 : vector<128x1xf32>
    %196 = math.rsqrt %195 : vector<128x1xf32>
    %197 = vector.broadcast %196 : vector<128x1xf32> to vector<128x32xf32>
    %198 = arith.mulf %193, %197 : vector<128x32xf32>
    %199 = vector.shape_cast %178 : vector<32xf32> to vector<1x32xf32>
    %200 = vector.broadcast %199 : vector<1x32xf32> to vector<128x32xf32>
    %201 = arith.mulf %198, %200 : vector<128x32xf32>
    %202 = vector.shape_cast %180 : vector<32xf32> to vector<1x32xf32>
    %203 = vector.broadcast %202 : vector<1x32xf32> to vector<128x32xf32>
    %204 = arith.addf %201, %203 : vector<128x32xf32>
    %c0_77 = arith.constant 0 : index
    %c0_78 = arith.constant 0 : index
    %c0_79 = arith.constant 0 : index
    %205 = vector.load %arg21[%c0_77, %c0_78, %c0_79] : memref<1x128x32xf32, #tpu.memory_space<vmem>>, vector<1x128x32xf32>
    %206 = vector.shape_cast %205 : vector<1x128x32xf32> to vector<128x32xf32>
    %207 = vector.shape_cast %204 : vector<128x32xf32> to vector<1x128x32xf32>
    tpu.vector_store %arg21[%c0_77, %c0_78, %c0_79], %207 {strides = array<i32>} : memref<1x128x32xf32, #tpu.memory_space<vmem>>, vector<1x128x32xf32>,
    return
  }
  func.func @transform_0(%arg0: i32, %arg1: i32) -> (i32, i32, i32) {
    %c0_i32 = arith.constant 0 : i32
    %c0_i32_0 = arith.constant 0 : i32
    %c0_i32_1 = arith.constant 0 : i32
    return %arg0, %c0_i32, %c0_i32_0 : i32, i32, i32
  }
  func.func @transform_1(%arg0: i32, %arg1: i32) -> (i32, i32, i32) {
    %c0_i32 = arith.constant 0 : i32
    %c0_i32_0 = arith.constant 0 : i32
    %c0_i32_1 = arith.constant 0 : i32
    return %arg0, %c0_i32, %c0_i32_0 : i32, i32, i32
  }
  func.func @transform_2(%arg0: i32, %arg1: i32) -> (i32, i32) {
    %c0_i32 = arith.constant 0 : i32
    %c0_i32_0 = arith.constant 0 : i32
    %c0_i32_1 = arith.constant 0 : i32
    return %c0_i32, %c0_i32_0 : i32, i32
  }
  func.func @transform_3(%arg0: i32, %arg1: i32) -> (i32, i32) {
    %c0_i32 = arith.constant 0 : i32
    %c0_i32_0 = arith.constant 0 : i32
    %c0_i32_1 = arith.constant 0 : i32
    return %c0_i32, %c0_i32_0 : i32, i32
  }
  func.func @transform_4(%arg0: i32, %arg1: i32) -> (i32, i32) {
    %c0_i32 = arith.constant 0 : i32
    %c0_i32_0 = arith.constant 0 : i32
    %c0_i32_1 = arith.constant 0 : i32
    return %c0_i32, %c0_i32_0 : i32, i32
  }
  func.func @transform_5(%arg0: i32, %arg1: i32) -> (i32, i32) {
    %c0_i32 = arith.constant 0 : i32
    %c0_i32_0 = arith.constant 0 : i32
    %c0_i32_1 = arith.constant 0 : i32
    return %c0_i32, %c0_i32_0 : i32, i32
  }
  func.func @transform_6(%arg0: i32, %arg1: i32) -> (i32, i32) {
    %c0_i32 = arith.constant 0 : i32
    %c0_i32_0 = arith.constant 0 : i32
    %c0_i32_1 = arith.constant 0 : i32
    return %c0_i32, %c0_i32_0 : i32, i32
  }
  func.func @transform_7(%arg0: i32, %arg1: i32) -> (i32, i32) {
    %c0_i32 = arith.constant 0 : i32
    %c0_i32_0 = arith.constant 0 : i32
    %c0_i32_1 = arith.constant 0 : i32
    return %c0_i32, %c0_i32_0 : i32, i32
  }
  func.func @transform_8(%arg0: i32, %arg1: i32) -> (i32, i32) {
    %c0_i32 = arith.constant 0 : i32
    %c0_i32_0 = arith.constant 0 : i32
    %c0_i32_1 = arith.constant 0 : i32
    return %c0_i32, %c0_i32_0 : i32, i32
  }
  func.func @transform_9(%arg0: i32, %arg1: i32) -> (i32, i32) {
    %c0_i32 = arith.constant 0 : i32
    %c0_i32_0 = arith.constant 0 : i32
    %c0_i32_1 = arith.constant 0 : i32
    return %c0_i32, %c0_i32_0 : i32, i32
  }
  func.func @transform_10(%arg0: i32, %arg1: i32) -> (i32, i32) {
    %c0_i32 = arith.constant 0 : i32
    %c0_i32_0 = arith.constant 0 : i32
    %c0_i32_1 = arith.constant 0 : i32
    return %c0_i32, %c0_i32_0 : i32, i32
  }
  func.func @transform_11(%arg0: i32, %arg1: i32) -> (i32, i32) {
    %c0_i32 = arith.constant 0 : i32
    %c0_i32_0 = arith.constant 0 : i32
    %c0_i32_1 = arith.constant 0 : i32
    return %c0_i32, %c0_i32_0 : i32, i32
  }
  func.func @transform_12(%arg0: i32, %arg1: i32) -> (i32, i32) {
    %c0_i32 = arith.constant 0 : i32
    %c0_i32_0 = arith.constant 0 : i32
    %c0_i32_1 = arith.constant 0 : i32
    return %c0_i32, %c0_i32_0 : i32, i32
  }
  func.func @transform_13(%arg0: i32, %arg1: i32) -> (i32, i32) {
    %c0_i32 = arith.constant 0 : i32
    %c0_i32_0 = arith.constant 0 : i32
    %c0_i32_1 = arith.constant 0 : i32
    return %c0_i32, %c0_i32_0 : i32, i32
  }
  func.func @transform_14(%arg0: i32, %arg1: i32) -> (i32, i32) {
    %c0_i32 = arith.constant 0 : i32
    %c0_i32_0 = arith.constant 0 : i32
    %c0_i32_1 = arith.constant 0 : i32
    return %c0_i32, %c0_i32_0 : i32, i32
  }
  func.func @transform_15(%arg0: i32, %arg1: i32) -> (i32, i32) {
    %c0_i32 = arith.constant 0 : i32
    %c0_i32_0 = arith.constant 0 : i32
    %c0_i32_1 = arith.constant 0 : i32
    return %c0_i32, %c0_i32_0 : i32, i32
  }
  func.func @transform_16(%arg0: i32, %arg1: i32) -> (i32, i32) {
    %c0_i32 = arith.constant 0 : i32
    %c0_i32_0 = arith.constant 0 : i32
    %c0_i32_1 = arith.constant 0 : i32
    return %c0_i32, %c0_i32_0 : i32, i32
  }
  func.func @transform_17(%arg0: i32, %arg1: i32) -> (i32, i32) {
    %c0_i32 = arith.constant 0 : i32
    %c0_i32_0 = arith.constant 0 : i32
    %c0_i32_1 = arith.constant 0 : i32
    return %c0_i32, %c0_i32_0 : i32, i32
  }
  func.func @transform_18(%arg0: i32, %arg1: i32) -> (i32, i32) {
    %c0_i32 = arith.constant 0 : i32
    %c0_i32_0 = arith.constant 0 : i32
    %c0_i32_1 = arith.constant 0 : i32
    return %c0_i32, %c0_i32_0 : i32, i32
  }
  func.func @transform_19(%arg0: i32, %arg1: i32) -> (i32, i32, i32) {
    %c0_i32 = arith.constant 0 : i32
    %c0_i32_0 = arith.constant 0 : i32
    %c0_i32_1 = arith.constant 0 : i32
    return %arg0, %c0_i32, %c0_i32_0 : i32, i32, i32
  }
}

</mosaic_0001>

<llo_original>
// kernel: tpu_custom_call.1
$region0: #{tpu_custom_call.1}
  #allocation0 [shape = 'u32[]', space=smem, size = 0x4, offset = 0x4, fixed_abs, tag = 'smem constant byte address 0x4 - core index']
  #allocation1 [shape = 'u32[144,128]{1,0:T(1,128)}', space=vmem, size = 0x12000, scoped, tag = 'internal scratch']
  %s0 = inlined_call_operand.vmem [shape: f32[2,128,32], index: 0, kind: input, shape index: {}]
  %s1 = inlined_call_operand.vmem [shape: f32[2,1,128], index: 1, kind: input, shape index: {}]
  %s2 = inlined_call_operand.vmem [shape: f32[3,32], index: 2, kind: input, shape index: {}]
  %s3 = inlined_call_operand.vmem [shape: bf16[32,512], index: 3, kind: input, shape index: {}]
  %s4 = inlined_call_operand.vmem [shape: bf16[32,512], index: 4, kind: input, shape index: {}]
  %s5 = inlined_call_operand.vmem [shape: bf16[32,512], index: 5, kind: input, shape index: {}]
  %s6 = inlined_call_operand.vmem [shape: f32[1,512], index: 6, kind: input, shape index: {}]
  %s7 = inlined_call_operand.vmem [shape: f32[1,512], index: 7, kind: input, shape index: {}]
  %s8 = inlined_call_operand.vmem [shape: f32[1,512], index: 8, kind: input, shape index: {}]
  %s9 = inlined_call_operand.vmem [shape: bf16[512,32], index: 9, kind: input, shape index: {}]
  %s10 = inlined_call_operand.vmem [shape: f32[1,32], index: 10, kind: input, shape index: {}]
  %s11 = inlined_call_operand.vmem [shape: f32[1,32], index: 11, kind: input, shape index: {}]
  %s12 = inlined_call_operand.vmem [shape: f32[1,32], index: 12, kind: input, shape index: {}]
  %s13 = inlined_call_operand.vmem [shape: bf16[32,32], index: 13, kind: input, shape index: {}]
  %s14 = inlined_call_operand.vmem [shape: f32[1,32], index: 14, kind: input, shape index: {}]
  %s15 = inlined_call_operand.vmem [shape: bf16[32,32], index: 15, kind: input, shape index: {}]
  %s16 = inlined_call_operand.vmem [shape: f32[1,32], index: 16, kind: input, shape index: {}]
  %s17 = inlined_call_operand.vmem [shape: f32[1,32], index: 17, kind: input, shape index: {}]
  %s18 = inlined_call_operand.vmem [shape: f32[1,32], index: 18, kind: input, shape index: {}]
  %s19 = inlined_call_operand.vmem [shape: f32[2,128,32], index: 19, kind: output, shape index: {}]
  %s20 = sld [smem:[#allocation0]]
  $region113: #{tpu_custom_call.1} parent=0
    _
  %s22 = ssub.s32 1, %s20
  %s23 = scalar_select 0, %s22, %s20
  loop: start=0, step=1, limit=8
  $region2: #{tpu_custom_call.1} parent=0 // loop_pre_header
    _
  $region3: #{tpu_custom_call.1} parent=0 // loop_header
    %s25 = sphi 0, %s29
    %p26 = scmp.ge.s32.totalorder %s25, 8
    %s32 = sphi 0, %s44
    %s33 = sphi 0, %s40
    %s34 = sphi 0, %s32
    %s35 = sphi 0, %s33
    %s36 = sphi 0, %s34
    %s37 = sphi 0, %s35
    %s47 = sphi 0, %s49
    %s50 = sphi 0, %s47
    %s51 = sphi 0, %s50
    %s67 = sphi 0, %s51
    %s73 = sphi 0, %s75
    %s76 = sphi 0, %s73
    %s77 = sphi 0, %s76
    %s93 = sphi 0, %s77
    %s97 = sphi 0, %s97
    %s99 = sphi 0, %s97
    %s100 = sphi 0, %s99
    %s114 = sphi 0, %s100
    %s118 = sphi 0, %s118
    %s120 = sphi 0, %s118
    %s121 = sphi 0, %s120
    %s135 = sphi 0, %s121
    %s139 = sphi 0, %s139
    %s141 = sphi 0, %s139
    %s142 = sphi 0, %s141
    %s156 = sphi 0, %s142
    %s160 = sphi 0, %s160
    %s162 = sphi 0, %s160
    %s163 = sphi 0, %s162
    %s177 = sphi 0, %s163
    %s181 = sphi 0, %s181
    %s183 = sphi 0, %s181
    %s184 = sphi 0, %s183
    %s198 = sphi 0, %s184
    %s202 = sphi 0, %s202
    %s204 = sphi 0, %s202
    %s205 = sphi 0, %s204
    %s219 = sphi 0, %s205
    %s223 = sphi 0, %s223
    %s225 = sphi 0, %s223
    %s226 = sphi 0, %s225
    %s240 = sphi 0, %s226
    %s244 = sphi 0, %s244
    %s246 = sphi 0, %s244
    %s247 = sphi 0, %s246
    %s261 = sphi 0, %s247
    %s265 = sphi 0, %s265
    %s267 = sphi 0, %s265
    %s268 = sphi 0, %s267
    %s282 = sphi 0, %s268
    %s286 = sphi 0, %s286
    %s288 = sphi 0, %s286
    %s289 = sphi 0, %s288
    %s303 = sphi 0, %s289
    %s307 = sphi 0, %s307
    %s309 = sphi 0, %s307
    %s310 = sphi 0, %s309
    %s324 = sphi 0, %s310
    %s328 = sphi 0, %s328
    %s330 = sphi 0, %s328
    %s331 = sphi 0, %s330
    %s345 = sphi 0, %s331
    %s349 = sphi 0, %s349
    %s351 = sphi 0, %s349
    %s352 = sphi 0, %s351
    %s366 = sphi 0, %s352
    %s370 = sphi 0, %s370
    %s372 = sphi 0, %s370
    %s373 = sphi 0, %s372
    %s387 = sphi 0, %s373
    %s391 = sphi 0, %s391
    %s393 = sphi 0, %s391
    %s394 = sphi 0, %s393
    %s408 = sphi 0, %s394
    %s412 = sphi 0, %s412
    %s414 = sphi 0, %s412
    %s415 = sphi 0, %s414
    %s429 = sphi 0, %s415
    %s433 = sphi 0, %s433
    %s435 = sphi 0, %s433
    %s436 = sphi 0, %s435
    %s450 = sphi 0, %s436
    %s456 = sphi 0, %s458
    %s459 = sphi 0, %s456
    %s460 = sphi 0, %s459
    %s476 = sphi 0, %s460
  $region4: #{tpu_custom_call.1} parent=0 // loop_header_branch
    %28 = sbr.rel (%p26) target = $region8
  $region5: #{tpu_custom_call.1} parent=0 // loop_body
    %s30 = ssub.s32 %s25, 1
    %s31 = ssub.s32 %s25, 2
    %s38 = sadd.s32 1, %s33
    %p39 = scmp.ge.s32.totalorder %s38, 3
    %s40 = scalar_select %p39, 0, %s38
    %s41 = sadd.s32 1, %s32
    %s42 = scalar_select %p39, %s41, %s32
    %p43 = scmp.ge.s32.totalorder %s42, 2
    %s44 = scalar_select %p43, 0, %s42
    %s45 = ssub.s32 %s32, %s44
    %p46 = scmp.eq.s32.totalorder %s45, 0
    %s48 = sadd.s32 %s47, 1
    %s49 = scalar_select %p46, %s47, %s48
    %p52 = pneg %p46
    %p53 = scmp.eq.s32.totalorder %s25, 5
    %p54 = por %p52, %p53
    %p55 = scmp.ne.s32.totalorder %s47, %s50
    %p56 = scmp.eq.s32.totalorder %s25, 0
    %p57 = por %p55, %p56
    %p58 = scmp.ne.s32.totalorder %s47, %s50
    %p59 = scmp.eq.s32.totalorder %s30, 5
    %p60 = por %p58, %p59
    %p61 = scmp.ne.s32.totalorder %s50, %s51
    %p62 = scmp.eq.s32.totalorder %s30, 0
    %p63 = por %p61, %p62
    %p64 = scmp.ne.s32.totalorder %s50, %s51
    %p65 = scmp.eq.s32.totalorder %s31, 5
    %p66 = por %p64, %p65
    %p68 = scmp.ne.s32.totalorder %s51, %s67
    %p69 = scmp.eq.s32.totalorder %s31, 0
    %p70 = por %p68, %p69
    %s71 = ssub.s32 %s32, %s44
    %p72 = scmp.eq.s32.totalorder %s71, 0
    %s74 = sadd.s32 %s73, 1
    %s75 = scalar_select %p72, %s73, %s74
    %p78 = pneg %p72
    %p79 = scmp.eq.s32.totalorder %s25, 5
    %p80 = por %p78, %p79
    %p81 = scmp.ne.s32.totalorder %s73, %s76
    %p82 = scmp.eq.s32.totalorder %s25, 0
    %p83 = por %p81, %p82
    %p84 = scmp.ne.s32.totalorder %s73, %s76
    %p85 = scmp.eq.s32.totalorder %s30, 5
    %p86 = por %p84, %p85
    %p87 = scmp.ne.s32.totalorder %s76, %s77
    %p88 = scmp.eq.s32.totalorder %s30, 0
    %p89 = por %p87, %p88
    %p90 = scmp.ne.s32.totalorder %s76, %s77
    %p91 = scmp.eq.s32.totalorder %s31, 5
    %p92 = por %p90, %p91
    %p94 = scmp.ne.s32.totalorder %s77, %s93
    %p95 = scmp.eq.s32.totalorder %s31, 0
    %p96 = por %p94, %p95
    %s98 = sadd.s32 %s97, 1
    %p101 = scmp.eq.s32.totalorder %s25, 5
    %p102 = scmp.ne.s32.totalorder %s97, %s99
    %p103 = scmp.eq.s32.totalorder %s25, 0
    %p104 = por %p102, %p103
    %p105 = scmp.ne.s32.totalorder %s97, %s99
    %p106 = scmp.eq.s32.totalorder %s30, 5
    %p107 = por %p105, %p106
    %p108 = scmp.ne.s32.totalorder %s99, %s100
    %p109 = scmp.eq.s32.totalorder %s30, 0
    %p110 = por %p108, %p109
    %p111 = scmp.ne.s32.totalorder %s99, %s100
    %p112 = scmp.eq.s32.totalorder %s31, 5
    %p113 = por %p111, %p112
    %p115 = scmp.ne.s32.totalorder %s100, %s114
    %p116 = scmp.eq.s32.totalorder %s31, 0
    %p117 = por %p115, %p116
    %s119 = sadd.s32 %s118, 1
    %p122 = scmp.eq.s32.totalorder %s25, 5
    %p123 = scmp.ne.s32.totalorder %s118, %s120
    %p124 = scmp.eq.s32.totalorder %s25, 0
    %p125 = por %p123, %p124
    %p126 = scmp.ne.s32.totalorder %s118, %s120
    %p127 = scmp.eq.s32.totalorder %s30, 5
    %p128 = por %p126, %p127
    %p129 = scmp.ne.s32.totalorder %s120, %s121
    %p130 = scmp.eq.s32.totalorder %s30, 0
    %p131 = por %p129, %p130
    %p132 = scmp.ne.s32.totalorder %s120, %s121
    %p133 = scmp.eq.s32.totalorder %s31, 5
    %p134 = por %p132, %p133
    %p136 = scmp.ne.s32.totalorder %s121, %s135
    %p137 = scmp.eq.s32.totalorder %s31, 0
    %p138 = por %p136, %p137
    %s140 = sadd.s32 %s139, 1
    %p143 = scmp.eq.s32.totalorder %s25, 5
    %p144 = scmp.ne.s32.totalorder %s139, %s141
    %p145 = scmp.eq.s32.totalorder %s25, 0
    %p146 = por %p144, %p145
    %p147 = scmp.ne.s32.totalorder %s139, %s141
    %p148 = scmp.eq.s32.totalorder %s30, 5
    %p149 = por %p147, %p148
    %p150 = scmp.ne.s32.totalorder %s141, %s142
    %p151 = scmp.eq.s32.totalorder %s30, 0
    %p152 = por %p150, %p151
    %p153 = scmp.ne.s32.totalorder %s141, %s142
    %p154 = scmp.eq.s32.totalorder %s31, 5
    %p155 = por %p153, %p154
    %p157 = scmp.ne.s32.totalorder %s142, %s156
    %p158 = scmp.eq.s32.totalorder %s31, 0
    %p159 = por %p157, %p158
    %s161 = sadd.s32 %s160, 1
    %p164 = scmp.eq.s32.totalorder %s25, 5
    %p165 = scmp.ne.s32.totalorder %s160, %s162
    %p166 = scmp.eq.s32.totalorder %s25, 0
    %p167 = por %p165, %p166
    %p168 = scmp.ne.s32.totalorder %s160, %s162
    %p169 = scmp.eq.s32.totalorder %s30, 5
    %p170 = por %p168, %p169
    %p171 = scmp.ne.s32.totalorder %s162, %s163
    %p172 = scmp.eq.s32.totalorder %s30, 0
    %p173 = por %p171, %p172
    %p174 = scmp.ne.s32.totalorder %s162, %s163
    %p175 = scmp.eq.s32.totalorder %s31, 5
    %p176 = por %p174, %p175
    %p178 = scmp.ne.s32.totalorder %s163, %s177
    %p179 = scmp.eq.s32.totalorder %s31, 0
    %p180 = por %p178, %p179
    %s182 = sadd.s32 %s181, 1
    %p185 = scmp.eq.s32.totalorder %s25, 5
    %p186 = scmp.ne.s32.totalorder %s181, %s183
    %p187 = scmp.eq.s32.totalorder %s25, 0
    %p188 = por %p186, %p187
    %p189 = scmp.ne.s32.totalorder %s181, %s183
    %p190 = scmp.eq.s32.totalorder %s30, 5
    %p191 = por %p189, %p190
    %p192 = scmp.ne.s32.totalorder %s183, %s184
    %p193 = scmp.eq.s32.totalorder %s30, 0
    %p194 = por %p192, %p193
    %p195 = scmp.ne.s32.totalorder %s183, %s184
    %p196 = scmp.eq.s32.totalorder %s31, 5
    %p197 = por %p195, %p196
    %p199 = scmp.ne.s32.totalorder %s184, %s198
    %p200 = scmp.eq.s32.totalorder %s31, 0
    %p201 = por %p199, %p200
    %s203 = sadd.s32 %s202, 1
    %p206 = scmp.eq.s32.totalorder %s25, 5
    %p207 = scmp.ne.s32.totalorder %s202, %s204
    %p208 = scmp.eq.s32.totalorder %s25, 0
    %p209 = por %p207, %p208
    %p210 = scmp.ne.s32.totalorder %s202, %s204
    %p211 = scmp.eq.s32.totalorder %s30, 5
    %p212 = por %p210, %p211
    %p213 = scmp.ne.s32.totalorder %s204, %s205
    %p214 = scmp.eq.s32.totalorder %s30, 0
    %p215 = por %p213, %p214
    %p216 = scmp.ne.s32.totalorder %s204, %s205
    %p217 = scmp.eq.s32.totalorder %s31, 5
    %p218 = por %p216, %p217
    %p220 = scmp.ne.s32.totalorder %s205, %s219
    %p221 = scmp.eq.s32.totalorder %s31, 0
    %p222 = por %p220, %p221
    %s224 = sadd.s32 %s223, 1
    %p227 = scmp.eq.s32.totalorder %s25, 5
    %p228 = scmp.ne.s32.totalorder %s223, %s225
    %p229 = scmp.eq.s32.totalorder %s25, 0
    %p230 = por %p228, %p229
    %p231 = scmp.ne.s32.totalorder %s223, %s225
    %p232 = scmp.eq.s32.totalorder %s30, 5
    %p233 = por %p231, %p232
    %p234 = scmp.ne.s32.totalorder %s225, %s226
    %p235 = scmp.eq.s32.totalorder %s30, 0
    %p236 = por %p234, %p235
    %p237 = scmp.ne.s32.totalorder %s225, %s226
    %p238 = scmp.eq.s32.totalorder %s31, 5
    %p239 = por %p237, %p238
    %p241 = scmp.ne.s32.totalorder %s226, %s240
    %p242 = scmp.eq.s32.totalorder %s31, 0
    %p243 = por %p241, %p242
    %s245 = sadd.s32 %s244, 1
    %p248 = scmp.eq.s32.totalorder %s25, 5
    %p249 = scmp.ne.s32.totalorder %s244, %s246
    %p250 = scmp.eq.s32.totalorder %s25, 0
    %p251 = por %p249, %p250
    %p252 = scmp.ne.s32.totalorder %s244, %s246
    %p253 = scmp.eq.s32.totalorder %s30, 5
    %p254 = por %p252, %p253
    %p255 = scmp.ne.s32.totalorder %s246, %s247
    %p256 = scmp.eq.s32.totalorder %s30, 0
    %p257 = por %p255, %p256
    %p258 = scmp.ne.s32.totalorder %s246, %s247
    %p259 = scmp.eq.s32.totalorder %s31, 5
    %p260 = por %p258, %p259
    %p262 = scmp.ne.s32.totalorder %s247, %s261
    %p263 = scmp.eq.s32.totalorder %s31, 0
    %p264 = por %p262, %p263
    %s266 = sadd.s32 %s265, 1
    %p269 = scmp.eq.s32.totalorder %s25, 5
    %p270 = scmp.ne.s32.totalorder %s265, %s267
    %p271 = scmp.eq.s32.totalorder %s25, 0
    %p272 = por %p270, %p271
    %p273 = scmp.ne.s32.totalorder %s265, %s267
    %p274 = scmp.eq.s32.totalorder %s30, 5
    %p275 = por %p273, %p274
    %p276 = scmp.ne.s32.totalorder %s267, %s268
    %p277 = scmp.eq.s32.totalorder %s30, 0
    %p278 = por %p276, %p277
    %p279 = scmp.ne.s32.totalorder %s267, %s268
    %p280 = scmp.eq.s32.totalorder %s31, 5
    %p281 = por %p279, %p280
    %p283 = scmp.ne.s32.totalorder %s268, %s282
    %p284 = scmp.eq.s32.totalorder %s31, 0
    %p285 = por %p283, %p284
    %s287 = sadd.s32 %s286, 1
    %p290 = scmp.eq.s32.totalorder %s25, 5
    %p291 = scmp.ne.s32.totalorder %s286, %s288
    %p292 = scmp.eq.s32.totalorder %s25, 0
    %p293 = por %p291, %p292
    %p294 = scmp.ne.s32.totalorder %s286, %s288
    %p295 = scmp.eq.s32.totalorder %s30, 5
    %p296 = por %p294, %p295
    %p297 = scmp.ne.s32.totalorder %s288, %s289
    %p298 = scmp.eq.s32.totalorder %s30, 0
    %p299 = por %p297, %p298
    %p300 = scmp.ne.s32.totalorder %s288, %s289
    %p301 = scmp.eq.s32.totalorder %s31, 5
    %p302 = por %p300, %p301
    %p304 = scmp.ne.s32.totalorder %s289, %s303
    %p305 = scmp.eq.s32.totalorder %s31, 0
    %p306 = por %p304, %p305
    %s308 = sadd.s32 %s307, 1
    %p311 = scmp.eq.s32.totalorder %s25, 5
    %p312 = scmp.ne.s32.totalorder %s307, %s309
    %p313 = scmp.eq.s32.totalorder %s25, 0
    %p314 = por %p312, %p313
    %p315 = scmp.ne.s32.totalorder %s307, %s309
    %p316 = scmp.eq.s32.totalorder %s30, 5
    %p317 = por %p315, %p316
    %p318 = scmp.ne.s32.totalorder %s309, %s310
    %p319 = scmp.eq.s32.totalorder %s30, 0
    %p320 = por %p318, %p319
    %p321 = scmp.ne.s32.totalorder %s309, %s310
    %p322 = scmp.eq.s32.totalorder %s31, 5
    %p323 = por %p321, %p322
    %p325 = scmp.ne.s32.totalorder %s310, %s324
    %p326 = scmp.eq.s32.totalorder %s31, 0
    %p327 = por %p325, %p326
    %s329 = sadd.s32 %s328, 1
    %p332 = scmp.eq.s32.totalorder %s25, 5
    %p333 = scmp.ne.s32.totalorder %s328, %s330
    %p334 = scmp.eq.s32.totalorder %s25, 0
    %p335 = por %p333, %p334
    %p336 = scmp.ne.s32.totalorder %s328, %s330
    %p337 = scmp.eq.s32.totalorder %s30, 5
    %p338 = por %p336, %p337
    %p339 = scmp.ne.s32.totalorder %s330, %s331
    %p340 = scmp.eq.s32.totalorder %s30, 0
    %p341 = por %p339, %p340
    %p342 = scmp.ne.s32.totalorder %s330, %s331
    %p343 = scmp.eq.s32.totalorder %s31, 5
    %p344 = por %p342, %p343
    %p346 = scmp.ne.s32.totalorder %s331, %s345
    %p347 = scmp.eq.s32.totalorder %s31, 0
    %p348 = por %p346, %p347
    %s350 = sadd.s32 %s349, 1
    %p353 = scmp.eq.s32.totalorder %s25, 5
    %p354 = scmp.ne.s32.totalorder %s349, %s351
    %p355 = scmp.eq.s32.totalorder %s25, 0
    %p356 = por %p354, %p355
    %p357 = scmp.ne.s32.totalorder %s349, %s351
    %p358 = scmp.eq.s32.totalorder %s30, 5
    %p359 = por %p357, %p358
    %p360 = scmp.ne.s32.totalorder %s351, %s352
    %p361 = scmp.eq.s32.totalorder %s30, 0
    %p362 = por %p360, %p361
    %p363 = scmp.ne.s32.totalorder %s351, %s352
    %p364 = scmp.eq.s32.totalorder %s31, 5
    %p365 = por %p363, %p364
    %p367 = scmp.ne.s32.totalorder %s352, %s366
    %p368 = scmp.eq.s32.totalorder %s31, 0
    %p369 = por %p367, %p368
    %s371 = sadd.s32 %s370, 1
    %p374 = scmp.eq.s32.totalorder %s25, 5
    %p375 = scmp.ne.s32.totalorder %s370, %s372
    %p376 = scmp.eq.s32.totalorder %s25, 0
    %p377 = por %p375, %p376
    %p378 = scmp.ne.s32.totalorder %s370, %s372
    %p379 = scmp.eq.s32.totalorder %s30, 5
    %p380 = por %p378, %p379
    %p381 = scmp.ne.s32.totalorder %s372, %s373
    %p382 = scmp.eq.s32.totalorder %s30, 0
    %p383 = por %p381, %p382
    %p384 = scmp.ne.s32.totalorder %s372, %s373
    %p385 = scmp.eq.s32.totalorder %s31, 5
    %p386 = por %p384, %p385
    %p388 = scmp.ne.s32.totalorder %s373, %s387
    %p389 = scmp.eq.s32.totalorder %s31, 0
    %p390 = por %p388, %p389
    %s392 = sadd.s32 %s391, 1
    %p395 = scmp.eq.s32.totalorder %s25, 5
    %p396 = scmp.ne.s32.totalorder %s391, %s393
    %p397 = scmp.eq.s32.totalorder %s25, 0
    %p398 = por %p396, %p397
    %p399 = scmp.ne.s32.totalorder %s391, %s393
    %p400 = scmp.eq.s32.totalorder %s30, 5
    %p401 = por %p399, %p400
    %p402 = scmp.ne.s32.totalorder %s393, %s394
    %p403 = scmp.eq.s32.totalorder %s30, 0
    %p404 = por %p402, %p403
    %p405 = scmp.ne.s32.totalorder %s393, %s394
    %p406 = scmp.eq.s32.totalorder %s31, 5
    %p407 = por %p405, %p406
    %p409 = scmp.ne.s32.totalorder %s394, %s408
    %p410 = scmp.eq.s32.totalorder %s31, 0
    %p411 = por %p409, %p410
    %s413 = sadd.s32 %s412, 1
    %p416 = scmp.eq.s32.totalorder %s25, 5
    %p417 = scmp.ne.s32.totalorder %s412, %s414
    %p418 = scmp.eq.s32.totalorder %s25, 0
    %p419 = por %p417, %p418
    %p420 = scmp.ne.s32.totalorder %s412, %s414
    %p421 = scmp.eq.s32.totalorder %s30, 5
    %p422 = por %p420, %p421
    %p423 = scmp.ne.s32.totalorder %s414, %s415
    %p424 = scmp.eq.s32.totalorder %s30, 0
    %p425 = por %p423, %p424
    %p426 = scmp.ne.s32.totalorder %s414, %s415
    %p427 = scmp.eq.s32.totalorder %s31, 5
    %p428 = por %p426, %p427
    %p430 = scmp.ne.s32.totalorder %s415, %s429
    %p431 = scmp.eq.s32.totalorder %s31, 0
    %p432 = por %p430, %p431
    %s434 = sadd.s32 %s433, 1
    %p437 = scmp.eq.s32.totalorder %s25, 5
    %p438 = scmp.ne.s32.totalorder %s433, %s435
    %p439 = scmp.eq.s32.totalorder %s25, 0
    %p440 = por %p438, %p439
    %p441 = scmp.ne.s32.totalorder %s433, %s435
    %p442 = scmp.eq.s32.totalorder %s30, 5
    %p443 = por %p441, %p442
    %p444 = scmp.ne.s32.totalorder %s435, %s436
    %p445 = scmp.eq.s32.totalorder %s30, 0
    %p446 = por %p444, %p445
    %p447 = scmp.ne.s32.totalorder %s435, %s436
    %p448 = scmp.eq.s32.totalorder %s31, 5
    %p449 = por %p447, %p448
    %p451 = scmp.ne.s32.totalorder %s436, %s450
    %p452 = scmp.eq.s32.totalorder %s31, 0
    %p453 = por %p451, %p452
    %s454 = ssub.s32 %s32, %s44
    %p455 = scmp.eq.s32.totalorder %s454, 0
    %s457 = sadd.s32 %s456, 1
    %s458 = scalar_select %p455, %s456, %s457
    %p461 = pneg %p455
    %p462 = scmp.eq.s32.totalorder %s25, 5
    %p463 = por %p461, %p462
    %p464 = scmp.ne.s32.totalorder %s456, %s459
    %p465 = scmp.eq.s32.totalorder %s25, 0
    %p466 = por %p464, %p465
    %p467 = scmp.ne.s32.totalorder %s456, %s459
    %p468 = scmp.eq.s32.totalorder %s30, 5
    %p469 = por %p467, %p468
    %p470 = scmp.ne.s32.totalorder %s459, %s460
    %p471 = scmp.eq.s32.totalorder %s30, 0
    %p472 = por %p470, %p471
    %p473 = scmp.ne.s32.totalorder %s459, %s460
    %p474 = scmp.eq.s32.totalorder %s31, 5
    %p475 = por %p473, %p474
    %p477 = scmp.ne.s32.totalorder %s460, %s476
    %p478 = scmp.eq.s32.totalorder %s31, 0
    %p479 = por %p477, %p478
    %p480 = scmp.le.s32.totalorder 1, %s25
    %p481 = scmp.lt.s32.totalorder %s25, 7
    %p482 = pnand %p480, %p481
    %p483 = pneg %p482
    // Predicated region
    $region9: #{tpu_custom_call.1} parent=5 // pred_check
      _
    $region10: #{tpu_custom_call.1} parent=5 // pred_check_branch
      %485 = sbr.rel (%p482) target = $region12
    $region11: #{tpu_custom_call.1} parent=5 // pred_region
      %s486 = ssub.s32 %s25, 1
      // Predicated region
      $region13: #{tpu_custom_call.1} parent=11 // pred_check
        %p487 = pneg %p110
      $region14: #{tpu_custom_call.1} parent=11 // pred_check_branch
        %489 = sbr.rel (%p487) target = $region16
      $region15: #{tpu_custom_call.1} parent=11 // pred_region
        _
      $region16: #{tpu_custom_call.1} parent=11 // pred_fallthru
        _
      // Predicated region
      $region17: #{tpu_custom_call.1} parent=11 // pred_check
        %p490 = pneg %p131
      $region18: #{tpu_custom_call.1} parent=11 // pred_check_branch
        %492 = sbr.rel (%p490) target = $region20
      $region19: #{tpu_custom_call.1} parent=11 // pred_region
        _
      $region20: #{tpu_custom_call.1} parent=11 // pred_fallthru
        _
      // Predicated region
      $region21: #{tpu_custom_call.1} parent=11 // pred_check
        %p493 = pneg %p152
      $region22: #{tpu_custom_call.1} parent=11 // pred_check_branch
        %495 = sbr.rel (%p493) target = $region24
      $region23: #{tpu_custom_call.1} parent=11 // pred_region
        _
      $region24: #{tpu_custom_call.1} parent=11 // pred_fallthru
        _
      // Predicated region
      $region25: #{tpu_custom_call.1} parent=11 // pred_check
        %p496 = pneg %p173
      $region26: #{tpu_custom_call.1} parent=11 // pred_check_branch
        %498 = sbr.rel (%p496) target = $region28
      $region27: #{tpu_custom_call.1} parent=11 // pred_region
        _
      $region28: #{tpu_custom_call.1} parent=11 // pred_fallthru
        _
      // Predicated region
      $region29: #{tpu_custom_call.1} parent=11 // pred_check
        %p499 = pneg %p194
      $region30: #{tpu_custom_call.1} parent=11 // pred_check_branch
        %501 = sbr.rel (%p499) target = $region32
      $region31: #{tpu_custom_call.1} parent=11 // pred_region
        _
      $region32: #{tpu_custom_call.1} parent=11 // pred_fallthru
        _
      // Predicated region
      $region33: #{tpu_custom_call.1} parent=11 // pred_check
        %p502 = pneg %p215
      $region34: #{tpu_custom_call.1} parent=11 // pred_check_branch
        %504 = sbr.rel (%p502) target = $region36
      $region35: #{tpu_custom_call.1} parent=11 // pred_region
        _
      $region36: #{tpu_custom_call.1} parent=11 // pred_fallthru
        _
      // Predicated region
      $region37: #{tpu_custom_call.1} parent=11 // pred_check
        %p505 = pneg %p236
      $region38: #{tpu_custom_call.1} parent=11 // pred_check_branch
        %507 = sbr.rel (%p505) target = $region40
      $region39: #{tpu_custom_call.1} parent=11 // pred_region
        _
      $region40: #{tpu_custom_call.1} parent=11 // pred_fallthru
        _
      // Predicated region
      $region41: #{tpu_custom_call.1} parent=11 // pred_check
        %p508 = pneg %p257
      $region42: #{tpu_custom_call.1} parent=11 // pred_check_branch
        %510 = sbr.rel (%p508) target = $region44
      $region43: #{tpu_custom_call.1} parent=11 // pred_region
        _
      $region44: #{tpu_custom_call.1} parent=11 // pred_fallthru
        _
      // Predicated region
      $region45: #{tpu_custom_call.1} parent=11 // pred_check
        %p511 = pneg %p278
      $region46: #{tpu_custom_call.1} parent=11 // pred_check_branch
        %513 = sbr.rel (%p511) target = $region48
      $region47: #{tpu_custom_call.1} parent=11 // pred_region
        _
      $region48: #{tpu_custom_call.1} parent=11 // pred_fallthru
        _
      // Predicated region
      $region49: #{tpu_custom_call.1} parent=11 // pred_check
        %p514 = pneg %p299
      $region50: #{tpu_custom_call.1} parent=11 // pred_check_branch
        %516 = sbr.rel (%p514) target = $region52
      $region51: #{tpu_custom_call.1} parent=11 // pred_region
        _
      $region52: #{tpu_custom_call.1} parent=11 // pred_fallthru
        _
      // Predicated region
      $region53: #{tpu_custom_call.1} parent=11 // pred_check
        %p517 = pneg %p320
      $region54: #{tpu_custom_call.1} parent=11 // pred_check_branch
        %519 = sbr.rel (%p517) target = $region56
      $region55: #{tpu_custom_call.1} parent=11 // pred_region
        _
      $region56: #{tpu_custom_call.1} parent=11 // pred_fallthru
        _
      // Predicated region
      $region57: #{tpu_custom_call.1} parent=11 // pred_check
        %p520 = pneg %p341
      $region58: #{tpu_custom_call.1} parent=11 // pred_check_branch
        %522 = sbr.rel (%p520) target = $region60
      $region59: #{tpu_custom_call.1} parent=11 // pred_region
        _
      $region60: #{tpu_custom_call.1} parent=11 // pred_fallthru
        _
      // Predicated region
      $region61: #{tpu_custom_call.1} parent=11 // pred_check
        %p523 = pneg %p362
      $region62: #{tpu_custom_call.1} parent=11 // pred_check_branch
        %525 = sbr.rel (%p523) target = $region64
      $region63: #{tpu_custom_call.1} parent=11 // pred_region
        _
      $region64: #{tpu_custom_call.1} parent=11 // pred_fallthru
        _
      // Predicated region
      $region65: #{tpu_custom_call.1} parent=11 // pred_check
        %p526 = pneg %p383
      $region66: #{tpu_custom_call.1} parent=11 // pred_check_branch
        %528 = sbr.rel (%p526) target = $region68
      $region67: #{tpu_custom_call.1} parent=11 // pred_region
        _
      $region68: #{tpu_custom_call.1} parent=11 // pred_fallthru
        _
      // Predicated region
      $region69: #{tpu_custom_call.1} parent=11 // pred_check
        %p529 = pneg %p404
      $region70: #{tpu_custom_call.1} parent=11 // pred_check_branch
        %531 = sbr.rel (%p529) target = $region72
      $region71: #{tpu_custom_call.1} parent=11 // pred_region
        _
      $region72: #{tpu_custom_call.1} parent=11 // pred_fallthru
        _
      // Predicated region
      $region73: #{tpu_custom_call.1} parent=11 // pred_check
        %p532 = pneg %p425
      $region74: #{tpu_custom_call.1} parent=11 // pred_check_branch
        %534 = sbr.rel (%p532) target = $region76
      $region75: #{tpu_custom_call.1} parent=11 // pred_region
        _
      $region76: #{tpu_custom_call.1} parent=11 // pred_fallthru
        _
      // Predicated region
      $region77: #{tpu_custom_call.1} parent=11 // pred_check
        %p535 = pneg %p446
      $region78: #{tpu_custom_call.1} parent=11 // pred_check_branch
        %537 = sbr.rel (%p535) target = $region80
      $region79: #{tpu_custom_call.1} parent=11 // pred_region
        _
      $region80: #{tpu_custom_call.1} parent=11 // pred_fallthru
        _
    $region12: #{tpu_custom_call.1} parent=5 // pred_fallthru
      _
    %p538 = scmp.lt.s32.totalorder %s25, 6
    // Predicated region
    $region81: #{tpu_custom_call.1} parent=5 // pred_check
      %p539 = pneg %p538
    $region82: #{tpu_custom_call.1} parent=5 // pred_check_branch
      %541 = sbr.rel (%p539) target = $region84
    $region83: #{tpu_custom_call.1} parent=5 // pred_region
      // Predicated region
      $region85: #{tpu_custom_call.1} parent=83 // pred_check
        %p542 = pneg %p57
      $region86: #{tpu_custom_call.1} parent=83 // pred_check_branch
        %544 = sbr.rel (%p542) target = $region88
      $region87: #{tpu_custom_call.1} parent=83 // pred_region
        %p545 = scmp.lt.s32.totalorder %s32, 1
        %s546 = scalar_select %p545, %s32, 1
        %s547 = smul.addr %s546, 16
        %s548 = smul.addr %s547, 8
        %s549 = scalar_lea.vmem %s0, %s548
      $region88: #{tpu_custom_call.1} parent=83 // pred_fallthru
        _
      // Predicated region
      $region89: #{tpu_custom_call.1} parent=83 // pred_check
        %p550 = pneg %p83
      $region90: #{tpu_custom_call.1} parent=83 // pred_check_branch
        %552 = sbr.rel (%p550) target = $region92
      $region91: #{tpu_custom_call.1} parent=83 // pred_region
        %p553 = scmp.lt.s32.totalorder %s32, 1
        %s554 = scalar_select %p553, %s32, 1
        %s555 = scalar_lea.vmem %s1, %s554
      $region92: #{tpu_custom_call.1} parent=83 // pred_fallthru
        _
    $region84: #{tpu_custom_call.1} parent=5 // pred_fallthru
      _
    %p556 = scmp.le.s32.totalorder 1, %s25
    %p557 = scmp.lt.s32.totalorder %s25, 7
    %p558 = pnand %p556, %p557
    %p559 = pneg %p558
    // Predicated region
    $region93: #{tpu_custom_call.1} parent=5 // pred_check
      _
    $region94: #{tpu_custom_call.1} parent=5 // pred_check_branch
      %561 = sbr.rel (%p558) target = $region96
    $region95: #{tpu_custom_call.1} parent=5 // pred_region
      %s562 = ssub.s32 %s25, 1
      %p563 = scmp.lt.s32.totalorder %s34, 1
      %s564 = scalar_select %p563, %s34, 1
      %s565 = smul.addr %s564, 16
      %s566 = smul.addr %s565, 8
      %s567 = scalar_lea.vmem %s0, %s566
      %p568 = pneg %p63
      %p569 = pneg %p60
      %p570 = scmp.lt.s32.totalorder %s34, 1
      %s571 = scalar_select %p570, %s34, 1
      %s572 = scalar_lea.vmem %s1, %s571
      %p573 = pneg %p89
      %p574 = pneg %p86
      %p575 = pneg %p110
      %p576 = pneg %p107
      %p577 = pneg %p131
      %p578 = pneg %p128
      %p579 = pneg %p152
      %p580 = pneg %p149
      %p581 = pneg %p173
      %p582 = pneg %p170
      %p583 = pneg %p194
      %p584 = pneg %p191
      %p585 = pneg %p215
      %p586 = pneg %p212
      %p587 = pneg %p236
      %p588 = pneg %p233
      %p589 = pneg %p257
      %p590 = pneg %p254
      %p591 = pneg %p278
      %p592 = pneg %p275
      %p593 = pneg %p299
      %p594 = pneg %p296
      %p595 = pneg %p320
      %p596 = pneg %p317
      %p597 = pneg %p341
      %p598 = pneg %p338
      %p599 = pneg %p362
      %p600 = pneg %p359
      %p601 = pneg %p383
      %p602 = pneg %p380
      %p603 = pneg %p404
      %p604 = pneg %p401
      %p605 = pneg %p425
      %p606 = pneg %p422
      %p607 = pneg %p446
      %p608 = pneg %p443
      %p609 = pneg %p472
      %p610 = pneg %p469
      %p611 = scmp.lt.s32.totalorder %s34, 1
      %s612 = scalar_select %p611, %s34, 1
      %s613 = smul.addr %s612, 16
      %s614 = smul.addr %s613, 8
      %s615 = scalar_lea.vmem %s19, %s614
      %p616 = scmp.lt.s32.totalorder %s34, 1
      %s617 = scalar_select %p616, %s34, 1
      %s618 = smul.addr %s617, 16
      %s619 = smul.addr %s618, 8
      %s620 = scalar_lea.vmem %s0, %s619
      %p621 = scmp.lt.s32.totalorder %s34, 1
      %s622 = scalar_select %p621, %s34, 1
      %s623 = scalar_lea.vmem %s1, %s622
      %p624 = scmp.lt.s32.totalorder %s34, 1
      %s625 = scalar_select %p624, %s34, 1
      %s626 = smul.addr %s625, 16
      %s627 = smul.addr %s626, 8
      %s628 = scalar_lea.vmem %s19, %s627
      %p630 = scmp.eq.s32.totalorder %s35, 0
      // Predicated region
      $region97: #{tpu_custom_call.1} parent=95 // pred_check
        %p631 = pneg %p630
      $region98: #{tpu_custom_call.1} parent=95 // pred_check_branch
        %633 = sbr.rel (%p631) target = $region100
      $region99: #{tpu_custom_call.1} parent=95 // pred_region
        %v634 = vld [vmem:[%s620] sm:$0xff]
        %v635 = vld [vmem:[%s620 + $0x8] sm:$0xff]
        %v636 = vld [vmem:[%s620 + $0x10] sm:$0xff]
        %v637 = vld [vmem:[%s620 + $0x18] sm:$0xff]
        %v638 = vld [vmem:[%s620 + $0x20] sm:$0xff]
        %v639 = vld [vmem:[%s620 + $0x28] sm:$0xff]
        %v640 = vld [vmem:[%s620 + $0x30] sm:$0xff]
        %v641 = vld [vmem:[%s620 + $0x38] sm:$0xff]
        %v642 = vld [vmem:[%s620 + $0x40] sm:$0xff]
        %v643 = vld [vmem:[%s620 + $0x48] sm:$0xff]
        %v644 = vld [vmem:[%s620 + $0x50] sm:$0xff]
        %v645 = vld [vmem:[%s620 + $0x58] sm:$0xff]
        %v646 = vld [vmem:[%s620 + $0x60] sm:$0xff]
        %v647 = vld [vmem:[%s620 + $0x68] sm:$0xff]
        %v648 = vld [vmem:[%s620 + $0x70] sm:$0xff]
        %v649 = vld [vmem:[%s620 + $0x78] sm:$0xff]
        %vm650 = vcmask 261120
        %651 = vst.msk [vmem:[%s628] sm:$0xff] %vm650, %v634
        %652 = vst.msk [vmem:[%s628 + $0x8] sm:$0xff] %vm650, %v635
        %653 = vst.msk [vmem:[%s628 + $0x10] sm:$0xff] %vm650, %v636
        %654 = vst.msk [vmem:[%s628 + $0x18] sm:$0xff] %vm650, %v637
        %655 = vst.msk [vmem:[%s628 + $0x20] sm:$0xff] %vm650, %v638
        %656 = vst.msk [vmem:[%s628 + $0x28] sm:$0xff] %vm650, %v639
        %657 = vst.msk [vmem:[%s628 + $0x30] sm:$0xff] %vm650, %v640
        %658 = vst.msk [vmem:[%s628 + $0x38] sm:$0xff] %vm650, %v641
        %659 = vst.msk [vmem:[%s628 + $0x40] sm:$0xff] %vm650, %v642
        %660 = vst.msk [vmem:[%s628 + $0x48] sm:$0xff] %vm650, %v643
        %661 = vst.msk [vmem:[%s628 + $0x50] sm:$0xff] %vm650, %v644
        %662 = vst.msk [vmem:[%s628 + $0x58] sm:$0xff] %vm650, %v645
        %663 = vst.msk [vmem:[%s628 + $0x60] sm:$0xff] %vm650, %v646
        %664 = vst.msk [vmem:[%s628 + $0x68] sm:$0xff] %vm650, %v647
        %665 = vst.msk [vmem:[%s628 + $0x70] sm:$0xff] %vm650, %v648
        %666 = vst.msk [vmem:[%s628 + $0x78] sm:$0xff] %vm650, %v649
      $region100: #{tpu_custom_call.1} parent=95 // pred_fallthru
        _
      %v667 = vld [vmem:[%s628] sm:$0xff]
      %v668 = vld [vmem:[%s628 + $0x8] sm:$0xff]
      %v669 = vld [vmem:[%s628 + $0x10] sm:$0xff]
      %v670 = vld [vmem:[%s628 + $0x18] sm:$0xff]
      %v671 = vld [vmem:[%s628 + $0x20] sm:$0xff]
      %v672 = vld [vmem:[%s628 + $0x28] sm:$0xff]
      %v673 = vld [vmem:[%s628 + $0x30] sm:$0xff]
      %v674 = vld [vmem:[%s628 + $0x38] sm:$0xff]
      %v675 = vld [vmem:[%s628 + $0x40] sm:$0xff]
      %v676 = vld [vmem:[%s628 + $0x48] sm:$0xff]
      %v677 = vld [vmem:[%s628 + $0x50] sm:$0xff]
      %v678 = vld [vmem:[%s628 + $0x58] sm:$0xff]
      %v679 = vld [vmem:[%s628 + $0x60] sm:$0xff]
      %v680 = vld [vmem:[%s628 + $0x68] sm:$0xff]
      %v681 = vld [vmem:[%s628 + $0x70] sm:$0xff]
      %v682 = vld [vmem:[%s628 + $0x78] sm:$0xff]
      %s683 = scalar_lea.vmem %s2, %s35
      %v684 = vld [vmem:[%s683] sm:$0x1]
      %v685 = vlaneseq
      %v686 = vshrl.u32 %v685, 7
      %v687 = vsub.s32 0, %v686
      %v688 = vrot.slane %v684, %v687
      %v689 = vadd.f32 %v667, %v688
      %v690 = vadd.f32 %v668, %v688
      %v691 = vadd.f32 %v669, %v688
      %v692 = vadd.f32 %v670, %v688
      %v693 = vadd.f32 %v671, %v688
      %v694 = vadd.f32 %v672, %v688
      %v695 = vadd.f32 %v673, %v688
      %v696 = vadd.f32 %v674, %v688
      %v697 = vadd.f32 %v675, %v688
      %v698 = vadd.f32 %v676, %v688
      %v699 = vadd.f32 %v677, %v688
      %v700 = vadd.f32 %v678, %v688
      %v701 = vadd.f32 %v679, %v688
      %v702 = vadd.f32 %v680, %v688
      %v703 = vadd.f32 %v681, %v688
      %v704 = vadd.f32 %v682, %v688
      %v705 = vld [vmem:[%s623] sm:$0x1]
      %vm706 = vcmp.lt.f32.partialorder %v705, 0.5
      %v707 = vpack.c.bf16 %v690, %v689
      %v708 = vpack.c.bf16 %v692, %v691
      %v709 = vpack.c.bf16 %v694, %v693
      %v710 = vpack.c.bf16 %v696, %v695
      %v711 = vpack.c.bf16 %v698, %v697
      %v712 = vpack.c.bf16 %v700, %v699
      %v713 = vpack.c.bf16 %v702, %v701
      %v714 = vpack.c.bf16 %v704, %v703
      %v715 = vld [vmem:[%s3] sm:$0xff]
      %v716 = vld [vmem:[%s3 + $0x8] sm:$0xff]
      %v717 = vld [vmem:[%s3 + $0x10] sm:$0xff]
      %v718 = vld [vmem:[%s3 + $0x18] sm:$0xff]
      %v719 = vld [vmem:[%s3 + $0x20] sm:$0xff]
      %v720 = vld [vmem:[%s3 + $0x28] sm:$0xff]
      %v721 = vld [vmem:[%s3 + $0x30] sm:$0xff]
      %v722 = vld [vmem:[%s3 + $0x38] sm:$0xff]
      %v723 = vld [vmem:[%s6] sm:$0xf]
      %v725 = vlaneseq
      %v726 = vshrl.u32 %v725, 7
      %v727 = vsub.s32 0, %v726
      %v728 = vrot.slane %v723, %v727
      %v729 = vlaneseq
      %v730 = vshrl.u32 %v729, 7
      %v731 = vsub.s32 1, %v730
      %v732 = vrot.slane %v723, %v731
      %v733 = vlaneseq
      %v734 = vshrl.u32 %v733, 7
      %v735 = vsub.s32 2, %v734
      %v736 = vrot.slane %v723, %v735
      %v737 = vlaneseq
      %v738 = vshrl.u32 %v737, 7
      %v739 = vsub.s32 3, %v738
      %v740 = vrot.slane %v723, %v739
      %v753 = vunpack.c.l.b16 %v715
      %v754 = vunpack.c.h.b16 %v715
      %v755 = vunpack.c.l.b16 %v716
      %v756 = vunpack.c.h.b16 %v716
      %v757 = vunpack.c.l.b16 %v717
      %v758 = vunpack.c.h.b16 %v717
      %v759 = vunpack.c.l.b16 %v718
      %v760 = vunpack.c.h.b16 %v718
      %v761 = vunpack.c.l.b16 %v719
      %v762 = vunpack.c.h.b16 %v719
      %v763 = vunpack.c.l.b16 %v720
      %v764 = vunpack.c.h.b16 %v720
      %v765 = vunpack.c.l.b16 %v721
      %v766 = vunpack.c.h.b16 %v721
      %v767 = vunpack.c.l.b16 %v722
      %v768 = vunpack.c.h.b16 %v722
      %v769 = vpack.c.b16 %v757, %v753
      %v770 = vpack.c.b16 %v758, %v754
      %v771 = vpack.c.b16 %v759, %v755
      %v772 = vpack.c.b16 %v760, %v756
      %v773 = vpack.c.b16 %v765, %v761
      %v774 = vpack.c.b16 %v766, %v762
      %v775 = vpack.c.b16 %v767, %v763
      %v776 = vpack.c.b16 %v768, %v764
      %vm785 = vcmask 261120
      %v787 = vsel %vm785, %v707, 0
      %v790 = vsel %vm785, %v708, 0
      %v793 = vsel %vm785, %v709, 0
      %v796 = vsel %vm785, %v710, 0
      %v799 = vsel %vm785, %v711, 0
      %v802 = vsel %vm785, %v712, 0
      %v805 = vsel %vm785, %v713, 0
      %v808 = vsel %vm785, %v714, 0
      %810 = vmatprep.subr.bf16.mxu0 %v770
      %811 = vmatpush1.bf16.msra.mxu0 %v769
      %812 = vmatprep.subr.bf16.mxu0 %v774
      %813 = vmatpush1.bf16.msra.mxu0 %v773
      %814 = vmatprep.subr.bf16.mxu0 0
      %815 = vmatpush1.bf16.msra.mxu0 0
      %816 = vmatprep.subr.bf16.mxu0 0
      %817 = vmatpush1.bf16.msra.mxu0 0
      %818 = vmatprep.subr.bf16.mxu0 0
      %819 = vmatpush1.bf16.msra.mxu0 0
      %820 = vmatprep.subr.bf16.mxu0 0
      %821 = vmatpush1.bf16.msra.mxu0 0
      %822 = vmatprep.subr.bf16.mxu0 0
      %823 = vmatpush1.bf16.msra.mxu0 0
      %824 = vmatprep.subr.bf16.mxu0 0
      %825 = vmatpush1.bf16.msra.mxu0 0
      %826 = vmatprep.subr.bf16.mxu0 0
      %827 = vmatpush1.bf16.msra.mxu0 0
      %828 = vmatprep.subr.bf16.mxu0 0
      %829 = vmatpush1.bf16.msra.mxu0 0
      %830 = vmatprep.subr.bf16.mxu0 0
      %831 = vmatpush1.bf16.msra.mxu0 0
      %832 = vmatprep.subr.bf16.mxu0 0
      %833 = vmatpush1.bf16.msra.mxu0 0
      %834 = vmatprep.subr.bf16.mxu0 0
      %835 = vmatpush1.bf16.msra.mxu0 0
      %836 = vmatprep.subr.bf16.mxu0 0
      %837 = vmatpush1.bf16.msra.mxu0 0
      %838 = vmatprep.subr.bf16.mxu0 0
      %839 = vmatpush1.bf16.msra.mxu0 0
      %840 = vmatprep.subr.bf16.mxu0 0
      %841 = vmatpush1.bf16.msra.mxu0 0
      %842 = vmatprep.mubr.bf16.mxu0 0
      %843 = vmatmul.mubr.bf16.gmra.mrb[0].mxu0 %v787
      %v844 = vpop.f32.mrb[0].mxu0
      %v845 = vadd.f32 %v728, %v844
      %v846 = vpop.f32.mrb[0].mxu0
      %v847 = vadd.f32 %v732, %v846
      %v848 = vpop.f32.mrb[0].mxu0
      %v849 = vadd.f32 %v728, %v848
      %v850 = vpop.f32.mrb[0].mxu0
      %v851 = vadd.f32 %v732, %v850
      %852 = vmatprep.mubr.bf16.mxu0 0
      %853 = vmatmul.mubr.bf16.gmra.mrb[0].mxu0 %v790
      %v854 = vpop.f32.mrb[0].mxu0
      %v855 = vadd.f32 %v728, %v854
      %v856 = vpop.f32.mrb[0].mxu0
      %v857 = vadd.f32 %v732, %v856
      %v858 = vpop.f32.mrb[0].mxu0
      %v859 = vadd.f32 %v728, %v858
      %v860 = vpop.f32.mrb[0].mxu0
      %v861 = vadd.f32 %v732, %v860
      %862 = vmatprep.mubr.bf16.mxu0 0
      %863 = vmatmul.mubr.bf16.gmra.mrb[0].mxu0 %v793
      %v864 = vpop.f32.mrb[0].mxu0
      %v865 = vadd.f32 %v728, %v864
      %v866 = vpop.f32.mrb[0].mxu0
      %v867 = vadd.f32 %v732, %v866
      %v868 = vpop.f32.mrb[0].mxu0
      %v869 = vadd.f32 %v728, %v868
      %v870 = vpop.f32.mrb[0].mxu0
      %v871 = vadd.f32 %v732, %v870
      %872 = vmatprep.mubr.bf16.mxu0 0
      %873 = vmatmul.mubr.bf16.gmra.mrb[0].mxu0 %v796
      %v874 = vpop.f32.mrb[0].mxu0
      %v875 = vadd.f32 %v728, %v874
      %v876 = vpop.f32.mrb[0].mxu0
      %v877 = vadd.f32 %v732, %v876
      %v878 = vpop.f32.mrb[0].mxu0
      %v879 = vadd.f32 %v728, %v878
      %v880 = vpop.f32.mrb[0].mxu0
      %v881 = vadd.f32 %v732, %v880
      %882 = vmatprep.mubr.bf16.mxu0 0
      %883 = vmatmul.mubr.bf16.gmra.mrb[0].mxu0 %v799
      %v884 = vpop.f32.mrb[0].mxu0
      %v885 = vadd.f32 %v728, %v884
      %v886 = vpop.f32.mrb[0].mxu0
      %v887 = vadd.f32 %v732, %v886
      %v888 = vpop.f32.mrb[0].mxu0
      %v889 = vadd.f32 %v728, %v888
      %v890 = vpop.f32.mrb[0].mxu0
      %v891 = vadd.f32 %v732, %v890
      %892 = vmatprep.mubr.bf16.mxu0 0
      %893 = vmatmul.mubr.bf16.gmra.mrb[0].mxu0 %v802
      %v894 = vpop.f32.mrb[0].mxu0
      %v895 = vadd.f32 %v728, %v894
      %v896 = vpop.f32.mrb[0].mxu0
      %v897 = vadd.f32 %v732, %v896
      %v898 = vpop.f32.mrb[0].mxu0
      %v899 = vadd.f32 %v728, %v898
      %v900 = vpop.f32.mrb[0].mxu0
      %v901 = vadd.f32 %v732, %v900
      %902 = vmatprep.mubr.bf16.mxu0 0
      %903 = vmatmul.mubr.bf16.gmra.mrb[0].mxu0 %v805
      %v904 = vpop.f32.mrb[0].mxu0
      %v905 = vadd.f32 %v728, %v904
      %v906 = vpop.f32.mrb[0].mxu0
      %v907 = vadd.f32 %v732, %v906
      %v908 = vpop.f32.mrb[0].mxu0
      %v909 = vadd.f32 %v728, %v908
      %v910 = vpop.f32.mrb[0].mxu0
      %v911 = vadd.f32 %v732, %v910
      %912 = vmatprep.mubr.bf16.mxu0 0
      %913 = vmatmul.mubr.bf16.gmra.mrb[0].mxu0 %v808
      %v914 = vpop.f32.mrb[0].mxu0
      %v915 = vadd.f32 %v728, %v914
      %v916 = vpop.f32.mrb[0].mxu0
      %v917 = vadd.f32 %v732, %v916
      %v918 = vpop.f32.mrb[0].mxu0
      %v919 = vadd.f32 %v728, %v918
      %v920 = vpop.f32.mrb[0].mxu0
      %v921 = vadd.f32 %v732, %v920
      %922 = vdwg.mxu0
      %923 = vmatprep.subr.bf16.mxu0 %v772
      %924 = vmatpush1.bf16.msra.mxu0 %v771
      %925 = vmatprep.subr.bf16.mxu0 %v776
      %926 = vmatpush1.bf16.msra.mxu0 %v775
      %927 = vmatprep.subr.bf16.mxu0 0
      %928 = vmatpush1.bf16.msra.mxu0 0
      %929 = vmatprep.subr.bf16.mxu0 0
      %930 = vmatpush1.bf16.msra.mxu0 0
      %931 = vmatprep.subr.bf16.mxu0 0
      %932 = vmatpush1.bf16.msra.mxu0 0
      %933 = vmatprep.subr.bf16.mxu0 0
      %934 = vmatpush1.bf16.msra.mxu0 0
      %935 = vmatprep.subr.bf16.mxu0 0
      %936 = vmatpush1.bf16.msra.mxu0 0
      %937 = vmatprep.subr.bf16.mxu0 0
      %938 = vmatpush1.bf16.msra.mxu0 0
      %939 = vmatprep.subr.bf16.mxu0 0
      %940 = vmatpush1.bf16.msra.mxu0 0
      %941 = vmatprep.subr.bf16.mxu0 0
      %942 = vmatpush1.bf16.msra.mxu0 0
      %943 = vmatprep.subr.bf16.mxu0 0
      %944 = vmatpush1.bf16.msra.mxu0 0
      %945 = vmatprep.subr.bf16.mxu0 0
      %946 = vmatpush1.bf16.msra.mxu0 0
      %947 = vmatprep.subr.bf16.mxu0 0
      %948 = vmatpush1.bf16.msra.mxu0 0
      %949 = vmatprep.subr.bf16.mxu0 0
      %950 = vmatpush1.bf16.msra.mxu0 0
      %951 = vmatprep.subr.bf16.mxu0 0
      %952 = vmatpush1.bf16.msra.mxu0 0
      %953 = vmatprep.subr.bf16.mxu0 0
      %954 = vmatpush1.bf16.msra.mxu0 0
      %955 = vmatprep.mubr.bf16.mxu0 0
      %956 = vmatmul.mubr.bf16.gmra.mrb[0].mxu0 %v787
      %v957 = vpop.f32.mrb[0].mxu0
      %v958 = vadd.f32 %v736, %v957
      %v959 = vpop.f32.mrb[0].mxu0
      %v960 = vadd.f32 %v740, %v959
      %v961 = vpop.f32.mrb[0].mxu0
      %v962 = vadd.f32 %v736, %v961
      %v963 = vpop.f32.mrb[0].mxu0
      %v964 = vadd.f32 %v740, %v963
      %965 = vmatprep.mubr.bf16.mxu0 0
      %966 = vmatmul.mubr.bf16.gmra.mrb[0].mxu0 %v790
      %v967 = vpop.f32.mrb[0].mxu0
      %v968 = vadd.f32 %v736, %v967
      %v969 = vpop.f32.mrb[0].mxu0
      %v970 = vadd.f32 %v740, %v969
      %v971 = vpop.f32.mrb[0].mxu0
      %v972 = vadd.f32 %v736, %v971
      %v973 = vpop.f32.mrb[0].mxu0
      %v974 = vadd.f32 %v740, %v973
      %975 = vmatprep.mubr.bf16.mxu0 0
      %976 = vmatmul.mubr.bf16.gmra.mrb[0].mxu0 %v793
      %v977 = vpop.f32.mrb[0].mxu0
      %v978 = vadd.f32 %v736, %v977
      %v979 = vpop.f32.mrb[0].mxu0
      %v980 = vadd.f32 %v740, %v979
      %v981 = vpop.f32.mrb[0].mxu0
      %v982 = vadd.f32 %v736, %v981
      %v983 = vpop.f32.mrb[0].mxu0
      %v984 = vadd.f32 %v740, %v983
      %985 = vmatprep.mubr.bf16.mxu0 0
      %986 = vmatmul.mubr.bf16.gmra.mrb[0].mxu0 %v796
      %v987 = vpop.f32.mrb[0].mxu0
      %v988 = vadd.f32 %v736, %v987
      %v989 = vpop.f32.mrb[0].mxu0
      %v990 = vadd.f32 %v740, %v989
      %v991 = vpop.f32.mrb[0].mxu0
      %v992 = vadd.f32 %v736, %v991
      %v993 = vpop.f32.mrb[0].mxu0
      %v994 = vadd.f32 %v740, %v993
      %995 = vmatprep.mubr.bf16.mxu0 0
      %996 = vmatmul.mubr.bf16.gmra.mrb[0].mxu0 %v799
      %v997 = vpop.f32.mrb[0].mxu0
      %v998 = vadd.f32 %v736, %v997
      %v999 = vpop.f32.mrb[0].mxu0
      %v1000 = vadd.f32 %v740, %v999
      %v1001 = vpop.f32.mrb[0].mxu0
      %v1002 = vadd.f32 %v736, %v1001
      %v1003 = vpop.f32.mrb[0].mxu0
      %v1004 = vadd.f32 %v740, %v1003
      %1005 = vmatprep.mubr.bf16.mxu0 0
      %1006 = vmatmul.mubr.bf16.gmra.mrb[0].mxu0 %v802
      %v1007 = vpop.f32.mrb[0].mxu0
      %v1008 = vadd.f32 %v736, %v1007
      %v1009 = vpop.f32.mrb[0].mxu0
      %v1010 = vadd.f32 %v740, %v1009
      %v1011 = vpop.f32.mrb[0].mxu0
      %v1012 = vadd.f32 %v736, %v1011
      %v1013 = vpop.f32.mrb[0].mxu0
      %v1014 = vadd.f32 %v740, %v1013
      %1015 = vmatprep.mubr.bf16.mxu0 0
      %1016 = vmatmul.mubr.bf16.gmra.mrb[0].mxu0 %v805
      %v1017 = vpop.f32.mrb[0].mxu0
      %v1018 = vadd.f32 %v736, %v1017
      %v1019 = vpop.f32.mrb[0].mxu0
      %v1020 = vadd.f32 %v740, %v1019
      %v1021 = vpop.f32.mrb[0].mxu0
      %v1022 = vadd.f32 %v736, %v1021
      %v1023 = vpop.f32.mrb[0].mxu0
      %v1024 = vadd.f32 %v740, %v1023
      %1025 = vmatprep.mubr.bf16.mxu0 0
      %1026 = vmatmul.mubr.bf16.gmra.mrb[0].mxu0 %v808
      %v1027 = vpop.f32.mrb[0].mxu0
      %v1028 = vadd.f32 %v736, %v1027
      %v1029 = vpop.f32.mrb[0].mxu0
      %v1030 = vadd.f32 %v740, %v1029
      %v1031 = vpop.f32.mrb[0].mxu0
      %v1032 = vadd.f32 %v736, %v1031
      %v1033 = vpop.f32.mrb[0].mxu0
      %v1034 = vadd.f32 %v740, %v1033
      %1035 = vdwg.mxu0
      %v1036 = vpack.c.bf16 %v849, %v845
      %v1037 = vpack.c.bf16 %v851, %v847
      %v1038 = vpack.c.bf16 %v962, %v958
      %v1039 = vpack.c.bf16 %v964, %v960
      %v1040 = vpack.c.bf16 %v859, %v855
      %v1041 = vpack.c.bf16 %v861, %v857
      %v1042 = vpack.c.bf16 %v972, %v968
      %v1043 = vpack.c.bf16 %v974, %v970
      %v1044 = vpack.c.bf16 %v869, %v865
      %v1045 = vpack.c.bf16 %v871, %v867
      %v1046 = vpack.c.bf16 %v982, %v978
      %v1047 = vpack.c.bf16 %v984, %v980
      %v1048 = vpack.c.bf16 %v879, %v875
      %v1049 = vpack.c.bf16 %v881, %v877
      %v1050 = vpack.c.bf16 %v992, %v988
      %v1051 = vpack.c.bf16 %v994, %v990
      %v1052 = vpack.c.bf16 %v889, %v885
      %v1053 = vpack.c.bf16 %v891, %v887
      %v1054 = vpack.c.bf16 %v1002, %v998
      %v1055 = vpack.c.bf16 %v1004, %v1000
      %v1056 = vpack.c.bf16 %v899, %v895
      %v1057 = vpack.c.bf16 %v901, %v897
      %v1058 = vpack.c.bf16 %v1012, %v1008
      %v1059 = vpack.c.bf16 %v1014, %v1010
      %v1060 = vpack.c.bf16 %v909, %v905
      %v1061 = vpack.c.bf16 %v911, %v907
      %v1062 = vpack.c.bf16 %v1022, %v1018
      %v1063 = vpack.c.bf16 %v1024, %v1020
      %v1064 = vpack.c.bf16 %v919, %v915
      %v1065 = vpack.c.bf16 %v921, %v917
      %v1066 = vpack.c.bf16 %v1032, %v1028
      %v1067 = vpack.c.bf16 %v1034, %v1030
      %v1068 = vld [vmem:[%s4] sm:$0xff]
      %v1069 = vld [vmem:[%s4 + $0x8] sm:$0xff]
      %v1070 = vld [vmem:[%s4 + $0x10] sm:$0xff]
      %v1071 = vld [vmem:[%s4 + $0x18] sm:$0xff]
      %v1072 = vld [vmem:[%s4 + $0x20] sm:$0xff]
      %v1073 = vld [vmem:[%s4 + $0x28] sm:$0xff]
      %v1074 = vld [vmem:[%s4 + $0x30] sm:$0xff]
      %v1075 = vld [vmem:[%s4 + $0x38] sm:$0xff]
      %v1076 = vld [vmem:[%s7] sm:$0xf]
      %v1078 = vlaneseq
      %v1079 = vshrl.u32 %v1078, 7
      %v1080 = vsub.s32 0, %v1079
      %v1081 = vrot.slane %v1076, %v1080
      %v1082 = vlaneseq
      %v1083 = vshrl.u32 %v1082, 7
      %v1084 = vsub.s32 1, %v1083
      %v1085 = vrot.slane %v1076, %v1084
      %v1086 = vlaneseq
      %v1087 = vshrl.u32 %v1086, 7
      %v1088 = vsub.s32 2, %v1087
      %v1089 = vrot.slane %v1076, %v1088
      %v1090 = vlaneseq
      %v1091 = vshrl.u32 %v1090, 7
      %v1092 = vsub.s32 3, %v1091
      %v1093 = vrot.slane %v1076, %v1092
      %v1106 = vunpack.c.l.b16 %v1068
      %v1107 = vunpack.c.h.b16 %v1068
      %v1108 = vunpack.c.l.b16 %v1069
      %v1109 = vunpack.c.h.b16 %v1069
      %v1110 = vunpack.c.l.b16 %v1070
      %v1111 = vunpack.c.h.b16 %v1070
      %v1112 = vunpack.c.l.b16 %v1071
      %v1113 = vunpack.c.h.b16 %v1071
      %v1114 = vunpack.c.l.b16 %v1072
      %v1115 = vunpack.c.h.b16 %v1072
      %v1116 = vunpack.c.l.b16 %v1073
      %v1117 = vunpack.c.h.b16 %v1073
      %v1118 = vunpack.c.l.b16 %v1074
      %v1119 = vunpack.c.h.b16 %v1074
      %v1120 = vunpack.c.l.b16 %v1075
      %v1121 = vunpack.c.h.b16 %v1075
      %v1122 = vpack.c.b16 %v1110, %v1106
      %v1123 = vpack.c.b16 %v1111, %v1107
      %v1124 = vpack.c.b16 %v1112, %v1108
      %v1125 = vpack.c.b16 %v1113, %v1109
      %v1126 = vpack.c.b16 %v1118, %v1114
      %v1127 = vpack.c.b16 %v1119, %v1115
      %v1128 = vpack.c.b16 %v1120, %v1116
      %v1129 = vpack.c.b16 %v1121, %v1117
      %1138 = vmatprep.subr.bf16.mxu0 %v1123
      %1139 = vmatpush1.bf16.msra.mxu0 %v1122
      %1140 = vmatprep.subr.bf16.mxu0 %v1127
      %1141 = vmatpush1.bf16.msra.mxu0 %v1126
      %1142 = vmatprep.subr.bf16.mxu0 0
      %1143 = vmatpush1.bf16.msra.mxu0 0
      %1144 = vmatprep.subr.bf16.mxu0 0
      %1145 = vmatpush1.bf16.msra.mxu0 0
      %1146 = vmatprep.subr.bf16.mxu0 0
      %1147 = vmatpush1.bf16.msra.mxu0 0
      %1148 = vmatprep.subr.bf16.mxu0 0
      %1149 = vmatpush1.bf16.msra.mxu0 0
      %1150 = vmatprep.subr.bf16.mxu0 0
      %1151 = vmatpush1.bf16.msra.mxu0 0
      %1152 = vmatprep.subr.bf16.mxu0 0
      %1153 = vmatpush1.bf16.msra.mxu0 0
      %1154 = vmatprep.subr.bf16.mxu0 0
      %1155 = vmatpush1.bf16.msra.mxu0 0
      %1156 = vmatprep.subr.bf16.mxu0 0
      %1157 = vmatpush1.bf16.msra.mxu0 0
      %1158 = vmatprep.subr.bf16.mxu0 0
      %1159 = vmatpush1.bf16.msra.mxu0 0
      %1160 = vmatprep.subr.bf16.mxu0 0
      %1161 = vmatpush1.bf16.msra.mxu0 0
      %1162 = vmatprep.subr.bf16.mxu0 0
      %1163 = vmatpush1.bf16.msra.mxu0 0
      %1164 = vmatprep.subr.bf16.mxu0 0
      %1165 = vmatpush1.bf16.msra.mxu0 0
      %1166 = vmatprep.subr.bf16.mxu0 0
      %1167 = vmatpush1.bf16.msra.mxu0 0
      %1168 = vmatprep.subr.bf16.mxu0 0
      %1169 = vmatpush1.bf16.msra.mxu0 0
      %1170 = vmatprep.mubr.bf16.mxu0 0
      %1171 = vmatmul.mubr.bf16.gmra.mrb[0].mxu0 %v787
      %v1172 = vpop.f32.mrb[0].mxu0
      %v1173 = vadd.f32 %v1081, %v1172
      %v1174 = vpop.f32.mrb[0].mxu0
      %v1175 = vadd.f32 %v1085, %v1174
      %v1176 = vpop.f32.mrb[0].mxu0
      %v1177 = vadd.f32 %v1081, %v1176
      %v1178 = vpop.f32.mrb[0].mxu0
      %v1179 = vadd.f32 %v1085, %v1178
      %1180 = vmatprep.mubr.bf16.mxu0 0
      %1181 = vmatmul.mubr.bf16.gmra.mrb[0].mxu0 %v790
      %v1182 = vpop.f32.mrb[0].mxu0
      %v1183 = vadd.f32 %v1081, %v1182
      %v1184 = vpop.f32.mrb[0].mxu0
      %v1185 = vadd.f32 %v1085, %v1184
      %v1186 = vpop.f32.mrb[0].mxu0
      %v1187 = vadd.f32 %v1081, %v1186
      %v1188 = vpop.f32.mrb[0].mxu0
      %v1189 = vadd.f32 %v1085, %v1188
      %1190 = vmatprep.mubr.bf16.mxu0 0
      %1191 = vmatmul.mubr.bf16.gmra.mrb[0].mxu0 %v793
      %v1192 = vpop.f32.mrb[0].mxu0
      %v1193 = vadd.f32 %v1081, %v1192
      %v1194 = vpop.f32.mrb[0].mxu0
      %v1195 = vadd.f32 %v1085, %v1194
      %v1196 = vpop.f32.mrb[0].mxu0
      %v1197 = vadd.f32 %v1081, %v1196
      %v1198 = vpop.f32.mrb[0].mxu0
      %v1199 = vadd.f32 %v1085, %v1198
      %1200 = vmatprep.mubr.bf16.mxu0 0
      %1201 = vmatmul.mubr.bf16.gmra.mrb[0].mxu0 %v796
      %v1202 = vpop.f32.mrb[0].mxu0
      %v1203 = vadd.f32 %v1081, %v1202
      %v1204 = vpop.f32.mrb[0].mxu0
      %v1205 = vadd.f32 %v1085, %v1204
      %v1206 = vpop.f32.mrb[0].mxu0
      %v1207 = vadd.f32 %v1081, %v1206
      %v1208 = vpop.f32.mrb[0].mxu0
      %v1209 = vadd.f32 %v1085, %v1208
      %1210 = vmatprep.mubr.bf16.mxu0 0
      %1211 = vmatmul.mubr.bf16.gmra.mrb[0].mxu0 %v799
      %v1212 = vpop.f32.mrb[0].mxu0
      %v1213 = vadd.f32 %v1081, %v1212
      %v1214 = vpop.f32.mrb[0].mxu0
      %v1215 = vadd.f32 %v1085, %v1214
      %v1216 = vpop.f32.mrb[0].mxu0
      %v1217 = vadd.f32 %v1081, %v1216
      %v1218 = vpop.f32.mrb[0].mxu0
      %v1219 = vadd.f32 %v1085, %v1218
      %1220 = vmatprep.mubr.bf16.mxu0 0
      %1221 = vmatmul.mubr.bf16.gmra.mrb[0].mxu0 %v802
      %v1222 = vpop.f32.mrb[0].mxu0
      %v1223 = vadd.f32 %v1081, %v1222
      %v1224 = vpop.f32.mrb[0].mxu0
      %v1225 = vadd.f32 %v1085, %v1224
      %v1226 = vpop.f32.mrb[0].mxu0
      %v1227 = vadd.f32 %v1081, %v1226
      %v1228 = vpop.f32.mrb[0].mxu0
      %v1229 = vadd.f32 %v1085, %v1228
      %1230 = vmatprep.mubr.bf16.mxu0 0
      %1231 = vmatmul.mubr.bf16.gmra.mrb[0].mxu0 %v805
      %v1232 = vpop.f32.mrb[0].mxu0
      %v1233 = vadd.f32 %v1081, %v1232
      %v1234 = vpop.f32.mrb[0].mxu0
      %v1235 = vadd.f32 %v1085, %v1234
      %v1236 = vpop.f32.mrb[0].mxu0
      %v1237 = vadd.f32 %v1081, %v1236
      %v1238 = vpop.f32.mrb[0].mxu0
      %v1239 = vadd.f32 %v1085, %v1238
      %1240 = vmatprep.mubr.bf16.mxu0 0
      %1241 = vmatmul.mubr.bf16.gmra.mrb[0].mxu0 %v808
      %v1242 = vpop.f32.mrb[0].mxu0
      %v1243 = vadd.f32 %v1081, %v1242
      %v1244 = vpop.f32.mrb[0].mxu0
      %v1245 = vadd.f32 %v1085, %v1244
      %v1246 = vpop.f32.mrb[0].mxu0
      %v1247 = vadd.f32 %v1081, %v1246
      %v1248 = vpop.f32.mrb[0].mxu0
      %v1249 = vadd.f32 %v1085, %v1248
      %1250 = vdwg.mxu0
      %1251 = vmatprep.subr.bf16.mxu0 %v1125
      %1252 = vmatpush1.bf16.msra.mxu0 %v1124
      %1253 = vmatprep.subr.bf16.mxu0 %v1129
      %1254 = vmatpush1.bf16.msra.mxu0 %v1128
      %1255 = vmatprep.subr.bf16.mxu0 0
      %1256 = vmatpush1.bf16.msra.mxu0 0
      %1257 = vmatprep.subr.bf16.mxu0 0
      %1258 = vmatpush1.bf16.msra.mxu0 0
      %1259 = vmatprep.subr.bf16.mxu0 0
      %1260 = vmatpush1.bf16.msra.mxu0 0
      %1261 = vmatprep.subr.bf16.mxu0 0
      %1262 = vmatpush1.bf16.msra.mxu0 0
      %1263 = vmatprep.subr.bf16.mxu0 0
      %1264 = vmatpush1.bf16.msra.mxu0 0
      %1265 = vmatprep.subr.bf16.mxu0 0
      %1266 = vmatpush1.bf16.msra.mxu0 0
      %1267 = vmatprep.subr.bf16.mxu0 0
      %1268 = vmatpush1.bf16.msra.mxu0 0
      %1269 = vmatprep.subr.bf16.mxu0 0
      %1270 = vmatpush1.bf16.msra.mxu0 0
      %1271 = vmatprep.subr.bf16.mxu0 0
      %1272 = vmatpush1.bf16.msra.mxu0 0
      %1273 = vmatprep.subr.bf16.mxu0 0
      %1274 = vmatpush1.bf16.msra.mxu0 0
      %1275 = vmatprep.subr.bf16.mxu0 0
      %1276 = vmatpush1.bf16.msra.mxu0 0
      %1277 = vmatprep.subr.bf16.mxu0 0
      %1278 = vmatpush1.bf16.msra.mxu0 0
      %1279 = vmatprep.subr.bf16.mxu0 0
      %1280 = vmatpush1.bf16.msra.mxu0 0
      %1281 = vmatprep.subr.bf16.mxu0 0
      %1282 = vmatpush1.bf16.msra.mxu0 0
      %1283 = vmatprep.mubr.bf16.mxu0 0
      %1284 = vmatmul.mubr.bf16.gmra.mrb[0].mxu0 %v787
      %v1285 = vpop.f32.mrb[0].mxu0
      %v1286 = vadd.f32 %v1089, %v1285
      %v1287 = vpop.f32.mrb[0].mxu0
      %v1288 = vadd.f32 %v1093, %v1287
      %v1289 = vpop.f32.mrb[0].mxu0
      %v1290 = vadd.f32 %v1089, %v1289
      %v1291 = vpop.f32.mrb[0].mxu0
      %v1292 = vadd.f32 %v1093, %v1291
      %1293 = vmatprep.mubr.bf16.mxu0 0
      %1294 = vmatmul.mubr.bf16.gmra.mrb[0].mxu0 %v790
      %v1295 = vpop.f32.mrb[0].mxu0
      %v1296 = vadd.f32 %v1089, %v1295
      %v1297 = vpop.f32.mrb[0].mxu0
      %v1298 = vadd.f32 %v1093, %v1297
      %v1299 = vpop.f32.mrb[0].mxu0
      %v1300 = vadd.f32 %v1089, %v1299
      %v1301 = vpop.f32.mrb[0].mxu0
      %v1302 = vadd.f32 %v1093, %v1301
      %1303 = vmatprep.mubr.bf16.mxu0 0
      %1304 = vmatmul.mubr.bf16.gmra.mrb[0].mxu0 %v793
      %v1305 = vpop.f32.mrb[0].mxu0
      %v1306 = vadd.f32 %v1089, %v1305
      %v1307 = vpop.f32.mrb[0].mxu0
      %v1308 = vadd.f32 %v1093, %v1307
      %v1309 = vpop.f32.mrb[0].mxu0
      %v1310 = vadd.f32 %v1089, %v1309
      %v1311 = vpop.f32.mrb[0].mxu0
      %v1312 = vadd.f32 %v1093, %v1311
      %1313 = vmatprep.mubr.bf16.mxu0 0
      %1314 = vmatmul.mubr.bf16.gmra.mrb[0].mxu0 %v796
      %v1315 = vpop.f32.mrb[0].mxu0
      %v1316 = vadd.f32 %v1089, %v1315
      %v1317 = vpop.f32.mrb[0].mxu0
      %v1318 = vadd.f32 %v1093, %v1317
      %v1319 = vpop.f32.mrb[0].mxu0
      %v1320 = vadd.f32 %v1089, %v1319
      %v1321 = vpop.f32.mrb[0].mxu0
      %v1322 = vadd.f32 %v1093, %v1321
      %1323 = vmatprep.mubr.bf16.mxu0 0
      %1324 = vmatmul.mubr.bf16.gmra.mrb[0].mxu0 %v799
      %v1325 = vpop.f32.mrb[0].mxu0
      %v1326 = vadd.f32 %v1089, %v1325
      %v1327 = vpop.f32.mrb[0].mxu0
      %v1328 = vadd.f32 %v1093, %v1327
      %v1329 = vpop.f32.mrb[0].mxu0
      %v1330 = vadd.f32 %v1089, %v1329
      %v1331 = vpop.f32.mrb[0].mxu0
      %v1332 = vadd.f32 %v1093, %v1331
      %1333 = vmatprep.mubr.bf16.mxu0 0
      %1334 = vmatmul.mubr.bf16.gmra.mrb[0].mxu0 %v802
      %v1335 = vpop.f32.mrb[0].mxu0
      %v1336 = vadd.f32 %v1089, %v1335
      %v1337 = vpop.f32.mrb[0].mxu0
      %v1338 = vadd.f32 %v1093, %v1337
      %v1339 = vpop.f32.mrb[0].mxu0
      %v1340 = vadd.f32 %v1089, %v1339
      %v1341 = vpop.f32.mrb[0].mxu0
      %v1342 = vadd.f32 %v1093, %v1341
      %1343 = vmatprep.mubr.bf16.mxu0 0
      %1344 = vmatmul.mubr.bf16.gmra.mrb[0].mxu0 %v805
      %v1345 = vpop.f32.mrb[0].mxu0
      %v1346 = vadd.f32 %v1089, %v1345
      %v1347 = vpop.f32.mrb[0].mxu0
      %v1348 = vadd.f32 %v1093, %v1347
      %v1349 = vpop.f32.mrb[0].mxu0
      %v1350 = vadd.f32 %v1089, %v1349
      %v1351 = vpop.f32.mrb[0].mxu0
      %v1352 = vadd.f32 %v1093, %v1351
      %1353 = vmatprep.mubr.bf16.mxu0 0
      %1354 = vmatmul.mubr.bf16.gmra.mrb[0].mxu0 %v808
      %v1355 = vpop.f32.mrb[0].mxu0
      %v1356 = vadd.f32 %v1089, %v1355
      %v1357 = vpop.f32.mrb[0].mxu0
      %v1358 = vadd.f32 %v1093, %v1357
      %v1359 = vpop.f32.mrb[0].mxu0
      %v1360 = vadd.f32 %v1089, %v1359
      %v1361 = vpop.f32.mrb[0].mxu0
      %v1362 = vadd.f32 %v1093, %v1361
      %1363 = vdwg.mxu0
      %v1364 = vpack.c.bf16 %v1177, %v1173
      %v1365 = vpack.c.bf16 %v1179, %v1175
      %v1366 = vpack.c.bf16 %v1290, %v1286
      %v1367 = vpack.c.bf16 %v1292, %v1288
      %v1368 = vpack.c.bf16 %v1187, %v1183
      %v1369 = vpack.c.bf16 %v1189, %v1185
      %v1370 = vpack.c.bf16 %v1300, %v1296
      %v1371 = vpack.c.bf16 %v1302, %v1298
      %v1372 = vpack.c.bf16 %v1197, %v1193
      %v1373 = vpack.c.bf16 %v1199, %v1195
      %v1374 = vpack.c.bf16 %v1310, %v1306
      %v1375 = vpack.c.bf16 %v1312, %v1308
      %v1376 = vpack.c.bf16 %v1207, %v1203
      %v1377 = vpack.c.bf16 %v1209, %v1205
      %v1378 = vpack.c.bf16 %v1320, %v1316
      %v1379 = vpack.c.bf16 %v1322, %v1318
      %v1380 = vpack.c.bf16 %v1217, %v1213
      %v1381 = vpack.c.bf16 %v1219, %v1215
      %v1382 = vpack.c.bf16 %v1330, %v1326
      %v1383 = vpack.c.bf16 %v1332, %v1328
      %v1384 = vpack.c.bf16 %v1227, %v1223
      %v1385 = vpack.c.bf16 %v1229, %v1225
      %v1386 = vpack.c.bf16 %v1340, %v1336
      %v1387 = vpack.c.bf16 %v1342, %v1338
      %v1388 = vpack.c.bf16 %v1237, %v1233
      %v1389 = vpack.c.bf16 %v1239, %v1235
      %v1390 = vpack.c.bf16 %v1350, %v1346
      %v1391 = vpack.c.bf16 %v1352, %v1348
      %v1392 = vpack.c.bf16 %v1247, %v1243
      %v1393 = vpack.c.bf16 %v1249, %v1245
      %v1394 = vpack.c.bf16 %v1360, %v1356
      %v1395 = vpack.c.bf16 %v1362, %v1358
      %v1396 = vld [vmem:[%s5] sm:$0xff]
      %v1397 = vld [vmem:[%s5 + $0x8] sm:$0xff]
      %v1398 = vld [vmem:[%s5 + $0x10] sm:$0xff]
      %v1399 = vld [vmem:[%s5 + $0x18] sm:$0xff]
      %v1400 = vld [vmem:[%s5 + $0x20] sm:$0xff]
      %v1401 = vld [vmem:[%s5 + $0x28] sm:$0xff]
      %v1402 = vld [vmem:[%s5 + $0x30] sm:$0xff]
      %v1403 = vld [vmem:[%s5 + $0x38] sm:$0xff]
      %v1404 = vld [vmem:[%s8] sm:$0xf]
      %v1406 = vlaneseq
      %v1407 = vshrl.u32 %v1406, 7
      %v1408 = vsub.s32 0, %v1407
      %v1409 = vrot.slane %v1404, %v1408
      %v1410 = vlaneseq
      %v1411 = vshrl.u32 %v1410, 7
      %v1412 = vsub.s32 1, %v1411
      %v1413 = vrot.slane %v1404, %v1412
      %v1414 = vlaneseq
      %v1415 = vshrl.u32 %v1414, 7
      %v1416 = vsub.s32 2, %v1415
      %v1417 = vrot.slane %v1404, %v1416
      %v1418 = vlaneseq
      %v1419 = vshrl.u32 %v1418, 7
      %v1420 = vsub.s32 3, %v1419
      %v1421 = vrot.slane %v1404, %v1420
      %v1434 = vunpack.c.l.b16 %v1396
      %v1435 = vunpack.c.h.b16 %v1396
      %v1436 = vunpack.c.l.b16 %v1397
      %v1437 = vunpack.c.h.b16 %v1397
      %v1438 = vunpack.c.l.b16 %v1398
      %v1439 = vunpack.c.h.b16 %v1398
      %v1440 = vunpack.c.l.b16 %v1399
      %v1441 = vunpack.c.h.b16 %v1399
      %v1442 = vunpack.c.l.b16 %v1400
      %v1443 = vunpack.c.h.b16 %v1400
      %v1444 = vunpack.c.l.b16 %v1401
      %v1445 = vunpack.c.h.b16 %v1401
      %v1446 = vunpack.c.l.b16 %v1402
      %v1447 = vunpack.c.h.b16 %v1402
      %v1448 = vunpack.c.l.b16 %v1403
      %v1449 = vunpack.c.h.b16 %v1403
      %v1450 = vpack.c.b16 %v1438, %v1434
      %v1451 = vpack.c.b16 %v1439, %v1435
      %v1452 = vpack.c.b16 %v1440, %v1436
      %v1453 = vpack.c.b16 %v1441, %v1437
      %v1454 = vpack.c.b16 %v1446, %v1442
      %v1455 = vpack.c.b16 %v1447, %v1443
      %v1456 = vpack.c.b16 %v1448, %v1444
      %v1457 = vpack.c.b16 %v1449, %v1445
      %1466 = vmatprep.subr.bf16.mxu0 %v1451
      %1467 = vmatpush1.bf16.msra.mxu0 %v1450
      %1468 = vmatprep.subr.bf16.mxu0 %v1455
      %1469 = vmatpush1.bf16.msra.mxu0 %v1454
      %1470 = vmatprep.subr.bf16.mxu0 0
      %1471 = vmatpush1.bf16.msra.mxu0 0
      %1472 = vmatprep.subr.bf16.mxu0 0
      %1473 = vmatpush1.bf16.msra.mxu0 0
      %1474 = vmatprep.subr.bf16.mxu0 0
      %1475 = vmatpush1.bf16.msra.mxu0 0
      %1476 = vmatprep.subr.bf16.mxu0 0
      %1477 = vmatpush1.bf16.msra.mxu0 0
      %1478 = vmatprep.subr.bf16.mxu0 0
      %1479 = vmatpush1.bf16.msra.mxu0 0
      %1480 = vmatprep.subr.bf16.mxu0 0
      %1481 = vmatpush1.bf16.msra.mxu0 0
      %1482 = vmatprep.subr.bf16.mxu0 0
      %1483 = vmatpush1.bf16.msra.mxu0 0
      %1484 = vmatprep.subr.bf16.mxu0 0
      %1485 = vmatpush1.bf16.msra.mxu0 0
      %1486 = vmatprep.subr.bf16.mxu0 0
      %1487 = vmatpush1.bf16.msra.mxu0 0
      %1488 = vmatprep.subr.bf16.mxu0 0
      %1489 = vmatpush1.bf16.msra.mxu0 0
      %1490 = vmatprep.subr.bf16.mxu0 0
      %1491 = vmatpush1.bf16.msra.mxu0 0
      %1492 = vmatprep.subr.bf16.mxu0 0
      %1493 = vmatpush1.bf16.msra.mxu0 0
      %1494 = vmatprep.subr.bf16.mxu0 0
      %1495 = vmatpush1.bf16.msra.mxu0 0
      %1496 = vmatprep.subr.bf16.mxu0 0
      %1497 = vmatpush1.bf16.msra.mxu0 0
      %1498 = vmatprep.mubr.bf16.mxu0 0
      %1499 = vmatmul.mubr.bf16.gmra.mrb[0].mxu0 %v787
      %v1500 = vpop.f32.mrb[0].mxu0
      %v1501 = vadd.f32 %v1409, %v1500
      %v1502 = vpop.f32.mrb[0].mxu0
      %v1503 = vadd.f32 %v1413, %v1502
      %v1504 = vpop.f32.mrb[0].mxu0
      %v1505 = vadd.f32 %v1409, %v1504
      %v1506 = vpop.f32.mrb[0].mxu0
      %v1507 = vadd.f32 %v1413, %v1506
      %1508 = vmatprep.mubr.bf16.mxu0 0
      %1509 = vmatmul.mubr.bf16.gmra.mrb[0].mxu0 %v790
      %v1510 = vpop.f32.mrb[0].mxu0
      %v1511 = vadd.f32 %v1409, %v1510
      %v1512 = vpop.f32.mrb[0].mxu0
      %v1513 = vadd.f32 %v1413, %v1512
      %v1514 = vpop.f32.mrb[0].mxu0
      %v1515 = vadd.f32 %v1409, %v1514
      %v1516 = vpop.f32.mrb[0].mxu0
      %v1517 = vadd.f32 %v1413, %v1516
      %1518 = vmatprep.mubr.bf16.mxu0 0
      %1519 = vmatmul.mubr.bf16.gmra.mrb[0].mxu0 %v793
      %v1520 = vpop.f32.mrb[0].mxu0
      %v1521 = vadd.f32 %v1409, %v1520
      %v1522 = vpop.f32.mrb[0].mxu0
      %v1523 = vadd.f32 %v1413, %v1522
      %v1524 = vpop.f32.mrb[0].mxu0
      %v1525 = vadd.f32 %v1409, %v1524
      %v1526 = vpop.f32.mrb[0].mxu0
      %v1527 = vadd.f32 %v1413, %v1526
      %1528 = vmatprep.mubr.bf16.mxu0 0
      %1529 = vmatmul.mubr.bf16.gmra.mrb[0].mxu0 %v796
      %v1530 = vpop.f32.mrb[0].mxu0
      %v1531 = vadd.f32 %v1409, %v1530
      %v1532 = vpop.f32.mrb[0].mxu0
      %v1533 = vadd.f32 %v1413, %v1532
      %v1534 = vpop.f32.mrb[0].mxu0
      %v1535 = vadd.f32 %v1409, %v1534
      %v1536 = vpop.f32.mrb[0].mxu0
      %v1537 = vadd.f32 %v1413, %v1536
      %1538 = vmatprep.mubr.bf16.mxu0 0
      %1539 = vmatmul.mubr.bf16.gmra.mrb[0].mxu0 %v799
      %v1540 = vpop.f32.mrb[0].mxu0
      %v1541 = vadd.f32 %v1409, %v1540
      %v1542 = vpop.f32.mrb[0].mxu0
      %v1543 = vadd.f32 %v1413, %v1542
      %v1544 = vpop.f32.mrb[0].mxu0
      %v1545 = vadd.f32 %v1409, %v1544
      %v1546 = vpop.f32.mrb[0].mxu0
      %v1547 = vadd.f32 %v1413, %v1546
      %1548 = vmatprep.mubr.bf16.mxu0 0
      %1549 = vmatmul.mubr.bf16.gmra.mrb[0].mxu0 %v802
      %v1550 = vpop.f32.mrb[0].mxu0
      %v1551 = vadd.f32 %v1409, %v1550
      %v1552 = vpop.f32.mrb[0].mxu0
      %v1553 = vadd.f32 %v1413, %v1552
      %v1554 = vpop.f32.mrb[0].mxu0
      %v1555 = vadd.f32 %v1409, %v1554
      %v1556 = vpop.f32.mrb[0].mxu0
      %v1557 = vadd.f32 %v1413, %v1556
      %1558 = vmatprep.mubr.bf16.mxu0 0
      %1559 = vmatmul.mubr.bf16.gmra.mrb[0].mxu0 %v805
      %v1560 = vpop.f32.mrb[0].mxu0
      %v1561 = vadd.f32 %v1409, %v1560
      %v1562 = vpop.f32.mrb[0].mxu0
      %v1563 = vadd.f32 %v1413, %v1562
      %v1564 = vpop.f32.mrb[0].mxu0
      %v1565 = vadd.f32 %v1409, %v1564
      %v1566 = vpop.f32.mrb[0].mxu0
      %v1567 = vadd.f32 %v1413, %v1566
      %1568 = vmatprep.mubr.bf16.mxu0 0
      %1569 = vmatmul.mubr.bf16.gmra.mrb[0].mxu0 %v808
      %v1570 = vpop.f32.mrb[0].mxu0
      %v1571 = vadd.f32 %v1409, %v1570
      %v1572 = vpop.f32.mrb[0].mxu0
      %v1573 = vadd.f32 %v1413, %v1572
      %v1574 = vpop.f32.mrb[0].mxu0
      %v1575 = vadd.f32 %v1409, %v1574
      %v1576 = vpop.f32.mrb[0].mxu0
      %v1577 = vadd.f32 %v1413, %v1576
      %1578 = vdwg.mxu0
      %1579 = vmatprep.subr.bf16.mxu0 %v1453
      %1580 = vmatpush1.bf16.msra.mxu0 %v1452
      %1581 = vmatprep.subr.bf16.mxu0 %v1457
      %1582 = vmatpush1.bf16.msra.mxu0 %v1456
      %1583 = vmatprep.subr.bf16.mxu0 0
      %1584 = vmatpush1.bf16.msra.mxu0 0
      %1585 = vmatprep.subr.bf16.mxu0 0
      %1586 = vmatpush1.bf16.msra.mxu0 0
      %1587 = vmatprep.subr.bf16.mxu0 0
      %1588 = vmatpush1.bf16.msra.mxu0 0
      %1589 = vmatprep.subr.bf16.mxu0 0
      %1590 = vmatpush1.bf16.msra.mxu0 0
      %1591 = vmatprep.subr.bf16.mxu0 0
      %1592 = vmatpush1.bf16.msra.mxu0 0
      %1593 = vmatprep.subr.bf16.mxu0 0
      %1594 = vmatpush1.bf16.msra.mxu0 0
      %1595 = vmatprep.subr.bf16.mxu0 0
      %1596 = vmatpush1.bf16.msra.mxu0 0
      %1597 = vmatprep.subr.bf16.mxu0 0
      %1598 = vmatpush1.bf16.msra.mxu0 0
      %1599 = vmatprep.subr.bf16.mxu0 0
      %1600 = vmatpush1.bf16.msra.mxu0 0
      %1601 = vmatprep.subr.bf16.mxu0 0
      %1602 = vmatpush1.bf16.msra.mxu0 0
      %1603 = vmatprep.subr.bf16.mxu0 0
      %1604 = vmatpush1.bf16.msra.mxu0 0
      %1605 = vmatprep.subr.bf16.mxu0 0
      %1606 = vmatpush1.bf16.msra.mxu0 0
      %1607 = vmatprep.subr.bf16.mxu0 0
      %1608 = vmatpush1.bf16.msra.mxu0 0
      %1609 = vmatprep.subr.bf16.mxu0 0
      %1610 = vmatpush1.bf16.msra.mxu0 0
      %1611 = vmatprep.mubr.bf16.mxu0 0
      %1612 = vmatmul.mubr.bf16.gmra.mrb[0].mxu0 %v787
      %v1613 = vpop.f32.mrb[0].mxu0
      %v1614 = vadd.f32 %v1417, %v1613
      %v1615 = vpop.f32.mrb[0].mxu0
      %v1616 = vadd.f32 %v1421, %v1615
      %v1617 = vpop.f32.mrb[0].mxu0
      %v1618 = vadd.f32 %v1417, %v1617
      %v1619 = vpop.f32.mrb[0].mxu0
      %v1620 = vadd.f32 %v1421, %v1619
      %1621 = vmatprep.mubr.bf16.mxu0 0
      %1622 = vmatmul.mubr.bf16.gmra.mrb[0].mxu0 %v790
      %v1623 = vpop.f32.mrb[0].mxu0
      %v1624 = vadd.f32 %v1417, %v1623
      %v1625 = vpop.f32.mrb[0].mxu0
      %v1626 = vadd.f32 %v1421, %v1625
      %v1627 = vpop.f32.mrb[0].mxu0
      %v1628 = vadd.f32 %v1417, %v1627
      %v1629 = vpop.f32.mrb[0].mxu0
      %v1630 = vadd.f32 %v1421, %v1629
      %1631 = vmatprep.mubr.bf16.mxu0 0
      %1632 = vmatmul.mubr.bf16.gmra.mrb[0].mxu0 %v793
      %v1633 = vpop.f32.mrb[0].mxu0
      %v1634 = vadd.f32 %v1417, %v1633
      %v1635 = vpop.f32.mrb[0].mxu0
      %v1636 = vadd.f32 %v1421, %v1635
      %v1637 = vpop.f32.mrb[0].mxu0
      %v1638 = vadd.f32 %v1417, %v1637
      %v1639 = vpop.f32.mrb[0].mxu0
      %v1640 = vadd.f32 %v1421, %v1639
      %1641 = vmatprep.mubr.bf16.mxu0 0
      %1642 = vmatmul.mubr.bf16.gmra.mrb[0].mxu0 %v796
      %v1643 = vpop.f32.mrb[0].mxu0
      %v1644 = vadd.f32 %v1417, %v1643
      %v1645 = vpop.f32.mrb[0].mxu0
      %v1646 = vadd.f32 %v1421, %v1645
      %v1647 = vpop.f32.mrb[0].mxu0
      %v1648 = vadd.f32 %v1417, %v1647
      %v1649 = vpop.f32.mrb[0].mxu0
      %v1650 = vadd.f32 %v1421, %v1649
      %1651 = vmatprep.mubr.bf16.mxu0 0
      %1652 = vmatmul.mubr.bf16.gmra.mrb[0].mxu0 %v799
      %v1653 = vpop.f32.mrb[0].mxu0
      %v1654 = vadd.f32 %v1417, %v1653
      %v1655 = vpop.f32.mrb[0].mxu0
      %v1656 = vadd.f32 %v1421, %v1655
      %v1657 = vpop.f32.mrb[0].mxu0
      %v1658 = vadd.f32 %v1417, %v1657
      %v1659 = vpop.f32.mrb[0].mxu0
      %v1660 = vadd.f32 %v1421, %v1659
      %1661 = vmatprep.mubr.bf16.mxu0 0
      %1662 = vmatmul.mubr.bf16.gmra.mrb[0].mxu0 %v802
      %v1663 = vpop.f32.mrb[0].mxu0
      %v1664 = vadd.f32 %v1417, %v1663
      %v1665 = vpop.f32.mrb[0].mxu0
      %v1666 = vadd.f32 %v1421, %v1665
      %v1667 = vpop.f32.mrb[0].mxu0
      %v1668 = vadd.f32 %v1417, %v1667
      %v1669 = vpop.f32.mrb[0].mxu0
      %v1670 = vadd.f32 %v1421, %v1669
      %1671 = vmatprep.mubr.bf16.mxu0 0
      %1672 = vmatmul.mubr.bf16.gmra.mrb[0].mxu0 %v805
      %v1673 = vpop.f32.mrb[0].mxu0
      %v1674 = vadd.f32 %v1417, %v1673
      %v1675 = vpop.f32.mrb[0].mxu0
      %v1676 = vadd.f32 %v1421, %v1675
      %v1677 = vpop.f32.mrb[0].mxu0
      %v1678 = vadd.f32 %v1417, %v1677
      %v1679 = vpop.f32.mrb[0].mxu0
      %v1680 = vadd.f32 %v1421, %v1679
      %1681 = vmatprep.mubr.bf16.mxu0 0
      %1682 = vmatmul.mubr.bf16.gmra.mrb[0].mxu0 %v808
      %v1683 = vpop.f32.mrb[0].mxu0
      %v1684 = vadd.f32 %v1417, %v1683
      %v1685 = vpop.f32.mrb[0].mxu0
      %v1686 = vadd.f32 %v1421, %v1685
      %v1687 = vpop.f32.mrb[0].mxu0
      %v1688 = vadd.f32 %v1417, %v1687
      %v1689 = vpop.f32.mrb[0].mxu0
      %v1690 = vadd.f32 %v1421, %v1689
      %1691 = vdwg.mxu0
      %v1692 = vpack.c.bf16 %v1505, %v1501
      %v1693 = vpack.c.bf16 %v1507, %v1503
      %v1694 = vpack.c.bf16 %v1618, %v1614
      %v1695 = vpack.c.bf16 %v1620, %v1616
      %v1696 = vpack.c.bf16 %v1515, %v1511
      %v1697 = vpack.c.bf16 %v1517, %v1513
      %v1698 = vpack.c.bf16 %v1628, %v1624
      %v1699 = vpack.c.bf16 %v1630, %v1626
      %v1700 = vpack.c.bf16 %v1525, %v1521
      %v1701 = vpack.c.bf16 %v1527, %v1523
      %v1702 = vpack.c.bf16 %v1638, %v1634
      %v1703 = vpack.c.bf16 %v1640, %v1636
      %v1704 = vpack.c.bf16 %v1535, %v1531
      %v1705 = vpack.c.bf16 %v1537, %v1533
      %v1706 = vpack.c.bf16 %v1648, %v1644
      %v1707 = vpack.c.bf16 %v1650, %v1646
      %v1708 = vpack.c.bf16 %v1545, %v1541
      %v1709 = vpack.c.bf16 %v1547, %v1543
      %v1710 = vpack.c.bf16 %v1658, %v1654
      %v1711 = vpack.c.bf16 %v1660, %v1656
      %v1712 = vpack.c.bf16 %v1555, %v1551
      %v1713 = vpack.c.bf16 %v1557, %v1553
      %v1714 = vpack.c.bf16 %v1668, %v1664
      %v1715 = vpack.c.bf16 %v1670, %v1666
      %v1716 = vpack.c.bf16 %v1565, %v1561
      %v1717 = vpack.c.bf16 %v1567, %v1563
      %v1718 = vpack.c.bf16 %v1678, %v1674
      %v1719 = vpack.c.bf16 %v1680, %v1676
      %v1720 = vpack.c.bf16 %v1575, %v1571
      %v1721 = vpack.c.bf16 %v1577, %v1573
      %v1722 = vpack.c.bf16 %v1688, %v1684
      %v1723 = vpack.c.bf16 %v1690, %v1686
      %v1724 = vlaneseq
      %v1725 = vshrl.u32 %v1724, 7
      %v1726 = vadd.s32 %v1725, 8
      %v1727 = vadd.s32 %v1725, 16
      %v1728 = vadd.s32 %v1725, 24
      %v1729 = vadd.s32 %v1725, 32
      %v1730 = vadd.s32 %v1725, 40
      %v1731 = vadd.s32 %v1725, 48
      %v1732 = vadd.s32 %v1725, 56
      %v1733 = vadd.s32 %v1725, 64
      %v1734 = vadd.s32 %v1725, 72
      %v1735 = vadd.s32 %v1725, 80
      %v1736 = vadd.s32 %v1725, 88
      %v1737 = vadd.s32 %v1725, 96
      %v1738 = vadd.s32 %v1725, 104
      %v1739 = vadd.s32 %v1725, 112
      %v1740 = vadd.s32 %v1725, 120
      %v1741 = vlaneseq
      %v1742 = vand.u32 %v1741, 127
      %vm1743 = vcmp.gt.s32.totalorder %v1742, %v1725
      %vm1744 = vcmp.gt.s32.totalorder %v1742, %v1726
      %vm1745 = vcmp.gt.s32.totalorder %v1742, %v1727
      %vm1746 = vcmp.gt.s32.totalorder %v1742, %v1728
      %vm1747 = vcmp.gt.s32.totalorder %v1742, %v1729
      %vm1748 = vcmp.gt.s32.totalorder %v1742, %v1730
      %vm1749 = vcmp.gt.s32.totalorder %v1742, %v1731
      %vm1750 = vcmp.gt.s32.totalorder %v1742, %v1732
      %vm1751 = vcmp.gt.s32.totalorder %v1742, %v1733
      %vm1752 = vcmp.gt.s32.totalorder %v1742, %v1734
      %vm1753 = vcmp.gt.s32.totalorder %v1742, %v1735
      %vm1754 = vcmp.gt.s32.totalorder %v1742, %v1736
      %vm1755 = vcmp.gt.s32.totalorder %v1742, %v1737
      %vm1756 = vcmp.gt.s32.totalorder %v1742, %v1738
      %vm1757 = vcmp.gt.s32.totalorder %v1742, %v1739
      %vm1758 = vcmp.gt.s32.totalorder %v1742, %v1740
      %v1759 = vsel %vm706, 1, 0
      %v1760 = vlaneseq
      %v1761 = vshrl.u32 %v1760, 7
      %v1762 = vsub.s32 0, %v1761
      %v1763 = vrot.slane %v1759, %v1762
      %vm1764 = vcmp.eq.s32.totalorder %v1763, 1
      %vm1765 = vmor %vm1743, %vm1764
      %vm1766 = vmor %vm1744, %vm1764
      %vm1767 = vmor %vm1745, %vm1764
      %vm1768 = vmor %vm1746, %vm1764
      %vm1769 = vmor %vm1747, %vm1764
      %vm1770 = vmor %vm1748, %vm1764
      %vm1771 = vmor %vm1749, %vm1764
      %vm1772 = vmor %vm1750, %vm1764
      %vm1773 = vmor %vm1751, %vm1764
      %vm1774 = vmor %vm1752, %vm1764
      %vm1775 = vmor %vm1753, %vm1764
      %vm1776 = vmor %vm1754, %vm1764
      %vm1777 = vmor %vm1755, %vm1764
      %vm1778 = vmor %vm1756, %vm1764
      %vm1779 = vmor %vm1757, %vm1764
      %vm1780 = vmor %vm1758, %vm1764
      %1781 = vmatprep.subr.bf16.mxu0 0
      %1782 = vmatpush1.bf16.xpose.msra.mxu0 %v1364
      %1783 = vmatprep.subr.bf16.mxu0 0
      %1784 = vmatpush1.bf16.xpose.msra.mxu0 %v1368
      %1785 = vmatprep.subr.bf16.mxu0 0
      %1786 = vmatpush1.bf16.xpose.msra.mxu0 %v1372
      %1787 = vmatprep.subr.bf16.mxu0 0
      %1788 = vmatpush1.bf16.xpose.msra.mxu0 %v1376
      %1789 = vmatprep.subr.bf16.mxu0 0
      %1790 = vmatpush1.bf16.xpose.msra.mxu0 %v1380
      %1791 = vmatprep.subr.bf16.mxu0 0
      %1792 = vmatpush1.bf16.xpose.msra.mxu0 %v1384
      %1793 = vmatprep.subr.bf16.mxu0 0
      %1794 = vmatpush1.bf16.xpose.msra.mxu0 %v1388
      %1795 = vmatprep.subr.bf16.mxu0 0
      %1796 = vmatpush1.bf16.xpose.msra.mxu0 %v1392
      %1797 = vmatprep.subr.bf16.mxu0 0
      %1798 = vmatpush1.bf16.xpose.msra.mxu0 0
      %1799 = vmatprep.subr.bf16.mxu0 0
      %1800 = vmatpush1.bf16.xpose.msra.mxu0 0
      %1801 = vmatprep.subr.bf16.mxu0 0
      %1802 = vmatpush1.bf16.xpose.msra.mxu0 0
      %1803 = vmatprep.subr.bf16.mxu0 0
      %1804 = vmatpush1.bf16.xpose.msra.mxu0 0
      %1805 = vmatprep.subr.bf16.mxu0 0
      %1806 = vmatpush1.bf16.xpose.msra.mxu0 0
      %1807 = vmatprep.subr.bf16.mxu0 0
      %1808 = vmatpush1.bf16.xpose.msra.mxu0 0
      %1809 = vmatprep.subr.bf16.mxu0 0
      %1810 = vmatpush1.bf16.xpose.msra.mxu0 0
      %1811 = vmatprep.subr.bf16.mxu0 0
      %1812 = vmatpush1.bf16.xpose.msra.mxu0 0
      %1813 = vmatprep.mubr.bf16.mxu0 0
      %1814 = vmatmul.mubr.bf16.gmra.mrb[0].mxu0 %v1036
      %v1815 = vpop.f32.mrb[0].mxu0
      %v1816 = vadd.f32 0.0, %v1815
      %v1817 = vpop.f32.mrb[0].mxu0
      %v1818 = vpop.f32.mrb[0].mxu0
      %v1819 = vadd.f32 0.0, %v1818
      %v1820 = vpop.f32.mrb[0].mxu0
      %1821 = vmatprep.mubr.bf16.mxu0 0
      %1822 = vmatmul.mubr.bf16.gmra.mrb[0].mxu0 %v1040
      %v1823 = vpop.f32.mrb[0].mxu0
      %v1824 = vadd.f32 0.0, %v1823
      %v1825 = vpop.f32.mrb[0].mxu0
      %v1826 = vpop.f32.mrb[0].mxu0
      %v1827 = vadd.f32 0.0, %v1826
      %v1828 = vpop.f32.mrb[0].mxu0
      %1829 = vmatprep.mubr.bf16.mxu0 0
      %1830 = vmatmul.mubr.bf16.gmra.mrb[0].mxu0 %v1044
      %v1831 = vpop.f32.mrb[0].mxu0
      %v1832 = vadd.f32 0.0, %v1831
      %v1833 = vpop.f32.mrb[0].mxu0
      %v1834 = vpop.f32.mrb[0].mxu0
      %v1835 = vadd.f32 0.0, %v1834
      %v1836 = vpop.f32.mrb[0].mxu0
      %1837 = vmatprep.mubr.bf16.mxu0 0
      %1838 = vmatmul.mubr.bf16.gmra.mrb[0].mxu0 %v1048
      %v1839 = vpop.f32.mrb[0].mxu0
      %v1840 = vadd.f32 0.0, %v1839
      %v1841 = vpop.f32.mrb[0].mxu0
      %v1842 = vpop.f32.mrb[0].mxu0
      %v1843 = vadd.f32 0.0, %v1842
      %v1844 = vpop.f32.mrb[0].mxu0
      %1845 = vmatprep.mubr.bf16.mxu0 0
      %1846 = vmatmul.mubr.bf16.gmra.mrb[0].mxu0 %v1052
      %v1847 = vpop.f32.mrb[0].mxu0
      %v1848 = vadd.f32 0.0, %v1847
      %v1849 = vpop.f32.mrb[0].mxu0
      %v1850 = vpop.f32.mrb[0].mxu0
      %v1851 = vadd.f32 0.0, %v1850
      %v1852 = vpop.f32.mrb[0].mxu0
      %1853 = vmatprep.mubr.bf16.mxu0 0
      %1854 = vmatmul.mubr.bf16.gmra.mrb[0].mxu0 %v1056
      %v1855 = vpop.f32.mrb[0].mxu0
      %v1856 = vadd.f32 0.0, %v1855
      %v1857 = vpop.f32.mrb[0].mxu0
      %v1858 = vpop.f32.mrb[0].mxu0
      %v1859 = vadd.f32 0.0, %v1858
      %v1860 = vpop.f32.mrb[0].mxu0
      %1861 = vmatprep.mubr.bf16.mxu0 0
      %1862 = vmatmul.mubr.bf16.gmra.mrb[0].mxu0 %v1060
      %v1863 = vpop.f32.mrb[0].mxu0
      %v1864 = vadd.f32 0.0, %v1863
      %v1865 = vpop.f32.mrb[0].mxu0
      %v1866 = vpop.f32.mrb[0].mxu0
      %v1867 = vadd.f32 0.0, %v1866
      %v1868 = vpop.f32.mrb[0].mxu0
      %1869 = vmatprep.mubr.bf16.mxu0 0
      %1870 = vmatmul.mubr.bf16.gmra.mrb[0].mxu0 %v1064
      %v1871 = vpop.f32.mrb[0].mxu0
      %v1872 = vadd.f32 0.0, %v1871
      %v1873 = vpop.f32.mrb[0].mxu0
      %v1874 = vpop.f32.mrb[0].mxu0
      %v1875 = vadd.f32 0.0, %v1874
      %v1876 = vpop.f32.mrb[0].mxu0
      %1877 = vdwg.mxu0
      %v1878 = vsel %vm1765, -1e+30, %v1816
      %v1879 = vsel %vm1766, -1e+30, %v1819
      %v1880 = vsel %vm1767, -1e+30, %v1824
      %v1881 = vsel %vm1768, -1e+30, %v1827
      %v1882 = vsel %vm1769, -1e+30, %v1832
      %v1883 = vsel %vm1770, -1e+30, %v1835
      %v1884 = vsel %vm1771, -1e+30, %v1840
      %v1885 = vsel %vm1772, -1e+30, %v1843
      %v1886 = vsel %vm1773, -1e+30, %v1848
      %v1887 = vsel %vm1774, -1e+30, %v1851
      %v1888 = vsel %vm1775, -1e+30, %v1856
      %v1889 = vsel %vm1776, -1e+30, %v1859
      %v1890 = vsel %vm1777, -1e+30, %v1864
      %v1891 = vsel %vm1778, -1e+30, %v1867
      %v1892 = vsel %vm1779, -1e+30, %v1872
      %v1893 = vsel %vm1780, -1e+30, %v1875
      %1894 = vmax.xlane.f32.xlu0 %v1878
      %v1895 = vpop.xlane.xlu0 %1894
      %1896 = vmax.xlane.f32.xlu0 %v1879
      %v1897 = vpop.xlane.xlu0 %1896
      %1898 = vmax.xlane.f32.xlu0 %v1880
      %v1899 = vpop.xlane.xlu0 %1898
      %1900 = vmax.xlane.f32.xlu0 %v1881
      %v1901 = vpop.xlane.xlu0 %1900
      %1902 = vmax.xlane.f32.xlu0 %v1882
      %v1903 = vpop.xlane.xlu0 %1902
      %1904 = vmax.xlane.f32.xlu0 %v1883
      %v1905 = vpop.xlane.xlu0 %1904
      %1906 = vmax.xlane.f32.xlu0 %v1884
      %v1907 = vpop.xlane.xlu0 %1906
      %1908 = vmax.xlane.f32.xlu0 %v1885
      %v1909 = vpop.xlane.xlu0 %1908
      %1910 = vmax.xlane.f32.xlu0 %v1886
      %v1911 = vpop.xlane.xlu0 %1910
      %1912 = vmax.xlane.f32.xlu0 %v1887
      %v1913 = vpop.xlane.xlu0 %1912
      %1914 = vmax.xlane.f32.xlu0 %v1888
      %v1915 = vpop.xlane.xlu0 %1914
      %1916 = vmax.xlane.f32.xlu0 %v1889
      %v1917 = vpop.xlane.xlu0 %1916
      %1918 = vmax.xlane.f32.xlu0 %v1890
      %v1919 = vpop.xlane.xlu0 %1918
      %1920 = vmax.xlane.f32.xlu0 %v1891
      %v1921 = vpop.xlane.xlu0 %1920
      %1922 = vmax.xlane.f32.xlu0 %v1892
      %v1923 = vpop.xlane.xlu0 %1922
      %1924 = vmax.xlane.f32.xlu0 %v1893
      %v1925 = vpop.xlane.xlu0 %1924
      %v1926 = vsub.f32 %v1878, %v1895
      %v1927 = vsub.f32 %v1879, %v1897
      %v1928 = vsub.f32 %v1880, %v1899
      %v1929 = vsub.f32 %v1881, %v1901
      %v1930 = vsub.f32 %v1882, %v1903
      %v1931 = vsub.f32 %v1883, %v1905
      %v1932 = vsub.f32 %v1884, %v1907
      %v1933 = vsub.f32 %v1885, %v1909
      %v1934 = vsub.f32 %v1886, %v1911
      %v1935 = vsub.f32 %v1887, %v1913
      %v1936 = vsub.f32 %v1888, %v1915
      %v1937 = vsub.f32 %v1889, %v1917
      %v1938 = vsub.f32 %v1890, %v1919
      %v1939 = vsub.f32 %v1891, %v1921
      %v1940 = vsub.f32 %v1892, %v1923
      %v1941 = vsub.f32 %v1893, %v1925
      %v1942 = vmul.f32 %v1926, 1.442695
      %v1943 = vpow.pop %v1942
      %v1944 = vmul.f32 %v1927, 1.442695
      %v1945 = vpow.pop %v1944
      %v1946 = vmul.f32 %v1928, 1.442695
      %v1947 = vpow.pop %v1946
      %v1948 = vmul.f32 %v1929, 1.442695
      %v1949 = vpow.pop %v1948
      %v1950 = vmul.f32 %v1930, 1.442695
      %v1951 = vpow.pop %v1950
      %v1952 = vmul.f32 %v1931, 1.442695
      %v1953 = vpow.pop %v1952
      %v1954 = vmul.f32 %v1932, 1.442695
      %v1955 = vpow.pop %v1954
      %v1956 = vmul.f32 %v1933, 1.442695
      %v1957 = vpow.pop %v1956
      %v1958 = vmul.f32 %v1934, 1.442695
      %v1959 = vpow.pop %v1958
      %v1960 = vmul.f32 %v1935, 1.442695
      %v1961 = vpow.pop %v1960
      %v1962 = vmul.f32 %v1936, 1.442695
      %v1963 = vpow.pop %v1962
      %v1964 = vmul.f32 %v1937, 1.442695
      %v1965 = vpow.pop %v1964
      %v1966 = vmul.f32 %v1938, 1.442695
      %v1967 = vpow.pop %v1966
      %v1968 = vmul.f32 %v1939, 1.442695
      %v1969 = vpow.pop %v1968
      %v1970 = vmul.f32 %v1940, 1.442695
      %v1971 = vpow.pop %v1970
      %v1972 = vmul.f32 %v1941, 1.442695
      %v1973 = vpow.pop %v1972
      %1974 = vadd.xlane.f32.xlu0 %v1943
      %v1975 = vpop.xlane.xlu0 %1974
      %1976 = vadd.xlane.f32.xlu0 %v1945
      %v1977 = vpop.xlane.xlu0 %1976
      %1978 = vadd.xlane.f32.xlu0 %v1947
      %v1979 = vpop.xlane.xlu0 %1978
      %1980 = vadd.xlane.f32.xlu0 %v1949
      %v1981 = vpop.xlane.xlu0 %1980
      %1982 = vadd.xlane.f32.xlu0 %v1951
      %v1983 = vpop.xlane.xlu0 %1982
      %1984 = vadd.xlane.f32.xlu0 %v1953
      %v1985 = vpop.xlane.xlu0 %1984
      %1986 = vadd.xlane.f32.xlu0 %v1955
      %v1987 = vpop.xlane.xlu0 %1986
      %1988 = vadd.xlane.f32.xlu0 %v1957
      %v1989 = vpop.xlane.xlu0 %1988
      %1990 = vadd.xlane.f32.xlu0 %v1959
      %v1991 = vpop.xlane.xlu0 %1990
      %1992 = vadd.xlane.f32.xlu0 %v1961
      %v1993 = vpop.xlane.xlu0 %1992
      %1994 = vadd.xlane.f32.xlu0 %v1963
      %v1995 = vpop.xlane.xlu0 %1994
      %1996 = vadd.xlane.f32.xlu0 %v1965
      %v1997 = vpop.xlane.xlu0 %1996
      %1998 = vadd.xlane.f32.xlu0 %v1967
      %v1999 = vpop.xlane.xlu0 %1998
      %2000 = vadd.xlane.f32.xlu0 %v1969
      %v2001 = vpop.xlane.xlu0 %2000
      %2002 = vadd.xlane.f32.xlu0 %v1971
      %v2003 = vpop.xlane.xlu0 %2002
      %2004 = vadd.xlane.f32.xlu0 %v1973
      %v2005 = vpop.xlane.xlu0 %2004
      %v2006 = vrcp.pop %v1975
      %v2007 = vrcp.pop %v1977
      %v2008 = vrcp.pop %v1979
      %v2009 = vrcp.pop %v1981
      %v2010 = vrcp.pop %v1983
      %v2011 = vrcp.pop %v1985
      %v2012 = vrcp.pop %v1987
      %v2013 = vrcp.pop %v1989
      %v2014 = vrcp.pop %v1991
      %v2015 = vrcp.pop %v1993
      %v2016 = vrcp.pop %v1995
      %v2017 = vrcp.pop %v1997
      %v2018 = vrcp.pop %v1999
      %v2019 = vrcp.pop %v2001
      %v2020 = vrcp.pop %v2003
      %v2021 = vrcp.pop %v2005
      %v2022 = vmul.f32 %v1943, %v2006
      %v2023 = vmul.f32 %v1945, %v2007
      %v2024 = vmul.f32 %v1947, %v2008
      %v2025 = vmul.f32 %v1949, %v2009
      %v2026 = vmul.f32 %v1951, %v2010
      %v2027 = vmul.f32 %v1953, %v2011
      %v2028 = vmul.f32 %v1955, %v2012
      %v2029 = vmul.f32 %v1957, %v2013
      %v2030 = vmul.f32 %v1959, %v2014
      %v2031 = vmul.f32 %v1961, %v2015
      %v2032 = vmul.f32 %v1963, %v2016
      %v2033 = vmul.f32 %v1965, %v2017
      %v2034 = vmul.f32 %v1967, %v2018
      %v2035 = vmul.f32 %v1969, %v2019
      %v2036 = vmul.f32 %v1971, %v2020
      %v2037 = vmul.f32 %v1973, %v2021
      %v2038 = vpack.c.bf16 %v2023, %v2022
      %v2039 = vpack.c.bf16 %v2025, %v2024
      %v2040 = vpack.c.bf16 %v2027, %v2026
      %v2041 = vpack.c.bf16 %v2029, %v2028
      %v2042 = vpack.c.bf16 %v2031, %v2030
      %v2043 = vpack.c.bf16 %v2033, %v2032
      %v2044 = vpack.c.bf16 %v2035, %v2034
      %v2045 = vpack.c.bf16 %v2037, %v2036
      %2046 = vmatprep.subr.bf16.mxu0 0
      %2047 = vmatpush1.bf16.msra.mxu0 %v1692
      %2048 = vmatprep.subr.bf16.mxu0 0
      %2049 = vmatpush1.bf16.msra.mxu0 %v1696
      %2050 = vmatprep.subr.bf16.mxu0 0
      %2051 = vmatpush1.bf16.msra.mxu0 %v1700
      %2052 = vmatprep.subr.bf16.mxu0 0
      %2053 = vmatpush1.bf16.msra.mxu0 %v1704
      %2054 = vmatprep.subr.bf16.mxu0 0
      %2055 = vmatpush1.bf16.msra.mxu0 %v1708
      %2056 = vmatprep.subr.bf16.mxu0 0
      %2057 = vmatpush1.bf16.msra.mxu0 %v1712
      %2058 = vmatprep.subr.bf16.mxu0 0
      %2059 = vmatpush1.bf16.msra.mxu0 %v1716
      %2060 = vmatprep.subr.bf16.mxu0 0
      %2061 = vmatpush1.bf16.msra.mxu0 %v1720
      %2062 = vmatprep.subr.bf16.mxu0 0
      %2063 = vmatpush1.bf16.msra.mxu0 0
      %2064 = vmatprep.subr.bf16.mxu0 0
      %2065 = vmatpush1.bf16.msra.mxu0 0
      %2066 = vmatprep.subr.bf16.mxu0 0
      %2067 = vmatpush1.bf16.msra.mxu0 0
      %2068 = vmatprep.subr.bf16.mxu0 0
      %2069 = vmatpush1.bf16.msra.mxu0 0
      %2070 = vmatprep.subr.bf16.mxu0 0
      %2071 = vmatpush1.bf16.msra.mxu0 0
      %2072 = vmatprep.subr.bf16.mxu0 0
      %2073 = vmatpush1.bf16.msra.mxu0 0
      %2074 = vmatprep.subr.bf16.mxu0 0
      %2075 = vmatpush1.bf16.msra.mxu0 0
      %2076 = vmatprep.subr.bf16.mxu0 0
      %2077 = vmatpush1.bf16.msra.mxu0 0
      %2078 = vmatprep.mubr.bf16.mxu0 0
      %2079 = vmatmul.mubr.bf16.gmra.mrb[0].mxu0 %v2038
      %v2080 = vpop.f32.mrb[0].mxu0
      %v2081 = vadd.f32 0.0, %v2080
      %v2082 = vpop.f32.mrb[0].mxu0
      %v2083 = vpop.f32.mrb[0].mxu0
      %v2084 = vadd.f32 0.0, %v2083
      %v2085 = vpop.f32.mrb[0].mxu0
      %2086 = vmatprep.mubr.bf16.mxu0 0
      %2087 = vmatmul.mubr.bf16.gmra.mrb[0].mxu0 %v2039
      %v2088 = vpop.f32.mrb[0].mxu0
      %v2089 = vadd.f32 0.0, %v2088
      %v2090 = vpop.f32.mrb[0].mxu0
      %v2091 = vpop.f32.mrb[0].mxu0
      %v2092 = vadd.f32 0.0, %v2091
      %v2093 = vpop.f32.mrb[0].mxu0
      %2094 = vmatprep.mubr.bf16.mxu0 0
      %2095 = vmatmul.mubr.bf16.gmra.mrb[0].mxu0 %v2040
      %v2096 = vpop.f32.mrb[0].mxu0
      %v2097 = vadd.f32 0.0, %v2096
      %v2098 = vpop.f32.mrb[0].mxu0
      %v2099 = vpop.f32.mrb[0].mxu0
      %v2100 = vadd.f32 0.0, %v2099
      %v2101 = vpop.f32.mrb[0].mxu0
      %2102 = vmatprep.mubr.bf16.mxu0 0
      %2103 = vmatmul.mubr.bf16.gmra.mrb[0].mxu0 %v2041
      %v2104 = vpop.f32.mrb[0].mxu0
      %v2105 = vadd.f32 0.0, %v2104
      %v2106 = vpop.f32.mrb[0].mxu0
      %v2107 = vpop.f32.mrb[0].mxu0
      %v2108 = vadd.f32 0.0, %v2107
      %v2109 = vpop.f32.mrb[0].mxu0
      %2110 = vmatprep.mubr.bf16.mxu0 0
      %2111 = vmatmul.mubr.bf16.gmra.mrb[0].mxu0 %v2042
      %v2112 = vpop.f32.mrb[0].mxu0
      %v2113 = vadd.f32 0.0, %v2112
      %v2114 = vpop.f32.mrb[0].mxu0
      %v2115 = vpop.f32.mrb[0].mxu0
      %v2116 = vadd.f32 0.0, %v2115
      %v2117 = vpop.f32.mrb[0].mxu0
      %2118 = vmatprep.mubr.bf16.mxu0 0
      %2119 = vmatmul.mubr.bf16.gmra.mrb[0].mxu0 %v2043
      %v2120 = vpop.f32.mrb[0].mxu0
      %v2121 = vadd.f32 0.0, %v2120
      %v2122 = vpop.f32.mrb[0].mxu0
      %v2123 = vpop.f32.mrb[0].mxu0
      %v2124 = vadd.f32 0.0, %v2123
      %v2125 = vpop.f32.mrb[0].mxu0
      %2126 = vmatprep.mubr.bf16.mxu0 0
      %2127 = vmatmul.mubr.bf16.gmra.mrb[0].mxu0 %v2044
      %v2128 = vpop.f32.mrb[0].mxu0
      %v2129 = vadd.f32 0.0, %v2128
      %v2130 = vpop.f32.mrb[0].mxu0
      %v2131 = vpop.f32.mrb[0].mxu0
      %v2132 = vadd.f32 0.0, %v2131
      %v2133 = vpop.f32.mrb[0].mxu0
      %2134 = vmatprep.mubr.bf16.mxu0 0
      %2135 = vmatmul.mubr.bf16.gmra.mrb[0].mxu0 %v2045
      %v2136 = vpop.f32.mrb[0].mxu0
      %v2137 = vadd.f32 0.0, %v2136
      %v2138 = vpop.f32.mrb[0].mxu0
      %v2139 = vpop.f32.mrb[0].mxu0
      %v2140 = vadd.f32 0.0, %v2139
      %v2141 = vpop.f32.mrb[0].mxu0
      %2142 = vdwg.mxu0
      %v2143 = vpack.c.bf16 %v2084, %v2081
      %v2144 = vpack.c.bf16 %v2092, %v2089
      %v2145 = vpack.c.bf16 %v2100, %v2097
      %v2146 = vpack.c.bf16 %v2108, %v2105
      %v2147 = vpack.c.bf16 %v2116, %v2113
      %v2148 = vpack.c.bf16 %v2124, %v2121
      %v2149 = vpack.c.bf16 %v2132, %v2129
      %v2150 = vpack.c.bf16 %v2140, %v2137
      %2151 = vmatprep.subr.bf16.mxu0 0
      %2152 = vmatpush1.bf16.xpose.msra.mxu0 %v1365
      %2153 = vmatprep.subr.bf16.mxu0 0
      %2154 = vmatpush1.bf16.xpose.msra.mxu0 %v1369
      %2155 = vmatprep.subr.bf16.mxu0 0
      %2156 = vmatpush1.bf16.xpose.msra.mxu0 %v1373
      %2157 = vmatprep.subr.bf16.mxu0 0
      %2158 = vmatpush1.bf16.xpose.msra.mxu0 %v1377
      %2159 = vmatprep.subr.bf16.mxu0 0
      %2160 = vmatpush1.bf16.xpose.msra.mxu0 %v1381
      %2161 = vmatprep.subr.bf16.mxu0 0
      %2162 = vmatpush1.bf16.xpose.msra.mxu0 %v1385
      %2163 = vmatprep.subr.bf16.mxu0 0
      %2164 = vmatpush1.bf16.xpose.msra.mxu0 %v1389
      %2165 = vmatprep.subr.bf16.mxu0 0
      %2166 = vmatpush1.bf16.xpose.msra.mxu0 %v1393
      %2167 = vmatprep.subr.bf16.mxu0 0
      %2168 = vmatpush1.bf16.xpose.msra.mxu0 0
      %2169 = vmatprep.subr.bf16.mxu0 0
      %2170 = vmatpush1.bf16.xpose.msra.mxu0 0
      %2171 = vmatprep.subr.bf16.mxu0 0
      %2172 = vmatpush1.bf16.xpose.msra.mxu0 0
      %2173 = vmatprep.subr.bf16.mxu0 0
      %2174 = vmatpush1.bf16.xpose.msra.mxu0 0
      %2175 = vmatprep.subr.bf16.mxu0 0
      %2176 = vmatpush1.bf16.xpose.msra.mxu0 0
      %2177 = vmatprep.subr.bf16.mxu0 0
      %2178 = vmatpush1.bf16.xpose.msra.mxu0 0
      %2179 = vmatprep.subr.bf16.mxu0 0
      %2180 = vmatpush1.bf16.xpose.msra.mxu0 0
      %2181 = vmatprep.subr.bf16.mxu0 0
      %2182 = vmatpush1.bf16.xpose.msra.mxu0 0
      %2183 = vmatprep.mubr.bf16.mxu0 0
      %2184 = vmatmul.mubr.bf16.gmra.mrb[0].mxu0 %v1037
      %v2185 = vpop.f32.mrb[0].mxu0
      %v2186 = vadd.f32 0.0, %v2185
      %v2187 = vpop.f32.mrb[0].mxu0
      %v2188 = vpop.f32.mrb[0].mxu0
      %v2189 = vadd.f32 0.0, %v2188
      %v2190 = vpop.f32.mrb[0].mxu0
      %2191 = vmatprep.mubr.bf16.mxu0 0
      %2192 = vmatmul.mubr.bf16.gmra.mrb[0].mxu0 %v1041
      %v2193 = vpop.f32.mrb[0].mxu0
      %v2194 = vadd.f32 0.0, %v2193
      %v2195 = vpop.f32.mrb[0].mxu0
      %v2196 = vpop.f32.mrb[0].mxu0
      %v2197 = vadd.f32 0.0, %v2196
      %v2198 = vpop.f32.mrb[0].mxu0
      %2199 = vmatprep.mubr.bf16.mxu0 0
      %2200 = vmatmul.mubr.bf16.gmra.mrb[0].mxu0 %v1045
      %v2201 = vpop.f32.mrb[0].mxu0
      %v2202 = vadd.f32 0.0, %v2201
      %v2203 = vpop.f32.mrb[0].mxu0
      %v2204 = vpop.f32.mrb[0].mxu0
      %v2205 = vadd.f32 0.0, %v2204
      %v2206 = vpop.f32.mrb[0].mxu0
      %2207 = vmatprep.mubr.bf16.mxu0 0
      %2208 = vmatmul.mubr.bf16.gmra.mrb[0].mxu0 %v1049
      %v2209 = vpop.f32.mrb[0].mxu0
      %v2210 = vadd.f32 0.0, %v2209
      %v2211 = vpop.f32.mrb[0].mxu0
      %v2212 = vpop.f32.mrb[0].mxu0
      %v2213 = vadd.f32 0.0, %v2212
      %v2214 = vpop.f32.mrb[0].mxu0
      %2215 = vmatprep.mubr.bf16.mxu0 0
      %2216 = vmatmul.mubr.bf16.gmra.mrb[0].mxu0 %v1053
      %v2217 = vpop.f32.mrb[0].mxu0
      %v2218 = vadd.f32 0.0, %v2217
      %v2219 = vpop.f32.mrb[0].mxu0
      %v2220 = vpop.f32.mrb[0].mxu0
      %v2221 = vadd.f32 0.0, %v2220
      %v2222 = vpop.f32.mrb[0].mxu0
      %2223 = vmatprep.mubr.bf16.mxu0 0
      %2224 = vmatmul.mubr.bf16.gmra.mrb[0].mxu0 %v1057
      %v2225 = vpop.f32.mrb[0].mxu0
      %v2226 = vadd.f32 0.0, %v2225
      %v2227 = vpop.f32.mrb[0].mxu0
      %v2228 = vpop.f32.mrb[0].mxu0
      %v2229 = vadd.f32 0.0, %v2228
      %v2230 = vpop.f32.mrb[0].mxu0
      %2231 = vmatprep.mubr.bf16.mxu0 0
      %2232 = vmatmul.mubr.bf16.gmra.mrb[0].mxu0 %v1061
      %v2233 = vpop.f32.mrb[0].mxu0
      %v2234 = vadd.f32 0.0, %v2233
      %v2235 = vpop.f32.mrb[0].mxu0
      %v2236 = vpop.f32.mrb[0].mxu0
      %v2237 = vadd.f32 0.0, %v2236
      %v2238 = vpop.f32.mrb[0].mxu0
      %2239 = vmatprep.mubr.bf16.mxu0 0
      %2240 = vmatmul.mubr.bf16.gmra.mrb[0].mxu0 %v1065
      %v2241 = vpop.f32.mrb[0].mxu0
      %v2242 = vadd.f32 0.0, %v2241
      %v2243 = vpop.f32.mrb[0].mxu0
      %v2244 = vpop.f32.mrb[0].mxu0
      %v2245 = vadd.f32 0.0, %v2244
      %v2246 = vpop.f32.mrb[0].mxu0
      %2247 = vdwg.mxu0
      %v2248 = vsel %vm1765, -1e+30, %v2186
      %v2249 = vsel %vm1766, -1e+30, %v2189
      %v2250 = vsel %vm1767, -1e+30, %v2194
      %v2251 = vsel %vm1768, -1e+30, %v2197
      %v2252 = vsel %vm1769, -1e+30, %v2202
      %v2253 = vsel %vm1770, -1e+30, %v2205
      %v2254 = vsel %vm1771, -1e+30, %v2210
      %v2255 = vsel %vm1772, -1e+30, %v2213
      %v2256 = vsel %vm1773, -1e+30, %v2218
      %v2257 = vsel %vm1774, -1e+30, %v2221
      %v2258 = vsel %vm1775, -1e+30, %v2226
      %v2259 = vsel %vm1776, -1e+30, %v2229
      %v2260 = vsel %vm1777, -1e+30, %v2234
      %v2261 = vsel %vm1778, -1e+30, %v2237
      %v2262 = vsel %vm1779, -1e+30, %v2242
      %v2263 = vsel %vm1780, -1e+30, %v2245
      %2264 = vmax.xlane.f32.xlu0 %v2248
      %v2265 = vpop.xlane.xlu0 %2264
      %2266 = vmax.xlane.f32.xlu0 %v2249
      %v2267 = vpop.xlane.xlu0 %2266
      %2268 = vmax.xlane.f32.xlu0 %v2250
      %v2269 = vpop.xlane.xlu0 %2268
      %2270 = vmax.xlane.f32.xlu0 %v2251
      %v2271 = vpop.xlane.xlu0 %2270
      %2272 = vmax.xlane.f32.xlu0 %v2252
      %v2273 = vpop.xlane.xlu0 %2272
      %2274 = vmax.xlane.f32.xlu0 %v2253
      %v2275 = vpop.xlane.xlu0 %2274
      %2276 = vmax.xlane.f32.xlu0 %v2254
      %v2277 = vpop.xlane.xlu0 %2276
      %2278 = vmax.xlane.f32.xlu0 %v2255
      %v2279 = vpop.xlane.xlu0 %2278
      %2280 = vmax.xlane.f32.xlu0 %v2256
      %v2281 = vpop.xlane.xlu0 %2280
      %2282 = vmax.xlane.f32.xlu0 %v2257
      %v2283 = vpop.xlane.xlu0 %2282
      %2284 = vmax.xlane.f32.xlu0 %v2258
      %v2285 = vpop.xlane.xlu0 %2284
      %2286 = vmax.xlane.f32.xlu0 %v2259
      %v2287 = vpop.xlane.xlu0 %2286
      %2288 = vmax.xlane.f32.xlu0 %v2260
      %v2289 = vpop.xlane.xlu0 %2288
      %2290 = vmax.xlane.f32.xlu0 %v2261
      %v2291 = vpop.xlane.xlu0 %2290
      %2292 = vmax.xlane.f32.xlu0 %v2262
      %v2293 = vpop.xlane.xlu0 %2292
      %2294 = vmax.xlane.f32.xlu0 %v2263
      %v2295 = vpop.xlane.xlu0 %2294
      %v2296 = vsub.f32 %v2248, %v2265
      %v2297 = vsub.f32 %v2249, %v2267
      %v2298 = vsub.f32 %v2250, %v2269
      %v2299 = vsub.f32 %v2251, %v2271
      %v2300 = vsub.f32 %v2252, %v2273
      %v2301 = vsub.f32 %v2253, %v2275
      %v2302 = vsub.f32 %v2254, %v2277
      %v2303 = vsub.f32 %v2255, %v2279
      %v2304 = vsub.f32 %v2256, %v2281
      %v2305 = vsub.f32 %v2257, %v2283
      %v2306 = vsub.f32 %v2258, %v2285
      %v2307 = vsub.f32 %v2259, %v2287
      %v2308 = vsub.f32 %v2260, %v2289
      %v2309 = vsub.f32 %v2261, %v2291
      %v2310 = vsub.f32 %v2262, %v2293
      %v2311 = vsub.f32 %v2263, %v2295
      %v2312 = vmul.f32 %v2296, 1.442695
      %v2313 = vpow.pop %v2312
      %v2314 = vmul.f32 %v2297, 1.442695
      %v2315 = vpow.pop %v2314
      %v2316 = vmul.f32 %v2298, 1.442695
      %v2317 = vpow.pop %v2316
      %v2318 = vmul.f32 %v2299, 1.442695
      %v2319 = vpow.pop %v2318
      %v2320 = vmul.f32 %v2300, 1.442695
      %v2321 = vpow.pop %v2320
      %v2322 = vmul.f32 %v2301, 1.442695
      %v2323 = vpow.pop %v2322
      %v2324 = vmul.f32 %v2302, 1.442695
      %v2325 = vpow.pop %v2324
      %v2326 = vmul.f32 %v2303, 1.442695
      %v2327 = vpow.pop %v2326
      %v2328 = vmul.f32 %v2304, 1.442695
      %v2329 = vpow.pop %v2328
      %v2330 = vmul.f32 %v2305, 1.442695
      %v2331 = vpow.pop %v2330
      %v2332 = vmul.f32 %v2306, 1.442695
      %v2333 = vpow.pop %v2332
      %v2334 = vmul.f32 %v2307, 1.442695
      %v2335 = vpow.pop %v2334
      %v2336 = vmul.f32 %v2308, 1.442695
      %v2337 = vpow.pop %v2336
      %v2338 = vmul.f32 %v2309, 1.442695
      %v2339 = vpow.pop %v2338
      %v2340 = vmul.f32 %v2310, 1.442695
      %v2341 = vpow.pop %v2340
      %v2342 = vmul.f32 %v2311, 1.442695
      %v2343 = vpow.pop %v2342
      %2344 = vadd.xlane.f32.xlu0 %v2313
      %v2345 = vpop.xlane.xlu0 %2344
      %2346 = vadd.xlane.f32.xlu0 %v2315
      %v2347 = vpop.xlane.xlu0 %2346
      %2348 = vadd.xlane.f32.xlu0 %v2317
      %v2349 = vpop.xlane.xlu0 %2348
      %2350 = vadd.xlane.f32.xlu0 %v2319
      %v2351 = vpop.xlane.xlu0 %2350
      %2352 = vadd.xlane.f32.xlu0 %v2321
      %v2353 = vpop.xlane.xlu0 %2352
      %2354 = vadd.xlane.f32.xlu0 %v2323
      %v2355 = vpop.xlane.xlu0 %2354
      %2356 = vadd.xlane.f32.xlu0 %v2325
      %v2357 = vpop.xlane.xlu0 %2356
      %2358 = vadd.xlane.f32.xlu0 %v2327
      %v2359 = vpop.xlane.xlu0 %2358
      %2360 = vadd.xlane.f32.xlu0 %v2329
      %v2361 = vpop.xlane.xlu0 %2360
      %2362 = vadd.xlane.f32.xlu0 %v2331
      %v2363 = vpop.xlane.xlu0 %2362
      %2364 = vadd.xlane.f32.xlu0 %v2333
      %v2365 = vpop.xlane.xlu0 %2364
      %2366 = vadd.xlane.f32.xlu0 %v2335
      %v2367 = vpop.xlane.xlu0 %2366
      %2368 = vadd.xlane.f32.xlu0 %v2337
      %v2369 = vpop.xlane.xlu0 %2368
      %2370 = vadd.xlane.f32.xlu0 %v2339
      %v2371 = vpop.xlane.xlu0 %2370
      %2372 = vadd.xlane.f32.xlu0 %v2341
      %v2373 = vpop.xlane.xlu0 %2372
      %2374 = vadd.xlane.f32.xlu0 %v2343
      %v2375 = vpop.xlane.xlu0 %2374
      %v2376 = vrcp.pop %v2345
      %v2377 = vrcp.pop %v2347
      %v2378 = vrcp.pop %v2349
      %v2379 = vrcp.pop %v2351
      %v2380 = vrcp.pop %v2353
      %v2381 = vrcp.pop %v2355
      %v2382 = vrcp.pop %v2357
      %v2383 = vrcp.pop %v2359
      %v2384 = vrcp.pop %v2361
      %v2385 = vrcp.pop %v2363
      %v2386 = vrcp.pop %v2365
      %v2387 = vrcp.pop %v2367
      %v2388 = vrcp.pop %v2369
      %v2389 = vrcp.pop %v2371
      %v2390 = vrcp.pop %v2373
      %v2391 = vrcp.pop %v2375
      %v2392 = vmul.f32 %v2313, %v2376
      %v2393 = vmul.f32 %v2315, %v2377
      %v2394 = vmul.f32 %v2317, %v2378
      %v2395 = vmul.f32 %v2319, %v2379
      %v2396 = vmul.f32 %v2321, %v2380
      %v2397 = vmul.f32 %v2323, %v2381
      %v2398 = vmul.f32 %v2325, %v2382
      %v2399 = vmul.f32 %v2327, %v2383
      %v2400 = vmul.f32 %v2329, %v2384
      %v2401 = vmul.f32 %v2331, %v2385
      %v2402 = vmul.f32 %v2333, %v2386
      %v2403 = vmul.f32 %v2335, %v2387
      %v2404 = vmul.f32 %v2337, %v2388
      %v2405 = vmul.f32 %v2339, %v2389
      %v2406 = vmul.f32 %v2341, %v2390
      %v2407 = vmul.f32 %v2343, %v2391
      %v2408 = vpack.c.bf16 %v2393, %v2392
      %v2409 = vpack.c.bf16 %v2395, %v2394
      %v2410 = vpack.c.bf16 %v2397, %v2396
      %v2411 = vpack.c.bf16 %v2399, %v2398
      %v2412 = vpack.c.bf16 %v2401, %v2400
      %v2413 = vpack.c.bf16 %v2403, %v2402
      %v2414 = vpack.c.bf16 %v2405, %v2404
      %v2415 = vpack.c.bf16 %v2407, %v2406
      %2416 = vmatprep.subr.bf16.mxu0 0
      %2417 = vmatpush1.bf16.msra.mxu0 %v1693
      %2418 = vmatprep.subr.bf16.mxu0 0
      %2419 = vmatpush1.bf16.msra.mxu0 %v1697
      %2420 = vmatprep.subr.bf16.mxu0 0
      %2421 = vmatpush1.bf16.msra.mxu0 %v1701
      %2422 = vmatprep.subr.bf16.mxu0 0
      %2423 = vmatpush1.bf16.msra.mxu0 %v1705
      %2424 = vmatprep.subr.bf16.mxu0 0
      %2425 = vmatpush1.bf16.msra.mxu0 %v1709
      %2426 = vmatprep.subr.bf16.mxu0 0
      %2427 = vmatpush1.bf16.msra.mxu0 %v1713
      %2428 = vmatprep.subr.bf16.mxu0 0
      %2429 = vmatpush1.bf16.msra.mxu0 %v1717
      %2430 = vmatprep.subr.bf16.mxu0 0
      %2431 = vmatpush1.bf16.msra.mxu0 %v1721
      %2432 = vmatprep.subr.bf16.mxu0 0
      %2433 = vmatpush1.bf16.msra.mxu0 0
      %2434 = vmatprep.subr.bf16.mxu0 0
      %2435 = vmatpush1.bf16.msra.mxu0 0
      %2436 = vmatprep.subr.bf16.mxu0 0
      %2437 = vmatpush1.bf16.msra.mxu0 0
      %2438 = vmatprep.subr.bf16.mxu0 0
      %2439 = vmatpush1.bf16.msra.mxu0 0
      %2440 = vmatprep.subr.bf16.mxu0 0
      %2441 = vmatpush1.bf16.msra.mxu0 0
      %2442 = vmatprep.subr.bf16.mxu0 0
      %2443 = vmatpush1.bf16.msra.mxu0 0
      %2444 = vmatprep.subr.bf16.mxu0 0
      %2445 = vmatpush1.bf16.msra.mxu0 0
      %2446 = vmatprep.subr.bf16.mxu0 0
      %2447 = vmatpush1.bf16.msra.mxu0 0
      %2448 = vmatprep.mubr.bf16.mxu0 0
      %2449 = vmatmul.mubr.bf16.gmra.mrb[0].mxu0 %v2408
      %v2450 = vpop.f32.mrb[0].mxu0
      %v2451 = vadd.f32 0.0, %v2450
      %v2452 = vpop.f32.mrb[0].mxu0
      %v2453 = vpop.f32.mrb[0].mxu0
      %v2454 = vadd.f32 0.0, %v2453
      %v2455 = vpop.f32.mrb[0].mxu0
      %2456 = vmatprep.mubr.bf16.mxu0 0
      %2457 = vmatmul.mubr.bf16.gmra.mrb[0].mxu0 %v2409
      %v2458 = vpop.f32.mrb[0].mxu0
      %v2459 = vadd.f32 0.0, %v2458
      %v2460 = vpop.f32.mrb[0].mxu0
      %v2461 = vpop.f32.mrb[0].mxu0
      %v2462 = vadd.f32 0.0, %v2461
      %v2463 = vpop.f32.mrb[0].mxu0
      %2464 = vmatprep.mubr.bf16.mxu0 0
      %2465 = vmatmul.mubr.bf16.gmra.mrb[0].mxu0 %v2410
      %v2466 = vpop.f32.mrb[0].mxu0
      %v2467 = vadd.f32 0.0, %v2466
      %v2468 = vpop.f32.mrb[0].mxu0
      %v2469 = vpop.f32.mrb[0].mxu0
      %v2470 = vadd.f32 0.0, %v2469
      %v2471 = vpop.f32.mrb[0].mxu0
      %2472 = vmatprep.mubr.bf16.mxu0 0
      %2473 = vmatmul.mubr.bf16.gmra.mrb[0].mxu0 %v2411
      %v2474 = vpop.f32.mrb[0].mxu0
      %v2475 = vadd.f32 0.0, %v2474
      %v2476 = vpop.f32.mrb[0].mxu0
      %v2477 = vpop.f32.mrb[0].mxu0
      %v2478 = vadd.f32 0.0, %v2477
      %v2479 = vpop.f32.mrb[0].mxu0
      %2480 = vmatprep.mubr.bf16.mxu0 0
      %2481 = vmatmul.mubr.bf16.gmra.mrb[0].mxu0 %v2412
      %v2482 = vpop.f32.mrb[0].mxu0
      %v2483 = vadd.f32 0.0, %v2482
      %v2484 = vpop.f32.mrb[0].mxu0
      %v2485 = vpop.f32.mrb[0].mxu0
      %v2486 = vadd.f32 0.0, %v2485
      %v2487 = vpop.f32.mrb[0].mxu0
      %2488 = vmatprep.mubr.bf16.mxu0 0
      %2489 = vmatmul.mubr.bf16.gmra.mrb[0].mxu0 %v2413
      %v2490 = vpop.f32.mrb[0].mxu0
      %v2491 = vadd.f32 0.0, %v2490
      %v2492 = vpop.f32.mrb[0].mxu0
      %v2493 = vpop.f32.mrb[0].mxu0
      %v2494 = vadd.f32 0.0, %v2493
      %v2495 = vpop.f32.mrb[0].mxu0
      %2496 = vmatprep.mubr.bf16.mxu0 0
      %2497 = vmatmul.mubr.bf16.gmra.mrb[0].mxu0 %v2414
      %v2498 = vpop.f32.mrb[0].mxu0
      %v2499 = vadd.f32 0.0, %v2498
      %v2500 = vpop.f32.mrb[0].mxu0
      %v2501 = vpop.f32.mrb[0].mxu0
      %v2502 = vadd.f32 0.0, %v2501
      %v2503 = vpop.f32.mrb[0].mxu0
      %2504 = vmatprep.mubr.bf16.mxu0 0
      %2505 = vmatmul.mubr.bf16.gmra.mrb[0].mxu0 %v2415
      %v2506 = vpop.f32.mrb[0].mxu0
      %v2507 = vadd.f32 0.0, %v2506
      %v2508 = vpop.f32.mrb[0].mxu0
      %v2509 = vpop.f32.mrb[0].mxu0
      %v2510 = vadd.f32 0.0, %v2509
      %v2511 = vpop.f32.mrb[0].mxu0
      %2512 = vdwg.mxu0
      %v2513 = vpack.c.bf16 %v2454, %v2451
      %v2514 = vpack.c.bf16 %v2462, %v2459
      %v2515 = vpack.c.bf16 %v2470, %v2467
      %v2516 = vpack.c.bf16 %v2478, %v2475
      %v2517 = vpack.c.bf16 %v2486, %v2483
      %v2518 = vpack.c.bf16 %v2494, %v2491
      %v2519 = vpack.c.bf16 %v2502, %v2499
      %v2520 = vpack.c.bf16 %v2510, %v2507
      %2521 = vmatprep.subr.bf16.mxu0 0
      %2522 = vmatpush1.bf16.xpose.msra.mxu0 %v1366
      %2523 = vmatprep.subr.bf16.mxu0 0
      %2524 = vmatpush1.bf16.xpose.msra.mxu0 %v1370
      %2525 = vmatprep.subr.bf16.mxu0 0
      %2526 = vmatpush1.bf16.xpose.msra.mxu0 %v1374
      %2527 = vmatprep.subr.bf16.mxu0 0
      %2528 = vmatpush1.bf16.xpose.msra.mxu0 %v1378
      %2529 = vmatprep.subr.bf16.mxu0 0
      %2530 = vmatpush1.bf16.xpose.msra.mxu0 %v1382
      %2531 = vmatprep.subr.bf16.mxu0 0
      %2532 = vmatpush1.bf16.xpose.msra.mxu0 %v1386
      %2533 = vmatprep.subr.bf16.mxu0 0
      %2534 = vmatpush1.bf16.xpose.msra.mxu0 %v1390
      %2535 = vmatprep.subr.bf16.mxu0 0
      %2536 = vmatpush1.bf16.xpose.msra.mxu0 %v1394
      %2537 = vmatprep.subr.bf16.mxu0 0
      %2538 = vmatpush1.bf16.xpose.msra.mxu0 0
      %2539 = vmatprep.subr.bf16.mxu0 0
      %2540 = vmatpush1.bf16.xpose.msra.mxu0 0
      %2541 = vmatprep.subr.bf16.mxu0 0
      %2542 = vmatpush1.bf16.xpose.msra.mxu0 0
      %2543 = vmatprep.subr.bf16.mxu0 0
      %2544 = vmatpush1.bf16.xpose.msra.mxu0 0
      %2545 = vmatprep.subr.bf16.mxu0 0
      %2546 = vmatpush1.bf16.xpose.msra.mxu0 0
      %2547 = vmatprep.subr.bf16.mxu0 0
      %2548 = vmatpush1.bf16.xpose.msra.mxu0 0
      %2549 = vmatprep.subr.bf16.mxu0 0
      %2550 = vmatpush1.bf16.xpose.msra.mxu0 0
      %2551 = vmatprep.subr.bf16.mxu0 0
      %2552 = vmatpush1.bf16.xpose.msra.mxu0 0
      %2553 = vmatprep.mubr.bf16.mxu0 0
      %2554 = vmatmul.mubr.bf16.gmra.mrb[0].mxu0 %v1038
      %v2555 = vpop.f32.mrb[0].mxu0
      %v2556 = vadd.f32 0.0, %v2555
      %v2557 = vpop.f32.mrb[0].mxu0
      %v2558 = vpop.f32.mrb[0].mxu0
      %v2559 = vadd.f32 0.0, %v2558
      %v2560 = vpop.f32.mrb[0].mxu0
      %2561 = vmatprep.mubr.bf16.mxu0 0
      %2562 = vmatmul.mubr.bf16.gmra.mrb[0].mxu0 %v1042
      %v2563 = vpop.f32.mrb[0].mxu0
      %v2564 = vadd.f32 0.0, %v2563
      %v2565 = vpop.f32.mrb[0].mxu0
      %v2566 = vpop.f32.mrb[0].mxu0
      %v2567 = vadd.f32 0.0, %v2566
      %v2568 = vpop.f32.mrb[0].mxu0
      %2569 = vmatprep.mubr.bf16.mxu0 0
      %2570 = vmatmul.mubr.bf16.gmra.mrb[0].mxu0 %v1046
      %v2571 = vpop.f32.mrb[0].mxu0
      %v2572 = vadd.f32 0.0, %v2571
      %v2573 = vpop.f32.mrb[0].mxu0
      %v2574 = vpop.f32.mrb[0].mxu0
      %v2575 = vadd.f32 0.0, %v2574
      %v2576 = vpop.f32.mrb[0].mxu0
      %2577 = vmatprep.mubr.bf16.mxu0 0
      %2578 = vmatmul.mubr.bf16.gmra.mrb[0].mxu0 %v1050
      %v2579 = vpop.f32.mrb[0].mxu0
      %v2580 = vadd.f32 0.0, %v2579
      %v2581 = vpop.f32.mrb[0].mxu0
      %v2582 = vpop.f32.mrb[0].mxu0
      %v2583 = vadd.f32 0.0, %v2582
      %v2584 = vpop.f32.mrb[0].mxu0
      %2585 = vmatprep.mubr.bf16.mxu0 0
      %2586 = vmatmul.mubr.bf16.gmra.mrb[0].mxu0 %v1054
      %v2587 = vpop.f32.mrb[0].mxu0
      %v2588 = vadd.f32 0.0, %v2587
      %v2589 = vpop.f32.mrb[0].mxu0
      %v2590 = vpop.f32.mrb[0].mxu0
      %v2591 = vadd.f32 0.0, %v2590
      %v2592 = vpop.f32.mrb[0].mxu0
      %2593 = vmatprep.mubr.bf16.mxu0 0
      %2594 = vmatmul.mubr.bf16.gmra.mrb[0].mxu0 %v1058
      %v2595 = vpop.f32.mrb[0].mxu0
      %v2596 = vadd.f32 0.0, %v2595
      %v2597 = vpop.f32.mrb[0].mxu0
      %v2598 = vpop.f32.mrb[0].mxu0
      %v2599 = vadd.f32 0.0, %v2598
      %v2600 = vpop.f32.mrb[0].mxu0
      %2601 = vmatprep.mubr.bf16.mxu0 0
      %2602 = vmatmul.mubr.bf16.gmra.mrb[0].mxu0 %v1062
      %v2603 = vpop.f32.mrb[0].mxu0
      %v2604 = vadd.f32 0.0, %v2603
      %v2605 = vpop.f32.mrb[0].mxu0
      %v2606 = vpop.f32.mrb[0].mxu0
      %v2607 = vadd.f32 0.0, %v2606
      %v2608 = vpop.f32.mrb[0].mxu0
      %2609 = vmatprep.mubr.bf16.mxu0 0
      %2610 = vmatmul.mubr.bf16.gmra.mrb[0].mxu0 %v1066
      %v2611 = vpop.f32.mrb[0].mxu0
      %v2612 = vadd.f32 0.0, %v2611
      %v2613 = vpop.f32.mrb[0].mxu0
      %v2614 = vpop.f32.mrb[0].mxu0
      %v2615 = vadd.f32 0.0, %v2614
      %v2616 = vpop.f32.mrb[0].mxu0
      %2617 = vdwg.mxu0
      %v2618 = vsel %vm1765, -1e+30, %v2556
      %v2619 = vsel %vm1766, -1e+30, %v2559
      %v2620 = vsel %vm1767, -1e+30, %v2564
      %v2621 = vsel %vm1768, -1e+30, %v2567
      %v2622 = vsel %vm1769, -1e+30, %v2572
      %v2623 = vsel %vm1770, -1e+30, %v2575
      %v2624 = vsel %vm1771, -1e+30, %v2580
      %v2625 = vsel %vm1772, -1e+30, %v2583
      %v2626 = vsel %vm1773, -1e+30, %v2588
      %v2627 = vsel %vm1774, -1e+30, %v2591
      %v2628 = vsel %vm1775, -1e+30, %v2596
      %v2629 = vsel %vm1776, -1e+30, %v2599
      %v2630 = vsel %vm1777, -1e+30, %v2604
      %v2631 = vsel %vm1778, -1e+30, %v2607
      %v2632 = vsel %vm1779, -1e+30, %v2612
      %v2633 = vsel %vm1780, -1e+30, %v2615
      %2634 = vmax.xlane.f32.xlu0 %v2618
      %v2635 = vpop.xlane.xlu0 %2634
      %2636 = vmax.xlane.f32.xlu0 %v2619
      %v2637 = vpop.xlane.xlu0 %2636
      %2638 = vmax.xlane.f32.xlu0 %v2620
      %v2639 = vpop.xlane.xlu0 %2638
      %2640 = vmax.xlane.f32.xlu0 %v2621
      %v2641 = vpop.xlane.xlu0 %2640
      %2642 = vmax.xlane.f32.xlu0 %v2622
      %v2643 = vpop.xlane.xlu0 %2642
      %2644 = vmax.xlane.f32.xlu0 %v2623
      %v2645 = vpop.xlane.xlu0 %2644
      %2646 = vmax.xlane.f32.xlu0 %v2624
      %v2647 = vpop.xlane.xlu0 %2646
      %2648 = vmax.xlane.f32.xlu0 %v2625
      %v2649 = vpop.xlane.xlu0 %2648
      %2650 = vmax.xlane.f32.xlu0 %v2626
      %v2651 = vpop.xlane.xlu0 %2650
      %2652 = vmax.xlane.f32.xlu0 %v2627
      %v2653 = vpop.xlane.xlu0 %2652
      %2654 = vmax.xlane.f32.xlu0 %v2628
      %v2655 = vpop.xlane.xlu0 %2654
      %2656 = vmax.xlane.f32.xlu0 %v2629
      %v2657 = vpop.xlane.xlu0 %2656
      %2658 = vmax.xlane.f32.xlu0 %v2630
      %v2659 = vpop.xlane.xlu0 %2658
      %2660 = vmax.xlane.f32.xlu0 %v2631
      %v2661 = vpop.xlane.xlu0 %2660
      %2662 = vmax.xlane.f32.xlu0 %v2632
      %v2663 = vpop.xlane.xlu0 %2662
      %2664 = vmax.xlane.f32.xlu0 %v2633
      %v2665 = vpop.xlane.xlu0 %2664
      %v2666 = vsub.f32 %v2618, %v2635
      %v2667 = vsub.f32 %v2619, %v2637
      %v2668 = vsub.f32 %v2620, %v2639
      %v2669 = vsub.f32 %v2621, %v2641
      %v2670 = vsub.f32 %v2622, %v2643
      %v2671 = vsub.f32 %v2623, %v2645
      %v2672 = vsub.f32 %v2624, %v2647
      %v2673 = vsub.f32 %v2625, %v2649
      %v2674 = vsub.f32 %v2626, %v2651
      %v2675 = vsub.f32 %v2627, %v2653
      %v2676 = vsub.f32 %v2628, %v2655
      %v2677 = vsub.f32 %v2629, %v2657
      %v2678 = vsub.f32 %v2630, %v2659
      %v2679 = vsub.f32 %v2631, %v2661
      %v2680 = vsub.f32 %v2632, %v2663
      %v2681 = vsub.f32 %v2633, %v2665
      %v2682 = vmul.f32 %v2666, 1.442695
      %v2683 = vpow.pop %v2682
      %v2684 = vmul.f32 %v2667, 1.442695
      %v2685 = vpow.pop %v2684
      %v2686 = vmul.f32 %v2668, 1.442695
      %v2687 = vpow.pop %v2686
      %v2688 = vmul.f32 %v2669, 1.442695
      %v2689 = vpow.pop %v2688
      %v2690 = vmul.f32 %v2670, 1.442695
      %v2691 = vpow.pop %v2690
      %v2692 = vmul.f32 %v2671, 1.442695
      %v2693 = vpow.pop %v2692
      %v2694 = vmul.f32 %v2672, 1.442695
      %v2695 = vpow.pop %v2694
      %v2696 = vmul.f32 %v2673, 1.442695
      %v2697 = vpow.pop %v2696
      %v2698 = vmul.f32 %v2674, 1.442695
      %v2699 = vpow.pop %v2698
      %v2700 = vmul.f32 %v2675, 1.442695
      %v2701 = vpow.pop %v2700
      %v2702 = vmul.f32 %v2676, 1.442695
      %v2703 = vpow.pop %v2702
      %v2704 = vmul.f32 %v2677, 1.442695
      %v2705 = vpow.pop %v2704
      %v2706 = vmul.f32 %v2678, 1.442695
      %v2707 = vpow.pop %v2706
      %v2708 = vmul.f32 %v2679, 1.442695
      %v2709 = vpow.pop %v2708
      %v2710 = vmul.f32 %v2680, 1.442695
      %v2711 = vpow.pop %v2710
      %v2712 = vmul.f32 %v2681, 1.442695
      %v2713 = vpow.pop %v2712
      %2714 = vadd.xlane.f32.xlu0 %v2683
      %v2715 = vpop.xlane.xlu0 %2714
      %2716 = vadd.xlane.f32.xlu0 %v2685
      %v2717 = vpop.xlane.xlu0 %2716
      %2718 = vadd.xlane.f32.xlu0 %v2687
      %v2719 = vpop.xlane.xlu0 %2718
      %2720 = vadd.xlane.f32.xlu0 %v2689
      %v2721 = vpop.xlane.xlu0 %2720
      %2722 = vadd.xlane.f32.xlu0 %v2691
      %v2723 = vpop.xlane.xlu0 %2722
      %2724 = vadd.xlane.f32.xlu0 %v2693
      %v2725 = vpop.xlane.xlu0 %2724
      %2726 = vadd.xlane.f32.xlu0 %v2695
      %v2727 = vpop.xlane.xlu0 %2726
      %2728 = vadd.xlane.f32.xlu0 %v2697
      %v2729 = vpop.xlane.xlu0 %2728
      %2730 = vadd.xlane.f32.xlu0 %v2699
      %v2731 = vpop.xlane.xlu0 %2730
      %2732 = vadd.xlane.f32.xlu0 %v2701
      %v2733 = vpop.xlane.xlu0 %2732
      %2734 = vadd.xlane.f32.xlu0 %v2703
      %v2735 = vpop.xlane.xlu0 %2734
      %2736 = vadd.xlane.f32.xlu0 %v2705
      %v2737 = vpop.xlane.xlu0 %2736
      %2738 = vadd.xlane.f32.xlu0 %v2707
      %v2739 = vpop.xlane.xlu0 %2738
      %2740 = vadd.xlane.f32.xlu0 %v2709
      %v2741 = vpop.xlane.xlu0 %2740
      %2742 = vadd.xlane.f32.xlu0 %v2711
      %v2743 = vpop.xlane.xlu0 %2742
      %2744 = vadd.xlane.f32.xlu0 %v2713
      %v2745 = vpop.xlane.xlu0 %2744
      %v2746 = vrcp.pop %v2715
      %v2747 = vrcp.pop %v2717
      %v2748 = vrcp.pop %v2719
      %v2749 = vrcp.pop %v2721
      %v2750 = vrcp.pop %v2723
      %v2751 = vrcp.pop %v2725
      %v2752 = vrcp.pop %v2727
      %v2753 = vrcp.pop %v2729
      %v2754 = vrcp.pop %v2731
      %v2755 = vrcp.pop %v2733
      %v2756 = vrcp.pop %v2735
      %v2757 = vrcp.pop %v2737
      %v2758 = vrcp.pop %v2739
      %v2759 = vrcp.pop %v2741
      %v2760 = vrcp.pop %v2743
      %v2761 = vrcp.pop %v2745
      %v2762 = vmul.f32 %v2683, %v2746
      %v2763 = vmul.f32 %v2685, %v2747
      %v2764 = vmul.f32 %v2687, %v2748
      %v2765 = vmul.f32 %v2689, %v2749
      %v2766 = vmul.f32 %v2691, %v2750
      %v2767 = vmul.f32 %v2693, %v2751
      %v2768 = vmul.f32 %v2695, %v2752
      %v2769 = vmul.f32 %v2697, %v2753
      %v2770 = vmul.f32 %v2699, %v2754
      %v2771 = vmul.f32 %v2701, %v2755
      %v2772 = vmul.f32 %v2703, %v2756
      %v2773 = vmul.f32 %v2705, %v2757
      %v2774 = vmul.f32 %v2707, %v2758
      %v2775 = vmul.f32 %v2709, %v2759
      %v2776 = vmul.f32 %v2711, %v2760
      %v2777 = vmul.f32 %v2713, %v2761
      %v2778 = vpack.c.bf16 %v2763, %v2762
      %v2779 = vpack.c.bf16 %v2765, %v2764
      %v2780 = vpack.c.bf16 %v2767, %v2766
      %v2781 = vpack.c.bf16 %v2769, %v2768
      %v2782 = vpack.c.bf16 %v2771, %v2770
      %v2783 = vpack.c.bf16 %v2773, %v2772
      %v2784 = vpack.c.bf16 %v2775, %v2774
      %v2785 = vpack.c.bf16 %v2777, %v2776
      %2786 = vmatprep.subr.bf16.mxu0 0
      %2787 = vmatpush1.bf16.msra.mxu0 %v1694
      %2788 = vmatprep.subr.bf16.mxu0 0
      %2789 = vmatpush1.bf16.msra.mxu0 %v1698
      %2790 = vmatprep.subr.bf16.mxu0 0
      %2791 = vmatpush1.bf16.msra.mxu0 %v1702
      %2792 = vmatprep.subr.bf16.mxu0 0
      %2793 = vmatpush1.bf16.msra.mxu0 %v1706
      %2794 = vmatprep.subr.bf16.mxu0 0
      %2795 = vmatpush1.bf16.msra.mxu0 %v1710
      %2796 = vmatprep.subr.bf16.mxu0 0
      %2797 = vmatpush1.bf16.msra.mxu0 %v1714
      %2798 = vmatprep.subr.bf16.mxu0 0
      %2799 = vmatpush1.bf16.msra.mxu0 %v1718
      %2800 = vmatprep.subr.bf16.mxu0 0
      %2801 = vmatpush1.bf16.msra.mxu0 %v1722
      %2802 = vmatprep.subr.bf16.mxu0 0
      %2803 = vmatpush1.bf16.msra.mxu0 0
      %2804 = vmatprep.subr.bf16.mxu0 0
      %2805 = vmatpush1.bf16.msra.mxu0 0
      %2806 = vmatprep.subr.bf16.mxu0 0
      %2807 = vmatpush1.bf16.msra.mxu0 0
      %2808 = vmatprep.subr.bf16.mxu0 0
      %2809 = vmatpush1.bf16.msra.mxu0 0
      %2810 = vmatprep.subr.bf16.mxu0 0
      %2811 = vmatpush1.bf16.msra.mxu0 0
      %2812 = vmatprep.subr.bf16.mxu0 0
      %2813 = vmatpush1.bf16.msra.mxu0 0
      %2814 = vmatprep.subr.bf16.mxu0 0
      %2815 = vmatpush1.bf16.msra.mxu0 0
      %2816 = vmatprep.subr.bf16.mxu0 0
      %2817 = vmatpush1.bf16.msra.mxu0 0
      %2818 = vmatprep.mubr.bf16.mxu0 0
      %2819 = vmatmul.mubr.bf16.gmra.mrb[0].mxu0 %v2778
      %v2820 = vpop.f32.mrb[0].mxu0
      %v2821 = vadd.f32 0.0, %v2820
      %v2822 = vpop.f32.mrb[0].mxu0
      %v2823 = vpop.f32.mrb[0].mxu0
      %v2824 = vadd.f32 0.0, %v2823
      %v2825 = vpop.f32.mrb[0].mxu0
      %2826 = vmatprep.mubr.bf16.mxu0 0
      %2827 = vmatmul.mubr.bf16.gmra.mrb[0].mxu0 %v2779
      %v2828 = vpop.f32.mrb[0].mxu0
      %v2829 = vadd.f32 0.0, %v2828
      %v2830 = vpop.f32.mrb[0].mxu0
      %v2831 = vpop.f32.mrb[0].mxu0
      %v2832 = vadd.f32 0.0, %v2831
      %v2833 = vpop.f32.mrb[0].mxu0
      %2834 = vmatprep.mubr.bf16.mxu0 0
      %2835 = vmatmul.mubr.bf16.gmra.mrb[0].mxu0 %v2780
      %v2836 = vpop.f32.mrb[0].mxu0
      %v2837 = vadd.f32 0.0, %v2836
      %v2838 = vpop.f32.mrb[0].mxu0
      %v2839 = vpop.f32.mrb[0].mxu0
      %v2840 = vadd.f32 0.0, %v2839
      %v2841 = vpop.f32.mrb[0].mxu0
      %2842 = vmatprep.mubr.bf16.mxu0 0
      %2843 = vmatmul.mubr.bf16.gmra.mrb[0].mxu0 %v2781
      %v2844 = vpop.f32.mrb[0].mxu0
      %v2845 = vadd.f32 0.0, %v2844
      %v2846 = vpop.f32.mrb[0].mxu0
      %v2847 = vpop.f32.mrb[0].mxu0
      %v2848 = vadd.f32 0.0, %v2847
      %v2849 = vpop.f32.mrb[0].mxu0
      %2850 = vmatprep.mubr.bf16.mxu0 0
      %2851 = vmatmul.mubr.bf16.gmra.mrb[0].mxu0 %v2782
      %v2852 = vpop.f32.mrb[0].mxu0
      %v2853 = vadd.f32 0.0, %v2852
      %v2854 = vpop.f32.mrb[0].mxu0
      %v2855 = vpop.f32.mrb[0].mxu0
      %v2856 = vadd.f32 0.0, %v2855
      %v2857 = vpop.f32.mrb[0].mxu0
      %2858 = vmatprep.mubr.bf16.mxu0 0
      %2859 = vmatmul.mubr.bf16.gmra.mrb[0].mxu0 %v2783
      %v2860 = vpop.f32.mrb[0].mxu0
      %v2861 = vadd.f32 0.0, %v2860
      %v2862 = vpop.f32.mrb[0].mxu0
      %v2863 = vpop.f32.mrb[0].mxu0
      %v2864 = vadd.f32 0.0, %v2863
      %v2865 = vpop.f32.mrb[0].mxu0
      %2866 = vmatprep.mubr.bf16.mxu0 0
      %2867 = vmatmul.mubr.bf16.gmra.mrb[0].mxu0 %v2784
      %v2868 = vpop.f32.mrb[0].mxu0
      %v2869 = vadd.f32 0.0, %v2868
      %v2870 = vpop.f32.mrb[0].mxu0
      %v2871 = vpop.f32.mrb[0].mxu0
      %v2872 = vadd.f32 0.0, %v2871
      %v2873 = vpop.f32.mrb[0].mxu0
      %2874 = vmatprep.mubr.bf16.mxu0 0
      %2875 = vmatmul.mubr.bf16.gmra.mrb[0].mxu0 %v2785
      %v2876 = vpop.f32.mrb[0].mxu0
      %v2877 = vadd.f32 0.0, %v2876
      %v2878 = vpop.f32.mrb[0].mxu0
      %v2879 = vpop.f32.mrb[0].mxu0
      %v2880 = vadd.f32 0.0, %v2879
      %v2881 = vpop.f32.mrb[0].mxu0
      %2882 = vdwg.mxu0
      %v2883 = vpack.c.bf16 %v2824, %v2821
      %v2884 = vpack.c.bf16 %v2832, %v2829
      %v2885 = vpack.c.bf16 %v2840, %v2837
      %v2886 = vpack.c.bf16 %v2848, %v2845
      %v2887 = vpack.c.bf16 %v2856, %v2853
      %v2888 = vpack.c.bf16 %v2864, %v2861
      %v2889 = vpack.c.bf16 %v2872, %v2869
      %v2890 = vpack.c.bf16 %v2880, %v2877
      %2891 = vmatprep.subr.bf16.mxu0 0
      %2892 = vmatpush1.bf16.xpose.msra.mxu0 %v1367
      %2893 = vmatprep.subr.bf16.mxu0 0
      %2894 = vmatpush1.bf16.xpose.msra.mxu0 %v1371
      %2895 = vmatprep.subr.bf16.mxu0 0
      %2896 = vmatpush1.bf16.xpose.msra.mxu0 %v1375
      %2897 = vmatprep.subr.bf16.mxu0 0
      %2898 = vmatpush1.bf16.xpose.msra.mxu0 %v1379
      %2899 = vmatprep.subr.bf16.mxu0 0
      %2900 = vmatpush1.bf16.xpose.msra.mxu0 %v1383
      %2901 = vmatprep.subr.bf16.mxu0 0
      %2902 = vmatpush1.bf16.xpose.msra.mxu0 %v1387
      %2903 = vmatprep.subr.bf16.mxu0 0
      %2904 = vmatpush1.bf16.xpose.msra.mxu0 %v1391
      %2905 = vmatprep.subr.bf16.mxu0 0
      %2906 = vmatpush1.bf16.xpose.msra.mxu0 %v1395
      %2907 = vmatprep.subr.bf16.mxu0 0
      %2908 = vmatpush1.bf16.xpose.msra.mxu0 0
      %2909 = vmatprep.subr.bf16.mxu0 0
      %2910 = vmatpush1.bf16.xpose.msra.mxu0 0
      %2911 = vmatprep.subr.bf16.mxu0 0
      %2912 = vmatpush1.bf16.xpose.msra.mxu0 0
      %2913 = vmatprep.subr.bf16.mxu0 0
      %2914 = vmatpush1.bf16.xpose.msra.mxu0 0
      %2915 = vmatprep.subr.bf16.mxu0 0
      %2916 = vmatpush1.bf16.xpose.msra.mxu0 0
      %2917 = vmatprep.subr.bf16.mxu0 0
      %2918 = vmatpush1.bf16.xpose.msra.mxu0 0
      %2919 = vmatprep.subr.bf16.mxu0 0
      %2920 = vmatpush1.bf16.xpose.msra.mxu0 0
      %2921 = vmatprep.subr.bf16.mxu0 0
      %2922 = vmatpush1.bf16.xpose.msra.mxu0 0
      %2923 = vmatprep.mubr.bf16.mxu0 0
      %2924 = vmatmul.mubr.bf16.gmra.mrb[0].mxu0 %v1039
      %v2925 = vpop.f32.mrb[0].mxu0
      %v2926 = vadd.f32 0.0, %v2925
      %v2927 = vpop.f32.mrb[0].mxu0
      %v2928 = vpop.f32.mrb[0].mxu0
      %v2929 = vadd.f32 0.0, %v2928
      %v2930 = vpop.f32.mrb[0].mxu0
      %2931 = vmatprep.mubr.bf16.mxu0 0
      %2932 = vmatmul.mubr.bf16.gmra.mrb[0].mxu0 %v1043
      %v2933 = vpop.f32.mrb[0].mxu0
      %v2934 = vadd.f32 0.0, %v2933
      %v2935 = vpop.f32.mrb[0].mxu0
      %v2936 = vpop.f32.mrb[0].mxu0
      %v2937 = vadd.f32 0.0, %v2936
      %v2938 = vpop.f32.mrb[0].mxu0
      %2939 = vmatprep.mubr.bf16.mxu0 0
      %2940 = vmatmul.mubr.bf16.gmra.mrb[0].mxu0 %v1047
      %v2941 = vpop.f32.mrb[0].mxu0
      %v2942 = vadd.f32 0.0, %v2941
      %v2943 = vpop.f32.mrb[0].mxu0
      %v2944 = vpop.f32.mrb[0].mxu0
      %v2945 = vadd.f32 0.0, %v2944
      %v2946 = vpop.f32.mrb[0].mxu0
      %2947 = vmatprep.mubr.bf16.mxu0 0
      %2948 = vmatmul.mubr.bf16.gmra.mrb[0].mxu0 %v1051
      %v2949 = vpop.f32.mrb[0].mxu0
      %v2950 = vadd.f32 0.0, %v2949
      %v2951 = vpop.f32.mrb[0].mxu0
      %v2952 = vpop.f32.mrb[0].mxu0
      %v2953 = vadd.f32 0.0, %v2952
      %v2954 = vpop.f32.mrb[0].mxu0
      %2955 = vmatprep.mubr.bf16.mxu0 0
      %2956 = vmatmul.mubr.bf16.gmra.mrb[0].mxu0 %v1055
      %v2957 = vpop.f32.mrb[0].mxu0
      %v2958 = vadd.f32 0.0, %v2957
      %v2959 = vpop.f32.mrb[0].mxu0
      %v2960 = vpop.f32.mrb[0].mxu0
      %v2961 = vadd.f32 0.0, %v2960
      %v2962 = vpop.f32.mrb[0].mxu0
      %2963 = vmatprep.mubr.bf16.mxu0 0
      %2964 = vmatmul.mubr.bf16.gmra.mrb[0].mxu0 %v1059
      %v2965 = vpop.f32.mrb[0].mxu0
      %v2966 = vadd.f32 0.0, %v2965
      %v2967 = vpop.f32.mrb[0].mxu0
      %v2968 = vpop.f32.mrb[0].mxu0
      %v2969 = vadd.f32 0.0, %v2968
      %v2970 = vpop.f32.mrb[0].mxu0
      %2971 = vmatprep.mubr.bf16.mxu0 0
      %2972 = vmatmul.mubr.bf16.gmra.mrb[0].mxu0 %v1063
      %v2973 = vpop.f32.mrb[0].mxu0
      %v2974 = vadd.f32 0.0, %v2973
      %v2975 = vpop.f32.mrb[0].mxu0
      %v2976 = vpop.f32.mrb[0].mxu0
      %v2977 = vadd.f32 0.0, %v2976
      %v2978 = vpop.f32.mrb[0].mxu0
      %2979 = vmatprep.mubr.bf16.mxu0 0
      %2980 = vmatmul.mubr.bf16.gmra.mrb[0].mxu0 %v1067
      %v2981 = vpop.f32.mrb[0].mxu0
      %v2982 = vadd.f32 0.0, %v2981
      %v2983 = vpop.f32.mrb[0].mxu0
      %v2984 = vpop.f32.mrb[0].mxu0
      %v2985 = vadd.f32 0.0, %v2984
      %v2986 = vpop.f32.mrb[0].mxu0
      %2987 = vdwg.mxu0
      %v2988 = vsel %vm1765, -1e+30, %v2926
      %v2989 = vsel %vm1766, -1e+30, %v2929
      %v2990 = vsel %vm1767, -1e+30, %v2934
      %v2991 = vsel %vm1768, -1e+30, %v2937
      %v2992 = vsel %vm1769, -1e+30, %v2942
      %v2993 = vsel %vm1770, -1e+30, %v2945
      %v2994 = vsel %vm1771, -1e+30, %v2950
      %v2995 = vsel %vm1772, -1e+30, %v2953
      %v2996 = vsel %vm1773, -1e+30, %v2958
      %v2997 = vsel %vm1774, -1e+30, %v2961
      %v2998 = vsel %vm1775, -1e+30, %v2966
      %v2999 = vsel %vm1776, -1e+30, %v2969
      %v3000 = vsel %vm1777, -1e+30, %v2974
      %v3001 = vsel %vm1778, -1e+30, %v2977
      %v3002 = vsel %vm1779, -1e+30, %v2982
      %v3003 = vsel %vm1780, -1e+30, %v2985
      %3004 = vmax.xlane.f32.xlu0 %v2988
      %v3005 = vpop.xlane.xlu0 %3004
      %3006 = vmax.xlane.f32.xlu0 %v2989
      %v3007 = vpop.xlane.xlu0 %3006
      %3008 = vmax.xlane.f32.xlu0 %v2990
      %v3009 = vpop.xlane.xlu0 %3008
      %3010 = vmax.xlane.f32.xlu0 %v2991
      %v3011 = vpop.xlane.xlu0 %3010
      %3012 = vmax.xlane.f32.xlu0 %v2992
      %v3013 = vpop.xlane.xlu0 %3012
      %3014 = vmax.xlane.f32.xlu0 %v2993
      %v3015 = vpop.xlane.xlu0 %3014
      %3016 = vmax.xlane.f32.xlu0 %v2994
      %v3017 = vpop.xlane.xlu0 %3016
      %3018 = vmax.xlane.f32.xlu0 %v2995
      %v3019 = vpop.xlane.xlu0 %3018
      %3020 = vmax.xlane.f32.xlu0 %v2996
      %v3021 = vpop.xlane.xlu0 %3020
      %3022 = vmax.xlane.f32.xlu0 %v2997
      %v3023 = vpop.xlane.xlu0 %3022
      %3024 = vmax.xlane.f32.xlu0 %v2998
      %v3025 = vpop.xlane.xlu0 %3024
      %3026 = vmax.xlane.f32.xlu0 %v2999
      %v3027 = vpop.xlane.xlu0 %3026
      %3028 = vmax.xlane.f32.xlu0 %v3000
      %v3029 = vpop.xlane.xlu0 %3028
      %3030 = vmax.xlane.f32.xlu0 %v3001
      %v3031 = vpop.xlane.xlu0 %3030
      %3032 = vmax.xlane.f32.xlu0 %v3002
      %v3033 = vpop.xlane.xlu0 %3032
      %3034 = vmax.xlane.f32.xlu0 %v3003
      %v3035 = vpop.xlane.xlu0 %3034
      %v3036 = vsub.f32 %v2988, %v3005
      %v3037 = vsub.f32 %v2989, %v3007
      %v3038 = vsub.f32 %v2990, %v3009
      %v3039 = vsub.f32 %v2991, %v3011
      %v3040 = vsub.f32 %v2992, %v3013
      %v3041 = vsub.f32 %v2993, %v3015
      %v3042 = vsub.f32 %v2994, %v3017
      %v3043 = vsub.f32 %v2995, %v3019
      %v3044 = vsub.f32 %v2996, %v3021
      %v3045 = vsub.f32 %v2997, %v3023
      %v3046 = vsub.f32 %v2998, %v3025
      %v3047 = vsub.f32 %v2999, %v3027
      %v3048 = vsub.f32 %v3000, %v3029
      %v3049 = vsub.f32 %v3001, %v3031
      %v3050 = vsub.f32 %v3002, %v3033
      %v3051 = vsub.f32 %v3003, %v3035
      %v3052 = vmul.f32 %v3036, 1.442695
      %v3053 = vpow.pop %v3052
      %v3054 = vmul.f32 %v3037, 1.442695
      %v3055 = vpow.pop %v3054
      %v3056 = vmul.f32 %v3038, 1.442695
      %v3057 = vpow.pop %v3056
      %v3058 = vmul.f32 %v3039, 1.442695
      %v3059 = vpow.pop %v3058
      %v3060 = vmul.f32 %v3040, 1.442695
      %v3061 = vpow.pop %v3060
      %v3062 = vmul.f32 %v3041, 1.442695
      %v3063 = vpow.pop %v3062
      %v3064 = vmul.f32 %v3042, 1.442695
      %v3065 = vpow.pop %v3064
      %v3066 = vmul.f32 %v3043, 1.442695
      %v3067 = vpow.pop %v3066
      %v3068 = vmul.f32 %v3044, 1.442695
      %v3069 = vpow.pop %v3068
      %v3070 = vmul.f32 %v3045, 1.442695
      %v3071 = vpow.pop %v3070
      %v3072 = vmul.f32 %v3046, 1.442695
      %v3073 = vpow.pop %v3072
      %v3074 = vmul.f32 %v3047, 1.442695
      %v3075 = vpow.pop %v3074
      %v3076 = vmul.f32 %v3048, 1.442695
      %v3077 = vpow.pop %v3076
      %v3078 = vmul.f32 %v3049, 1.442695
      %v3079 = vpow.pop %v3078
      %v3080 = vmul.f32 %v3050, 1.442695
      %v3081 = vpow.pop %v3080
      %v3082 = vmul.f32 %v3051, 1.442695
      %v3083 = vpow.pop %v3082
      %3084 = vadd.xlane.f32.xlu0 %v3053
      %v3085 = vpop.xlane.xlu0 %3084
      %3086 = vadd.xlane.f32.xlu0 %v3055
      %v3087 = vpop.xlane.xlu0 %3086
      %3088 = vadd.xlane.f32.xlu0 %v3057
      %v3089 = vpop.xlane.xlu0 %3088
      %3090 = vadd.xlane.f32.xlu0 %v3059
      %v3091 = vpop.xlane.xlu0 %3090
      %3092 = vadd.xlane.f32.xlu0 %v3061
      %v3093 = vpop.xlane.xlu0 %3092
      %3094 = vadd.xlane.f32.xlu0 %v3063
      %v3095 = vpop.xlane.xlu0 %3094
      %3096 = vadd.xlane.f32.xlu0 %v3065
      %v3097 = vpop.xlane.xlu0 %3096
      %3098 = vadd.xlane.f32.xlu0 %v3067
      %v3099 = vpop.xlane.xlu0 %3098
      %3100 = vadd.xlane.f32.xlu0 %v3069
      %v3101 = vpop.xlane.xlu0 %3100
      %3102 = vadd.xlane.f32.xlu0 %v3071
      %v3103 = vpop.xlane.xlu0 %3102
      %3104 = vadd.xlane.f32.xlu0 %v3073
      %v3105 = vpop.xlane.xlu0 %3104
      %3106 = vadd.xlane.f32.xlu0 %v3075
      %v3107 = vpop.xlane.xlu0 %3106
      %3108 = vadd.xlane.f32.xlu0 %v3077
      %v3109 = vpop.xlane.xlu0 %3108
      %3110 = vadd.xlane.f32.xlu0 %v3079
      %v3111 = vpop.xlane.xlu0 %3110
      %3112 = vadd.xlane.f32.xlu0 %v3081
      %v3113 = vpop.xlane.xlu0 %3112
      %3114 = vadd.xlane.f32.xlu0 %v3083
      %v3115 = vpop.xlane.xlu0 %3114
      %v3116 = vrcp.pop %v3085
      %v3117 = vrcp.pop %v3087
      %v3118 = vrcp.pop %v3089
      %v3119 = vrcp.pop %v3091
      %v3120 = vrcp.pop %v3093
      %v3121 = vrcp.pop %v3095
      %v3122 = vrcp.pop %v3097
      %v3123 = vrcp.pop %v3099
      %v3124 = vrcp.pop %v3101
      %v3125 = vrcp.pop %v3103
      %v3126 = vrcp.pop %v3105
      %v3127 = vrcp.pop %v3107
      %v3128 = vrcp.pop %v3109
      %v3129 = vrcp.pop %v3111
      %v3130 = vrcp.pop %v3113
      %v3131 = vrcp.pop %v3115
      %v3132 = vmul.f32 %v3053, %v3116
      %v3133 = vmul.f32 %v3055, %v3117
      %v3134 = vmul.f32 %v3057, %v3118
      %v3135 = vmul.f32 %v3059, %v3119
      %v3136 = vmul.f32 %v3061, %v3120
      %v3137 = vmul.f32 %v3063, %v3121
      %v3138 = vmul.f32 %v3065, %v3122
      %v3139 = vmul.f32 %v3067, %v3123
      %v3140 = vmul.f32 %v3069, %v3124
      %v3141 = vmul.f32 %v3071, %v3125
      %v3142 = vmul.f32 %v3073, %v3126
      %v3143 = vmul.f32 %v3075, %v3127
      %v3144 = vmul.f32 %v3077, %v3128
      %v3145 = vmul.f32 %v3079, %v3129
      %v3146 = vmul.f32 %v3081, %v3130
      %v3147 = vmul.f32 %v3083, %v3131
      %v3148 = vpack.c.bf16 %v3133, %v3132
      %v3149 = vpack.c.bf16 %v3135, %v3134
      %v3150 = vpack.c.bf16 %v3137, %v3136
      %v3151 = vpack.c.bf16 %v3139, %v3138
      %v3152 = vpack.c.bf16 %v3141, %v3140
      %v3153 = vpack.c.bf16 %v3143, %v3142
      %v3154 = vpack.c.bf16 %v3145, %v3144
      %v3155 = vpack.c.bf16 %v3147, %v3146
      %3156 = vmatprep.subr.bf16.mxu0 0
      %3157 = vmatpush1.bf16.msra.mxu0 %v1695
      %3158 = vmatprep.subr.bf16.mxu0 0
      %3159 = vmatpush1.bf16.msra.mxu0 %v1699
      %3160 = vmatprep.subr.bf16.mxu0 0
      %3161 = vmatpush1.bf16.msra.mxu0 %v1703
      %3162 = vmatprep.subr.bf16.mxu0 0
      %3163 = vmatpush1.bf16.msra.mxu0 %v1707
      %3164 = vmatprep.subr.bf16.mxu0 0
      %3165 = vmatpush1.bf16.msra.mxu0 %v1711
      %3166 = vmatprep.subr.bf16.mxu0 0
      %3167 = vmatpush1.bf16.msra.mxu0 %v1715
      %3168 = vmatprep.subr.bf16.mxu0 0
      %3169 = vmatpush1.bf16.msra.mxu0 %v1719
      %3170 = vmatprep.subr.bf16.mxu0 0
      %3171 = vmatpush1.bf16.msra.mxu0 %v1723
      %3172 = vmatprep.subr.bf16.mxu0 0
      %3173 = vmatpush1.bf16.msra.mxu0 0
      %3174 = vmatprep.subr.bf16.mxu0 0
      %3175 = vmatpush1.bf16.msra.mxu0 0
      %3176 = vmatprep.subr.bf16.mxu0 0
      %3177 = vmatpush1.bf16.msra.mxu0 0
      %3178 = vmatprep.subr.bf16.mxu0 0
      %3179 = vmatpush1.bf16.msra.mxu0 0
      %3180 = vmatprep.subr.bf16.mxu0 0
      %3181 = vmatpush1.bf16.msra.mxu0 0
      %3182 = vmatprep.subr.bf16.mxu0 0
      %3183 = vmatpush1.bf16.msra.mxu0 0
      %3184 = vmatprep.subr.bf16.mxu0 0
      %3185 = vmatpush1.bf16.msra.mxu0 0
      %3186 = vmatprep.subr.bf16.mxu0 0
      %3187 = vmatpush1.bf16.msra.mxu0 0
      %3188 = vmatprep.mubr.bf16.mxu0 0
      %3189 = vmatmul.mubr.bf16.gmra.mrb[0].mxu0 %v3148
      %v3190 = vpop.f32.mrb[0].mxu0
      %v3191 = vadd.f32 0.0, %v3190
      %v3192 = vpop.f32.mrb[0].mxu0
      %v3193 = vpop.f32.mrb[0].mxu0
      %v3194 = vadd.f32 0.0, %v3193
      %v3195 = vpop.f32.mrb[0].mxu0
      %3196 = vmatprep.mubr.bf16.mxu0 0
      %3197 = vmatmul.mubr.bf16.gmra.mrb[0].mxu0 %v3149
      %v3198 = vpop.f32.mrb[0].mxu0
      %v3199 = vadd.f32 0.0, %v3198
      %v3200 = vpop.f32.mrb[0].mxu0
      %v3201 = vpop.f32.mrb[0].mxu0
      %v3202 = vadd.f32 0.0, %v3201
      %v3203 = vpop.f32.mrb[0].mxu0
      %3204 = vmatprep.mubr.bf16.mxu0 0
      %3205 = vmatmul.mubr.bf16.gmra.mrb[0].mxu0 %v3150
      %v3206 = vpop.f32.mrb[0].mxu0
      %v3207 = vadd.f32 0.0, %v3206
      %v3208 = vpop.f32.mrb[0].mxu0
      %v3209 = vpop.f32.mrb[0].mxu0
      %v3210 = vadd.f32 0.0, %v3209
      %v3211 = vpop.f32.mrb[0].mxu0
      %3212 = vmatprep.mubr.bf16.mxu0 0
      %3213 = vmatmul.mubr.bf16.gmra.mrb[0].mxu0 %v3151
      %v3214 = vpop.f32.mrb[0].mxu0
      %v3215 = vadd.f32 0.0, %v3214
      %v3216 = vpop.f32.mrb[0].mxu0
      %v3217 = vpop.f32.mrb[0].mxu0
      %v3218 = vadd.f32 0.0, %v3217
      %v3219 = vpop.f32.mrb[0].mxu0
      %3220 = vmatprep.mubr.bf16.mxu0 0
      %3221 = vmatmul.mubr.bf16.gmra.mrb[0].mxu0 %v3152
      %v3222 = vpop.f32.mrb[0].mxu0
      %v3223 = vadd.f32 0.0, %v3222
      %v3224 = vpop.f32.mrb[0].mxu0
      %v3225 = vpop.f32.mrb[0].mxu0
      %v3226 = vadd.f32 0.0, %v3225
      %v3227 = vpop.f32.mrb[0].mxu0
      %3228 = vmatprep.mubr.bf16.mxu0 0
      %3229 = vmatmul.mubr.bf16.gmra.mrb[0].mxu0 %v3153
      %v3230 = vpop.f32.mrb[0].mxu0
      %v3231 = vadd.f32 0.0, %v3230
      %v3232 = vpop.f32.mrb[0].mxu0
      %v3233 = vpop.f32.mrb[0].mxu0
      %v3234 = vadd.f32 0.0, %v3233
      %v3235 = vpop.f32.mrb[0].mxu0
      %3236 = vmatprep.mubr.bf16.mxu0 0
      %3237 = vmatmul.mubr.bf16.gmra.mrb[0].mxu0 %v3154
      %v3238 = vpop.f32.mrb[0].mxu0
      %v3239 = vadd.f32 0.0, %v3238
      %v3240 = vpop.f32.mrb[0].mxu0
      %v3241 = vpop.f32.mrb[0].mxu0
      %v3242 = vadd.f32 0.0, %v3241
      %v3243 = vpop.f32.mrb[0].mxu0
      %3244 = vmatprep.mubr.bf16.mxu0 0
      %3245 = vmatmul.mubr.bf16.gmra.mrb[0].mxu0 %v3155
      %v3246 = vpop.f32.mrb[0].mxu0
      %v3247 = vadd.f32 0.0, %v3246
      %v3248 = vpop.f32.mrb[0].mxu0
      %v3249 = vpop.f32.mrb[0].mxu0
      %v3250 = vadd.f32 0.0, %v3249
      %v3251 = vpop.f32.mrb[0].mxu0
      %3252 = vdwg.mxu0
      %v3253 = vpack.c.bf16 %v3194, %v3191
      %v3254 = vpack.c.bf16 %v3202, %v3199
      %v3255 = vpack.c.bf16 %v3210, %v3207
      %v3256 = vpack.c.bf16 %v3218, %v3215
      %v3257 = vpack.c.bf16 %v3226, %v3223
      %v3258 = vpack.c.bf16 %v3234, %v3231
      %v3259 = vpack.c.bf16 %v3242, %v3239
      %v3260 = vpack.c.bf16 %v3250, %v3247
      %v3261 = vld [vmem:[%s9] sm:$0xf]
      %v3262 = vld [vmem:[%s9 + $0x4] sm:$0xf]
      %v3263 = vld [vmem:[%s9 + $0x8] sm:$0xf]
      %v3264 = vld [vmem:[%s9 + $0xc] sm:$0xf]
      %v3265 = vld [vmem:[%s9 + $0x10] sm:$0xf]
      %v3266 = vld [vmem:[%s9 + $0x14] sm:$0xf]
      %v3267 = vld [vmem:[%s9 + $0x18] sm:$0xf]
      %v3268 = vld [vmem:[%s9 + $0x1c] sm:$0xf]
      %v3269 = vld [vmem:[%s9 + $0x20] sm:$0xf]
      %v3270 = vld [vmem:[%s9 + $0x24] sm:$0xf]
      %v3271 = vld [vmem:[%s9 + $0x28] sm:$0xf]
      %v3272 = vld [vmem:[%s9 + $0x2c] sm:$0xf]
      %v3273 = vld [vmem:[%s9 + $0x30] sm:$0xf]
      %v3274 = vld [vmem:[%s9 + $0x34] sm:$0xf]
      %v3275 = vld [vmem:[%s9 + $0x38] sm:$0xf]
      %v3276 = vld [vmem:[%s9 + $0x3c] sm:$0xf]
      %v3277 = vld [vmem:[%s9 + $0x40] sm:$0xf]
      %v3278 = vld [vmem:[%s9 + $0x44] sm:$0xf]
      %v3279 = vld [vmem:[%s9 + $0x48] sm:$0xf]
      %v3280 = vld [vmem:[%s9 + $0x4c] sm:$0xf]
      %v3281 = vld [vmem:[%s9 + $0x50] sm:$0xf]
      %v3282 = vld [vmem:[%s9 + $0x54] sm:$0xf]
      %v3283 = vld [vmem:[%s9 + $0x58] sm:$0xf]
      %v3284 = vld [vmem:[%s9 + $0x5c] sm:$0xf]
      %v3285 = vld [vmem:[%s9 + $0x60] sm:$0xf]
      %v3286 = vld [vmem:[%s9 + $0x64] sm:$0xf]
      %v3287 = vld [vmem:[%s9 + $0x68] sm:$0xf]
      %v3288 = vld [vmem:[%s9 + $0x6c] sm:$0xf]
      %v3289 = vld [vmem:[%s9 + $0x70] sm:$0xf]
      %v3290 = vld [vmem:[%s9 + $0x74] sm:$0xf]
      %v3291 = vld [vmem:[%s9 + $0x78] sm:$0xf]
      %v3292 = vld [vmem:[%s9 + $0x7c] sm:$0xf]
      %v3293 = vld [vmem:[%s9 + $0x80] sm:$0xf]
      %v3294 = vld [vmem:[%s9 + $0x84] sm:$0xf]
      %v3295 = vld [vmem:[%s9 + $0x88] sm:$0xf]
      %v3296 = vld [vmem:[%s9 + $0x8c] sm:$0xf]
      %v3297 = vld [vmem:[%s9 + $0x90] sm:$0xf]
      %v3298 = vld [vmem:[%s9 + $0x94] sm:$0xf]
      %v3299 = vld [vmem:[%s9 + $0x98] sm:$0xf]
      %v3300 = vld [vmem:[%s9 + $0x9c] sm:$0xf]
      %v3301 = vld [vmem:[%s9 + $0xa0] sm:$0xf]
      %v3302 = vld [vmem:[%s9 + $0xa4] sm:$0xf]
      %v3303 = vld [vmem:[%s9 + $0xa8] sm:$0xf]
      %v3304 = vld [vmem:[%s9 + $0xac] sm:$0xf]
      %v3305 = vld [vmem:[%s9 + $0xb0] sm:$0xf]
      %v3306 = vld [vmem:[%s9 + $0xb4] sm:$0xf]
      %v3307 = vld [vmem:[%s9 + $0xb8] sm:$0xf]
      %v3308 = vld [vmem:[%s9 + $0xbc] sm:$0xf]
      %v3309 = vld [vmem:[%s9 + $0xc0] sm:$0xf]
      %v3310 = vld [vmem:[%s9 + $0xc4] sm:$0xf]
      %v3311 = vld [vmem:[%s9 + $0xc8] sm:$0xf]
      %v3312 = vld [vmem:[%s9 + $0xcc] sm:$0xf]
      %v3313 = vld [vmem:[%s9 + $0xd0] sm:$0xf]
      %v3314 = vld [vmem:[%s9 + $0xd4] sm:$0xf]
      %v3315 = vld [vmem:[%s9 + $0xd8] sm:$0xf]
      %v3316 = vld [vmem:[%s9 + $0xdc] sm:$0xf]
      %v3317 = vld [vmem:[%s9 + $0xe0] sm:$0xf]
      %v3318 = vld [vmem:[%s9 + $0xe4] sm:$0xf]
      %v3319 = vld [vmem:[%s9 + $0xe8] sm:$0xf]
      %v3320 = vld [vmem:[%s9 + $0xec] sm:$0xf]
      %v3321 = vld [vmem:[%s9 + $0xf0] sm:$0xf]
      %v3322 = vld [vmem:[%s9 + $0xf4] sm:$0xf]
      %v3323 = vld [vmem:[%s9 + $0xf8] sm:$0xf]
      %v3324 = vld [vmem:[%s9 + $0xfc] sm:$0xf]
      %v3325 = vld [vmem:[%s10] sm:$0x1]
      %v3327 = vlaneseq
      %v3328 = vshrl.u32 %v3327, 7
      %v3329 = vsub.s32 0, %v3328
      %v3330 = vrot.slane %v3325, %v3329
      %v3396 = vunpack.c.l.b16 %v3261
      %v3397 = vunpack.c.l.b16 %v3262
      %v3398 = vunpack.c.l.b16 %v3263
      %v3399 = vunpack.c.l.b16 %v3264
      %v3400 = vunpack.c.l.b16 %v3265
      %v3401 = vunpack.c.l.b16 %v3266
      %v3402 = vunpack.c.l.b16 %v3267
      %v3403 = vunpack.c.l.b16 %v3268
      %v3404 = vunpack.c.l.b16 %v3269
      %v3405 = vunpack.c.l.b16 %v3270
      %v3406 = vunpack.c.l.b16 %v3271
      %v3407 = vunpack.c.l.b16 %v3272
      %v3408 = vunpack.c.l.b16 %v3273
      %v3409 = vunpack.c.l.b16 %v3274
      %v3410 = vunpack.c.l.b16 %v3275
      %v3411 = vunpack.c.l.b16 %v3276
      %v3412 = vunpack.c.l.b16 %v3277
      %v3413 = vunpack.c.l.b16 %v3278
      %v3414 = vunpack.c.l.b16 %v3279
      %v3415 = vunpack.c.l.b16 %v3280
      %v3416 = vunpack.c.l.b16 %v3281
      %v3417 = vunpack.c.l.b16 %v3282
      %v3418 = vunpack.c.l.b16 %v3283
      %v3419 = vunpack.c.l.b16 %v3284
      %v3420 = vunpack.c.l.b16 %v3285
      %v3421 = vunpack.c.l.b16 %v3286
      %v3422 = vunpack.c.l.b16 %v3287
      %v3423 = vunpack.c.l.b16 %v3288
      %v3424 = vunpack.c.l.b16 %v3289
      %v3425 = vunpack.c.l.b16 %v3290
      %v3426 = vunpack.c.l.b16 %v3291
      %v3427 = vunpack.c.l.b16 %v3292
      %v3428 = vunpack.c.l.b16 %v3293
      %v3429 = vunpack.c.l.b16 %v3294
      %v3430 = vunpack.c.l.b16 %v3295
      %v3431 = vunpack.c.l.b16 %v3296
      %v3432 = vunpack.c.l.b16 %v3297
      %v3433 = vunpack.c.l.b16 %v3298
      %v3434 = vunpack.c.l.b16 %v3299
      %v3435 = vunpack.c.l.b16 %v3300
      %v3436 = vunpack.c.l.b16 %v3301
      %v3437 = vunpack.c.l.b16 %v3302
      %v3438 = vunpack.c.l.b16 %v3303
      %v3439 = vunpack.c.l.b16 %v3304
      %v3440 = vunpack.c.l.b16 %v3305
      %v3441 = vunpack.c.l.b16 %v3306
      %v3442 = vunpack.c.l.b16 %v3307
      %v3443 = vunpack.c.l.b16 %v3308
      %v3444 = vunpack.c.l.b16 %v3309
      %v3445 = vunpack.c.l.b16 %v3310
      %v3446 = vunpack.c.l.b16 %v3311
      %v3447 = vunpack.c.l.b16 %v3312
      %v3448 = vunpack.c.l.b16 %v3313
      %v3449 = vunpack.c.l.b16 %v3314
      %v3450 = vunpack.c.l.b16 %v3315
      %v3451 = vunpack.c.l.b16 %v3316
      %v3452 = vunpack.c.l.b16 %v3317
      %v3453 = vunpack.c.l.b16 %v3318
      %v3454 = vunpack.c.l.b16 %v3319
      %v3455 = vunpack.c.l.b16 %v3320
      %v3456 = vunpack.c.l.b16 %v3321
      %v3457 = vunpack.c.l.b16 %v3322
      %v3458 = vunpack.c.l.b16 %v3323
      %v3459 = vunpack.c.l.b16 %v3324
      %v3460 = vpack.c.b16 %v3397, %v3396
      %v3461 = vpack.c.b16 %v3399, %v3398
      %v3462 = vpack.c.b16 %v3401, %v3400
      %v3463 = vpack.c.b16 %v3403, %v3402
      %v3464 = vpack.c.b16 %v3405, %v3404
      %v3465 = vpack.c.b16 %v3407, %v3406
      %v3466 = vpack.c.b16 %v3409, %v3408
      %v3467 = vpack.c.b16 %v3411, %v3410
      %v3468 = vpack.c.b16 %v3413, %v3412
      %v3469 = vpack.c.b16 %v3415, %v3414
      %v3470 = vpack.c.b16 %v3417, %v3416
      %v3471 = vpack.c.b16 %v3419, %v3418
      %v3472 = vpack.c.b16 %v3421, %v3420
      %v3473 = vpack.c.b16 %v3423, %v3422
      %v3474 = vpack.c.b16 %v3425, %v3424
      %v3475 = vpack.c.b16 %v3427, %v3426
      %v3476 = vpack.c.b16 %v3429, %v3428
      %v3477 = vpack.c.b16 %v3431, %v3430
      %v3478 = vpack.c.b16 %v3433, %v3432
      %v3479 = vpack.c.b16 %v3435, %v3434
      %v3480 = vpack.c.b16 %v3437, %v3436
      %v3481 = vpack.c.b16 %v3439, %v3438
      %v3482 = vpack.c.b16 %v3441, %v3440
      %v3483 = vpack.c.b16 %v3443, %v3442
      %v3484 = vpack.c.b16 %v3445, %v3444
      %v3485 = vpack.c.b16 %v3447, %v3446
      %v3486 = vpack.c.b16 %v3449, %v3448
      %v3487 = vpack.c.b16 %v3451, %v3450
      %v3488 = vpack.c.b16 %v3453, %v3452
      %v3489 = vpack.c.b16 %v3455, %v3454
      %v3490 = vpack.c.b16 %v3457, %v3456
      %v3491 = vpack.c.b16 %v3459, %v3458
      %3524 = vmatprep.subr.bf16.mxu0 0
      %3525 = vmatpush1.bf16.msra.mxu0 %v3460
      %3526 = vmatprep.subr.bf16.mxu0 0
      %3527 = vmatpush1.bf16.msra.mxu0 %v3461
      %3528 = vmatprep.subr.bf16.mxu0 0
      %3529 = vmatpush1.bf16.msra.mxu0 %v3462
      %3530 = vmatprep.subr.bf16.mxu0 0
      %3531 = vmatpush1.bf16.msra.mxu0 %v3463
      %3532 = vmatprep.subr.bf16.mxu0 0
      %3533 = vmatpush1.bf16.msra.mxu0 %v3464
      %3534 = vmatprep.subr.bf16.mxu0 0
      %3535 = vmatpush1.bf16.msra.mxu0 %v3465
      %3536 = vmatprep.subr.bf16.mxu0 0
      %3537 = vmatpush1.bf16.msra.mxu0 %v3466
      %3538 = vmatprep.subr.bf16.mxu0 0
      %3539 = vmatpush1.bf16.msra.mxu0 %v3467
      %3540 = vmatprep.subr.bf16.mxu0 0
      %3541 = vmatpush1.bf16.msra.mxu0 %v3468
      %3542 = vmatprep.subr.bf16.mxu0 0
      %3543 = vmatpush1.bf16.msra.mxu0 %v3469
      %3544 = vmatprep.subr.bf16.mxu0 0
      %3545 = vmatpush1.bf16.msra.mxu0 %v3470
      %3546 = vmatprep.subr.bf16.mxu0 0
      %3547 = vmatpush1.bf16.msra.mxu0 %v3471
      %3548 = vmatprep.subr.bf16.mxu0 0
      %3549 = vmatpush1.bf16.msra.mxu0 %v3472
      %3550 = vmatprep.subr.bf16.mxu0 0
      %3551 = vmatpush1.bf16.msra.mxu0 %v3473
      %3552 = vmatprep.subr.bf16.mxu0 0
      %3553 = vmatpush1.bf16.msra.mxu0 %v3474
      %3554 = vmatprep.subr.bf16.mxu0 0
      %3555 = vmatpush1.bf16.msra.mxu0 %v3475
      %3556 = vmatprep.mubr.bf16.mxu0 %v2513
      %3557 = vmatmul.mubr.bf16.gmra.mrb[0].mxu0 %v2143
      %v3558 = vpop.f32.mrb[0].mxu0
      %v3559 = vadd.f32 %v3330, %v3558
      %v3560 = vpop.f32.mrb[0].mxu0
      %v3561 = vpop.f32.mrb[0].mxu0
      %v3562 = vadd.f32 %v3330, %v3561
      %v3563 = vpop.f32.mrb[0].mxu0
      %3564 = vmatprep.mubr.bf16.mxu0 %v2514
      %3565 = vmatmul.mubr.bf16.gmra.mrb[0].mxu0 %v2144
      %v3566 = vpop.f32.mrb[0].mxu0
      %v3567 = vadd.f32 %v3330, %v3566
      %v3568 = vpop.f32.mrb[0].mxu0
      %v3569 = vpop.f32.mrb[0].mxu0
      %v3570 = vadd.f32 %v3330, %v3569
      %v3571 = vpop.f32.mrb[0].mxu0
      %3572 = vmatprep.mubr.bf16.mxu0 %v2515
      %3573 = vmatmul.mubr.bf16.gmra.mrb[0].mxu0 %v2145
      %v3574 = vpop.f32.mrb[0].mxu0
      %v3575 = vadd.f32 %v3330, %v3574
      %v3576 = vpop.f32.mrb[0].mxu0
      %v3577 = vpop.f32.mrb[0].mxu0
      %v3578 = vadd.f32 %v3330, %v3577
      %v3579 = vpop.f32.mrb[0].mxu0
      %3580 = vmatprep.mubr.bf16.mxu0 %v2516
      %3581 = vmatmul.mubr.bf16.gmra.mrb[0].mxu0 %v2146
      %v3582 = vpop.f32.mrb[0].mxu0
      %v3583 = vadd.f32 %v3330, %v3582
      %v3584 = vpop.f32.mrb[0].mxu0
      %v3585 = vpop.f32.mrb[0].mxu0
      %v3586 = vadd.f32 %v3330, %v3585
      %v3587 = vpop.f32.mrb[0].mxu0
      %3588 = vmatprep.mubr.bf16.mxu0 %v2517
      %3589 = vmatmul.mubr.bf16.gmra.mrb[0].mxu0 %v2147
      %v3590 = vpop.f32.mrb[0].mxu0
      %v3591 = vadd.f32 %v3330, %v3590
      %v3592 = vpop.f32.mrb[0].mxu0
      %v3593 = vpop.f32.mrb[0].mxu0
      %v3594 = vadd.f32 %v3330, %v3593
      %v3595 = vpop.f32.mrb[0].mxu0
      %3596 = vmatprep.mubr.bf16.mxu0 %v2518
      %3597 = vmatmul.mubr.bf16.gmra.mrb[0].mxu0 %v2148
      %v3598 = vpop.f32.mrb[0].mxu0
      %v3599 = vadd.f32 %v3330, %v3598
      %v3600 = vpop.f32.mrb[0].mxu0
      %v3601 = vpop.f32.mrb[0].mxu0
      %v3602 = vadd.f32 %v3330, %v3601
      %v3603 = vpop.f32.mrb[0].mxu0
      %3604 = vmatprep.mubr.bf16.mxu0 %v2519
      %3605 = vmatmul.mubr.bf16.gmra.mrb[0].mxu0 %v2149
      %v3606 = vpop.f32.mrb[0].mxu0
      %v3607 = vadd.f32 %v3330, %v3606
      %v3608 = vpop.f32.mrb[0].mxu0
      %v3609 = vpop.f32.mrb[0].mxu0
      %v3610 = vadd.f32 %v3330, %v3609
      %v3611 = vpop.f32.mrb[0].mxu0
      %3612 = vmatprep.mubr.bf16.mxu0 %v2520
      %3613 = vmatmul.mubr.bf16.gmra.mrb[0].mxu0 %v2150
      %v3614 = vpop.f32.mrb[0].mxu0
      %v3615 = vadd.f32 %v3330, %v3614
      %v3616 = vpop.f32.mrb[0].mxu0
      %v3617 = vpop.f32.mrb[0].mxu0
      %v3618 = vadd.f32 %v3330, %v3617
      %v3619 = vpop.f32.mrb[0].mxu0
      %3620 = vdwg.mxu0
      %3621 = vmatprep.subr.bf16.mxu0 0
      %3622 = vmatpush1.bf16.msra.mxu0 %v3476
      %3623 = vmatprep.subr.bf16.mxu0 0
      %3624 = vmatpush1.bf16.msra.mxu0 %v3477
      %3625 = vmatprep.subr.bf16.mxu0 0
      %3626 = vmatpush1.bf16.msra.mxu0 %v3478
      %3627 = vmatprep.subr.bf16.mxu0 0
      %3628 = vmatpush1.bf16.msra.mxu0 %v3479
      %3629 = vmatprep.subr.bf16.mxu0 0
      %3630 = vmatpush1.bf16.msra.mxu0 %v3480
      %3631 = vmatprep.subr.bf16.mxu0 0
      %3632 = vmatpush1.bf16.msra.mxu0 %v3481
      %3633 = vmatprep.subr.bf16.mxu0 0
      %3634 = vmatpush1.bf16.msra.mxu0 %v3482
      %3635 = vmatprep.subr.bf16.mxu0 0
      %3636 = vmatpush1.bf16.msra.mxu0 %v3483
      %3637 = vmatprep.subr.bf16.mxu0 0
      %3638 = vmatpush1.bf16.msra.mxu0 %v3484
      %3639 = vmatprep.subr.bf16.mxu0 0
      %3640 = vmatpush1.bf16.msra.mxu0 %v3485
      %3641 = vmatprep.subr.bf16.mxu0 0
      %3642 = vmatpush1.bf16.msra.mxu0 %v3486
      %3643 = vmatprep.subr.bf16.mxu0 0
      %3644 = vmatpush1.bf16.msra.mxu0 %v3487
      %3645 = vmatprep.subr.bf16.mxu0 0
      %3646 = vmatpush1.bf16.msra.mxu0 %v3488
      %3647 = vmatprep.subr.bf16.mxu0 0
      %3648 = vmatpush1.bf16.msra.mxu0 %v3489
      %3649 = vmatprep.subr.bf16.mxu0 0
      %3650 = vmatpush1.bf16.msra.mxu0 %v3490
      %3651 = vmatprep.subr.bf16.mxu0 0
      %3652 = vmatpush1.bf16.msra.mxu0 %v3491
      %3653 = vmatprep.mubr.bf16.mxu0 %v3253
      %3654 = vmatmul.mubr.bf16.gmra.mrb[0].mxu0 %v2883
      %v3655 = vpop.f32.mrb[0].mxu0
      %v3656 = vadd.f32 %v3559, %v3655
      %v3657 = vpop.f32.mrb[0].mxu0
      %v3658 = vpop.f32.mrb[0].mxu0
      %v3659 = vadd.f32 %v3562, %v3658
      %v3660 = vpop.f32.mrb[0].mxu0
      %3661 = vmatprep.mubr.bf16.mxu0 %v3254
      %3662 = vmatmul.mubr.bf16.gmra.mrb[0].mxu0 %v2884
      %v3663 = vpop.f32.mrb[0].mxu0
      %v3664 = vadd.f32 %v3567, %v3663
      %v3665 = vpop.f32.mrb[0].mxu0
      %v3666 = vpop.f32.mrb[0].mxu0
      %v3667 = vadd.f32 %v3570, %v3666
      %v3668 = vpop.f32.mrb[0].mxu0
      %3669 = vmatprep.mubr.bf16.mxu0 %v3255
      %3670 = vmatmul.mubr.bf16.gmra.mrb[0].mxu0 %v2885
      %v3671 = vpop.f32.mrb[0].mxu0
      %v3672 = vadd.f32 %v3575, %v3671
      %v3673 = vpop.f32.mrb[0].mxu0
      %v3674 = vpop.f32.mrb[0].mxu0
      %v3675 = vadd.f32 %v3578, %v3674
      %v3676 = vpop.f32.mrb[0].mxu0
      %3677 = vmatprep.mubr.bf16.mxu0 %v3256
      %3678 = vmatmul.mubr.bf16.gmra.mrb[0].mxu0 %v2886
      %v3679 = vpop.f32.mrb[0].mxu0
      %v3680 = vadd.f32 %v3583, %v3679
      %v3681 = vpop.f32.mrb[0].mxu0
      %v3682 = vpop.f32.mrb[0].mxu0
      %v3683 = vadd.f32 %v3586, %v3682
      %v3684 = vpop.f32.mrb[0].mxu0
      %3685 = vmatprep.mubr.bf16.mxu0 %v3257
      %3686 = vmatmul.mubr.bf16.gmra.mrb[0].mxu0 %v2887
      %v3687 = vpop.f32.mrb[0].mxu0
      %v3688 = vadd.f32 %v3591, %v3687
      %v3689 = vpop.f32.mrb[0].mxu0
      %v3690 = vpop.f32.mrb[0].mxu0
      %v3691 = vadd.f32 %v3594, %v3690
      %v3692 = vpop.f32.mrb[0].mxu0
      %3693 = vmatprep.mubr.bf16.mxu0 %v3258
      %3694 = vmatmul.mubr.bf16.gmra.mrb[0].mxu0 %v2888
      %v3695 = vpop.f32.mrb[0].mxu0
      %v3696 = vadd.f32 %v3599, %v3695
      %v3697 = vpop.f32.mrb[0].mxu0
      %v3698 = vpop.f32.mrb[0].mxu0
      %v3699 = vadd.f32 %v3602, %v3698
      %v3700 = vpop.f32.mrb[0].mxu0
      %3701 = vmatprep.mubr.bf16.mxu0 %v3259
      %3702 = vmatmul.mubr.bf16.gmra.mrb[0].mxu0 %v2889
      %v3703 = vpop.f32.mrb[0].mxu0
      %v3704 = vadd.f32 %v3607, %v3703
      %v3705 = vpop.f32.mrb[0].mxu0
      %v3706 = vpop.f32.mrb[0].mxu0
      %v3707 = vadd.f32 %v3610, %v3706
      %v3708 = vpop.f32.mrb[0].mxu0
      %3709 = vmatprep.mubr.bf16.mxu0 %v3260
      %3710 = vmatmul.mubr.bf16.gmra.mrb[0].mxu0 %v2890
      %v3711 = vpop.f32.mrb[0].mxu0
      %v3712 = vadd.f32 %v3615, %v3711
      %v3713 = vpop.f32.mrb[0].mxu0
      %v3714 = vpop.f32.mrb[0].mxu0
      %v3715 = vadd.f32 %v3618, %v3714
      %v3716 = vpop.f32.mrb[0].mxu0
      %3717 = vdwg.mxu0
      %v3718 = vadd.f32 %v689, %v3656
      %v3719 = vadd.f32 %v690, %v3659
      %v3720 = vadd.f32 %v691, %v3664
      %v3721 = vadd.f32 %v692, %v3667
      %v3722 = vadd.f32 %v693, %v3672
      %v3723 = vadd.f32 %v694, %v3675
      %v3724 = vadd.f32 %v695, %v3680
      %v3725 = vadd.f32 %v696, %v3683
      %v3726 = vadd.f32 %v697, %v3688
      %v3727 = vadd.f32 %v698, %v3691
      %v3728 = vadd.f32 %v699, %v3696
      %v3729 = vadd.f32 %v700, %v3699
      %v3730 = vadd.f32 %v701, %v3704
      %v3731 = vadd.f32 %v702, %v3707
      %v3732 = vadd.f32 %v703, %v3712
      %v3733 = vadd.f32 %v704, %v3715
      %v3734 = vld [vmem:[%s11] sm:$0x1]
      %v3735 = vld [vmem:[%s12] sm:$0x1]
      %v3736 = vsel %vm785, %v3718, 0.0
      %3737 = vadd.xlane.f32.xlu0 %v3736
      %v3738 = vpop.xlane.xlu0 %3737
      %v3739 = vsel %vm785, %v3719, 0.0
      %3740 = vadd.xlane.f32.xlu0 %v3739
      %v3741 = vpop.xlane.xlu0 %3740
      %v3742 = vsel %vm785, %v3720, 0.0
      %3743 = vadd.xlane.f32.xlu0 %v3742
      %v3744 = vpop.xlane.xlu0 %3743
      %v3745 = vsel %vm785, %v3721, 0.0
      %3746 = vadd.xlane.f32.xlu0 %v3745
      %v3747 = vpop.xlane.xlu0 %3746
      %v3748 = vsel %vm785, %v3722, 0.0
      %3749 = vadd.xlane.f32.xlu0 %v3748
      %v3750 = vpop.xlane.xlu0 %3749
      %v3751 = vsel %vm785, %v3723, 0.0
      %3752 = vadd.xlane.f32.xlu0 %v3751
      %v3753 = vpop.xlane.xlu0 %3752
      %v3754 = vsel %vm785, %v3724, 0.0
      %3755 = vadd.xlane.f32.xlu0 %v3754
      %v3756 = vpop.xlane.xlu0 %3755
      %v3757 = vsel %vm785, %v3725, 0.0
      %3758 = vadd.xlane.f32.xlu0 %v3757
      %v3759 = vpop.xlane.xlu0 %3758
      %v3760 = vsel %vm785, %v3726, 0.0
      %3761 = vadd.xlane.f32.xlu0 %v3760
      %v3762 = vpop.xlane.xlu0 %3761
      %v3763 = vsel %vm785, %v3727, 0.0
      %3764 = vadd.xlane.f32.xlu0 %v3763
      %v3765 = vpop.xlane.xlu0 %3764
      %v3766 = vsel %vm785, %v3728, 0.0
      %3767 = vadd.xlane.f32.xlu0 %v3766
      %v3768 = vpop.xlane.xlu0 %3767
      %v3769 = vsel %vm785, %v3729, 0.0
      %3770 = vadd.xlane.f32.xlu0 %v3769
      %v3771 = vpop.xlane.xlu0 %3770
      %v3772 = vsel %vm785, %v3730, 0.0
      %3773 = vadd.xlane.f32.xlu0 %v3772
      %v3774 = vpop.xlane.xlu0 %3773
      %v3775 = vsel %vm785, %v3731, 0.0
      %3776 = vadd.xlane.f32.xlu0 %v3775
      %v3777 = vpop.xlane.xlu0 %3776
      %v3778 = vsel %vm785, %v3732, 0.0
      %3779 = vadd.xlane.f32.xlu0 %v3778
      %v3780 = vpop.xlane.xlu0 %3779
      %v3781 = vsel %vm785, %v3733, 0.0
      %3782 = vadd.xlane.f32.xlu0 %v3781
      %v3783 = vpop.xlane.xlu0 %3782
      %v3784 = vrcp.pop 32.0
      %v3785 = vmul.f32 %v3738, %v3784
      %v3786 = vmul.f32 %v3741, %v3784
      %v3787 = vmul.f32 %v3744, %v3784
      %v3788 = vmul.f32 %v3747, %v3784
      %v3789 = vmul.f32 %v3750, %v3784
      %v3790 = vmul.f32 %v3753, %v3784
      %v3791 = vmul.f32 %v3756, %v3784
      %v3792 = vmul.f32 %v3759, %v3784
      %v3793 = vmul.f32 %v3762, %v3784
      %v3794 = vmul.f32 %v3765, %v3784
      %v3795 = vmul.f32 %v3768, %v3784
      %v3796 = vmul.f32 %v3771, %v3784
      %v3797 = vmul.f32 %v3774, %v3784
      %v3798 = vmul.f32 %v3777, %v3784
      %v3799 = vmul.f32 %v3780, %v3784
      %v3800 = vmul.f32 %v3783, %v3784
      %v3801 = vsub.f32 %v3718, %v3785
      %v3802 = vsub.f32 %v3719, %v3786
      %v3803 = vsub.f32 %v3720, %v3787
      %v3804 = vsub.f32 %v3721, %v3788
      %v3805 = vsub.f32 %v3722, %v3789
      %v3806 = vsub.f32 %v3723, %v3790
      %v3807 = vsub.f32 %v3724, %v3791
      %v3808 = vsub.f32 %v3725, %v3792
      %v3809 = vsub.f32 %v3726, %v3793
      %v3810 = vsub.f32 %v3727, %v3794
      %v3811 = vsub.f32 %v3728, %v3795
      %v3812 = vsub.f32 %v3729, %v3796
      %v3813 = vsub.f32 %v3730, %v3797
      %v3814 = vsub.f32 %v3731, %v3798
      %v3815 = vsub.f32 %v3732, %v3799
      %v3816 = vsub.f32 %v3733, %v3800
      %v3817 = vmul.f32 %v3801, %v3801
      %v3818 = vmul.f32 %v3802, %v3802
      %v3819 = vmul.f32 %v3803, %v3803
      %v3820 = vmul.f32 %v3804, %v3804
      %v3821 = vmul.f32 %v3805, %v3805
      %v3822 = vmul.f32 %v3806, %v3806
      %v3823 = vmul.f32 %v3807, %v3807
      %v3824 = vmul.f32 %v3808, %v3808
      %v3825 = vmul.f32 %v3809, %v3809
      %v3826 = vmul.f32 %v3810, %v3810
      %v3827 = vmul.f32 %v3811, %v3811
      %v3828 = vmul.f32 %v3812, %v3812
      %v3829 = vmul.f32 %v3813, %v3813
      %v3830 = vmul.f32 %v3814, %v3814
      %v3831 = vmul.f32 %v3815, %v3815
      %v3832 = vmul.f32 %v3816, %v3816
      %v3833 = vsel %vm785, %v3817, 0.0
      %3834 = vadd.xlane.f32.xlu0 %v3833
      %v3835 = vpop.xlane.xlu0 %3834
      %v3836 = vsel %vm785, %v3818, 0.0
      %3837 = vadd.xlane.f32.xlu0 %v3836
      %v3838 = vpop.xlane.xlu0 %3837
      %v3839 = vsel %vm785, %v3819, 0.0
      %3840 = vadd.xlane.f32.xlu0 %v3839
      %v3841 = vpop.xlane.xlu0 %3840
      %v3842 = vsel %vm785, %v3820, 0.0
      %3843 = vadd.xlane.f32.xlu0 %v3842
      %v3844 = vpop.xlane.xlu0 %3843
      %v3845 = vsel %vm785, %v3821, 0.0
      %3846 = vadd.xlane.f32.xlu0 %v3845
      %v3847 = vpop.xlane.xlu0 %3846
      %v3848 = vsel %vm785, %v3822, 0.0
      %3849 = vadd.xlane.f32.xlu0 %v3848
      %v3850 = vpop.xlane.xlu0 %3849
      %v3851 = vsel %vm785, %v3823, 0.0
      %3852 = vadd.xlane.f32.xlu0 %v3851
      %v3853 = vpop.xlane.xlu0 %3852
      %v3854 = vsel %vm785, %v3824, 0.0
      %3855 = vadd.xlane.f32.xlu0 %v3854
      %v3856 = vpop.xlane.xlu0 %3855
      %v3857 = vsel %vm785, %v3825, 0.0
      %3858 = vadd.xlane.f32.xlu0 %v3857
      %v3859 = vpop.xlane.xlu0 %3858
      %v3860 = vsel %vm785, %v3826, 0.0
      %3861 = vadd.xlane.f32.xlu0 %v3860
      %v3862 = vpop.xlane.xlu0 %3861
      %v3863 = vsel %vm785, %v3827, 0.0
      %3864 = vadd.xlane.f32.xlu0 %v3863
      %v3865 = vpop.xlane.xlu0 %3864
      %v3866 = vsel %vm785, %v3828, 0.0
      %3867 = vadd.xlane.f32.xlu0 %v3866
      %v3868 = vpop.xlane.xlu0 %3867
      %v3869 = vsel %vm785, %v3829, 0.0
      %3870 = vadd.xlane.f32.xlu0 %v3869
      %v3871 = vpop.xlane.xlu0 %3870
      %v3872 = vsel %vm785, %v3830, 0.0
      %3873 = vadd.xlane.f32.xlu0 %v3872
      %v3874 = vpop.xlane.xlu0 %3873
      %v3875 = vsel %vm785, %v3831, 0.0
      %3876 = vadd.xlane.f32.xlu0 %v3875
      %v3877 = vpop.xlane.xlu0 %3876
      %v3878 = vsel %vm785, %v3832, 0.0
      %3879 = vadd.xlane.f32.xlu0 %v3878
      %v3880 = vpop.xlane.xlu0 %3879
      %v3881 = vmul.f32 %v3835, %v3784
      %v3882 = vmul.f32 %v3838, %v3784
      %v3883 = vmul.f32 %v3841, %v3784
      %v3884 = vmul.f32 %v3844, %v3784
      %v3885 = vmul.f32 %v3847, %v3784
      %v3886 = vmul.f32 %v3850, %v3784
      %v3887 = vmul.f32 %v3853, %v3784
      %v3888 = vmul.f32 %v3856, %v3784
      %v3889 = vmul.f32 %v3859, %v3784
      %v3890 = vmul.f32 %v3862, %v3784
      %v3891 = vmul.f32 %v3865, %v3784
      %v3892 = vmul.f32 %v3868, %v3784
      %v3893 = vmul.f32 %v3871, %v3784
      %v3894 = vmul.f32 %v3874, %v3784
      %v3895 = vmul.f32 %v3877, %v3784
      %v3896 = vmul.f32 %v3880, %v3784
      %v3897 = vadd.f32 %v3881, 1e-05
      %v3898 = vadd.f32 %v3882, 1e-05
      %v3899 = vadd.f32 %v3883, 1e-05
      %v3900 = vadd.f32 %v3884, 1e-05
      %v3901 = vadd.f32 %v3885, 1e-05
      %v3902 = vadd.f32 %v3886, 1e-05
      %v3903 = vadd.f32 %v3887, 1e-05
      %v3904 = vadd.f32 %v3888, 1e-05
      %v3905 = vadd.f32 %v3889, 1e-05
      %v3906 = vadd.f32 %v3890, 1e-05
      %v3907 = vadd.f32 %v3891, 1e-05
      %v3908 = vadd.f32 %v3892, 1e-05
      %v3909 = vadd.f32 %v3893, 1e-05
      %v3910 = vadd.f32 %v3894, 1e-05
      %v3911 = vadd.f32 %v3895, 1e-05
      %v3912 = vadd.f32 %v3896, 1e-05
      %v3913 = vrsqrt.pop %v3897
      %v3914 = vrsqrt.pop %v3898
      %v3915 = vrsqrt.pop %v3899
      %v3916 = vrsqrt.pop %v3900
      %v3917 = vrsqrt.pop %v3901
      %v3918 = vrsqrt.pop %v3902
      %v3919 = vrsqrt.pop %v3903
      %v3920 = vrsqrt.pop %v3904
      %v3921 = vrsqrt.pop %v3905
      %v3922 = vrsqrt.pop %v3906
      %v3923 = vrsqrt.pop %v3907
      %v3924 = vrsqrt.pop %v3908
      %v3925 = vrsqrt.pop %v3909
      %v3926 = vrsqrt.pop %v3910
      %v3927 = vrsqrt.pop %v3911
      %v3928 = vrsqrt.pop %v3912
      %v3929 = vmul.f32 %v3801, %v3913
      %v3930 = vmul.f32 %v3802, %v3914
      %v3931 = vmul.f32 %v3803, %v3915
      %v3932 = vmul.f32 %v3804, %v3916
      %v3933 = vmul.f32 %v3805, %v3917
      %v3934 = vmul.f32 %v3806, %v3918
      %v3935 = vmul.f32 %v3807, %v3919
      %v3936 = vmul.f32 %v3808, %v3920
      %v3937 = vmul.f32 %v3809, %v3921
      %v3938 = vmul.f32 %v3810, %v3922
      %v3939 = vmul.f32 %v3811, %v3923
      %v3940 = vmul.f32 %v3812, %v3924
      %v3941 = vmul.f32 %v3813, %v3925
      %v3942 = vmul.f32 %v3814, %v3926
      %v3943 = vmul.f32 %v3815, %v3927
      %v3944 = vmul.f32 %v3816, %v3928
      %v3946 = vlaneseq
      %v3947 = vshrl.u32 %v3946, 7
      %v3948 = vsub.s32 0, %v3947
      %v3949 = vrot.slane %v3734, %v3948
      %v3951 = vmul.f32 %v3929, %v3949
      %v3952 = vmul.f32 %v3930, %v3949
      %v3953 = vmul.f32 %v3931, %v3949
      %v3954 = vmul.f32 %v3932, %v3949
      %v3955 = vmul.f32 %v3933, %v3949
      %v3956 = vmul.f32 %v3934, %v3949
      %v3957 = vmul.f32 %v3935, %v3949
      %v3958 = vmul.f32 %v3936, %v3949
      %v3959 = vmul.f32 %v3937, %v3949
      %v3960 = vmul.f32 %v3938, %v3949
      %v3961 = vmul.f32 %v3939, %v3949
      %v3962 = vmul.f32 %v3940, %v3949
      %v3963 = vmul.f32 %v3941, %v3949
      %v3964 = vmul.f32 %v3942, %v3949
      %v3965 = vmul.f32 %v3943, %v3949
      %v3966 = vmul.f32 %v3944, %v3949
      %v3968 = vlaneseq
      %v3969 = vshrl.u32 %v3968, 7
      %v3970 = vsub.s32 0, %v3969
      %v3971 = vrot.slane %v3735, %v3970
      %v3973 = vadd.f32 %v3951, %v3971
      %v3974 = vadd.f32 %v3952, %v3971
      %v3975 = vadd.f32 %v3953, %v3971
      %v3976 = vadd.f32 %v3954, %v3971
      %v3977 = vadd.f32 %v3955, %v3971
      %v3978 = vadd.f32 %v3956, %v3971
      %v3979 = vadd.f32 %v3957, %v3971
      %v3980 = vadd.f32 %v3958, %v3971
      %v3981 = vadd.f32 %v3959, %v3971
      %v3982 = vadd.f32 %v3960, %v3971
      %v3983 = vadd.f32 %v3961, %v3971
      %v3984 = vadd.f32 %v3962, %v3971
      %v3985 = vadd.f32 %v3963, %v3971
      %v3986 = vadd.f32 %v3964, %v3971
      %v3987 = vadd.f32 %v3965, %v3971
      %v3988 = vadd.f32 %v3966, %v3971
      %v3989 = vpack.c.bf16 %v3974, %v3973
      %v3990 = vpack.c.bf16 %v3976, %v3975
      %v3991 = vpack.c.bf16 %v3978, %v3977
      %v3992 = vpack.c.bf16 %v3980, %v3979
      %v3993 = vpack.c.bf16 %v3982, %v3981
      %v3994 = vpack.c.bf16 %v3984, %v3983
      %v3995 = vpack.c.bf16 %v3986, %v3985
      %v3996 = vpack.c.bf16 %v3988, %v3987
      %v3997 = vld [vmem:[%s13] sm:$0xf]
      %v3998 = vld [vmem:[%s13 + $0x4] sm:$0xf]
      %v3999 = vld [vmem:[%s13 + $0x8] sm:$0xf]
      %v4000 = vld [vmem:[%s13 + $0xc] sm:$0xf]
      %v4001 = vld [vmem:[%s14] sm:$0x1]
      %v4003 = vlaneseq
      %v4004 = vshrl.u32 %v4003, 7
      %v4005 = vsub.s32 0, %v4004
      %v4006 = vrot.slane %v4001, %v4005
      %v4012 = vunpack.c.l.b16 %v3997
      %v4013 = vunpack.c.l.b16 %v3998
      %v4014 = vunpack.c.l.b16 %v3999
      %v4015 = vunpack.c.l.b16 %v4000
      %v4016 = vpack.c.b16 %v4013, %v4012
      %v4017 = vpack.c.b16 %v4015, %v4014
      %v4021 = vsel %vm785, %v3989, 0
      %v4024 = vsel %vm785, %v3990, 0
      %v4027 = vsel %vm785, %v3991, 0
      %v4030 = vsel %vm785, %v3992, 0
      %v4033 = vsel %vm785, %v3993, 0
      %v4036 = vsel %vm785, %v3994, 0
      %v4039 = vsel %vm785, %v3995, 0
      %v4042 = vsel %vm785, %v3996, 0
      %4044 = vmatprep.subr.bf16.mxu0 0
      %4045 = vmatpush1.bf16.msra.mxu0 %v4016
      %4046 = vmatprep.subr.bf16.mxu0 0
      %4047 = vmatpush1.bf16.msra.mxu0 %v4017
      %4048 = vmatprep.subr.bf16.mxu0 0
      %4049 = vmatpush1.bf16.msra.mxu0 0
      %4050 = vmatprep.subr.bf16.mxu0 0
      %4051 = vmatpush1.bf16.msra.mxu0 0
      %4052 = vmatprep.subr.bf16.mxu0 0
      %4053 = vmatpush1.bf16.msra.mxu0 0
      %4054 = vmatprep.subr.bf16.mxu0 0
      %4055 = vmatpush1.bf16.msra.mxu0 0
      %4056 = vmatprep.subr.bf16.mxu0 0
      %4057 = vmatpush1.bf16.msra.mxu0 0
      %4058 = vmatprep.subr.bf16.mxu0 0
      %4059 = vmatpush1.bf16.msra.mxu0 0
      %4060 = vmatprep.subr.bf16.mxu0 0
      %4061 = vmatpush1.bf16.msra.mxu0 0
      %4062 = vmatprep.subr.bf16.mxu0 0
      %4063 = vmatpush1.bf16.msra.mxu0 0
      %4064 = vmatprep.subr.bf16.mxu0 0
      %4065 = vmatpush1.bf16.msra.mxu0 0
      %4066 = vmatprep.subr.bf16.mxu0 0
      %4067 = vmatpush1.bf16.msra.mxu0 0
      %4068 = vmatprep.subr.bf16.mxu0 0
      %4069 = vmatpush1.bf16.msra.mxu0 0
      %4070 = vmatprep.subr.bf16.mxu0 0
      %4071 = vmatpush1.bf16.msra.mxu0 0
      %4072 = vmatprep.subr.bf16.mxu0 0
      %4073 = vmatpush1.bf16.msra.mxu0 0
      %4074 = vmatprep.subr.bf16.mxu0 0
      %4075 = vmatpush1.bf16.msra.mxu0 0
      %4076 = vmatprep.mubr.bf16.mxu0 0
      %4077 = vmatmul.mubr.bf16.gmra.mrb[0].mxu0 %v4021
      %v4078 = vpop.f32.mrb[0].mxu0
      %v4079 = vadd.f32 %v4006, %v4078
      %v4080 = vpop.f32.mrb[0].mxu0
      %v4081 = vpop.f32.mrb[0].mxu0
      %v4082 = vadd.f32 %v4006, %v4081
      %v4083 = vpop.f32.mrb[0].mxu0
      %4084 = vmatprep.mubr.bf16.mxu0 0
      %4085 = vmatmul.mubr.bf16.gmra.mrb[0].mxu0 %v4024
      %v4086 = vpop.f32.mrb[0].mxu0
      %v4087 = vadd.f32 %v4006, %v4086
      %v4088 = vpop.f32.mrb[0].mxu0
      %v4089 = vpop.f32.mrb[0].mxu0
      %v4090 = vadd.f32 %v4006, %v4089
      %v4091 = vpop.f32.mrb[0].mxu0
      %4092 = vmatprep.mubr.bf16.mxu0 0
      %4093 = vmatmul.mubr.bf16.gmra.mrb[0].mxu0 %v4027
      %v4094 = vpop.f32.mrb[0].mxu0
      %v4095 = vadd.f32 %v4006, %v4094
      %v4096 = vpop.f32.mrb[0].mxu0
      %v4097 = vpop.f32.mrb[0].mxu0
      %v4098 = vadd.f32 %v4006, %v4097
      %v4099 = vpop.f32.mrb[0].mxu0
      %4100 = vmatprep.mubr.bf16.mxu0 0
      %4101 = vmatmul.mubr.bf16.gmra.mrb[0].mxu0 %v4030
      %v4102 = vpop.f32.mrb[0].mxu0
      %v4103 = vadd.f32 %v4006, %v4102
      %v4104 = vpop.f32.mrb[0].mxu0
      %v4105 = vpop.f32.mrb[0].mxu0
      %v4106 = vadd.f32 %v4006, %v4105
      %v4107 = vpop.f32.mrb[0].mxu0
      %4108 = vmatprep.mubr.bf16.mxu0 0
      %4109 = vmatmul.mubr.bf16.gmra.mrb[0].mxu0 %v4033
      %v4110 = vpop.f32.mrb[0].mxu0
      %v4111 = vadd.f32 %v4006, %v4110
      %v4112 = vpop.f32.mrb[0].mxu0
      %v4113 = vpop.f32.mrb[0].mxu0
      %v4114 = vadd.f32 %v4006, %v4113
      %v4115 = vpop.f32.mrb[0].mxu0
      %4116 = vmatprep.mubr.bf16.mxu0 0
      %4117 = vmatmul.mubr.bf16.gmra.mrb[0].mxu0 %v4036
      %v4118 = vpop.f32.mrb[0].mxu0
      %v4119 = vadd.f32 %v4006, %v4118
      %v4120 = vpop.f32.mrb[0].mxu0
      %v4121 = vpop.f32.mrb[0].mxu0
      %v4122 = vadd.f32 %v4006, %v4121
      %v4123 = vpop.f32.mrb[0].mxu0
      %4124 = vmatprep.mubr.bf16.mxu0 0
      %4125 = vmatmul.mubr.bf16.gmra.mrb[0].mxu0 %v4039
      %v4126 = vpop.f32.mrb[0].mxu0
      %v4127 = vadd.f32 %v4006, %v4126
      %v4128 = vpop.f32.mrb[0].mxu0
      %v4129 = vpop.f32.mrb[0].mxu0
      %v4130 = vadd.f32 %v4006, %v4129
      %v4131 = vpop.f32.mrb[0].mxu0
      %4132 = vmatprep.mubr.bf16.mxu0 0
      %4133 = vmatmul.mubr.bf16.gmra.mrb[0].mxu0 %v4042
      %v4134 = vpop.f32.mrb[0].mxu0
      %v4135 = vadd.f32 %v4006, %v4134
      %v4136 = vpop.f32.mrb[0].mxu0
      %v4137 = vpop.f32.mrb[0].mxu0
      %v4138 = vadd.f32 %v4006, %v4137
      %v4139 = vpop.f32.mrb[0].mxu0
      %4140 = vdwg.mxu0
      %v4141 = vmax.f32 %v4079, 0.0
      %v4142 = vmax.f32 %v4082, 0.0
      %v4143 = vmax.f32 %v4087, 0.0
      %v4144 = vmax.f32 %v4090, 0.0
      %v4145 = vmax.f32 %v4095, 0.0
      %v4146 = vmax.f32 %v4098, 0.0
      %v4147 = vmax.f32 %v4103, 0.0
      %v4148 = vmax.f32 %v4106, 0.0
      %v4149 = vmax.f32 %v4111, 0.0
      %v4150 = vmax.f32 %v4114, 0.0
      %v4151 = vmax.f32 %v4119, 0.0
      %v4152 = vmax.f32 %v4122, 0.0
      %v4153 = vmax.f32 %v4127, 0.0
      %v4154 = vmax.f32 %v4130, 0.0
      %v4155 = vmax.f32 %v4135, 0.0
      %v4156 = vmax.f32 %v4138, 0.0
      %v4157 = vpack.c.bf16 %v4142, %v4141
      %v4158 = vpack.c.bf16 %v4144, %v4143
      %v4159 = vpack.c.bf16 %v4146, %v4145
      %v4160 = vpack.c.bf16 %v4148, %v4147
      %v4161 = vpack.c.bf16 %v4150, %v4149
      %v4162 = vpack.c.bf16 %v4152, %v4151
      %v4163 = vpack.c.bf16 %v4154, %v4153
      %v4164 = vpack.c.bf16 %v4156, %v4155
      %v4165 = vld [vmem:[%s15] sm:$0xf]
      %v4166 = vld [vmem:[%s15 + $0x4] sm:$0xf]
      %v4167 = vld [vmem:[%s15 + $0x8] sm:$0xf]
      %v4168 = vld [vmem:[%s15 + $0xc] sm:$0xf]
      %v4169 = vld [vmem:[%s16] sm:$0x1]
      %v4171 = vlaneseq
      %v4172 = vshrl.u32 %v4171, 7
      %v4173 = vsub.s32 0, %v4172
      %v4174 = vrot.slane %v4169, %v4173
      %v4180 = vunpack.c.l.b16 %v4165
      %v4181 = vunpack.c.l.b16 %v4166
      %v4182 = vunpack.c.l.b16 %v4167
      %v4183 = vunpack.c.l.b16 %v4168
      %v4184 = vpack.c.b16 %v4181, %v4180
      %v4185 = vpack.c.b16 %v4183, %v4182
      %v4189 = vsel %vm785, %v4157, 0
      %v4192 = vsel %vm785, %v4158, 0
      %v4195 = vsel %vm785, %v4159, 0
      %v4198 = vsel %vm785, %v4160, 0
      %v4201 = vsel %vm785, %v4161, 0
      %v4204 = vsel %vm785, %v4162, 0
      %v4207 = vsel %vm785, %v4163, 0
      %v4210 = vsel %vm785, %v4164, 0
      %4212 = vmatprep.subr.bf16.mxu0 0
      %4213 = vmatpush1.bf16.msra.mxu0 %v4184
      %4214 = vmatprep.subr.bf16.mxu0 0
      %4215 = vmatpush1.bf16.msra.mxu0 %v4185
      %4216 = vmatprep.subr.bf16.mxu0 0
      %4217 = vmatpush1.bf16.msra.mxu0 0
      %4218 = vmatprep.subr.bf16.mxu0 0
      %4219 = vmatpush1.bf16.msra.mxu0 0
      %4220 = vmatprep.subr.bf16.mxu0 0
      %4221 = vmatpush1.bf16.msra.mxu0 0
      %4222 = vmatprep.subr.bf16.mxu0 0
      %4223 = vmatpush1.bf16.msra.mxu0 0
      %4224 = vmatprep.subr.bf16.mxu0 0
      %4225 = vmatpush1.bf16.msra.mxu0 0
      %4226 = vmatprep.subr.bf16.mxu0 0
      %4227 = vmatpush1.bf16.msra.mxu0 0
      %4228 = vmatprep.subr.bf16.mxu0 0
      %4229 = vmatpush1.bf16.msra.mxu0 0
      %4230 = vmatprep.subr.bf16.mxu0 0
      %4231 = vmatpush1.bf16.msra.mxu0 0
      %4232 = vmatprep.subr.bf16.mxu0 0
      %4233 = vmatpush1.bf16.msra.mxu0 0
      %4234 = vmatprep.subr.bf16.mxu0 0
      %4235 = vmatpush1.bf16.msra.mxu0 0
      %4236 = vmatprep.subr.bf16.mxu0 0
      %4237 = vmatpush1.bf16.msra.mxu0 0
      %4238 = vmatprep.subr.bf16.mxu0 0
      %4239 = vmatpush1.bf16.msra.mxu0 0
      %4240 = vmatprep.subr.bf16.mxu0 0
      %4241 = vmatpush1.bf16.msra.mxu0 0
      %4242 = vmatprep.subr.bf16.mxu0 0
      %4243 = vmatpush1.bf16.msra.mxu0 0
      %4244 = vmatprep.mubr.bf16.mxu0 0
      %4245 = vmatmul.mubr.bf16.gmra.mrb[0].mxu0 %v4189
      %v4246 = vpop.f32.mrb[0].mxu0
      %v4247 = vadd.f32 %v4174, %v4246
      %v4248 = vpop.f32.mrb[0].mxu0
      %v4249 = vpop.f32.mrb[0].mxu0
      %v4250 = vadd.f32 %v4174, %v4249
      %v4251 = vpop.f32.mrb[0].mxu0
      %4252 = vmatprep.mubr.bf16.mxu0 0
      %4253 = vmatmul.mubr.bf16.gmra.mrb[0].mxu0 %v4192
      %v4254 = vpop.f32.mrb[0].mxu0
      %v4255 = vadd.f32 %v4174, %v4254
      %v4256 = vpop.f32.mrb[0].mxu0
      %v4257 = vpop.f32.mrb[0].mxu0
      %v4258 = vadd.f32 %v4174, %v4257
      %v4259 = vpop.f32.mrb[0].mxu0
      %4260 = vmatprep.mubr.bf16.mxu0 0
      %4261 = vmatmul.mubr.bf16.gmra.mrb[0].mxu0 %v4195
      %v4262 = vpop.f32.mrb[0].mxu0
      %v4263 = vadd.f32 %v4174, %v4262
      %v4264 = vpop.f32.mrb[0].mxu0
      %v4265 = vpop.f32.mrb[0].mxu0
      %v4266 = vadd.f32 %v4174, %v4265
      %v4267 = vpop.f32.mrb[0].mxu0
      %4268 = vmatprep.mubr.bf16.mxu0 0
      %4269 = vmatmul.mubr.bf16.gmra.mrb[0].mxu0 %v4198
      %v4270 = vpop.f32.mrb[0].mxu0
      %v4271 = vadd.f32 %v4174, %v4270
      %v4272 = vpop.f32.mrb[0].mxu0
      %v4273 = vpop.f32.mrb[0].mxu0
      %v4274 = vadd.f32 %v4174, %v4273
      %v4275 = vpop.f32.mrb[0].mxu0
      %4276 = vmatprep.mubr.bf16.mxu0 0
      %4277 = vmatmul.mubr.bf16.gmra.mrb[0].mxu0 %v4201
      %v4278 = vpop.f32.mrb[0].mxu0
      %v4279 = vadd.f32 %v4174, %v4278
      %v4280 = vpop.f32.mrb[0].mxu0
      %v4281 = vpop.f32.mrb[0].mxu0
      %v4282 = vadd.f32 %v4174, %v4281
      %v4283 = vpop.f32.mrb[0].mxu0
      %4284 = vmatprep.mubr.bf16.mxu0 0
      %4285 = vmatmul.mubr.bf16.gmra.mrb[0].mxu0 %v4204
      %v4286 = vpop.f32.mrb[0].mxu0
      %v4287 = vadd.f32 %v4174, %v4286
      %v4288 = vpop.f32.mrb[0].mxu0
      %v4289 = vpop.f32.mrb[0].mxu0
      %v4290 = vadd.f32 %v4174, %v4289
      %v4291 = vpop.f32.mrb[0].mxu0
      %4292 = vmatprep.mubr.bf16.mxu0 0
      %4293 = vmatmul.mubr.bf16.gmra.mrb[0].mxu0 %v4207
      %v4294 = vpop.f32.mrb[0].mxu0
      %v4295 = vadd.f32 %v4174, %v4294
      %v4296 = vpop.f32.mrb[0].mxu0
      %v4297 = vpop.f32.mrb[0].mxu0
      %v4298 = vadd.f32 %v4174, %v4297
      %v4299 = vpop.f32.mrb[0].mxu0
      %4300 = vmatprep.mubr.bf16.mxu0 0
      %4301 = vmatmul.mubr.bf16.gmra.mrb[0].mxu0 %v4210
      %v4302 = vpop.f32.mrb[0].mxu0
      %v4303 = vadd.f32 %v4174, %v4302
      %v4304 = vpop.f32.mrb[0].mxu0
      %v4305 = vpop.f32.mrb[0].mxu0
      %v4306 = vadd.f32 %v4174, %v4305
      %v4307 = vpop.f32.mrb[0].mxu0
      %4308 = vdwg.mxu0
      %v4309 = vadd.f32 %v3973, %v4247
      %v4310 = vadd.f32 %v3974, %v4250
      %v4311 = vadd.f32 %v3975, %v4255
      %v4312 = vadd.f32 %v3976, %v4258
      %v4313 = vadd.f32 %v3977, %v4263
      %v4314 = vadd.f32 %v3978, %v4266
      %v4315 = vadd.f32 %v3979, %v4271
      %v4316 = vadd.f32 %v3980, %v4274
      %v4317 = vadd.f32 %v3981, %v4279
      %v4318 = vadd.f32 %v3982, %v4282
      %v4319 = vadd.f32 %v3983, %v4287
      %v4320 = vadd.f32 %v3984, %v4290
      %v4321 = vadd.f32 %v3985, %v4295
      %v4322 = vadd.f32 %v3986, %v4298
      %v4323 = vadd.f32 %v3987, %v4303
      %v4324 = vadd.f32 %v3988, %v4306
      %v4325 = vld [vmem:[%s17] sm:$0x1]
      %v4326 = vld [vmem:[%s18] sm:$0x1]
      %v4327 = vsel %vm785, %v4309, 0.0
      %4328 = vadd.xlane.f32.xlu0 %v4327
      %v4329 = vpop.xlane.xlu0 %4328
      %v4330 = vsel %vm785, %v4310, 0.0
      %4331 = vadd.xlane.f32.xlu0 %v4330
      %v4332 = vpop.xlane.xlu0 %4331
      %v4333 = vsel %vm785, %v4311, 0.0
      %4334 = vadd.xlane.f32.xlu0 %v4333
      %v4335 = vpop.xlane.xlu0 %4334
      %v4336 = vsel %vm785, %v4312, 0.0
      %4337 = vadd.xlane.f32.xlu0 %v4336
      %v4338 = vpop.xlane.xlu0 %4337
      %v4339 = vsel %vm785, %v4313, 0.0
      %4340 = vadd.xlane.f32.xlu0 %v4339
      %v4341 = vpop.xlane.xlu0 %4340
      %v4342 = vsel %vm785, %v4314, 0.0
      %4343 = vadd.xlane.f32.xlu0 %v4342
      %v4344 = vpop.xlane.xlu0 %4343
      %v4345 = vsel %vm785, %v4315, 0.0
      %4346 = vadd.xlane.f32.xlu0 %v4345
      %v4347 = vpop.xlane.xlu0 %4346
      %v4348 = vsel %vm785, %v4316, 0.0
      %4349 = vadd.xlane.f32.xlu0 %v4348
      %v4350 = vpop.xlane.xlu0 %4349
      %v4351 = vsel %vm785, %v4317, 0.0
      %4352 = vadd.xlane.f32.xlu0 %v4351
      %v4353 = vpop.xlane.xlu0 %4352
      %v4354 = vsel %vm785, %v4318, 0.0
      %4355 = vadd.xlane.f32.xlu0 %v4354
      %v4356 = vpop.xlane.xlu0 %4355
      %v4357 = vsel %vm785, %v4319, 0.0
      %4358 = vadd.xlane.f32.xlu0 %v4357
      %v4359 = vpop.xlane.xlu0 %4358
      %v4360 = vsel %vm785, %v4320, 0.0
      %4361 = vadd.xlane.f32.xlu0 %v4360
      %v4362 = vpop.xlane.xlu0 %4361
      %v4363 = vsel %vm785, %v4321, 0.0
      %4364 = vadd.xlane.f32.xlu0 %v4363
      %v4365 = vpop.xlane.xlu0 %4364
      %v4366 = vsel %vm785, %v4322, 0.0
      %4367 = vadd.xlane.f32.xlu0 %v4366
      %v4368 = vpop.xlane.xlu0 %4367
      %v4369 = vsel %vm785, %v4323, 0.0
      %4370 = vadd.xlane.f32.xlu0 %v4369
      %v4371 = vpop.xlane.xlu0 %4370
      %v4372 = vsel %vm785, %v4324, 0.0
      %4373 = vadd.xlane.f32.xlu0 %v4372
      %v4374 = vpop.xlane.xlu0 %4373
      %v4375 = vmul.f32 %v4329, %v3784
      %v4376 = vmul.f32 %v4332, %v3784
      %v4377 = vmul.f32 %v4335, %v3784
      %v4378 = vmul.f32 %v4338, %v3784
      %v4379 = vmul.f32 %v4341, %v3784
      %v4380 = vmul.f32 %v4344, %v3784
      %v4381 = vmul.f32 %v4347, %v3784
      %v4382 = vmul.f32 %v4350, %v3784
      %v4383 = vmul.f32 %v4353, %v3784
      %v4384 = vmul.f32 %v4356, %v3784
      %v4385 = vmul.f32 %v4359, %v3784
      %v4386 = vmul.f32 %v4362, %v3784
      %v4387 = vmul.f32 %v4365, %v3784
      %v4388 = vmul.f32 %v4368, %v3784
      %v4389 = vmul.f32 %v4371, %v3784
      %v4390 = vmul.f32 %v4374, %v3784
      %v4391 = vsub.f32 %v4309, %v4375
      %v4392 = vsub.f32 %v4310, %v4376
      %v4393 = vsub.f32 %v4311, %v4377
      %v4394 = vsub.f32 %v4312, %v4378
      %v4395 = vsub.f32 %v4313, %v4379
      %v4396 = vsub.f32 %v4314, %v4380
      %v4397 = vsub.f32 %v4315, %v4381
      %v4398 = vsub.f32 %v4316, %v4382
      %v4399 = vsub.f32 %v4317, %v4383
      %v4400 = vsub.f32 %v4318, %v4384
      %v4401 = vsub.f32 %v4319, %v4385
      %v4402 = vsub.f32 %v4320, %v4386
      %v4403 = vsub.f32 %v4321, %v4387
      %v4404 = vsub.f32 %v4322, %v4388
      %v4405 = vsub.f32 %v4323, %v4389
      %v4406 = vsub.f32 %v4324, %v4390
      %v4407 = vmul.f32 %v4391, %v4391
      %v4408 = vmul.f32 %v4392, %v4392
      %v4409 = vmul.f32 %v4393, %v4393
      %v4410 = vmul.f32 %v4394, %v4394
      %v4411 = vmul.f32 %v4395, %v4395
      %v4412 = vmul.f32 %v4396, %v4396
      %v4413 = vmul.f32 %v4397, %v4397
      %v4414 = vmul.f32 %v4398, %v4398
      %v4415 = vmul.f32 %v4399, %v4399
      %v4416 = vmul.f32 %v4400, %v4400
      %v4417 = vmul.f32 %v4401, %v4401
      %v4418 = vmul.f32 %v4402, %v4402
      %v4419 = vmul.f32 %v4403, %v4403
      %v4420 = vmul.f32 %v4404, %v4404
      %v4421 = vmul.f32 %v4405, %v4405
      %v4422 = vmul.f32 %v4406, %v4406
      %v4423 = vsel %vm785, %v4407, 0.0
      %4424 = vadd.xlane.f32.xlu0 %v4423
      %v4425 = vpop.xlane.xlu0 %4424
      %v4426 = vsel %vm785, %v4408, 0.0
      %4427 = vadd.xlane.f32.xlu0 %v4426
      %v4428 = vpop.xlane.xlu0 %4427
      %v4429 = vsel %vm785, %v4409, 0.0
      %4430 = vadd.xlane.f32.xlu0 %v4429
      %v4431 = vpop.xlane.xlu0 %4430
      %v4432 = vsel %vm785, %v4410, 0.0
      %4433 = vadd.xlane.f32.xlu0 %v4432
      %v4434 = vpop.xlane.xlu0 %4433
      %v4435 = vsel %vm785, %v4411, 0.0
      %4436 = vadd.xlane.f32.xlu0 %v4435
      %v4437 = vpop.xlane.xlu0 %4436
      %v4438 = vsel %vm785, %v4412, 0.0
      %4439 = vadd.xlane.f32.xlu0 %v4438
      %v4440 = vpop.xlane.xlu0 %4439
      %v4441 = vsel %vm785, %v4413, 0.0
      %4442 = vadd.xlane.f32.xlu0 %v4441
      %v4443 = vpop.xlane.xlu0 %4442
      %v4444 = vsel %vm785, %v4414, 0.0
      %4445 = vadd.xlane.f32.xlu0 %v4444
      %v4446 = vpop.xlane.xlu0 %4445
      %v4447 = vsel %vm785, %v4415, 0.0
      %4448 = vadd.xlane.f32.xlu0 %v4447
      %v4449 = vpop.xlane.xlu0 %4448
      %v4450 = vsel %vm785, %v4416, 0.0
      %4451 = vadd.xlane.f32.xlu0 %v4450
      %v4452 = vpop.xlane.xlu0 %4451
      %v4453 = vsel %vm785, %v4417, 0.0
      %4454 = vadd.xlane.f32.xlu0 %v4453
      %v4455 = vpop.xlane.xlu0 %4454
      %v4456 = vsel %vm785, %v4418, 0.0
      %4457 = vadd.xlane.f32.xlu0 %v4456
      %v4458 = vpop.xlane.xlu0 %4457
      %v4459 = vsel %vm785, %v4419, 0.0
      %4460 = vadd.xlane.f32.xlu0 %v4459
      %v4461 = vpop.xlane.xlu0 %4460
      %v4462 = vsel %vm785, %v4420, 0.0
      %4463 = vadd.xlane.f32.xlu0 %v4462
      %v4464 = vpop.xlane.xlu0 %4463
      %v4465 = vsel %vm785, %v4421, 0.0
      %4466 = vadd.xlane.f32.xlu0 %v4465
      %v4467 = vpop.xlane.xlu0 %4466
      %v4468 = vsel %vm785, %v4422, 0.0
      %4469 = vadd.xlane.f32.xlu0 %v4468
      %v4470 = vpop.xlane.xlu0 %4469
      %v4471 = vmul.f32 %v4425, %v3784
      %v4472 = vmul.f32 %v4428, %v3784
      %v4473 = vmul.f32 %v4431, %v3784
      %v4474 = vmul.f32 %v4434, %v3784
      %v4475 = vmul.f32 %v4437, %v3784
      %v4476 = vmul.f32 %v4440, %v3784
      %v4477 = vmul.f32 %v4443, %v3784
      %v4478 = vmul.f32 %v4446, %v3784
      %v4479 = vmul.f32 %v4449, %v3784
      %v4480 = vmul.f32 %v4452, %v3784
      %v4481 = vmul.f32 %v4455, %v3784
      %v4482 = vmul.f32 %v4458, %v3784
      %v4483 = vmul.f32 %v4461, %v3784
      %v4484 = vmul.f32 %v4464, %v3784
      %v4485 = vmul.f32 %v4467, %v3784
      %v4486 = vmul.f32 %v4470, %v3784
      %v4487 = vadd.f32 %v4471, 1e-05
      %v4488 = vadd.f32 %v4472, 1e-05
      %v4489 = vadd.f32 %v4473, 1e-05
      %v4490 = vadd.f32 %v4474, 1e-05
      %v4491 = vadd.f32 %v4475, 1e-05
      %v4492 = vadd.f32 %v4476, 1e-05
      %v4493 = vadd.f32 %v4477, 1e-05
      %v4494 = vadd.f32 %v4478, 1e-05
      %v4495 = vadd.f32 %v4479, 1e-05
      %v4496 = vadd.f32 %v4480, 1e-05
      %v4497 = vadd.f32 %v4481, 1e-05
      %v4498 = vadd.f32 %v4482, 1e-05
      %v4499 = vadd.f32 %v4483, 1e-05
      %v4500 = vadd.f32 %v4484, 1e-05
      %v4501 = vadd.f32 %v4485, 1e-05
      %v4502 = vadd.f32 %v4486, 1e-05
      %v4503 = vrsqrt.pop %v4487
      %v4504 = vrsqrt.pop %v4488
      %v4505 = vrsqrt.pop %v4489
      %v4506 = vrsqrt.pop %v4490
      %v4507 = vrsqrt.pop %v4491
      %v4508 = vrsqrt.pop %v4492
      %v4509 = vrsqrt.pop %v4493
      %v4510 = vrsqrt.pop %v4494
      %v4511 = vrsqrt.pop %v4495
      %v4512 = vrsqrt.pop %v4496
      %v4513 = vrsqrt.pop %v4497
      %v4514 = vrsqrt.pop %v4498
      %v4515 = vrsqrt.pop %v4499
      %v4516 = vrsqrt.pop %v4500
      %v4517 = vrsqrt.pop %v4501
      %v4518 = vrsqrt.pop %v4502
      %v4519 = vmul.f32 %v4391, %v4503
      %v4520 = vmul.f32 %v4392, %v4504
      %v4521 = vmul.f32 %v4393, %v4505
      %v4522 = vmul.f32 %v4394, %v4506
      %v4523 = vmul.f32 %v4395, %v4507
      %v4524 = vmul.f32 %v4396, %v4508
      %v4525 = vmul.f32 %v4397, %v4509
      %v4526 = vmul.f32 %v4398, %v4510
      %v4527 = vmul.f32 %v4399, %v4511
      %v4528 = vmul.f32 %v4400, %v4512
      %v4529 = vmul.f32 %v4401, %v4513
      %v4530 = vmul.f32 %v4402, %v4514
      %v4531 = vmul.f32 %v4403, %v4515
      %v4532 = vmul.f32 %v4404, %v4516
      %v4533 = vmul.f32 %v4405, %v4517
      %v4534 = vmul.f32 %v4406, %v4518
      %v4536 = vlaneseq
      %v4537 = vshrl.u32 %v4536, 7
      %v4538 = vsub.s32 0, %v4537
      %v4539 = vrot.slane %v4325, %v4538
      %v4541 = vmul.f32 %v4519, %v4539
      %v4542 = vmul.f32 %v4520, %v4539
      %v4543 = vmul.f32 %v4521, %v4539
      %v4544 = vmul.f32 %v4522, %v4539
      %v4545 = vmul.f32 %v4523, %v4539
      %v4546 = vmul.f32 %v4524, %v4539
      %v4547 = vmul.f32 %v4525, %v4539
      %v4548 = vmul.f32 %v4526, %v4539
      %v4549 = vmul.f32 %v4527, %v4539
      %v4550 = vmul.f32 %v4528, %v4539
      %v4551 = vmul.f32 %v4529, %v4539
      %v4552 = vmul.f32 %v4530, %v4539
      %v4553 = vmul.f32 %v4531, %v4539
      %v4554 = vmul.f32 %v4532, %v4539
      %v4555 = vmul.f32 %v4533, %v4539
      %v4556 = vmul.f32 %v4534, %v4539
      %v4558 = vlaneseq
      %v4559 = vshrl.u32 %v4558, 7
      %v4560 = vsub.s32 0, %v4559
      %v4561 = vrot.slane %v4326, %v4560
      %v4563 = vadd.f32 %v4541, %v4561
      %v4564 = vadd.f32 %v4542, %v4561
      %v4565 = vadd.f32 %v4543, %v4561
      %v4566 = vadd.f32 %v4544, %v4561
      %v4567 = vadd.f32 %v4545, %v4561
      %v4568 = vadd.f32 %v4546, %v4561
      %v4569 = vadd.f32 %v4547, %v4561
      %v4570 = vadd.f32 %v4548, %v4561
      %v4571 = vadd.f32 %v4549, %v4561
      %v4572 = vadd.f32 %v4550, %v4561
      %v4573 = vadd.f32 %v4551, %v4561
      %v4574 = vadd.f32 %v4552, %v4561
      %v4575 = vadd.f32 %v4553, %v4561
      %v4576 = vadd.f32 %v4554, %v4561
      %v4577 = vadd.f32 %v4555, %v4561
      %v4578 = vadd.f32 %v4556, %v4561
      %4579 = vst.msk [vmem:[%s628] sm:$0xff] %vm785, %v4563
      %4580 = vst.msk [vmem:[%s628 + $0x8] sm:$0xff] %vm785, %v4564
      %4581 = vst.msk [vmem:[%s628 + $0x10] sm:$0xff] %vm785, %v4565
      %4582 = vst.msk [vmem:[%s628 + $0x18] sm:$0xff] %vm785, %v4566
      %4583 = vst.msk [vmem:[%s628 + $0x20] sm:$0xff] %vm785, %v4567
      %4584 = vst.msk [vmem:[%s628 + $0x28] sm:$0xff] %vm785, %v4568
      %4585 = vst.msk [vmem:[%s628 + $0x30] sm:$0xff] %vm785, %v4569
      %4586 = vst.msk [vmem:[%s628 + $0x38] sm:$0xff] %vm785, %v4570
      %4587 = vst.msk [vmem:[%s628 + $0x40] sm:$0xff] %vm785, %v4571
      %4588 = vst.msk [vmem:[%s628 + $0x48] sm:$0xff] %vm785, %v4572
      %4589 = vst.msk [vmem:[%s628 + $0x50] sm:$0xff] %vm785, %v4573
      %4590 = vst.msk [vmem:[%s628 + $0x58] sm:$0xff] %vm785, %v4574
      %4591 = vst.msk [vmem:[%s628 + $0x60] sm:$0xff] %vm785, %v4575
      %4592 = vst.msk [vmem:[%s628 + $0x68] sm:$0xff] %vm785, %v4576
      %4593 = vst.msk [vmem:[%s628 + $0x70] sm:$0xff] %vm785, %v4577
      %4594 = vst.msk [vmem:[%s628 + $0x78] sm:$0xff] %vm785, %v4578
      %p4595 = scmp.lt.s32.totalorder %s34, 1
      %s4596 = scalar_select %p4595, %s34, 1
      %s4597 = smul.addr %s4596, 16
      %s4598 = smul.addr %s4597, 8
      %s4599 = scalar_lea.vmem %s19, %s4598
      // Predicated region
      $region101: #{tpu_custom_call.1} parent=95 // pred_check
        %p4600 = pneg %p469
      $region102: #{tpu_custom_call.1} parent=95 // pred_check_branch
        %4602 = sbr.rel (%p4600) target = $region104
      $region103: #{tpu_custom_call.1} parent=95 // pred_region
        _
      $region104: #{tpu_custom_call.1} parent=95 // pred_fallthru
        _
    $region96: #{tpu_custom_call.1} parent=5 // pred_fallthru
      _
    %p4603 = scmp.le.s32.totalorder 2, %s25
    // Predicated region
    $region105: #{tpu_custom_call.1} parent=5 // pred_check
      %p4604 = pneg %p4603
    $region106: #{tpu_custom_call.1} parent=5 // pred_check_branch
      %4606 = sbr.rel (%p4604) target = $region108
    $region107: #{tpu_custom_call.1} parent=5 // pred_region
      %s4607 = ssub.s32 %s25, 2
      // Predicated region
      $region109: #{tpu_custom_call.1} parent=107 // pred_check
        %p4608 = pneg %p475
      $region110: #{tpu_custom_call.1} parent=107 // pred_check_branch
        %4610 = sbr.rel (%p4608) target = $region112
      $region111: #{tpu_custom_call.1} parent=107 // pred_region
        %p4611 = scmp.lt.s32.totalorder %s36, 1
        %s4612 = scalar_select %p4611, %s36, 1
        %s4613 = smul.addr %s4612, 16
        %s4614 = smul.addr %s4613, 8
        %s4615 = scalar_lea.vmem %s19, %s4614
      $region112: #{tpu_custom_call.1} parent=107 // pred_fallthru
        _
    $region108: #{tpu_custom_call.1} parent=5 // pred_fallthru
      _
  $region6: #{tpu_custom_call.1} parent=0 // loop_footer
    %s29 = sadd.s32 1, %s25
  $region7: #{tpu_custom_call.1} parent=0 // loop_footer_branch
    %24 = sbr.rel target = $region3
  $region8: #{tpu_custom_call.1} parent=0 // loop_exit
    _

// kernel: tpu_custom_call.1
$region0: #{tpu_custom_call.1}
  #allocation0 [shape = 'u32[]', space=smem, size = 0x4, offset = 0x4, fixed_abs, tag = 'smem constant byte address 0x4 - core index']
  #allocation1 [shape = 'u32[144,128]{1,0:T(1,128)}', space=vmem, size = 0x12000, scoped, tag = 'internal scratch']
  %s0 = inlined_call_operand.vmem [shape: f32[2,128,32], index: 0, kind: input, shape index: {}]
  %s1 = inlined_call_operand.vmem [shape: f32[2,1,128], index: 1, kind: input, shape index: {}]
  %s2 = inlined_call_operand.vmem [shape: f32[3,32], index: 2, kind: input, shape index: {}]
  %s3 = inlined_call_operand.vmem [shape: bf16[32,512], index: 3, kind: input, shape index: {}]
  %s4 = inlined_call_operand.vmem [shape: bf16[32,512], index: 4, kind: input, shape index: {}]
  %s5 = inlined_call_operand.vmem [shape: bf16[32,512], index: 5, kind: input, shape index: {}]
  %s6 = inlined_call_operand.vmem [shape: f32[1,512], index: 6, kind: input, shape index: {}]
  %s7 = inlined_call_operand.vmem [shape: f32[1,512], index: 7, kind: input, shape index: {}]
  %s8 = inlined_call_operand.vmem [shape: f32[1,512], index: 8, kind: input, shape index: {}]
  %s9 = inlined_call_operand.vmem [shape: bf16[512,32], index: 9, kind: input, shape index: {}]
  %s10 = inlined_call_operand.vmem [shape: f32[1,32], index: 10, kind: input, shape index: {}]
  %s11 = inlined_call_operand.vmem [shape: f32[1,32], index: 11, kind: input, shape index: {}]
  %s12 = inlined_call_operand.vmem [shape: f32[1,32], index: 12, kind: input, shape index: {}]
  %s13 = inlined_call_operand.vmem [shape: bf16[32,32], index: 13, kind: input, shape index: {}]
  %s14 = inlined_call_operand.vmem [shape: f32[1,32], index: 14, kind: input, shape index: {}]
  %s15 = inlined_call_operand.vmem [shape: bf16[32,32], index: 15, kind: input, shape index: {}]
  %s16 = inlined_call_operand.vmem [shape: f32[1,32], index: 16, kind: input, shape index: {}]
  %s17 = inlined_call_operand.vmem [shape: f32[1,32], index: 17, kind: input, shape index: {}]
  %s18 = inlined_call_operand.vmem [shape: f32[1,32], index: 18, kind: input, shape index: {}]
  %s19 = inlined_call_operand.vmem [shape: f32[2,128,32], index: 19, kind: output, shape index: {}]
  %s20 = sld [smem:[#allocation0]]
  $region113: #{tpu_custom_call.1} parent=0
    _
  %s22 = ssub.s32 1, %s20
  %s23 = scalar_select 0, %s22, %s20
  loop: start=0, step=1, limit=8
  $region2: #{tpu_custom_call.1} parent=0 // loop_pre_header
    _
  $region3: #{tpu_custom_call.1} parent=0 // loop_header
    %s25 = sphi 0, %s29
    %p26 = scmp.ge.s32.totalorder %s25, 8
    %s32 = sphi 0, %s44
    %s33 = sphi 0, %s40
    %s34 = sphi 0, %s32
    %s35 = sphi 0, %s33
    %s36 = sphi 0, %s34
    %s37 = sphi 0, %s35
    %s47 = sphi 0, %s49
    %s50 = sphi 0, %s47
    %s51 = sphi 0, %s50
    %s67 = sphi 0, %s51
    %s73 = sphi 0, %s75
    %s76 = sphi 0, %s73
    %s77 = sphi 0, %s76
    %s93 = sphi 0, %s77
    %s97 = sphi 0, %s97
    %s99 = sphi 0, %s97
    %s100 = sphi 0, %s99
    %s114 = sphi 0, %s100
    %s118 = sphi 0, %s118
    %s120 = sphi 0, %s118
    %s121 = sphi 0, %s120
    %s135 = sphi 0, %s121
    %s139 = sphi 0, %s139
    %s141 = sphi 0, %s139
    %s142 = sphi 0, %s141
    %s156 = sphi 0, %s142
    %s160 = sphi 0, %s160
    %s162 = sphi 0, %s160
    %s163 = sphi 0, %s162
    %s177 = sphi 0, %s163
    %s181 = sphi 0, %s181
    %s183 = sphi 0, %s181
    %s184 = sphi 0, %s183
    %s198 = sphi 0, %s184
    %s202 = sphi 0, %s202
    %s204 = sphi 0, %s202
    %s205 = sphi 0, %s204
    %s219 = sphi 0, %s205
    %s223 = sphi 0, %s223
    %s225 = sphi 0, %s223
    %s226 = sphi 0, %s225
    %s240 = sphi 0, %s226
    %s244 = sphi 0, %s244
    %s246 = sphi 0, %s244
    %s247 = sphi 0, %s246
    %s261 = sphi 0, %s247
    %s265 = sphi 0, %s265
    %s267 = sphi 0, %s265
    %s268 = sphi 0, %s267
    %s282 = sphi 0, %s268
    %s286 = sphi 0, %s286
    %s288 = sphi 0, %s286
    %s289 = sphi 0, %s288
    %s303 = sphi 0, %s289
    %s307 = sphi 0, %s307
    %s309 = sphi 0, %s307
    %s310 = sphi 0, %s309
    %s324 = sphi 0, %s310
    %s328 = sphi 0, %s328
    %s330 = sphi 0, %s328
    %s331 = sphi 0, %s330
    %s345 = sphi 0, %s331
    %s349 = sphi 0, %s349
    %s351 = sphi 0, %s349
    %s352 = sphi 0, %s351
    %s366 = sphi 0, %s352
    %s370 = sphi 0, %s370
    %s372 = sphi 0, %s370
    %s373 = sphi 0, %s372
    %s387 = sphi 0, %s373
    %s391 = sphi 0, %s391
    %s393 = sphi 0, %s391
    %s394 = sphi 0, %s393
    %s408 = sphi 0, %s394
    %s412 = sphi 0, %s412
    %s414 = sphi 0, %s412
    %s415 = sphi 0, %s414
    %s429 = sphi 0, %s415
    %s433 = sphi 0, %s433
    %s435 = sphi 0, %s433
    %s436 = sphi 0, %s435
    %s450 = sphi 0, %s436
    %s456 = sphi 0, %s458
    %s459 = sphi 0, %s456
    %s460 = sphi 0, %s459
    %s476 = sphi 0, %s460
  $region4: #{tpu_custom_call.1} parent=0 // loop_header_branch
    %28 = sbr.rel (%p26) target = $region8
  $region5: #{tpu_custom_call.1} parent=0 // loop_body
    %s30 = ssub.s32 %s25, 1
    %s31 = ssub.s32 %s25, 2
    %s38 = sadd.s32 1, %s33
    %p39 = scmp.ge.s32.totalorder %s38, 3
    %s40 = scalar_select %p39, 0, %s38
    %s41 = sadd.s32 1, %s32
    %s42 = scalar_select %p39, %s41, %s32
    %p43 = scmp.ge.s32.totalorder %s42, 2
    %s44 = scalar_select %p43, 0, %s42
    %s45 = ssub.s32 %s32, %s44
    %p46 = scmp.eq.s32.totalorder %s45, 0
    %s48 = sadd.s32 %s47, 1
    %s49 = scalar_select %p46, %s47, %s48
    %p52 = pneg %p46
    %p53 = scmp.eq.s32.totalorder %s25, 5
    %p54 = por %p52, %p53
    %p55 = scmp.ne.s32.totalorder %s47, %s50
    %p56 = scmp.eq.s32.totalorder %s25, 0
    %p57 = por %p55, %p56
    %p58 = scmp.ne.s32.totalorder %s47, %s50
    %p59 = scmp.eq.s32.totalorder %s30, 5
    %p60 = por %p58, %p59
    %p61 = scmp.ne.s32.totalorder %s50, %s51
    %p62 = scmp.eq.s32.totalorder %s30, 0
    %p63 = por %p61, %p62
    %p64 = scmp.ne.s32.totalorder %s50, %s51
    %p65 = scmp.eq.s32.totalorder %s31, 5
    %p66 = por %p64, %p65
    %p68 = scmp.ne.s32.totalorder %s51, %s67
    %p69 = scmp.eq.s32.totalorder %s31, 0
    %p70 = por %p68, %p69
    %s71 = ssub.s32 %s32, %s44
    %p72 = scmp.eq.s32.totalorder %s71, 0
    %s74 = sadd.s32 %s73, 1
    %s75 = scalar_select %p72, %s73, %s74
    %p78 = pneg %p72
    %p79 = scmp.eq.s32.totalorder %s25, 5
    %p80 = por %p78, %p79
    %p81 = scmp.ne.s32.totalorder %s73, %s76
    %p82 = scmp.eq.s32.totalorder %s25, 0
    %p83 = por %p81, %p82
    %p84 = scmp.ne.s32.totalorder %s73, %s76
    %p85 = scmp.eq.s32.totalorder %s30, 5
    %p86 = por %p84, %p85
    %p87 = scmp.ne.s32.totalorder %s76, %s77
    %p88 = scmp.eq.s32.totalorder %s30, 0
    %p89 = por %p87, %p88
    %p90 = scmp.ne.s32.totalorder %s76, %s77
    %p91 = scmp.eq.s32.totalorder %s31, 5
    %p92 = por %p90, %p91
    %p94 = scmp.ne.s32.totalorder %s77, %s93
    %p95 = scmp.eq.s32.totalorder %s31, 0
    %p96 = por %p94, %p95
    %s98 = sadd.s32 %s97, 1
    %p101 = scmp.eq.s32.totalorder %s25, 5
    %p102 = scmp.ne.s32.totalorder %s97, %s99
    %p103 = scmp.eq.s32.totalorder %s25, 0
    %p104 = por %p102, %p103
    %p105 = scmp.ne.s32.totalorder %s97, %s99
    %p106 = scmp.eq.s32.totalorder %s30, 5
    %p107 = por %p105, %p106
    %p108 = scmp.ne.s32.totalorder %s99, %s100
    %p109 = scmp.eq.s32.totalorder %s30, 0
    %p110 = por %p108, %p109
    %p111 = scmp.ne.s32.totalorder %s99, %s100
    %p112 = scmp.eq.s32.totalorder %s31, 5
    %p113 = por %p111, %p112
    %p115 = scmp.ne.s32.totalorder %s100, %s114
    %p116 = scmp.eq.s32.totalorder %s31, 0
    %p117 = por %p115, %p116
    %s119 = sadd.s32 %s118, 1
    %p122 = scmp.eq.s32.totalorder %s25, 5
    %p123 = scmp.ne.s32.totalorder %s118, %s120
    %p124 = scmp.eq.s32.totalorder %s25, 0
    %p125 = por %p123, %p124
    %p126 = scmp.ne.s32.totalorder %s118, %s120
    %p127 = scmp.eq.s32.totalorder %s30, 5
    %p128 = por %p126, %p127
    %p129 = scmp.ne.s32.totalorder %s120, %s121
    %p130 = scmp.eq.s32.totalorder %s30, 0
    %p131 = por %p129, %p130
    %p132 = scmp.ne.s32.totalorder %s120, %s121
    %p133 = scmp.eq.s32.totalorder %s31, 5
    %p134 = por %p132, %p133
    %p136 = scmp.ne.s32.totalorder %s121, %s135
    %p137 = scmp.eq.s32.totalorder %s31, 0
    %p138 = por %p136, %p137
    %s140 = sadd.s32 %s139, 1
    %p143 = scmp.eq.s32.totalorder %s25, 5
    %p144 = scmp.ne.s32.totalorder %s139, %s141
    %p145 = scmp.eq.s32.totalorder %s25, 0
    %p146 = por %p144, %p145
    %p147 = scmp.ne.s32.totalorder %s139, %s141
    %p148 = scmp.eq.s32.totalorder %s30, 5
    %p149 = por %p147, %p148
    %p150 = scmp.ne.s32.totalorder %s141, %s142
    %p151 = scmp.eq.s32.totalorder %s30, 0
    %p152 = por %p150, %p151
    %p153 = scmp.ne.s32.totalorder %s141, %s142
    %p154 = scmp.eq.s32.totalorder %s31, 5
    %p155 = por %p153, %p154
    %p157 = scmp.ne.s32.totalorder %s142, %s156
    %p158 = scmp.eq.s32.totalorder %s31, 0
    %p159 = por %p157, %p158
    %s161 = sadd.s32 %s160, 1
    %p164 = scmp.eq.s32.totalorder %s25, 5
    %p165 = scmp.ne.s32.totalorder %s160, %s162
    %p166 = scmp.eq.s32.totalorder %s25, 0
    %p167 = por %p165, %p166
    %p168 = scmp.ne.s32.totalorder %s160, %s162
    %p169 = scmp.eq.s32.totalorder %s30, 5
    %p170 = por %p168, %p169
    %p171 = scmp.ne.s32.totalorder %s162, %s163
    %p172 = scmp.eq.s32.totalorder %s30, 0
    %p173 = por %p171, %p172
    %p174 = scmp.ne.s32.totalorder %s162, %s163
    %p175 = scmp.eq.s32.totalorder %s31, 5
    %p176 = por %p174, %p175
    %p178 = scmp.ne.s32.totalorder %s163, %s177
    %p179 = scmp.eq.s32.totalorder %s31, 0
    %p180 = por %p178, %p179
    %s182 = sadd.s32 %s181, 1
    %p185 = scmp.eq.s32.totalorder %s25, 5
    %p186 = scmp.ne.s32.totalorder %s181, %s183
    %p187 = scmp.eq.s32.totalorder %s25, 0
    %p188 = por %p186, %p187
    %p189 = scmp.ne.s32.totalorder %s181, %s183
    %p190 = scmp.eq.s32.totalorder %s30, 5
    %p191 = por %p189, %p190
    %p192 = scmp.ne.s32.totalorder %s183, %s184
    %p193 = scmp.eq.s32.totalorder %s30, 0
    %p194 = por %p192, %p193
    %p195 = scmp.ne.s32.totalorder %s183, %s184
    %p196 = scmp.eq.s32.totalorder %s31, 5
    %p197 = por %p195, %p196
    %p199 = scmp.ne.s32.totalorder %s184, %s198
    %p200 = scmp.eq.s32.totalorder %s31, 0
    %p201 = por %p199, %p200
    %s203 = sadd.s32 %s202, 1
    %p206 = scmp.eq.s32.totalorder %s25, 5
    %p207 = scmp.ne.s32.totalorder %s202, %s204
    %p208 = scmp.eq.s32.totalorder %s25, 0
    %p209 = por %p207, %p208
    %p210 = scmp.ne.s32.totalorder %s202, %s204
    %p211 = scmp.eq.s32.totalorder %s30, 5
    %p212 = por %p210, %p211
    %p213 = scmp.ne.s32.totalorder %s204, %s205
    %p214 = scmp.eq.s32.totalorder %s30, 0
    %p215 = por %p213, %p214
    %p216 = scmp.ne.s32.totalorder %s204, %s205
    %p217 = scmp.eq.s32.totalorder %s31, 5
    %p218 = por %p216, %p217
    %p220 = scmp.ne.s32.totalorder %s205, %s219
    %p221 = scmp.eq.s32.totalorder %s31, 0
    %p222 = por %p220, %p221
    %s224 = sadd.s32 %s223, 1
    %p227 = scmp.eq.s32.totalorder %s25, 5
    %p228 = scmp.ne.s32.totalorder %s223, %s225
    %p229 = scmp.eq.s32.totalorder %s25, 0
    %p230 = por %p228, %p229
    %p231 = scmp.ne.s32.totalorder %s223, %s225
    %p232 = scmp.eq.s32.totalorder %s30, 5
    %p233 = por %p231, %p232
    %p234 = scmp.ne.s32.totalorder %s225, %s226
    %p235 = scmp.eq.s32.totalorder %s30, 0
    %p236 = por %p234, %p235
    %p237 = scmp.ne.s32.totalorder %s225, %s226
    %p238 = scmp.eq.s32.totalorder %s31, 5
    %p239 = por %p237, %p238
    %p241 = scmp.ne.s32.totalorder %s226, %s240
    %p242 = scmp.eq.s32.totalorder %s31, 0
    %p243 = por %p241, %p242
    %s245 = sadd.s32 %s244, 1
    %p248 = scmp.eq.s32.totalorder %s25, 5
    %p249 = scmp.ne.s32.totalorder %s244, %s246
    %p250 = scmp.eq.s32.totalorder %s25, 0
    %p251 = por %p249, %p250
    %p252 = scmp.ne.s32.totalorder %s244, %s246
    %p253 = scmp.eq.s32.totalorder %s30, 5
    %p254 = por %p252, %p253
    %p255 = scmp.ne.s32.totalorder %s246, %s247
    %p256 = scmp.eq.s32.totalorder %s30, 0
    %p257 = por %p255, %p256
    %p258 = scmp.ne.s32.totalorder %s246, %s247
    %p259 = scmp.eq.s32.totalorder %s31, 5
    %p260 = por %p258, %p259
    %p262 = scmp.ne.s32.totalorder %s247, %s261
    %p263 = scmp.eq.s32.totalorder %s31, 0
    %p264 = por %p262, %p263
    %s266 = sadd.s32 %s265, 1
    %p269 = scmp.eq.s32.totalorder %s25, 5
    %p270 = scmp.ne.s32.totalorder %s265, %s267
    %p271 = scmp.eq.s32.totalorder %s25, 0
    %p272 = por %p270, %p271
    %p273 = scmp.ne.s32.totalorder %s265, %s267
    %p274 = scmp.eq.s32.totalorder %s30, 5
    %p275 = por %p273, %p274
    %p276 = scmp.ne.s32.totalorder %s267, %s268
    %p277 = scmp.eq.s32.totalorder %s30, 0
    %p278 = por %p276, %p277
    %p279 = scmp.ne.s32.totalorder %s267, %s268
    %p280 = scmp.eq.s32.totalorder %s31, 5
    %p281 = por %p279, %p280
    %p283 = scmp.ne.s32.totalorder %s268, %s282
    %p284 = scmp.eq.s32.totalorder %s31, 0
    %p285 = por %p283, %p284
    %s287 = sadd.s32 %s286, 1
    %p290 = scmp.eq.s32.totalorder %s25, 5
    %p291 = scmp.ne.s32.totalorder %s286, %s288
    %p292 = scmp.eq.s32.totalorder %s25, 0
    %p293 = por %p291, %p292
    %p294 = scmp.ne.s32.totalorder %s286, %s288
    %p295 = scmp.eq.s32.totalorder %s30, 5
    %p296 = por %p294, %p295
    %p297 = scmp.ne.s32.totalorder %s288, %s289
    %p298 = scmp.eq.s32.totalorder %s30, 0
    %p299 = por %p297, %p298
    %p300 = scmp.ne.s32.totalorder %s288, %s289
    %p301 = scmp.eq.s32.totalorder %s31, 5
    %p302 = por %p300, %p301
    %p304 = scmp.ne.s32.totalorder %s289, %s303
    %p305 = scmp.eq.s32.totalorder %s31, 0
    %p306 = por %p304, %p305
    %s308 = sadd.s32 %s307, 1
    %p311 = scmp.eq.s32.totalorder %s25, 5
    %p312 = scmp.ne.s32.totalorder %s307, %s309
    %p313 = scmp.eq.s32.totalorder %s25, 0
    %p314 = por %p312, %p313
    %p315 = scmp.ne.s32.totalorder %s307, %s309
    %p316 = scmp.eq.s32.totalorder %s30, 5
    %p317 = por %p315, %p316
    %p318 = scmp.ne.s32.totalorder %s309, %s310
    %p319 = scmp.eq.s32.totalorder %s30, 0
    %p320 = por %p318, %p319
    %p321 = scmp.ne.s32.totalorder %s309, %s310
    %p322 = scmp.eq.s32.totalorder %s31, 5
    %p323 = por %p321, %p322
    %p325 = scmp.ne.s32.totalorder %s310, %s324
    %p326 = scmp.eq.s32.totalorder %s31, 0
    %p327 = por %p325, %p326
    %s329 = sadd.s32 %s328, 1
    %p332 = scmp.eq.s32.totalorder %s25, 5
    %p333 = scmp.ne.s32.totalorder %s328, %s330
    %p334 = scmp.eq.s32.totalorder %s25, 0
    %p335 = por %p333, %p334
    %p336 = scmp.ne.s32.totalorder %s328, %s330
    %p337 = scmp.eq.s32.totalorder %s30, 5
    %p338 = por %p336, %p337
    %p339 = scmp.ne.s32.totalorder %s330, %s331
    %p340 = scmp.eq.s32.totalorder %s30, 0
    %p341 = por %p339, %p340
    %p342 = scmp.ne.s32.totalorder %s330, %s331
    %p343 = scmp.eq.s32.totalorder %s31, 5
    %p344 = por %p342, %p343
    %p346 = scmp.ne.s32.totalorder %s331, %s345
    %p347 = scmp.eq.s32.totalorder %s31, 0
    %p348 = por %p346, %p347
    %s350 = sadd.s32 %s349, 1
    %p353 = scmp.eq.s32.totalorder %s25, 5
    %p354 = scmp.ne.s32.totalorder %s349, %s351
    %p355 = scmp.eq.s32.totalorder %s25, 0
    %p356 = por %p354, %p355
    %p357 = scmp.ne.s32.totalorder %s349, %s351
    %p358 = scmp.eq.s32.totalorder %s30, 5
    %p359 = por %p357, %p358
    %p360 = scmp.ne.s32.totalorder %s351, %s352
    %p361 = scmp.eq.s32.totalorder %s30, 0
    %p362 = por %p360, %p361
    %p363 = scmp.ne.s32.totalorder %s351, %s352
    %p364 = scmp.eq.s32.totalorder %s31, 5
    %p365 = por %p363, %p364
    %p367 = scmp.ne.s32.totalorder %s352, %s366
    %p368 = scmp.eq.s32.totalorder %s31, 0
    %p369 = por %p367, %p368
    %s371 = sadd.s32 %s370, 1
    %p374 = scmp.eq.s32.totalorder %s25, 5
    %p375 = scmp.ne.s32.totalorder %s370, %s372
    %p376 = scmp.eq.s32.totalorder %s25, 0
    %p377 = por %p375, %p376
    %p378 = scmp.ne.s32.totalorder %s370, %s372
    %p379 = scmp.eq.s32.totalorder %s30, 5
    %p380 = por %p378, %p379
    %p381 = scmp.ne.s32.totalorder %s372, %s373
    %p382 = scmp.eq.s32.totalorder %s30, 0
    %p383 = por %p381, %p382
    %p384 = scmp.ne.s32.totalorder %s372, %s373
    %p385 = scmp.eq.s32.totalorder %s31, 5
    %p386 = por %p384, %p385
    %p388 = scmp.ne.s32.totalorder %s373, %s387
    %p389 = scmp.eq.s32.totalorder %s31, 0
    %p390 = por %p388, %p389
    %s392 = sadd.s32 %s391, 1
    %p395 = scmp.eq.s32.totalorder %s25, 5
    %p396 = scmp.ne.s32.totalorder %s391, %s393
    %p397 = scmp.eq.s32.totalorder %s25, 0
    %p398 = por %p396, %p397
    %p399 = scmp.ne.s32.totalorder %s391, %s393
    %p400 = scmp.eq.s32.totalorder %s30, 5
    %p401 = por %p399, %p400
    %p402 = scmp.ne.s32.totalorder %s393, %s394
    %p403 = scmp.eq.s32.totalorder %s30, 0
    %p404 = por %p402, %p403
    %p405 = scmp.ne.s32.totalorder %s393, %s394
    %p406 = scmp.eq.s32.totalorder %s31, 5
    %p407 = por %p405, %p406
    %p409 = scmp.ne.s32.totalorder %s394, %s408
    %p410 = scmp.eq.s32.totalorder %s31, 0
    %p411 = por %p409, %p410
    %s413 = sadd.s32 %s412, 1
    %p416 = scmp.eq.s32.totalorder %s25, 5
    %p417 = scmp.ne.s32.totalorder %s412, %s414
    %p418 = scmp.eq.s32.totalorder %s25, 0
    %p419 = por %p417, %p418
    %p420 = scmp.ne.s32.totalorder %s412, %s414
    %p421 = scmp.eq.s32.totalorder %s30, 5
    %p422 = por %p420, %p421
    %p423 = scmp.ne.s32.totalorder %s414, %s415
    %p424 = scmp.eq.s32.totalorder %s30, 0
    %p425 = por %p423, %p424
    %p426 = scmp.ne.s32.totalorder %s414, %s415
    %p427 = scmp.eq.s32.totalorder %s31, 5
    %p428 = por %p426, %p427
    %p430 = scmp.ne.s32.totalorder %s415, %s429
    %p431 = scmp.eq.s32.totalorder %s31, 0
    %p432 = por %p430, %p431
    %s434 = sadd.s32 %s433, 1
    %p437 = scmp.eq.s32.totalorder %s25, 5
    %p438 = scmp.ne.s32.totalorder %s433, %s435
    %p439 = scmp.eq.s32.totalorder %s25, 0
    %p440 = por %p438, %p439
    %p441 = scmp.ne.s32.totalorder %s433, %s435
    %p442 = scmp.eq.s32.totalorder %s30, 5
    %p443 = por %p441, %p442
    %p444 = scmp.ne.s32.totalorder %s435, %s436
    %p445 = scmp.eq.s32.totalorder %s30, 0
    %p446 = por %p444, %p445
    %p447 = scmp.ne.s32.totalorder %s435, %s436
    %p448 = scmp.eq.s32.totalorder %s31, 5
    %p449 = por %p447, %p448
    %p451 = scmp.ne.s32.totalorder %s436, %s450
    %p452 = scmp.eq.s32.totalorder %s31, 0
    %p453 = por %p451, %p452
    %s454 = ssub.s32 %s32, %s44
    %p455 = scmp.eq.s32.totalorder %s454, 0
    %s457 = sadd.s32 %s456, 1
    %s458 = scalar_select %p455, %s456, %s457
    %p461 = pneg %p455
    %p462 = scmp.eq.s32.totalorder %s25, 5
    %p463 = por %p461, %p462
    %p464 = scmp.ne.s32.totalorder %s456, %s459
    %p465 = scmp.eq.s32.totalorder %s25, 0
    %p466 = por %p464, %p465
    %p467 = scmp.ne.s32.totalorder %s456, %s459
    %p468 = scmp.eq.s32.totalorder %s30, 5
    %p469 = por %p467, %p468
    %p470 = scmp.ne.s32.totalorder %s459, %s460
    %p471 = scmp.eq.s32.totalorder %s30, 0
    %p472 = por %p470, %p471
    %p473 = scmp.ne.s32.totalorder %s459, %s460
    %p474 = scmp.eq.s32.totalorder %s31, 5
    %p475 = por %p473, %p474
    %p477 = scmp.ne.s32.totalorder %s460, %s476
    %p478 = scmp.eq.s32.totalorder %s31, 0
    %p479 = por %p477, %p478
    %p480 = scmp.le.s32.totalorder 1, %s25
    %p481 = scmp.lt.s32.totalorder %s25, 7
    %p482 = pnand %p480, %p481
    %p483 = pneg %p482
    // Predicated region
    $region9: #{tpu_custom_call.1} parent=5 // pred_check
      _
    $region10: #{tpu_custom_call.1} parent=5 // pred_check_branch
      %485 = sbr.rel (%p482) target = $region12
    $region11: #{tpu_custom_call.1} parent=5 // pred_region
      %s486 = ssub.s32 %s25, 1
      // Predicated region
      $region13: #{tpu_custom_call.1} parent=11 // pred_check
        %p487 = pneg %p110
      $region14: #{tpu_custom_call.1} parent=11 // pred_check_branch
        %489 = sbr.rel (%p487) target = $region16
      $region15: #{tpu_custom_call.1} parent=11 // pred_region
        _
      $region16: #{tpu_custom_call.1} parent=11 // pred_fallthru
        _
      // Predicated region
      $region17: #{tpu_custom_call.1} parent=11 // pred_check
        %p490 = pneg %p131
      $region18: #{tpu_custom_call.1} parent=11 // pred_check_branch
        %492 = sbr.rel (%p490) target = $region20
      $region19: #{tpu_custom_call.1} parent=11 // pred_region
        _
      $region20: #{tpu_custom_call.1} parent=11 // pred_fallthru
        _
      // Predicated region
      $region21: #{tpu_custom_call.1} parent=11 // pred_check
        %p493 = pneg %p152
      $region22: #{tpu_custom_call.1} parent=11 // pred_check_branch
        %495 = sbr.rel (%p493) target = $region24
      $region23: #{tpu_custom_call.1} parent=11 // pred_region
        _
      $region24: #{tpu_custom_call.1} parent=11 // pred_fallthru
        _
      // Predicated region
      $region25: #{tpu_custom_call.1} parent=11 // pred_check
        %p496 = pneg %p173
      $region26: #{tpu_custom_call.1} parent=11 // pred_check_branch
        %498 = sbr.rel (%p496) target = $region28
      $region27: #{tpu_custom_call.1} parent=11 // pred_region
        _
      $region28: #{tpu_custom_call.1} parent=11 // pred_fallthru
        _
      // Predicated region
      $region29: #{tpu_custom_call.1} parent=11 // pred_check
        %p499 = pneg %p194
      $region30: #{tpu_custom_call.1} parent=11 // pred_check_branch
        %501 = sbr.rel (%p499) target = $region32
      $region31: #{tpu_custom_call.1} parent=11 // pred_region
        _
      $region32: #{tpu_custom_call.1} parent=11 // pred_fallthru
        _
      // Predicated region
      $region33: #{tpu_custom_call.1} parent=11 // pred_check
        %p502 = pneg %p215
      $region34: #{tpu_custom_call.1} parent=11 // pred_check_branch
        %504 = sbr.rel (%p502) target = $region36
      $region35: #{tpu_custom_call.1} parent=11 // pred_region
        _
      $region36: #{tpu_custom_call.1} parent=11 // pred_fallthru
        _
      // Predicated region
      $region37: #{tpu_custom_call.1} parent=11 // pred_check
        %p505 = pneg %p236
      $region38: #{tpu_custom_call.1} parent=11 // pred_check_branch
        %507 = sbr.rel (%p505) target = $region40
      $region39: #{tpu_custom_call.1} parent=11 // pred_region
        _
      $region40: #{tpu_custom_call.1} parent=11 // pred_fallthru
        _
      // Predicated region
      $region41: #{tpu_custom_call.1} parent=11 // pred_check
        %p508 = pneg %p257
      $region42: #{tpu_custom_call.1} parent=11 // pred_check_branch
        %510 = sbr.rel (%p508) target = $region44
      $region43: #{tpu_custom_call.1} parent=11 // pred_region
        _
      $region44: #{tpu_custom_call.1} parent=11 // pred_fallthru
        _
      // Predicated region
      $region45: #{tpu_custom_call.1} parent=11 // pred_check
        %p511 = pneg %p278
      $region46: #{tpu_custom_call.1} parent=11 // pred_check_branch
        %513 = sbr.rel (%p511) target = $region48
      $region47: #{tpu_custom_call.1} parent=11 // pred_region
        _
      $region48: #{tpu_custom_call.1} parent=11 // pred_fallthru
        _
      // Predicated region
      $region49: #{tpu_custom_call.1} parent=11 // pred_check
        %p514 = pneg %p299
      $region50: #{tpu_custom_call.1} parent=11 // pred_check_branch
        %516 = sbr.rel (%p514) target = $region52
      $region51: #{tpu_custom_call.1} parent=11 // pred_region
        _
      $region52: #{tpu_custom_call.1} parent=11 // pred_fallthru
        _
      // Predicated region
      $region53: #{tpu_custom_call.1} parent=11 // pred_check
        %p517 = pneg %p320
      $region54: #{tpu_custom_call.1} parent=11 // pred_check_branch
        %519 = sbr.rel (%p517) target = $region56
      $region55: #{tpu_custom_call.1} parent=11 // pred_region
        _
      $region56: #{tpu_custom_call.1} parent=11 // pred_fallthru
        _
      // Predicated region
      $region57: #{tpu_custom_call.1} parent=11 // pred_check
        %p520 = pneg %p341
      $region58: #{tpu_custom_call.1} parent=11 // pred_check_branch
        %522 = sbr.rel (%p520) target = $region60
      $region59: #{tpu_custom_call.1} parent=11 // pred_region
        _
      $region60: #{tpu_custom_call.1} parent=11 // pred_fallthru
        _
      // Predicated region
      $region61: #{tpu_custom_call.1} parent=11 // pred_check
        %p523 = pneg %p362
      $region62: #{tpu_custom_call.1} parent=11 // pred_check_branch
        %525 = sbr.rel (%p523) target = $region64
      $region63: #{tpu_custom_call.1} parent=11 // pred_region
        _
      $region64: #{tpu_custom_call.1} parent=11 // pred_fallthru
        _
      // Predicated region
      $region65: #{tpu_custom_call.1} parent=11 // pred_check
        %p526 = pneg %p383
      $region66: #{tpu_custom_call.1} parent=11 // pred_check_branch
        %528 = sbr.rel (%p526) target = $region68
      $region67: #{tpu_custom_call.1} parent=11 // pred_region
        _
      $region68: #{tpu_custom_call.1} parent=11 // pred_fallthru
        _
      // Predicated region
      $region69: #{tpu_custom_call.1} parent=11 // pred_check
        %p529 = pneg %p404
      $region70: #{tpu_custom_call.1} parent=11 // pred_check_branch
        %531 = sbr.rel (%p529) target = $region72
      $region71: #{tpu_custom_call.1} parent=11 // pred_region
        _
      $region72: #{tpu_custom_call.1} parent=11 // pred_fallthru
        _
      // Predicated region
      $region73: #{tpu_custom_call.1} parent=11 // pred_check
        %p532 = pneg %p425
      $region74: #{tpu_custom_call.1} parent=11 // pred_check_branch
        %534 = sbr.rel (%p532) target = $region76
      $region75: #{tpu_custom_call.1} parent=11 // pred_region
        _
      $region76: #{tpu_custom_call.1} parent=11 // pred_fallthru
        _
      // Predicated region
      $region77: #{tpu_custom_call.1} parent=11 // pred_check
        %p535 = pneg %p446
      $region78: #{tpu_custom_call.1} parent=11 // pred_check_branch
        %537 = sbr.rel (%p535) target = $region80
      $region79: #{tpu_custom_call.1} parent=11 // pred_region
        _
      $region80: #{tpu_custom_call.1} parent=11 // pred_fallthru
        _
    $region12: #{tpu_custom_call.1} parent=5 // pred_fallthru
      _
    %p538 = scmp.lt.s32.totalorder %s25, 6
    // Predicated region
    $region81: #{tpu_custom_call.1} parent=5 // pred_check
      %p539 = pneg %p538
    $region82: #{tpu_custom_call.1} parent=5 // pred_check_branch
      %541 = sbr.rel (%p539) target = $region84
    $region83: #{tpu_custom_call.1} parent=5 // pred_region
      // Predicated region
      $region85: #{tpu_custom_call.1} parent=83 // pred_check
        %p542 = pneg %p57
      $region86: #{tpu_custom_call.1} parent=83 // pred_check_branch
        %544 = sbr.rel (%p542) target = $region88
      $region87: #{tpu_custom_call.1} parent=83 // pred_region
        %p545 = scmp.lt.s32.totalorder %s32, 1
        %s546 = scalar_select %p545, %s32, 1
        %s547 = smul.addr %s546, 16
        %s548 = smul.addr %s547, 8
        %s549 = scalar_lea.vmem %s0, %s548
      $region88: #{tpu_custom_call.1} parent=83 // pred_fallthru
        _
      // Predicated region
      $region89: #{tpu_custom_call.1} parent=83 // pred_check
        %p550 = pneg %p83
      $region90: #{tpu_custom_call.1} parent=83 // pred_check_branch
        %552 = sbr.rel (%p550) target = $region92
      $region91: #{tpu_custom_call.1} parent=83 // pred_region
        %p553 = scmp.lt.s32.totalorder %s32, 1
        %s554 = scalar_select %p553, %s32, 1
        %s555 = scalar_lea.vmem %s1, %s554
      $region92: #{tpu_custom_call.1} parent=83 // pred_fallthru
        _
    $region84: #{tpu_custom_call.1} parent=5 // pred_fallthru
      _
    %p556 = scmp.le.s32.totalorder 1, %s25
    %p557 = scmp.lt.s32.totalorder %s25, 7
    %p558 = pnand %p556, %p557
    %p559 = pneg %p558
    // Predicated region
    $region93: #{tpu_custom_call.1} parent=5 // pred_check
      _
    $region94: #{tpu_custom_call.1} parent=5 // pred_check_branch
      %561 = sbr.rel (%p558) target = $region96
    $region95: #{tpu_custom_call.1} parent=5 // pred_region
      %s562 = ssub.s32 %s25, 1
      %p563 = scmp.lt.s32.totalorder %s34, 1
      %s564 = scalar_select %p563, %s34, 1
      %s565 = smul.addr %s564, 16
      %s566 = smul.addr %s565, 8
      %s567 = scalar_lea.vmem %s0, %s566
      %p568 = pneg %p63
      %p569 = pneg %p60
      %p570 = scmp.lt.s32.totalorder %s34, 1
      %s571 = scalar_select %p570, %s34, 1
      %s572 = scalar_lea.vmem %s1, %s571
      %p573 = pneg %p89
      %p574 = pneg %p86
      %p575 = pneg %p110
      %p576 = pneg %p107
      %p577 = pneg %p131
      %p578 = pneg %p128
      %p579 = pneg %p152
      %p580 = pneg %p149
      %p581 = pneg %p173
      %p582 = pneg %p170
      %p583 = pneg %p194
      %p584 = pneg %p191
      %p585 = pneg %p215
      %p586 = pneg %p212
      %p587 = pneg %p236
      %p588 = pneg %p233
      %p589 = pneg %p257
      %p590 = pneg %p254
      %p591 = pneg %p278
      %p592 = pneg %p275
      %p593 = pneg %p299
      %p594 = pneg %p296
      %p595 = pneg %p320
      %p596 = pneg %p317
      %p597 = pneg %p341
      %p598 = pneg %p338
      %p599 = pneg %p362
      %p600 = pneg %p359
      %p601 = pneg %p383
      %p602 = pneg %p380
      %p603 = pneg %p404
      %p604 = pneg %p401
      %p605 = pneg %p425
      %p606 = pneg %p422
      %p607 = pneg %p446
      %p608 = pneg %p443
      %p609 = pneg %p472
      %p610 = pneg %p469
      %p611 = scmp.lt.s32.totalorder %s34, 1
      %s612 = scalar_select %p611, %s34, 1
      %s613 = smul.addr %s612, 16
      %s614 = smul.addr %s613, 8
      %s615 = scalar_lea.vmem %s19, %s614
      %p616 = scmp.lt.s32.totalorder %s34, 1
      %s617 = scalar_select %p616, %s34, 1
      %s618 = smul.addr %s617, 16
      %s619 = smul.addr %s618, 8
      %s620 = scalar_lea.vmem %s0, %s619
      %p621 = scmp.lt.s32.totalorder %s34, 1
      %s622 = scalar_select %p621, %s34, 1
      %s623 = scalar_lea.vmem %s1, %s622
      %p624 = scmp.lt.s32.totalorder %s34, 1
      %s625 = scalar_select %p624, %s34, 1
      %s626 = smul.addr %s625, 16
      %s627 = smul.addr %s626, 8
      %s628 = scalar_lea.vmem %s19, %s627
      %p630 = scmp.eq.s32.totalorder %s35, 0
      // Predicated region
      $region97: #{tpu_custom_call.1} parent=95 // pred_check
        %p631 = pneg %p630
      $region98: #{tpu_custom_call.1} parent=95 // pred_check_branch
        %633 = sbr.rel (%p631) target = $region100
      $region99: #{tpu_custom_call.1} parent=95 // pred_region
        %v634 = vld [vmem:[%s620] sm:$0xff]
        %v635 = vld [vmem:[%s620 + $0x8] sm:$0xff]
        %v636 = vld [vmem:[%s620 + $0x10] sm:$0xff]
        %v637 = vld [vmem:[%s620 + $0x18] sm:$0xff]
        %v638 = vld [vmem:[%s620 + $0x20] sm:$0xff]
        %v639 = vld [vmem:[%s620 + $0x28] sm:$0xff]
        %v640 = vld [vmem:[%s620 + $0x30] sm:$0xff]
        %v641 = vld [vmem:[%s620 + $0x38] sm:$0xff]
        %v642 = vld [vmem:[%s620 + $0x40] sm:$0xff]
        %v643 = vld [vmem:[%s620 + $0x48] sm:$0xff]
        %v644 = vld [vmem:[%s620 + $0x50] sm:$0xff]
        %v645 = vld [vmem:[%s620 + $0x58] sm:$0xff]
        %v646 = vld [vmem:[%s620 + $0x60] sm:$0xff]
        %v647 = vld [vmem:[%s620 + $0x68] sm:$0xff]
        %v648 = vld [vmem:[%s620 + $0x70] sm:$0xff]
        %v649 = vld [vmem:[%s620 + $0x78] sm:$0xff]
        %vm650 = vcmask 261120
        %651 = vst.msk [vmem:[%s628] sm:$0xff] %vm650, %v634
        %652 = vst.msk [vmem:[%s628 + $0x8] sm:$0xff] %vm650, %v635
        %653 = vst.msk [vmem:[%s628 + $0x10] sm:$0xff] %vm650, %v636
        %654 = vst.msk [vmem:[%s628 + $0x18] sm:$0xff] %vm650, %v637
        %655 = vst.msk [vmem:[%s628 + $0x20] sm:$0xff] %vm650, %v638
        %656 = vst.msk [vmem:[%s628 + $0x28] sm:$0xff] %vm650, %v639
        %657 = vst.msk [vmem:[%s628 + $0x30] sm:$0xff] %vm650, %v640
        %658 = vst.msk [vmem:[%s628 + $0x38] sm:$0xff] %vm650, %v641
        %659 = vst.msk [vmem:[%s628 + $0x40] sm:$0xff] %vm650, %v642
        %660 = vst.msk [vmem:[%s628 + $0x48] sm:$0xff] %vm650, %v643
        %661 = vst.msk [vmem:[%s628 + $0x50] sm:$0xff] %vm650, %v644
        %662 = vst.msk [vmem:[%s628 + $0x58] sm:$0xff] %vm650, %v645
        %663 = vst.msk [vmem:[%s628 + $0x60] sm:$0xff] %vm650, %v646
        %664 = vst.msk [vmem:[%s628 + $0x68] sm:$0xff] %vm650, %v647
        %665 = vst.msk [vmem:[%s628 + $0x70] sm:$0xff] %vm650, %v648
        %666 = vst.msk [vmem:[%s628 + $0x78] sm:$0xff] %vm650, %v649
      $region100: #{tpu_custom_call.1} parent=95 // pred_fallthru
        _
      %v667 = vld [vmem:[%s628] sm:$0xff]
      %v668 = vld [vmem:[%s628 + $0x8] sm:$0xff]
      %v669 = vld [vmem:[%s628 + $0x10] sm:$0xff]
      %v670 = vld [vmem:[%s628 + $0x18] sm:$0xff]
      %v671 = vld [vmem:[%s628 + $0x20] sm:$0xff]
      %v672 = vld [vmem:[%s628 + $0x28] sm:$0xff]
      %v673 = vld [vmem:[%s628 + $0x30] sm:$0xff]
      %v674 = vld [vmem:[%s628 + $0x38] sm:$0xff]
      %v675 = vld [vmem:[%s628 + $0x40] sm:$0xff]
      %v676 = vld [vmem:[%s628 + $0x48] sm:$0xff]
      %v677 = vld [vmem:[%s628 + $0x50] sm:$0xff]
      %v678 = vld [vmem:[%s628 + $0x58] sm:$0xff]
      %v679 = vld [vmem:[%s628 + $0x60] sm:$0xff]
      %v680 = vld [vmem:[%s628 + $0x68] sm:$0xff]
      %v681 = vld [vmem:[%s628 + $0x70] sm:$0xff]
      %v682 = vld [vmem:[%s628 + $0x78] sm:$0xff]
      %s683 = scalar_lea.vmem %s2, %s35
      %v684 = vld [vmem:[%s683] sm:$0x1]
      %v685 = vlaneseq
      %v686 = vshrl.u32 %v685, 7
      %v687 = vsub.s32 0, %v686
      %v688 = vrot.slane %v684, %v687
      %v689 = vadd.f32 %v667, %v688
      %v690 = vadd.f32 %v668, %v688
      %v691 = vadd.f32 %v669, %v688
      %v692 = vadd.f32 %v670, %v688
      %v693 = vadd.f32 %v671, %v688
      %v694 = vadd.f32 %v672, %v688
      %v695 = vadd.f32 %v673, %v688
      %v696 = vadd.f32 %v674, %v688
      %v697 = vadd.f32 %v675, %v688
      %v698 = vadd.f32 %v676, %v688
      %v699 = vadd.f32 %v677, %v688
      %v700 = vadd.f32 %v678, %v688
      %v701 = vadd.f32 %v679, %v688
      %v702 = vadd.f32 %v680, %v688
      %v703 = vadd.f32 %v681, %v688
      %v704 = vadd.f32 %v682, %v688
      %v705 = vld [vmem:[%s623] sm:$0x1]
      %vm706 = vcmp.lt.f32.partialorder %v705, 0.5
      %v707 = vpack.c.bf16 %v690, %v689
      %v708 = vpack.c.bf16 %v692, %v691
      %v709 = vpack.c.bf16 %v694, %v693
      %v710 = vpack.c.bf16 %v696, %v695
      %v711 = vpack.c.bf16 %v698, %v697
      %v712 = vpack.c.bf16 %v700, %v699
      %v713 = vpack.c.bf16 %v702, %v701
      %v714 = vpack.c.bf16 %v704, %v703
      %v715 = vld [vmem:[%s3] sm:$0xff]
      %v716 = vld [vmem:[%s3 + $0x8] sm:$0xff]
      %v717 = vld [vmem:[%s3 + $0x10] sm:$0xff]
      %v718 = vld [vmem:[%s3 + $0x18] sm:$0xff]
      %v719 = vld [vmem:[%s3 + $0x20] sm:$0xff]
      %v720 = vld [vmem:[%s3 + $0x28] sm:$0xff]
      %v721 = vld [vmem:[%s3 + $0x30] sm:$0xff]
      %v722 = vld [vmem:[%s3 + $0x38] sm:$0xff]
      %v723 = vld [vmem:[%s6] sm:$0xf]
      %v725 = vlaneseq
      %v726 = vshrl.u32 %v725, 7
      %v727 = vsub.s32 0, %v726
      %v728 = vrot.slane %v723, %v727
      %v729 = vlaneseq
      %v730 = vshrl.u32 %v729, 7
      %v731 = vsub.s32 1, %v730
      %v732 = vrot.slane %v723, %v731
      %v733 = vlaneseq
      %v734 = vshrl.u32 %v733, 7
      %v735 = vsub.s32 2, %v734
      %v736 = vrot.slane %v723, %v735
      %v737 = vlaneseq
      %v738 = vshrl.u32 %v737, 7
      %v739 = vsub.s32 3, %v738
      %v740 = vrot.slane %v723, %v739
      %v753 = vunpack.c.l.b16 %v715
      %v754 = vunpack.c.h.b16 %v715
      %v755 = vunpack.c.l.b16 %v716
      %v756 = vunpack.c.h.b16 %v716
      %v757 = vunpack.c.l.b16 %v717
      %v758 = vunpack.c.h.b16 %v717
      %v759 = vunpack.c.l.b16 %v718
      %v760 = vunpack.c.h.b16 %v718
      %v761 = vunpack.c.l.b16 %v719
      %v762 = vunpack.c.h.b16 %v719
      %v763 = vunpack.c.l.b16 %v720
      %v764 = vunpack.c.h.b16 %v720
      %v765 = vunpack.c.l.b16 %v721
      %v766 = vunpack.c.h.b16 %v721
      %v767 = vunpack.c.l.b16 %v722
      %v768 = vunpack.c.h.b16 %v722
      %v769 = vpack.c.b16 %v757, %v753
      %v770 = vpack.c.b16 %v758, %v754
      %v771 = vpack.c.b16 %v759, %v755
      %v772 = vpack.c.b16 %v760, %v756
      %v773 = vpack.c.b16 %v765, %v761
      %v774 = vpack.c.b16 %v766, %v762
      %v775 = vpack.c.b16 %v767, %v763
      %v776 = vpack.c.b16 %v768, %v764
      %vm785 = vcmask 261120
      %v787 = vsel %vm785, %v707, 0
      %v790 = vsel %vm785, %v708, 0
      %v793 = vsel %vm785, %v709, 0
      %v796 = vsel %vm785, %v710, 0
      %v799 = vsel %vm785, %v711, 0
      %v802 = vsel %vm785, %v712, 0
      %v805 = vsel %vm785, %v713, 0
      %v808 = vsel %vm785, %v714, 0
      %810 = vmatprep.subr.bf16.mxu0 %v770
      %811 = vmatpush1.bf16.msra.mxu0 %v769
      %812 = vmatprep.subr.bf16.mxu0 %v774
      %813 = vmatpush1.bf16.msra.mxu0 %v773
      %814 = vmatprep.subr.bf16.mxu0 0
      %815 = vmatpush1.bf16.msra.mxu0 0
      %816 = vmatprep.subr.bf16.mxu0 0
      %817 = vmatpush1.bf16.msra.mxu0 0
      %818 = vmatprep.subr.bf16.mxu0 0
      %819 = vmatpush1.bf16.msra.mxu0 0
      %820 = vmatprep.subr.bf16.mxu0 0
      %821 = vmatpush1.bf16.msra.mxu0 0
      %822 = vmatprep.subr.bf16.mxu0 0
      %823 = vmatpush1.bf16.msra.mxu0 0
      %824 = vmatprep.subr.bf16.mxu0 0
      %825 = vmatpush1.bf16.msra.mxu0 0
      %826 = vmatprep.subr.bf16.mxu0 0
      %827 = vmatpush1.bf16.msra.mxu0 0
      %828 = vmatprep.subr.bf16.mxu0 0
      %829 = vmatpush1.bf16.msra.mxu0 0
      %830 = vmatprep.subr.bf16.mxu0 0
      %831 = vmatpush1.bf16.msra.mxu0 0
      %832 = vmatprep.subr.bf16.mxu0 0
      %833 = vmatpush1.bf16.msra.mxu0 0
      %834 = vmatprep.subr.bf16.mxu0 0
      %835 = vmatpush1.bf16.msra.mxu0 0
      %836 = vmatprep.subr.bf16.mxu0 0
      %837 = vmatpush1.bf16.msra.mxu0 0
      %838 = vmatprep.subr.bf16.mxu0 0
      %839 = vmatpush1.bf16.msra.mxu0 0
      %840 = vmatprep.subr.bf16.mxu0 0
      %841 = vmatpush1.bf16.msra.mxu0 0
      %842 = vmatprep.mubr.bf16.mxu0 0
      %843 = vmatmul.mubr.bf16.gmra.mrb[0].mxu0 %v787
      %v844 = vpop.f32.mrb[0].mxu0
      %v845 = vadd.f32 %v728, %v844
      %v846 = vpop.f32.mrb[0].mxu0
      %v847 = vadd.f32 %v732, %v846
      %v848 = vpop.f32.mrb[0].mxu0
      %v849 = vadd.f32 %v728, %v848
      %v850 = vpop.f32.mrb[0].mxu0
      %v851 = vadd.f32 %v732, %v850
      %852 = vmatprep.mubr.bf16.mxu0 0
      %853 = vmatmul.mubr.bf16.gmra.mrb[0].mxu0 %v790
      %v854 = vpop.f32.mrb[0].mxu0
      %v855 = vadd.f32 %v728, %v854
      %v856 = vpop.f32.mrb[0].mxu0
      %v857 = vadd.f32 %v732, %v856
      %v858 = vpop.f32.mrb[0].mxu0
      %v859 = vadd.f32 %v728, %v858
      %v860 = vpop.f32.mrb[0].mxu0
      %v861 = vadd.f32 %v732, %v860
      %862 = vmatprep.mubr.bf16.mxu0 0
      %863 = vmatmul.mubr.bf16.gmra.mrb[0].mxu0 %v793
      %v864 = vpop.f32.mrb[0].mxu0
      %v865 = vadd.f32 %v728, %v864
      %v866 = vpop.f32.mrb[0].mxu0
      %v867 = vadd.f32 %v732, %v866
      %v868 = vpop.f32.mrb[0].mxu0
      %v869 = vadd.f32 %v728, %v868
      %v870 = vpop.f32.mrb[0].mxu0
      %v871 = vadd.f32 %v732, %v870
      %872 = vmatprep.mubr.bf16.mxu0 0
      %873 = vmatmul.mubr.bf16.gmra.mrb[0].mxu0 %v796
      %v874 = vpop.f32.mrb[0].mxu0
      %v875 = vadd.f32 %v728, %v874
      %v876 = vpop.f32.mrb[0].mxu0
      %v877 = vadd.f32 %v732, %v876
      %v878 = vpop.f32.mrb[0].mxu0
      %v879 = vadd.f32 %v728, %v878
      %v880 = vpop.f32.mrb[0].mxu0
      %v881 = vadd.f32 %v732, %v880
      %882 = vmatprep.mubr.bf16.mxu0 0
      %883 = vmatmul.mubr.bf16.gmra.mrb[0].mxu0 %v799
      %v884 = vpop.f32.mrb[0].mxu0
      %v885 = vadd.f32 %v728, %v884
      %v886 = vpop.f32.mrb[0].mxu0
      %v887 = vadd.f32 %v732, %v886
      %v888 = vpop.f32.mrb[0].mxu0
      %v889 = vadd.f32 %v728, %v888
      %v890 = vpop.f32.mrb[0].mxu0
      %v891 = vadd.f32 %v732, %v890
      %892 = vmatprep.mubr.bf16.mxu0 0
      %893 = vmatmul.mubr.bf16.gmra.mrb[0].mxu0 %v802
      %v894 = vpop.f32.mrb[0].mxu0
      %v895 = vadd.f32 %v728, %v894
      %v896 = vpop.f32.mrb[0].mxu0
      %v897 = vadd.f32 %v732, %v896
      %v898 = vpop.f32.mrb[0].mxu0
      %v899 = vadd.f32 %v728, %v898
      %v900 = vpop.f32.mrb[0].mxu0
      %v901 = vadd.f32 %v732, %v900
      %902 = vmatprep.mubr.bf16.mxu0 0
      %903 = vmatmul.mubr.bf16.gmra.mrb[0].mxu0 %v805
      %v904 = vpop.f32.mrb[0].mxu0
      %v905 = vadd.f32 %v728, %v904
      %v906 = vpop.f32.mrb[0].mxu0
      %v907 = vadd.f32 %v732, %v906
      %v908 = vpop.f32.mrb[0].mxu0
      %v909 = vadd.f32 %v728, %v908
      %v910 = vpop.f32.mrb[0].mxu0
      %v911 = vadd.f32 %v732, %v910
      %912 = vmatprep.mubr.bf16.mxu0 0
      %913 = vmatmul.mubr.bf16.gmra.mrb[0].mxu0 %v808
      %v914 = vpop.f32.mrb[0].mxu0
      %v915 = vadd.f32 %v728, %v914
      %v916 = vpop.f32.mrb[0].mxu0
      %v917 = vadd.f32 %v732, %v916
      %v918 = vpop.f32.mrb[0].mxu0
      %v919 = vadd.f32 %v728, %v918
      %v920 = vpop.f32.mrb[0].mxu0
      %v921 = vadd.f32 %v732, %v920
      %922 = vdwg.mxu0
      %923 = vmatprep.subr.bf16.mxu0 %v772
      %924 = vmatpush1.bf16.msra.mxu0 %v771
      %925 = vmatprep.subr.bf16.mxu0 %v776
      %926 = vmatpush1.bf16.msra.mxu0 %v775
      %927 = vmatprep.subr.bf16.mxu0 0
      %928 = vmatpush1.bf16.msra.mxu0 0
      %929 = vmatprep.subr.bf16.mxu0 0
      %930 = vmatpush1.bf16.msra.mxu0 0
      %931 = vmatprep.subr.bf16.mxu0 0
      %932 = vmatpush1.bf16.msra.mxu0 0
      %933 = vmatprep.subr.bf16.mxu0 0
      %934 = vmatpush1.bf16.msra.mxu0 0
      %935 = vmatprep.subr.bf16.mxu0 0
      %936 = vmatpush1.bf16.msra.mxu0 0
      %937 = vmatprep.subr.bf16.mxu0 0
      %938 = vmatpush1.bf16.msra.mxu0 0
      %939 = vmatprep.subr.bf16.mxu0 0
      %940 = vmatpush1.bf16.msra.mxu0 0
      %941 = vmatprep.subr.bf16.mxu0 0
      %942 = vmatpush1.bf16.msra.mxu0 0
      %943 = vmatprep.subr.bf16.mxu0 0
      %944 = vmatpush1.bf16.msra.mxu0 0
      %945 = vmatprep.subr.bf16.mxu0 0
      %946 = vmatpush1.bf16.msra.mxu0 0
      %947 = vmatprep.subr.bf16.mxu0 0
      %948 = vmatpush1.bf16.msra.mxu0 0
      %949 = vmatprep.subr.bf16.mxu0 0
      %950 = vmatpush1.bf16.msra.mxu0 0
      %951 = vmatprep.subr.bf16.mxu0 0
      %952 = vmatpush1.bf16.msra.mxu0 0
      %953 = vmatprep.subr.bf16.mxu0 0
      %954 = vmatpush1.bf16.msra.mxu0 0
      %955 = vmatprep.mubr.bf16.mxu0 0
      %956 = vmatmul.mubr.bf16.gmra.mrb[0].mxu0 %v787
      %v957 = vpop.f32.mrb[0].mxu0
      %v958 = vadd.f32 %v736, %v957
      %v959 = vpop.f32.mrb[0].mxu0
      %v960 = vadd.f32 %v740, %v959
      %v961 = vpop.f32.mrb[0].mxu0
      %v962 = vadd.f32 %v736, %v961
      %v963 = vpop.f32.mrb[0].mxu0
      %v964 = vadd.f32 %v740, %v963
      %965 = vmatprep.mubr.bf16.mxu0 0
      %966 = vmatmul.mubr.bf16.gmra.mrb[0].mxu0 %v790
      %v967 = vpop.f32.mrb[0].mxu0
      %v968 = vadd.f32 %v736, %v967
      %v969 = vpop.f32.mrb[0].mxu0
      %v970 = vadd.f32 %v740, %v969
      %v971 = vpop.f32.mrb[0].mxu0
      %v972 = vadd.f32 %v736, %v971
      %v973 = vpop.f32.mrb[0].mxu0
      %v974 = vadd.f32 %v740, %v973
      %975 = vmatprep.mubr.bf16.mxu0 0
      %976 = vmatmul.mubr.bf16.gmra.mrb[0].mxu0 %v793
      %v977 = vpop.f32.mrb[0].mxu0
      %v978 = vadd.f32 %v736, %v977
      %v979 = vpop.f32.mrb[0].mxu0
      %v980 = vadd.f32 %v740, %v979
      %v981 = vpop.f32.mrb[0].mxu0
      %v982 = vadd.f32 %v736, %v981
      %v983 = vpop.f32.mrb[0].mxu0
      %v984 = vadd.f32 %v740, %v983
      %985 = vmatprep.mubr.bf16.mxu0 0
      %986 = vmatmul.mubr.bf16.gmra.mrb[0].mxu0 %v796
      %v987 = vpop.f32.mrb[0].mxu0
      %v988 = vadd.f32 %v736, %v987
      %v989 = vpop.f32.mrb[0].mxu0
      %v990 = vadd.f32 %v740, %v989
      %v991 = vpop.f32.mrb[0].mxu0
      %v992 = vadd.f32 %v736, %v991
      %v993 = vpop.f32.mrb[0].mxu0
      %v994 = vadd.f32 %v740, %v993
      %995 = vmatprep.mubr.bf16.mxu0 0
      %996 = vmatmul.mubr.bf16.gmra.mrb[0].mxu0 %v799
      %v997 = vpop.f32.mrb[0].mxu0
      %v998 = vadd.f32 %v736, %v997
      %v999 = vpop.f32.mrb[0].mxu0
      %v1000 = vadd.f32 %v740, %v999
      %v1001 = vpop.f32.mrb[0].mxu0
      %v1002 = vadd.f32 %v736, %v1001
      %v1003 = vpop.f32.mrb[0].mxu0
      %v1004 = vadd.f32 %v740, %v1003
      %1005 = vmatprep.mubr.bf16.mxu0 0
      %1006 = vmatmul.mubr.bf16.gmra.mrb[0].mxu0 %v802
      %v1007 = vpop.f32.mrb[0].mxu0
      %v1008 = vadd.f32 %v736, %v1007
      %v1009 = vpop.f32.mrb[0].mxu0
      %v1010 = vadd.f32 %v740, %v1009
      %v1011 = vpop.f32.mrb[0].mxu0
      %v1012 = vadd.f32 %v736, %v1011
      %v1013 = vpop.f32.mrb[0].mxu0
      %v1014 = vadd.f32 %v740, %v1013
      %1015 = vmatprep.mubr.bf16.mxu0 0
      %1016 = vmatmul.mubr.bf16.gmra.mrb[0].mxu0 %v805
      %v1017 = vpop.f32.mrb[0].mxu0
      %v1018 = vadd.f32 %v736, %v1017
      %v1019 = vpop.f32.mrb[0].mxu0
      %v1020 = vadd.f32 %v740, %v1019
      %v1021 = vpop.f32.mrb[0].mxu0
      %v1022 = vadd.f32 %v736, %v1021
      %v1023 = vpop.f32.mrb[0].mxu0
      %v1024 = vadd.f32 %v740, %v1023
      %1025 = vmatprep.mubr.bf16.mxu0 0
      %1026 = vmatmul.mubr.bf16.gmra.mrb[0].mxu0 %v808
      %v1027 = vpop.f32.mrb[0].mxu0
      %v1028 = vadd.f32 %v736, %v1027
      %v1029 = vpop.f32.mrb[0].mxu0
      %v1030 = vadd.f32 %v740, %v1029
      %v1031 = vpop.f32.mrb[0].mxu0
      %v1032 = vadd.f32 %v736, %v1031
      %v1033 = vpop.f32.mrb[0].mxu0
      %v1034 = vadd.f32 %v740, %v1033
      %1035 = vdwg.mxu0
      %v1036 = vpack.c.bf16 %v849, %v845
      %v1037 = vpack.c.bf16 %v851, %v847
      %v1038 = vpack.c.bf16 %v962, %v958
      %v1039 = vpack.c.bf16 %v964, %v960
      %v1040 = vpack.c.bf16 %v859, %v855
      %v1041 = vpack.c.bf16 %v861, %v857
      %v1042 = vpack.c.bf16 %v972, %v968
      %v1043 = vpack.c.bf16 %v974, %v970
      %v1044 = vpack.c.bf16 %v869, %v865
      %v1045 = vpack.c.bf16 %v871, %v867
      %v1046 = vpack.c.bf16 %v982, %v978
      %v1047 = vpack.c.bf16 %v984, %v980
      %v1048 = vpack.c.bf16 %v879, %v875
      %v1049 = vpack.c.bf16 %v881, %v877
      %v1050 = vpack.c.bf16 %v992, %v988
      %v1051 = vpack.c.bf16 %v994, %v990
      %v1052 = vpack.c.bf16 %v889, %v885
      %v1053 = vpack.c.bf16 %v891, %v887
      %v1054 = vpack.c.bf16 %v1002, %v998
      %v1055 = vpack.c.bf16 %v1004, %v1000
      %v1056 = vpack.c.bf16 %v899, %v895
      %v1057 = vpack.c.bf16 %v901, %v897
      %v1058 = vpack.c.bf16 %v1012, %v1008
      %v1059 = vpack.c.bf16 %v1014, %v1010
      %v1060 = vpack.c.bf16 %v909, %v905
      %v1061 = vpack.c.bf16 %v911, %v907
      %v1062 = vpack.c.bf16 %v1022, %v1018
      %v1063 = vpack.c.bf16 %v1024, %v1020
      %v1064 = vpack.c.bf16 %v919, %v915
      %v1065 = vpack.c.bf16 %v921, %v917
      %v1066 = vpack.c.bf16 %v1032, %v1028
      %v1067 = vpack.c.bf16 %v1034, %v1030
      %v1068 = vld [vmem:[%s4] sm:$0xff]
      %v1069 = vld [vmem:[%s4 + $0x8] sm:$0xff]
      %v1070 = vld [vmem:[%s4 + $0x10] sm:$0xff]
      %v1071 = vld [vmem:[%s4 + $0x18] sm:$0xff]
      %v1072 = vld [vmem:[%s4 + $0x20] sm:$0xff]
      %v1073 = vld [vmem:[%s4 + $0x28] sm:$0xff]
      %v1074 = vld [vmem:[%s4 + $0x30] sm:$0xff]
      %v1075 = vld [vmem:[%s4 + $0x38] sm:$0xff]
      %v1076 = vld [vmem:[%s7] sm:$0xf]
      %v1078 = vlaneseq
      %v1079 = vshrl.u32 %v1078, 7
      %v1080 = vsub.s32 0, %v1079
      %v1081 = vrot.slane %v1076, %v1080
      %v1082 = vlaneseq
      %v1083 = vshrl.u32 %v1082, 7
      %v1084 = vsub.s32 1, %v1083
      %v1085 = vrot.slane %v1076, %v1084
      %v1086 = vlaneseq
      %v1087 = vshrl.u32 %v1086, 7
      %v1088 = vsub.s32 2, %v1087
      %v1089 = vrot.slane %v1076, %v1088
      %v1090 = vlaneseq
      %v1091 = vshrl.u32 %v1090, 7
      %v1092 = vsub.s32 3, %v1091
      %v1093 = vrot.slane %v1076, %v1092
      %v1106 = vunpack.c.l.b16 %v1068
      %v1107 = vunpack.c.h.b16 %v1068
      %v1108 = vunpack.c.l.b16 %v1069
      %v1109 = vunpack.c.h.b16 %v1069
      %v1110 = vunpack.c.l.b16 %v1070
      %v1111 = vunpack.c.h.b16 %v1070
      %v1112 = vunpack.c.l.b16 %v1071
      %v1113 = vunpack.c.h.b16 %v1071
      %v1114 = vunpack.c.l.b16 %v1072
      %v1115 = vunpack.c.h.b16 %v1072
      %v1116 = vunpack.c.l.b16 %v1073
      %v1117 = vunpack.c.h.b16 %v1073
      %v1118 = vunpack.c.l.b16 %v1074
      %v1119 = vunpack.c.h.b16 %v1074
      %v1120 = vunpack.c.l.b16 %v1075
      %v1121 = vunpack.c.h.b16 %v1075
      %v1122 = vpack.c.b16 %v1110, %v1106
      %v1123 = vpack.c.b16 %v1111, %v1107
      %v1124 = vpack.c.b16 %v1112, %v1108
      %v1125 = vpack.c.b16 %v1113, %v1109
      %v1126 = vpack.c.b16 %v1118, %v1114
      %v1127 = vpack.c.b16 %v1119, %v1115
      %v1128 = vpack.c.b16 %v1120, %v1116
      %v1129 = vpack.c.b16 %v1121, %v1117
      %1138 = vmatprep.subr.bf16.mxu0 %v1123
      %1139 = vmatpush1.bf16.msra.mxu0 %v1122
      %1140 = vmatprep.subr.bf16.mxu0 %v1127
      %1141 = vmatpush1.bf16.msra.mxu0 %v1126
      %1142 = vmatprep.subr.bf16.mxu0 0
      %1143 = vmatpush1.bf16.msra.mxu0 0
      %1144 = vmatprep.subr.bf16.mxu0 0
      %1145 = vmatpush1.bf16.msra.mxu0 0
      %1146 = vmatprep.subr.bf16.mxu0 0
      %1147 = vmatpush1.bf16.msra.mxu0 0
      %1148 = vmatprep.subr.bf16.mxu0 0
      %1149 = vmatpush1.bf16.msra.mxu0 0
      %1150 = vmatprep.subr.bf16.mxu0 0
      %1151 = vmatpush1.bf16.msra.mxu0 0
      %1152 = vmatprep.subr.bf16.mxu0 0
      %1153 = vmatpush1.bf16.msra.mxu0 0
      %1154 = vmatprep.subr.bf16.mxu0 0
      %1155 = vmatpush1.bf16.msra.mxu0 0
      %1156 = vmatprep.subr.bf16.mxu0 0
      %1157 = vmatpush1.bf16.msra.mxu0 0
      %1158 = vmatprep.subr.bf16.mxu0 0
      %1159 = vmatpush1.bf16.msra.mxu0 0
      %1160 = vmatprep.subr.bf16.mxu0 0
      %1161 = vmatpush1.bf16.msra.mxu0 0
      %1162 = vmatprep.subr.bf16.mxu0 0
      %1163 = vmatpush1.bf16.msra.mxu0 0
      %1164 = vmatprep.subr.bf16.mxu0 0
      %1165 = vmatpush1.bf16.msra.mxu0 0
      %1166 = vmatprep.subr.bf16.mxu0 0
      %1167 = vmatpush1.bf16.msra.mxu0 0
      %1168 = vmatprep.subr.bf16.mxu0 0
      %1169 = vmatpush1.bf16.msra.mxu0 0
      %1170 = vmatprep.mubr.bf16.mxu0 0
      %1171 = vmatmul.mubr.bf16.gmra.mrb[0].mxu0 %v787
      %v1172 = vpop.f32.mrb[0].mxu0
      %v1173 = vadd.f32 %v1081, %v1172
      %v1174 = vpop.f32.mrb[0].mxu0
      %v1175 = vadd.f32 %v1085, %v1174
      %v1176 = vpop.f32.mrb[0].mxu0
      %v1177 = vadd.f32 %v1081, %v1176
      %v1178 = vpop.f32.mrb[0].mxu0
      %v1179 = vadd.f32 %v1085, %v1178
      %1180 = vmatprep.mubr.bf16.mxu0 0
      %1181 = vmatmul.mubr.bf16.gmra.mrb[0].mxu0 %v790
      %v1182 = vpop.f32.mrb[0].mxu0
      %v1183 = vadd.f32 %v1081, %v1182
      %v1184 = vpop.f32.mrb[0].mxu0
      %v1185 = vadd.f32 %v1085, %v1184
      %v1186 = vpop.f32.mrb[0].mxu0
      %v1187 = vadd.f32 %v1081, %v1186
      %v1188 = vpop.f32.mrb[0].mxu0
      %v1189 = vadd.f32 %v1085, %v1188
      %1190 = vmatprep.mubr.bf16.mxu0 0
      %1191 = vmatmul.mubr.bf16.gmra.mrb[0].mxu0 %v793
      %v1192 = vpop.f32.mrb[0].mxu0
      %v1193 = vadd.f32 %v1081, %v1192
      %v1194 = vpop.f32.mrb[0].mxu0
      %v1195 = vadd.f32 %v1085, %v1194
      %v1196 = vpop.f32.mrb[0].mxu0
      %v1197 = vadd.f32 %v1081, %v1196
      %v1198 = vpop.f32.mrb[0].mxu0
      %v1199 = vadd.f32 %v1085, %v1198
      %1200 = vmatprep.mubr.bf16.mxu0 0
      %1201 = vmatmul.mubr.bf16.gmra.mrb[0].mxu0 %v796
      %v1202 = vpop.f32.mrb[0].mxu0
      %v1203 = vadd.f32 %v1081, %v1202
      %v1204 = vpop.f32.mrb[0].mxu0
      %v1205 = vadd.f32 %v1085, %v1204
      %v1206 = vpop.f32.mrb[0].mxu0
      %v1207 = vadd.f32 %v1081, %v1206
      %v1208 = vpop.f32.mrb[0].mxu0
      %v1209 = vadd.f32 %v1085, %v1208
      %1210 = vmatprep.mubr.bf16.mxu0 0
      %1211 = vmatmul.mubr.bf16.gmra.mrb[0].mxu0 %v799
      %v1212 = vpop.f32.mrb[0].mxu0
      %v1213 = vadd.f32 %v1081, %v1212
      %v1214 = vpop.f32.mrb[0].mxu0
      %v1215 = vadd.f32 %v1085, %v1214
      %v1216 = vpop.f32.mrb[0].mxu0
      %v1217 = vadd.f32 %v1081, %v1216
      %v1218 = vpop.f32.mrb[0].mxu0
      %v1219 = vadd.f32 %v1085, %v1218
      %1220 = vmatprep.mubr.bf16.mxu0 0
      %1221 = vmatmul.mubr.bf16.gmra.mrb[0].mxu0 %v802
      %v1222 = vpop.f32.mrb[0].mxu0
      %v1223 = vadd.f32 %v1081, %v1222
      %v1224 = vpop.f32.mrb[0].mxu0
      %v1225 = vadd.f32 %v1085, %v1224
      %v1226 = vpop.f32.mrb[0].mxu0
      %v1227 = vadd.f32 %v1081, %v1226
      %v1228 = vpop.f32.mrb[0].mxu0
      %v1229 = vadd.f32 %v1085, %v1228
      %1230 = vmatprep.mubr.bf16.mxu0 0
      %1231 = vmatmul.mubr.bf16.gmra.mrb[0].mxu0 %v805
      %v1232 = vpop.f32.mrb[0].mxu0
      %v1233 = vadd.f32 %v1081, %v1232
      %v1234 = vpop.f32.mrb[0].mxu0
      %v1235 = vadd.f32 %v1085, %v1234
      %v1236 = vpop.f32.mrb[0].mxu0
      %v1237 = vadd.f32 %v1081, %v1236
      %v1238 = vpop.f32.mrb[0].mxu0
      %v1239 = vadd.f32 %v1085, %v1238
      %1240 = vmatprep.mubr.bf16.mxu0 0
      %1241 = vmatmul.mubr.bf16.gmra.mrb[0].mxu0 %v808
      %v1242 = vpop.f32.mrb[0].mxu0
      %v1243 = vadd.f32 %v1081, %v1242
      %v1244 = vpop.f32.mrb[0].mxu0
      %v1245 = vadd.f32 %v1085, %v1244
      %v1246 = vpop.f32.mrb[0].mxu0
      %v1247 = vadd.f32 %v1081, %v1246
      %v1248 = vpop.f32.mrb[0].mxu0
      %v1249 = vadd.f32 %v1085, %v1248
      %1250 = vdwg.mxu0
      %1251 = vmatprep.subr.bf16.mxu0 %v1125
      %1252 = vmatpush1.bf16.msra.mxu0 %v1124
      %1253 = vmatprep.subr.bf16.mxu0 %v1129
      %1254 = vmatpush1.bf16.msra.mxu0 %v1128
      %1255 = vmatprep.subr.bf16.mxu0 0
      %1256 = vmatpush1.bf16.msra.mxu0 0
      %1257 = vmatprep.subr.bf16.mxu0 0
      %1258 = vmatpush1.bf16.msra.mxu0 0
      %1259 = vmatprep.subr.bf16.mxu0 0
      %1260 = vmatpush1.bf16.msra.mxu0 0
      %1261 = vmatprep.subr.bf16.mxu0 0
      %1262 = vmatpush1.bf16.msra.mxu0 0
      %1263 = vmatprep.subr.bf16.mxu0 0
      %1264 = vmatpush1.bf16.msra.mxu0 0
      %1265 = vmatprep.subr.bf16.mxu0 0
      %1266 = vmatpush1.bf16.msra.mxu0 0
      %1267 = vmatprep.subr.bf16.mxu0 0
      %1268 = vmatpush1.bf16.msra.mxu0 0
      %1269 = vmatprep.subr.bf16.mxu0 0
      %1270 = vmatpush1.bf16.msra.mxu0 0
      %1271 = vmatprep.subr.bf16.mxu0 0
      %1272 = vmatpush1.bf16.msra.mxu0 0
      %1273 = vmatprep.subr.bf16.mxu0 0
      %1274 = vmatpush1.bf16.msra.mxu0 0
      %1275 = vmatprep.subr.bf16.mxu0 0
      %1276 = vmatpush1.bf16.msra.mxu0 0
      %1277 = vmatprep.subr.bf16.mxu0 0
      %1278 = vmatpush1.bf16.msra.mxu0 0
      %1279 = vmatprep.subr.bf16.mxu0 0
      %1280 = vmatpush1.bf16.msra.mxu0 0
      %1281 = vmatprep.subr.bf16.mxu0 0
      %1282 = vmatpush1.bf16.msra.mxu0 0
      %1283 = vmatprep.mubr.bf16.mxu0 0
      %1284 = vmatmul.mubr.bf16.gmra.mrb[0].mxu0 %v787
      %v1285 = vpop.f32.mrb[0].mxu0
      %v1286 = vadd.f32 %v1089, %v1285
      %v1287 = vpop.f32.mrb[0].mxu0
      %v1288 = vadd.f32 %v1093, %v1287
      %v1289 = vpop.f32.mrb[0].mxu0
      %v1290 = vadd.f32 %v1089, %v1289
      %v1291 = vpop.f32.mrb[0].mxu0
      %v1292 = vadd.f32 %v1093, %v1291
      %1293 = vmatprep.mubr.bf16.mxu0 0
      %1294 = vmatmul.mubr.bf16.gmra.mrb[0].mxu0 %v790
      %v1295 = vpop.f32.mrb[0].mxu0
      %v1296 = vadd.f32 %v1089, %v1295
      %v1297 = vpop.f32.mrb[0].mxu0
      %v1298 = vadd.f32 %v1093, %v1297
      %v1299 = vpop.f32.mrb[0].mxu0
      %v1300 = vadd.f32 %v1089, %v1299
      %v1301 = vpop.f32.mrb[0].mxu0
      %v1302 = vadd.f32 %v1093, %v1301
      %1303 = vmatprep.mubr.bf16.mxu0 0
      %1304 = vmatmul.mubr.bf16.gmra.mrb[0].mxu0 %v793
      %v1305 = vpop.f32.mrb[0].mxu0
      %v1306 = vadd.f32 %v1089, %v1305
      %v1307 = vpop.f32.mrb[0].mxu0
      %v1308 = vadd.f32 %v1093, %v1307
      %v1309 = vpop.f32.mrb[0].mxu0
      %v1310 = vadd.f32 %v1089, %v1309
      %v1311 = vpop.f32.mrb[0].mxu0
      %v1312 = vadd.f32 %v1093, %v1311
      %1313 = vmatprep.mubr.bf16.mxu0 0
      %1314 = vmatmul.mubr.bf16.gmra.mrb[0].mxu0 %v796
      %v1315 = vpop.f32.mrb[0].mxu0
      %v1316 = vadd.f32 %v1089, %v1315
      %v1317 = vpop.f32.mrb[0].mxu0
      %v1318 = vadd.f32 %v1093, %v1317
      %v1319 = vpop.f32.mrb[0].mxu0
      %v1320 = vadd.f32 %v1089, %v1319
      %v1321 = vpop.f32.mrb[0].mxu0
      %v1322 = vadd.f32 %v1093, %v1321
      %1323 = vmatprep.mubr.bf16.mxu0 0
      %1324 = vmatmul.mubr.bf16.gmra.mrb[0].mxu0 %v799
      %v1325 = vpop.f32.mrb[0].mxu0
      %v1326 = vadd.f32 %v1089, %v1325
      %v1327 = vpop.f32.mrb[0].mxu0
      %v1328 = vadd.f32 %v1093, %v1327
      %v1329 = vpop.f32.mrb[0].mxu0
      %v1330 = vadd.f32 %v1089, %v1329
      %v1331 = vpop.f32.mrb[0].mxu0
      %v1332 = vadd.f32 %v1093, %v1331
      %1333 = vmatprep.mubr.bf16.mxu0 0
      %1334 = vmatmul.mubr.bf16.gmra.mrb[0].mxu0 %v802
      %v1335 = vpop.f32.mrb[0].mxu0
      %v1336 = vadd.f32 %v1089, %v1335
      %v1337 = vpop.f32.mrb[0].mxu0
      %v1338 = vadd.f32 %v1093, %v1337
      %v1339 = vpop.f32.mrb[0].mxu0
      %v1340 = vadd.f32 %v1089, %v1339
      %v1341 = vpop.f32.mrb[0].mxu0
      %v1342 = vadd.f32 %v1093, %v1341
      %1343 = vmatprep.mubr.bf16.mxu0 0
      %1344 = vmatmul.mubr.bf16.gmra.mrb[0].mxu0 %v805
      %v1345 = vpop.f32.mrb[0].mxu0
      %v1346 = vadd.f32 %v1089, %v1345
      %v1347 = vpop.f32.mrb[0].mxu0
      %v1348 = vadd.f32 %v1093, %v1347
      %v1349 = vpop.f32.mrb[0].mxu0
      %v1350 = vadd.f32 %v1089, %v1349
      %v1351 = vpop.f32.mrb[0].mxu0
      %v1352 = vadd.f32 %v1093, %v1351
      %1353 = vmatprep.mubr.bf16.mxu0 0
      %1354 = vmatmul.mubr.bf16.gmra.mrb[0].mxu0 %v808
      %v1355 = vpop.f32.mrb[0].mxu0
      %v1356 = vadd.f32 %v1089, %v1355
      %v1357 = vpop.f32.mrb[0].mxu0
      %v1358 = vadd.f32 %v1093, %v1357
      %v1359 = vpop.f32.mrb[0].mxu0
      %v1360 = vadd.f32 %v1089, %v1359
      %v1361 = vpop.f32.mrb[0].mxu0
      %v1362 = vadd.f32 %v1093, %v1361
      %1363 = vdwg.mxu0
      %v1364 = vpack.c.bf16 %v1177, %v1173
      %v1365 = vpack.c.bf16 %v1179, %v1175
      %v1366 = vpack.c.bf16 %v1290, %v1286
      %v1367 = vpack.c.bf16 %v1292, %v1288
      %v1368 = vpack.c.bf16 %v1187, %v1183
      %v1369 = vpack.c.bf16 %v1189, %v1185
      %v1370 = vpack.c.bf16 %v1300, %v1296
      %v1371 = vpack.c.bf16 %v1302, %v1298
      %v1372 = vpack.c.bf16 %v1197, %v1193
      %v1373 = vpack.c.bf16 %v1199, %v1195
      %v1374 = vpack.c.bf16 %v1310, %v1306
      %v1375 = vpack.c.bf16 %v1312, %v1308
      %v1376 = vpack.c.bf16 %v1207, %v1203
      %v1377 = vpack.c.bf16 %v1209, %v1205
      %v1378 = vpack.c.bf16 %v1320, %v1316
      %v1379 = vpack.c.bf16 %v1322, %v1318
      %v1380 = vpack.c.bf16 %v1217, %v1213
      %v1381 = vpack.c.bf16 %v1219, %v1215
      %v1382 = vpack.c.bf16 %v1330, %v1326
      %v1383 = vpack.c.bf16 %v1332, %v1328
      %v1384 = vpack.c.bf16 %v1227, %v1223
      %v1385 = vpack.c.bf16 %v1229, %v1225
      %v1386 = vpack.c.bf16 %v1340, %v1336
      %v1387 = vpack.c.bf16 %v1342, %v1338
      %v1388 = vpack.c.bf16 %v1237, %v1233
      %v1389 = vpack.c.bf16 %v1239, %v1235
      %v1390 = vpack.c.bf16 %v1350, %v1346
      %v1391 = vpack.c.bf16 %v1352, %v1348
      %v1392 = vpack.c.bf16 %v1247, %v1243
      %v1393 = vpack.c.bf16 %v1249, %v1245
      %v1394 = vpack.c.bf16 %v1360, %v1356
      %v1395 = vpack.c.bf16 %v1362, %v1358
      %v1396 = vld [vmem:[%s5] sm:$0xff]
      %v1397 = vld [vmem:[%s5 + $0x8] sm:$0xff]
      %v1398 = vld [vmem:[%s5 + $0x10] sm:$0xff]
      %v1399 = vld [vmem:[%s5 + $0x18] sm:$0xff]
      %v1400 = vld [vmem:[%s5 + $0x20] sm:$0xff]
      %v1401 = vld [vmem:[%s5 + $0x28] sm:$0xff]
      %v1402 = vld [vmem:[%s5 + $0x30] sm:$0xff]
      %v1403 = vld [vmem:[%s5 + $0x38] sm:$0xff]
      %v1404 = vld [vmem:[%s8] sm:$0xf]
      %v1406 = vlaneseq
      %v1407 = vshrl.u32 %v1406, 7
      %v1408 = vsub.s32 0, %v1407
      %v1409 = vrot.slane %v1404, %v1408
      %v1410 = vlaneseq
      %v1411 = vshrl.u32 %v1410, 7
      %v1412 = vsub.s32 1, %v1411
      %v1413 = vrot.slane %v1404, %v1412
      %v1414 = vlaneseq
      %v1415 = vshrl.u32 %v1414, 7
      %v1416 = vsub.s32 2, %v1415
      %v1417 = vrot.slane %v1404, %v1416
      %v1418 = vlaneseq
      %v1419 = vshrl.u32 %v1418, 7
      %v1420 = vsub.s32 3, %v1419
      %v1421 = vrot.slane %v1404, %v1420
      %v1434 = vunpack.c.l.b16 %v1396
      %v1435 = vunpack.c.h.b16 %v1396
      %v1436 = vunpack.c.l.b16 %v1397
      %v1437 = vunpack.c.h.b16 %v1397
      %v1438 = vunpack.c.l.b16 %v1398
      %v1439 = vunpack.c.h.b16 %v1398
      %v1440 = vunpack.c.l.b16 %v1399
      %v1441 = vunpack.c.h.b16 %v1399
      %v1442 = vunpack.c.l.b16 %v1400
      %v1443 = vunpack.c.h.b16 %v1400
      %v1444 = vunpack.c.l.b16 %v1401
      %v1445 = vunpack.c.h.b16 %v1401
      %v1446 = vunpack.c.l.b16 %v1402
      %v1447 = vunpack.c.h.b16 %v1402
      %v1448 = vunpack.c.l.b16 %v1403
      %v1449 = vunpack.c.h.b16 %v1403
      %v1450 = vpack.c.b16 %v1438, %v1434
      %v1451 = vpack.c.b16 %v1439, %v1435
      %v1452 = vpack.c.b16 %v1440, %v1436
      %v1453 = vpack.c.b16 %v1441, %v1437
      %v1454 = vpack.c.b16 %v1446, %v1442
      %v1455 = vpack.c.b16 %v1447, %v1443
      %v1456 = vpack.c.b16 %v1448, %v1444
      %v1457 = vpack.c.b16 %v1449, %v1445
      %1466 = vmatprep.subr.bf16.mxu0 %v1451
      %1467 = vmatpush1.bf16.msra.mxu0 %v1450
      %1468 = vmatprep.subr.bf16.mxu0 %v1455
      %1469 = vmatpush1.bf16.msra.mxu0 %v1454
      %1470 = vmatprep.subr.bf16.mxu0 0
      %1471 = vmatpush1.bf16.msra.mxu0 0
      %1472 = vmatprep.subr.bf16.mxu0 0
      %1473 = vmatpush1.bf16.msra.mxu0 0
      %1474 = vmatprep.subr.bf16.mxu0 0
      %1475 = vmatpush1.bf16.msra.mxu0 0
      %1476 = vmatprep.subr.bf16.mxu0 0
      %1477 = vmatpush1.bf16.msra.mxu0 0
      %1478 = vmatprep.subr.bf16.mxu0 0
      %1479 = vmatpush1.bf16.msra.mxu0 0
      %1480 = vmatprep.subr.bf16.mxu0 0
      %1481 = vmatpush1.bf16.msra.mxu0 0
      %1482 = vmatprep.subr.bf16.mxu0 0
      %1483 = vmatpush1.bf16.msra.mxu0 0
      %1484 = vmatprep.subr.bf16.mxu0 0
      %1485 = vmatpush1.bf16.msra.mxu0 0
      %1486 = vmatprep.subr.bf16.mxu0 0
      %1487 = vmatpush1.bf16.msra.mxu0 0
      %1488 = vmatprep.subr.bf16.mxu0 0
      %1489 = vmatpush1.bf16.msra.mxu0 0
      %1490 = vmatprep.subr.bf16.mxu0 0
      %1491 = vmatpush1.bf16.msra.mxu0 0
      %1492 = vmatprep.subr.bf16.mxu0 0
      %1493 = vmatpush1.bf16.msra.mxu0 0
      %1494 = vmatprep.subr.bf16.mxu0 0
      %1495 = vmatpush1.bf16.msra.mxu0 0
      %1496 = vmatprep.subr.bf16.mxu0 0
      %1497 = vmatpush1.bf16.msra.mxu0 0
      %1498 = vmatprep.mubr.bf16.mxu0 0
      %1499 = vmatmul.mubr.bf16.gmra.mrb[0].mxu0 %v787
      %v1500 = vpop.f32.mrb[0].mxu0
      %v1501 = vadd.f32 %v1409, %v1500
      %v1502 = vpop.f32.mrb[0].mxu0
      %v1503 = vadd.f32 %v1413, %v1502
      %v1504 = vpop.f32.mrb[0].mxu0
      %v1505 = vadd.f32 %v1409, %v1504
      %v1506 = vpop.f32.mrb[0].mxu0
      %v1507 = vadd.f32 %v1413, %v1506
      %1508 = vmatprep.mubr.bf16.mxu0 0
      %1509 = vmatmul.mubr.bf16.gmra.mrb[0].mxu0 %v790
      %v1510 = vpop.f32.mrb[0].mxu0
      %v1511 = vadd.f32 %v1409, %v1510
      %v1512 = vpop.f32.mrb[0].mxu0
      %v1513 = vadd.f32 %v1413, %v1512
      %v1514 = vpop.f32.mrb[0].mxu0
      %v1515 = vadd.f32 %v1409, %v1514
      %v1516 = vpop.f32.mrb[0].mxu0
      %v1517 = vadd.f32 %v1413, %v1516
      %1518 = vmatprep.mubr.bf16.mxu0 0
      %1519 = vmatmul.mubr.bf16.gmra.mrb[0].mxu0 %v793
      %v1520 = vpop.f32.mrb[0].mxu0
      %v1521 = vadd.f32 %v1409, %v1520
      %v1522 = vpop.f32.mrb[0].mxu0
      %v1523 = vadd.f32 %v1413, %v1522
      %v1524 = vpop.f32.mrb[0].mxu0
      %v1525 = vadd.f32 %v1409, %v1524
      %v1526 = vpop.f32.mrb[0].mxu0
      %v1527 = vadd.f32 %v1413, %v1526
      %1528 = vmatprep.mubr.bf16.mxu0 0
      %1529 = vmatmul.mubr.bf16.gmra.mrb[0].mxu0 %v796
      %v1530 = vpop.f32.mrb[0].mxu0
      %v1531 = vadd.f32 %v1409, %v1530
      %v1532 = vpop.f32.mrb[0].mxu0
      %v1533 = vadd.f32 %v1413, %v1532
      %v1534 = vpop.f32.mrb[0].mxu0
      %v1535 = vadd.f32 %v1409, %v1534
      %v1536 = vpop.f32.mrb[0].mxu0
      %v1537 = vadd.f32 %v1413, %v1536
      %1538 = vmatprep.mubr.bf16.mxu0 0
      %1539 = vmatmul.mubr.bf16.gmra.mrb[0].mxu0 %v799
      %v1540 = vpop.f32.mrb[0].mxu0
      %v1541 = vadd.f32 %v1409, %v1540
      %v1542 = vpop.f32.mrb[0].mxu0
      %v1543 = vadd.f32 %v1413, %v1542
      %v1544 = vpop.f32.mrb[0].mxu0
      %v1545 = vadd.f32 %v1409, %v1544
      %v1546 = vpop.f32.mrb[0].mxu0
      %v1547 = vadd.f32 %v1413, %v1546
      %1548 = vmatprep.mubr.bf16.mxu0 0
      %1549 = vmatmul.mubr.bf16.gmra.mrb[0].mxu0 %v802
      %v1550 = vpop.f32.mrb[0].mxu0
      %v1551 = vadd.f32 %v1409, %v1550
      %v1552 = vpop.f32.mrb[0].mxu0
      %v1553 = vadd.f32 %v1413, %v1552
      %v1554 = vpop.f32.mrb[0].mxu0
      %v1555 = vadd.f32 %v1409, %v1554
      %v1556 = vpop.f32.mrb[0].mxu0
      %v1557 = vadd.f32 %v1413, %v1556
      %1558 = vmatprep.mubr.bf16.mxu0 0
      %1559 = vmatmul.mubr.bf16.gmra.mrb[0].mxu0 %v805
      %v1560 = vpop.f32.mrb[0].mxu0
      %v1561 = vadd.f32 %v1409, %v1560
      %v1562 = vpop.f32.mrb[0].mxu0
      %v1563 = vadd.f32 %v1413, %v1562
      %v1564 = vpop.f32.mrb[0].mxu0
      %v1565 = vadd.f32 %v1409, %v1564
      %v1566 = vpop.f32.mrb[0].mxu0
      %v1567 = vadd.f32 %v1413, %v1566
      %1568 = vmatprep.mubr.bf16.mxu0 0
      %1569 = vmatmul.mubr.bf16.gmra.mrb[0].mxu0 %v808
      %v1570 = vpop.f32.mrb[0].mxu0
      %v1571 = vadd.f32 %v1409, %v1570
      %v1572 = vpop.f32.mrb[0].mxu0
      %v1573 = vadd.f32 %v1413, %v1572
      %v1574 = vpop.f32.mrb[0].mxu0
      %v1575 = vadd.f32 %v1409, %v1574
      %v1576 = vpop.f32.mrb[0].mxu0
      %v1577 = vadd.f32 %v1413, %v1576
      %1578 = vdwg.mxu0
      %1579 = vmatprep.subr.bf16.mxu0 %v1453
      %1580 = vmatpush1.bf16.msra.mxu0 %v1452
      %1581 = vmatprep.subr.bf16.mxu0 %v1457
      %1582 = vmatpush1.bf16.msra.mxu0 %v1456
      %1583 = vmatprep.subr.bf16.mxu0 0
      %1584 = vmatpush1.bf16.msra.mxu0 0
      %1585 = vmatprep.subr.bf16.mxu0 0
      %1586 = vmatpush1.bf16.msra.mxu0 0
      %1587 = vmatprep.subr.bf16.mxu0 0
      %1588 = vmatpush1.bf16.msra.mxu0 0
      %1589 = vmatprep.subr.bf16.mxu0 0
      %1590 = vmatpush1.bf16.msra.mxu0 0
      %1591 = vmatprep.subr.bf16.mxu0 0
      %1592 = vmatpush1.bf16.msra.mxu0 0
      %1593 = vmatprep.subr.bf16.mxu0 0
      %1594 = vmatpush1.bf16.msra.mxu0 0
      %1595 = vmatprep.subr.bf16.mxu0 0
      %1596 = vmatpush1.bf16.msra.mxu0 0
      %1597 = vmatprep.subr.bf16.mxu0 0
      %1598 = vmatpush1.bf16.msra.mxu0 0
      %1599 = vmatprep.subr.bf16.mxu0 0
      %1600 = vmatpush1.bf16.msra.mxu0 0
      %1601 = vmatprep.subr.bf16.mxu0 0
      %1602 = vmatpush1.bf16.msra.mxu0 0
      %1603 = vmatprep.subr.bf16.mxu0 0
      %1604 = vmatpush1.bf16.msra.mxu0 0
      %1605 = vmatprep.subr.bf16.mxu0 0
      %1606 = vmatpush1.bf16.msra.mxu0 0
      %1607 = vmatprep.subr.bf16.mxu0 0
      %1608 = vmatpush1.bf16.msra.mxu0 0
      %1609 = vmatprep.subr.bf16.mxu0 0
      %1610 = vmatpush1.bf16.msra.mxu0 0
      %1611 = vmatprep.mubr.bf16.mxu0 0
      %1612 = vmatmul.mubr.bf16.gmra.mrb[0].mxu0 %v787
      %v1613 = vpop.f32.mrb[0].mxu0
      %v1614 = vadd.f32 %v1417, %v1613
      %v1615 = vpop.f32.mrb[0].mxu0
      %v1616 = vadd.f32 %v1421, %v1615
      %v1617 = vpop.f32.mrb[0].mxu0
      %v1618 = vadd.f32 %v1417, %v1617
      %v1619 = vpop.f32.mrb[0].mxu0
      %v1620 = vadd.f32 %v1421, %v1619
      %1621 = vmatprep.mubr.bf16.mxu0 0
      %1622 = vmatmul.mubr.bf16.gmra.mrb[0].mxu0 %v790
      %v1623 = vpop.f32.mrb[0].mxu0
      %v1624 = vadd.f32 %v1417, %v1623
      %v1625 = vpop.f32.mrb[0].mxu0
      %v1626 = vadd.f32 %v1421, %v1625
      %v1627 = vpop.f32.mrb[0].mxu0
      %v1628 = vadd.f32 %v1417, %v1627
      %v1629 = vpop.f32.mrb[0].mxu0
      %v1630 = vadd.f32 %v1421, %v1629
      %1631 = vmatprep.mubr.bf16.mxu0 0
      %1632 = vmatmul.mubr.bf16.gmra.mrb[0].mxu0 %v793
      %v1633 = vpop.f32.mrb[0].mxu0
      %v1634 = vadd.f32 %v1417, %v1633
      %v1635 = vpop.f32.mrb[0].mxu0
      %v1636 = vadd.f32 %v1421, %v1635
      %v1637 = vpop.f32.mrb[0].mxu0
      %v1638 = vadd.f32 %v1417, %v1637
      %v1639 = vpop.f32.mrb[0].mxu0
      %v1640 = vadd.f32 %v1421, %v1639
      %1641 = vmatprep.mubr.bf16.mxu0 0
      %1642 = vmatmul.mubr.bf16.gmra.mrb[0].mxu0 %v796
      %v1643 = vpop.f32.mrb[0].mxu0
      %v1644 = vadd.f32 %v1417, %v1643
      %v1645 = vpop.f32.mrb[0].mxu0
      %v1646 = vadd.f32 %v1421, %v1645
      %v1647 = vpop.f32.mrb[0].mxu0
      %v1648 = vadd.f32 %v1417, %v1647
      %v1649 = vpop.f32.mrb[0].mxu0
      %v1650 = vadd.f32 %v1421, %v1649
      %1651 = vmatprep.mubr.bf16.mxu0 0
      %1652 = vmatmul.mubr.bf16.gmra.mrb[0].mxu0 %v799
      %v1653 = vpop.f32.mrb[0].mxu0
      %v1654 = vadd.f32 %v1417, %v1653
      %v1655 = vpop.f32.mrb[0].mxu0
      %v1656 = vadd.f32 %v1421, %v1655
      %v1657 = vpop.f32.mrb[0].mxu0
      %v1658 = vadd.f32 %v1417, %v1657
      %v1659 = vpop.f32.mrb[0].mxu0
      %v1660 = vadd.f32 %v1421, %v1659
      %1661 = vmatprep.mubr.bf16.mxu0 0
      %1662 = vmatmul.mubr.bf16.gmra.mrb[0].mxu0 %v802
      %v1663 = vpop.f32.mrb[0].mxu0
      %v1664 = vadd.f32 %v1417, %v1663
      %v1665 = vpop.f32.mrb[0].mxu0
      %v1666 = vadd.f32 %v1421, %v1665
      %v1667 = vpop.f32.mrb[0].mxu0
      %v1668 = vadd.f32 %v1417, %v1667
      %v1669 = vpop.f32.mrb[0].mxu0
      %v1670 = vadd.f32 %v1421, %v1669
      %1671 = vmatprep.mubr.bf16.mxu0 0
      %1672 = vmatmul.mubr.bf16.gmra.mrb[0].mxu0 %v805
      %v1673 = vpop.f32.mrb[0].mxu0
      %v1674 = vadd.f32 %v1417, %v1673
      %v1675 = vpop.f32.mrb[0].mxu0
      %v1676 = vadd.f32 %v1421, %v1675
      %v1677 = vpop.f32.mrb[0].mxu0
      %v1678 = vadd.f32 %v1417, %v1677
      %v1679 = vpop.f32.mrb[0].mxu0
      %v1680 = vadd.f32 %v1421, %v1679
      %1681 = vmatprep.mubr.bf16.mxu0 0
      %1682 = vmatmul.mubr.bf16.gmra.mrb[0].mxu0 %v808
      %v1683 = vpop.f32.mrb[0].mxu0
      %v1684 = vadd.f32 %v1417, %v1683
      %v1685 = vpop.f32.mrb[0].mxu0
      %v1686 = vadd.f32 %v1421, %v1685
      %v1687 = vpop.f32.mrb[0].mxu0
      %v1688 = vadd.f32 %v1417, %v1687
      %v1689 = vpop.f32.mrb[0].mxu0
      %v1690 = vadd.f32 %v1421, %v1689
      %1691 = vdwg.mxu0
      %v1692 = vpack.c.bf16 %v1505, %v1501
      %v1693 = vpack.c.bf16 %v1507, %v1503
      %v1694 = vpack.c.bf16 %v1618, %v1614
      %v1695 = vpack.c.bf16 %v1620, %v1616
      %v1696 = vpack.c.bf16 %v1515, %v1511
      %v1697 = vpack.c.bf16 %v1517, %v1513
      %v1698 = vpack.c.bf16 %v1628, %v1624
      %v1699 = vpack.c.bf16 %v1630, %v1626
      %v1700 = vpack.c.bf16 %v1525, %v1521
      %v1701 = vpack.c.bf16 %v1527, %v1523
      %v1702 = vpack.c.bf16 %v1638, %v1634
      %v1703 = vpack.c.bf16 %v1640, %v1636
      %v1704 = vpack.c.bf16 %v1535, %v1531
      %v1705 = vpack.c.bf16 %v1537, %v1533
      %v1706 = vpack.c.bf16 %v1648, %v1644
      %v1707 = vpack.c.bf16 %v1650, %v1646
      %v1708 = vpack.c.bf16 %v1545, %v1541
      %v1709 = vpack.c.bf16 %v1547, %v1543
      %v1710 = vpack.c.bf16 %v1658, %v1654
      %v1711 = vpack.c.bf16 %v1660, %v1656
      %v1712 = vpack.c.bf16 %v1555, %v1551
      %v1713 = vpack.c.bf16 %v1557, %v1553
      %v1714 = vpack.c.bf16 %v1668, %v1664
      %v1715 = vpack.c.bf16 %v1670, %v1666
      %v1716 = vpack.c.bf16 %v1565, %v1561
      %v1717 = vpack.c.bf16 %v1567, %v1563
      %v1718 = vpack.c.bf16 %v1678, %v1674
      %v1719 = vpack.c.bf16 %v1680, %v1676
      %v1720 = vpack.c.bf16 %v1575, %v1571
      %v1721 = vpack.c.bf16 %v1577, %v1573
      %v1722 = vpack.c.bf16 %v1688, %v1684
      %v1723 = vpack.c.bf16 %v1690, %v1686
      %v1724 = vlaneseq
      %v1725 = vshrl.u32 %v1724, 7
      %v1726 = vadd.s32 %v1725, 8
      %v1727 = vadd.s32 %v1725, 16
      %v1728 = vadd.s32 %v1725, 24
      %v1729 = vadd.s32 %v1725, 32
      %v1730 = vadd.s32 %v1725, 40
      %v1731 = vadd.s32 %v1725, 48
      %v1732 = vadd.s32 %v1725, 56
      %v1733 = vadd.s32 %v1725, 64
      %v1734 = vadd.s32 %v1725, 72
      %v1735 = vadd.s32 %v1725, 80
      %v1736 = vadd.s32 %v1725, 88
      %v1737 = vadd.s32 %v1725, 96
      %v1738 = vadd.s32 %v1725, 104
      %v1739 = vadd.s32 %v1725, 112
      %v1740 = vadd.s32 %v1725, 120
      %v1741 = vlaneseq
      %v1742 = vand.u32 %v1741, 127
      %vm1743 = vcmp.gt.s32.totalorder %v1742, %v1725
      %vm1744 = vcmp.gt.s32.totalorder %v1742, %v1726
      %vm1745 = vcmp.gt.s32.totalorder %v1742, %v1727
      %vm1746 = vcmp.gt.s32.totalorder %v1742, %v1728
      %vm1747 = vcmp.gt.s32.totalorder %v1742, %v1729
      %vm1748 = vcmp.gt.s32.totalorder %v1742, %v1730
      %vm1749 = vcmp.gt.s32.totalorder %v1742, %v1731
      %vm1750 = vcmp.gt.s32.totalorder %v1742, %v1732
      %vm1751 = vcmp.gt.s32.totalorder %v1742, %v1733
      %vm1752 = vcmp.gt.s32.totalorder %v1742, %v1734
      %vm1753 = vcmp.gt.s32.totalorder %v1742, %v1735
      %vm1754 = vcmp.gt.s32.totalorder %v1742, %v1736
      %vm1755 = vcmp.gt.s32.totalorder %v1742, %v1737
      %vm1756 = vcmp.gt.s32.totalorder %v1742, %v1738
      %vm1757 = vcmp.gt.s32.totalorder %v1742, %v1739
      %vm1758 = vcmp.gt.s32.totalorder %v1742, %v1740
      %v1759 = vsel %vm706, 1, 0
      %v1760 = vlaneseq
      %v1761 = vshrl.u32 %v1760, 7
      %v1762 = vsub.s32 0, %v1761
      %v1763 = vrot.slane %v1759, %v1762
      %vm1764 = vcmp.eq.s32.totalorder %v1763, 1
      %vm1765 = vmor %vm1743, %vm1764
      %vm1766 = vmor %vm1744, %vm1764
      %vm1767 = vmor %vm1745, %vm1764
      %vm1768 = vmor %vm1746, %vm1764
      %vm1769 = vmor %vm1747, %vm1764
      %vm1770 = vmor %vm1748, %vm1764
      %vm1771 = vmor %vm1749, %vm1764
      %vm1772 = vmor %vm1750, %vm1764
      %vm1773 = vmor %vm1751, %vm1764
      %vm1774 = vmor %vm1752, %vm1764
      %vm1775 = vmor %vm1753, %vm1764
      %vm1776 = vmor %vm1754, %vm1764
      %vm1777 = vmor %vm1755, %vm1764
      %vm1778 = vmor %vm1756, %vm1764
      %vm1779 = vmor %vm1757, %vm1764
      %vm1780 = vmor %vm1758, %vm1764
      %1781 = vmatprep.subr.bf16.mxu0 0
      %1782 = vmatpush1.bf16.xpose.msra.mxu0 %v1364
      %1783 = vmatprep.subr.bf16.mxu0 0
      %1784 = vmatpush1.bf16.xpose.msra.mxu0 %v1368
      %1785 = vmatprep.subr.bf16.mxu0 0
      %1786 = vmatpush1.bf16.xpose.msra.mxu0 %v1372
      %1787 = vmatprep.subr.bf16.mxu0 0
      %1788 = vmatpush1.bf16.xpose.msra.mxu0 %v1376
      %1789 = vmatprep.subr.bf16.mxu0 0
      %1790 = vmatpush1.bf16.xpose.msra.mxu0 %v1380
      %1791 = vmatprep.subr.bf16.mxu0 0
      %1792 = vmatpush1.bf16.xpose.msra.mxu0 %v1384
      %1793 = vmatprep.subr.bf16.mxu0 0
      %1794 = vmatpush1.bf16.xpose.msra.mxu0 %v1388
      %1795 = vmatprep.subr.bf16.mxu0 0
      %1796 = vmatpush1.bf16.xpose.msra.mxu0 %v1392
      %1797 = vmatprep.subr.bf16.mxu0 0
      %1798 = vmatpush1.bf16.xpose.msra.mxu0 0
      %1799 = vmatprep.subr.bf16.mxu0 0
      %1800 = vmatpush1.bf16.xpose.msra.mxu0 0
      %1801 = vmatprep.subr.bf16.mxu0 0
      %1802 = vmatpush1.bf16.xpose.msra.mxu0 0
      %1803 = vmatprep.subr.bf16.mxu0 0
      %1804 = vmatpush1.bf16.xpose.msra.mxu0 0
      %1805 = vmatprep.subr.bf16.mxu0 0
      %1806 = vmatpush1.bf16.xpose.msra.mxu0 0
      %1807 = vmatprep.subr.bf16.mxu0 0
      %1808 = vmatpush1.bf16.xpose.msra.mxu0 0
      %1809 = vmatprep.subr.bf16.mxu0 0
      %1810 = vmatpush1.bf16.xpose.msra.mxu0 0
      %1811 = vmatprep.subr.bf16.mxu0 0
      %1812 = vmatpush1.bf16.xpose.msra.mxu0 0
      %1813 = vmatprep.mubr.bf16.mxu0 0
      %1814 = vmatmul.mubr.bf16.gmra.mrb[0].mxu0 %v1036
      %v1815 = vpop.f32.mrb[0].mxu0
      %v1816 = vadd.f32 0.0, %v1815
      %v1817 = vpop.f32.mrb[0].mxu0
      %v1818 = vpop.f32.mrb[0].mxu0
      %v1819 = vadd.f32 0.0, %v1818
      %v1820 = vpop.f32.mrb[0].mxu0
      %1821 = vmatprep.mubr.bf16.mxu0 0
      %1822 = vmatmul.mubr.bf16.gmra.mrb[0].mxu0 %v1040
      %v1823 = vpop.f32.mrb[0].mxu0
      %v1824 = vadd.f32 0.0, %v1823
      %v1825 = vpop.f32.mrb[0].mxu0
      %v1826 = vpop.f32.mrb[0].mxu0
      %v1827 = vadd.f32 0.0, %v1826
      %v1828 = vpop.f32.mrb[0].mxu0
      %1829 = vmatprep.mubr.bf16.mxu0 0
      %1830 = vmatmul.mubr.bf16.gmra.mrb[0].mxu0 %v1044
      %v1831 = vpop.f32.mrb[0].mxu0
      %v1832 = vadd.f32 0.0, %v1831
      %v1833 = vpop.f32.mrb[0].mxu0
      %v1834 = vpop.f32.mrb[0].mxu0
      %v1835 = vadd.f32 0.0, %v1834
      %v1836 = vpop.f32.mrb[0].mxu0
      %1837 = vmatprep.mubr.bf16.mxu0 0
      %1838 = vmatmul.mubr.bf16.gmra.mrb[0].mxu0 %v1048
      %v1839 = vpop.f32.mrb[0].mxu0
      %v1840 = vadd.f32 0.0, %v1839
      %v1841 = vpop.f32.mrb[0].mxu0
      %v1842 = vpop.f32.mrb[0].mxu0
      %v1843 = vadd.f32 0.0, %v1842
      %v1844 = vpop.f32.mrb[0].mxu0
      %1845 = vmatprep.mubr.bf16.mxu0 0
      %1846 = vmatmul.mubr.bf16.gmra.mrb[0].mxu0 %v1052
      %v1847 = vpop.f32.mrb[0].mxu0
      %v1848 = vadd.f32 0.0, %v1847
      %v1849 = vpop.f32.mrb[0].mxu0
      %v1850 = vpop.f32.mrb[0].mxu0
      %v1851 = vadd.f32 0.0, %v1850
      %v1852 = vpop.f32.mrb[0].mxu0
      %1853 = vmatprep.mubr.bf16.mxu0 0
      %1854 = vmatmul.mubr.bf16.gmra.mrb[0].mxu0 %v1056
      %v1855 = vpop.f32.mrb[0].mxu0
      %v1856 = vadd.f32 0.0, %v1855
      %v1857 = vpop.f32.mrb[0].mxu0
      %v1858 = vpop.f32.mrb[0].mxu0
      %v1859 = vadd.f32 0.0, %v1858
      %v1860 = vpop.f32.mrb[0].mxu0
      %1861 = vmatprep.mubr.bf16.mxu0 0
      %1862 = vmatmul.mubr.bf16.gmra.mrb[0].mxu0 %v1060
      %v1863 = vpop.f32.mrb[0].mxu0
      %v1864 = vadd.f32 0.0, %v1863
      %v1865 = vpop.f32.mrb[0].mxu0
      %v1866 = vpop.f32.mrb[0].mxu0
      %v1867 = vadd.f32 0.0, %v1866
      %v1868 = vpop.f32.mrb[0].mxu0
      %1869 = vmatprep.mubr.bf16.mxu0 0
      %1870 = vmatmul.mubr.bf16.gmra.mrb[0].mxu0 %v1064
      %v1871 = vpop.f32.mrb[0].mxu0
      %v1872 = vadd.f32 0.0, %v1871
      %v1873 = vpop.f32.mrb[0].mxu0
      %v1874 = vpop.f32.mrb[0].mxu0
      %v1875 = vadd.f32 0.0, %v1874
      %v1876 = vpop.f32.mrb[0].mxu0
      %1877 = vdwg.mxu0
      %v1878 = vsel %vm1765, -1e+30, %v1816
      %v1879 = vsel %vm1766, -1e+30, %v1819
      %v1880 = vsel %vm1767, -1e+30, %v1824
      %v1881 = vsel %vm1768, -1e+30, %v1827
      %v1882 = vsel %vm1769, -1e+30, %v1832
      %v1883 = vsel %vm1770, -1e+30, %v1835
      %v1884 = vsel %vm1771, -1e+30, %v1840
      %v1885 = vsel %vm1772, -1e+30, %v1843
      %v1886 = vsel %vm1773, -1e+30, %v1848
      %v1887 = vsel %vm1774, -1e+30, %v1851
      %v1888 = vsel %vm1775, -1e+30, %v1856
      %v1889 = vsel %vm1776, -1e+30, %v1859
      %v1890 = vsel %vm1777, -1e+30, %v1864
      %v1891 = vsel %vm1778, -1e+30, %v1867
      %v1892 = vsel %vm1779, -1e+30, %v1872
      %v1893 = vsel %vm1780, -1e+30, %v1875
      %1894 = vmax.xlane.f32.xlu0 %v1878
      %v1895 = vpop.xlane.xlu0 %1894
      %1896 = vmax.xlane.f32.xlu0 %v1879
      %v1897 = vpop.xlane.xlu0 %1896
      %1898 = vmax.xlane.f32.xlu0 %v1880
      %v1899 = vpop.xlane.xlu0 %1898
      %1900 = vmax.xlane.f32.xlu0 %v1881
      %v1901 = vpop.xlane.xlu0 %1900
      %1902 = vmax.xlane.f32.xlu0 %v1882
      %v1903 = vpop.xlane.xlu0 %1902
      %1904 = vmax.xlane.f32.xlu0 %v1883
      %v1905 = vpop.xlane.xlu0 %1904
      %1906 = vmax.xlane.f32.xlu0 %v1884
      %v1907 = vpop.xlane.xlu0 %1906
      %1908 = vmax.xlane.f32.xlu0 %v1885
      %v1909 = vpop.xlane.xlu0 %1908
      %1910 = vmax.xlane.f32.xlu0 %v1886
      %v1911 = vpop.xlane.xlu0 %1910
      %1912 = vmax.xlane.f32.xlu0 %v1887
      %v1913 = vpop.xlane.xlu0 %1912
      %1914 = vmax.xlane.f32.xlu0 %v1888
      %v1915 = vpop.xlane.xlu0 %1914
      %1916 = vmax.xlane.f32.xlu0 %v1889
      %v1917 = vpop.xlane.xlu0 %1916
      %1918 = vmax.xlane.f32.xlu0 %v1890
      %v1919 = vpop.xlane.xlu0 %1918
      %1920 = vmax.xlane.f32.xlu0 %v1891
      %v1921 = vpop.xlane.xlu0 %1920
      %1922 = vmax.xlane.f32.xlu0 %v1892
      %v1923 = vpop.xlane.xlu0 %1922
      %1924 = vmax.xlane.f32.xlu0 %v1893
      %v1925 = vpop.xlane.xlu0 %1924
      %v1926 = vsub.f32 %v1878, %v1895
      %v1927 = vsub.f32 %v1879, %v1897
      %v1928 = vsub.f32 %v1880, %v1899
      %v1929 = vsub.f32 %v1881, %v1901
      %v1930 = vsub.f32 %v1882, %v1903
      %v1931 = vsub.f32 %v1883, %v1905
      %v1932 = vsub.f32 %v1884, %v1907
      %v1933 = vsub.f32 %v1885, %v1909
      %v1934 = vsub.f32 %v1886, %v1911
      %v1935 = vsub.f32 %v1887, %v1913
      %v1936 = vsub.f32 %v1888, %v1915
      %v1937 = vsub.f32 %v1889, %v1917
      %v1938 = vsub.f32 %v1890, %v1919
      %v1939 = vsub.f32 %v1891, %v1921
      %v1940 = vsub.f32 %v1892, %v1923
      %v1941 = vsub.f32 %v1893, %v1925
      %v1942 = vmul.f32 %v1926, 1.442695
      %v1943 = vpow.pop %v1942
      %v1944 = vmul.f32 %v1927, 1.442695
      %v1945 = vpow.pop %v1944
      %v1946 = vmul.f32 %v1928, 1.442695
      %v1947 = vpow.pop %v1946
      %v1948 = vmul.f32 %v1929, 1.442695
      %v1949 = vpow.pop %v1948
      %v1950 = vmul.f32 %v1930, 1.442695
      %v1951 = vpow.pop %v1950
      %v1952 = vmul.f32 %v1931, 1.442695
      %v1953 = vpow.pop %v1952
      %v1954 = vmul.f32 %v1932, 1.442695
      %v1955 = vpow.pop %v1954
      %v1956 = vmul.f32 %v1933, 1.442695
      %v1957 = vpow.pop %v1956
      %v1958 = vmul.f32 %v1934, 1.442695
      %v1959 = vpow.pop %v1958
      %v1960 = vmul.f32 %v1935, 1.442695
      %v1961 = vpow.pop %v1960
      %v1962 = vmul.f32 %v1936, 1.442695
      %v1963 = vpow.pop %v1962
      %v1964 = vmul.f32 %v1937, 1.442695
      %v1965 = vpow.pop %v1964
      %v1966 = vmul.f32 %v1938, 1.442695
      %v1967 = vpow.pop %v1966
      %v1968 = vmul.f32 %v1939, 1.442695
      %v1969 = vpow.pop %v1968
      %v1970 = vmul.f32 %v1940, 1.442695
      %v1971 = vpow.pop %v1970
      %v1972 = vmul.f32 %v1941, 1.442695
      %v1973 = vpow.pop %v1972
      %1974 = vadd.xlane.f32.xlu0 %v1943
      %v1975 = vpop.xlane.xlu0 %1974
      %1976 = vadd.xlane.f32.xlu0 %v1945
      %v1977 = vpop.xlane.xlu0 %1976
      %1978 = vadd.xlane.f32.xlu0 %v1947
      %v1979 = vpop.xlane.xlu0 %1978
      %1980 = vadd.xlane.f32.xlu0 %v1949
      %v1981 = vpop.xlane.xlu0 %1980
      %1982 = vadd.xlane.f32.xlu0 %v1951
      %v1983 = vpop.xlane.xlu0 %1982
      %1984 = vadd.xlane.f32.xlu0 %v1953
      %v1985 = vpop.xlane.xlu0 %1984
      %1986 = vadd.xlane.f32.xlu0 %v1955
      %v1987 = vpop.xlane.xlu0 %1986
      %1988 = vadd.xlane.f32.xlu0 %v1957
      %v1989 = vpop.xlane.xlu0 %1988
      %1990 = vadd.xlane.f32.xlu0 %v1959
      %v1991 = vpop.xlane.xlu0 %1990
      %1992 = vadd.xlane.f32.xlu0 %v1961
      %v1993 = vpop.xlane.xlu0 %1992
      %1994 = vadd.xlane.f32.xlu0 %v1963
      %v1995 = vpop.xlane.xlu0 %1994
      %1996 = vadd.xlane.f32.xlu0 %v1965
      %v1997 = vpop.xlane.xlu0 %1996
      %1998 = vadd.xlane.f32.xlu0 %v1967
      %v1999 = vpop.xlane.xlu0 %1998
      %2000 = vadd.xlane.f32.xlu0 %v1969
      %v2001 = vpop.xlane.xlu0 %2000
      %2002 = vadd.xlane.f32.xlu0 %v1971
      %v2003 = vpop.xlane.xlu0 %2002
      %2004 = vadd.xlane.f32.xlu0 %v1973
      %v2005 = vpop.xlane.xlu0 %2004
      %v2006 = vrcp.pop %v1975
      %v2007 = vrcp.pop %v1977
      %v2008 = vrcp.pop %v1979
      %v2009 = vrcp.pop %v1981
      %v2010 = vrcp.pop %v1983
      %v2011 = vrcp.pop %v1985
      %v2012 = vrcp.pop %v1987
      %v2013 = vrcp.pop %v1989
      %v2014 = vrcp.pop %v1991
      %v2015 = vrcp.pop %v1993
      %v2016 = vrcp.pop %v1995
      %v2017 = vrcp.pop %v1997
      %v2018 = vrcp.pop %v1999
      %v2019 = vrcp.pop %v2001
      %v2020 = vrcp.pop %v2003
      %v2021 = vrcp.pop %v2005
      %v2022 = vmul.f32 %v1943, %v2006
      %v2023 = vmul.f32 %v1945, %v2007
      %v2024 = vmul.f32 %v1947, %v2008
      %v2025 = vmul.f32 %v1949, %v2009
      %v2026 = vmul.f32 %v1951, %v2010
      %v2027 = vmul.f32 %v1953, %v2011
      %v2028 = vmul.f32 %v1955, %v2012
      %v2029 = vmul.f32 %v1957, %v2013
      %v2030 = vmul.f32 %v1959, %v2014
      %v2031 = vmul.f32 %v1961, %v2015
      %v2032 = vmul.f32 %v1963, %v2016
      %v2033 = vmul.f32 %v1965, %v2017
      %v2034 = vmul.f32 %v1967, %v2018
      %v2035 = vmul.f32 %v1969, %v2019
      %v2036 = vmul.f32 %v1971, %v2020
      %v2037 = vmul.f32 %v1973, %v2021
      %v2038 = vpack.c.bf16 %v2023, %v2022
      %v2039 = vpack.c.bf16 %v2025, %v2024
      %v2040 = vpack.c.bf16 %v2027, %v2026
      %v2041 = vpack.c.bf16 %v2029, %v2028
      %v2042 = vpack.c.bf16 %v2031, %v2030
      %v2043 = vpack.c.bf16 %v2033, %v2032
      %v2044 = vpack.c.bf16 %v2035, %v2034
      %v2045 = vpack.c.bf16 %v2037, %v2036
      %2046 = vmatprep.subr.bf16.mxu0 0
      %2047 = vmatpush1.bf16.msra.mxu0 %v1692
      %2048 = vmatprep.subr.bf16.mxu0 0
      %2049 = vmatpush1.bf16.msra.mxu0 %v1696
      %2050 = vmatprep.subr.bf16.mxu0 0
      %2051 = vmatpush1.bf16.msra.mxu0 %v1700
      %2052 = vmatprep.subr.bf16.mxu0 0
      %2053 = vmatpush1.bf16.msra.mxu0 %v1704
      %2054 = vmatprep.subr.bf16.mxu0 0
      %2055 = vmatpush1.bf16.msra.mxu0 %v1708
      %2056 = vmatprep.subr.bf16.mxu0 0
      %2057 = vmatpush1.bf16.msra.mxu0 %v1712
      %2058 = vmatprep.subr.bf16.mxu0 0
      %2059 = vmatpush1.bf16.msra.mxu0 %v1716
      %2060 = vmatprep.subr.bf16.mxu0 0
      %2061 = vmatpush1.bf16.msra.mxu0 %v1720
      %2062 = vmatprep.subr.bf16.mxu0 0
      %2063 = vmatpush1.bf16.msra.mxu0 0
      %2064 = vmatprep.subr.bf16.mxu0 0
      %2065 = vmatpush1.bf16.msra.mxu0 0
      %2066 = vmatprep.subr.bf16.mxu0 0
      %2067 = vmatpush1.bf16.msra.mxu0 0
      %2068 = vmatprep.subr.bf16.mxu0 0
      %2069 = vmatpush1.bf16.msra.mxu0 0
      %2070 = vmatprep.subr.bf16.mxu0 0
      %2071 = vmatpush1.bf16.msra.mxu0 0
      %2072 = vmatprep.subr.bf16.mxu0 0
      %2073 = vmatpush1.bf16.msra.mxu0 0
      %2074 = vmatprep.subr.bf16.mxu0 0
      %2075 = vmatpush1.bf16.msra.mxu0 0
      %2076 = vmatprep.subr.bf16.mxu0 0
      %2077 = vmatpush1.bf16.msra.mxu0 0
      %2078 = vmatprep.mubr.bf16.mxu0 0
      %2079 = vmatmul.mubr.bf16.gmra.mrb[0].mxu0 %v2038
      %v2080 = vpop.f32.mrb[0].mxu0
      %v2081 = vadd.f32 0.0, %v2080
      %v2082 = vpop.f32.mrb[0].mxu0
      %v2083 = vpop.f32.mrb[0].mxu0
      %v2084 = vadd.f32 0.0, %v2083
      %v2085 = vpop.f32.mrb[0].mxu0
      %2086 = vmatprep.mubr.bf16.mxu0 0
      %2087 = vmatmul.mubr.bf16.gmra.mrb[0].mxu0 %v2039
      %v2088 = vpop.f32.mrb[0].mxu0
      %v2089 = vadd.f32 0.0, %v2088
      %v2090 = vpop.f32.mrb[0].mxu0
      %v2091 = vpop.f32.mrb[0].mxu0
      %v2092 = vadd.f32 0.0, %v2091
      %v2093 = vpop.f32.mrb[0].mxu0
      %2094 = vmatprep.mubr.bf16.mxu0 0
      %2095 = vmatmul.mubr.bf16.gmra.mrb[0].mxu0 %v2040
      %v2096 = vpop.f32.mrb[0].mxu0
      %v2097 = vadd.f32 0.0, %v2096
      %v2098 = vpop.f32.mrb[0].mxu0
      %v2099 = vpop.f32.mrb[0].mxu0
      %v2100 = vadd.f32 0.0, %v2099
      %v2101 = vpop.f32.mrb[0].mxu0
      %2102 = vmatprep.mubr.bf16.mxu0 0
      %2103 = vmatmul.mubr.bf16.gmra.mrb[0].mxu0 %v2041
      %v2104 = vpop.f32.mrb[0].mxu0
      %v2105 = vadd.f32 0.0, %v2104
      %v2106 = vpop.f32.mrb[0].mxu0
      %v2107 = vpop.f32.mrb[0].mxu0
      %v2108 = vadd.f32 0.0, %v2107
      %v2109 = vpop.f32.mrb[0].mxu0
      %2110 = vmatprep.mubr.bf16.mxu0 0
      %2111 = vmatmul.mubr.bf16.gmra.mrb[0].mxu0 %v2042
      %v2112 = vpop.f32.mrb[0].mxu0
      %v2113 = vadd.f32 0.0, %v2112
      %v2114 = vpop.f32.mrb[0].mxu0
      %v2115 = vpop.f32.mrb[0].mxu0
      %v2116 = vadd.f32 0.0, %v2115
      %v2117 = vpop.f32.mrb[0].mxu0
      %2118 = vmatprep.mubr.bf16.mxu0 0
      %2119 = vmatmul.mubr.bf16.gmra.mrb[0].mxu0 %v2043
      %v2120 = vpop.f32.mrb[0].mxu0
      %v2121 = vadd.f32 0.0, %v2120
      %v2122 = vpop.f32.mrb[0].mxu0
      %v2123 = vpop.f32.mrb[0].mxu0
      %v2124 = vadd.f32 0.0, %v2123
      %v2125 = vpop.f32.mrb[0].mxu0
      %2126 = vmatprep.mubr.bf16.mxu0 0
      %2127 = vmatmul.mubr.bf16.gmra.mrb[0].mxu0 %v2044
      %v2128 = vpop.f32.mrb[0].mxu0
      %v2129 = vadd.f32 0.0, %v2128
      %v2130 = vpop.f32.mrb[0].mxu0
      %v2131 = vpop.f32.mrb[0].mxu0
      %v2132 = vadd.f32 0.0, %v2131
      %v2133 = vpop.f32.mrb[0].mxu0
      %2134 = vmatprep.mubr.bf16.mxu0 0
      %2135 = vmatmul.mubr.bf16.gmra.mrb[0].mxu0 %v2045
      %v2136 = vpop.f32.mrb[0].mxu0
      %v2137 = vadd.f32 0.0, %v2136
      %v2138 = vpop.f32.mrb[0].mxu0
      %v2139 = vpop.f32.mrb[0].mxu0
      %v2140 = vadd.f32 0.0, %v2139
      %v2141 = vpop.f32.mrb[0].mxu0
      %2142 = vdwg.mxu0
      %v2143 = vpack.c.bf16 %v2084, %v2081
      %v2144 = vpack.c.bf16 %v2092, %v2089
      %v2145 = vpack.c.bf16 %v2100, %v2097
      %v2146 = vpack.c.bf16 %v2108, %v2105
      %v2147 = vpack.c.bf16 %v2116, %v2113
      %v2148 = vpack.c.bf16 %v2124, %v2121
      %v2149 = vpack.c.bf16 %v2132, %v2129
      %v2150 = vpack.c.bf16 %v2140, %v2137
      %2151 = vmatprep.subr.bf16.mxu0 0
      %2152 = vmatpush1.bf16.xpose.msra.mxu0 %v1365
      %2153 = vmatprep.subr.bf16.mxu0 0
      %2154 = vmatpush1.bf16.xpose.msra.mxu0 %v1369
      %2155 = vmatprep.subr.bf16.mxu0 0
      %2156 = vmatpush1.bf16.xpose.msra.mxu0 %v1373
      %2157 = vmatprep.subr.bf16.mxu0 0
      %2158 = vmatpush1.bf16.xpose.msra.mxu0 %v1377
      %2159 = vmatprep.subr.bf16.mxu0 0
      %2160 = vmatpush1.bf16.xpose.msra.mxu0 %v1381
      %2161 = vmatprep.subr.bf16.mxu0 0
      %2162 = vmatpush1.bf16.xpose.msra.mxu0 %v1385
      %2163 = vmatprep.subr.bf16.mxu0 0
      %2164 = vmatpush1.bf16.xpose.msra.mxu0 %v1389
      %2165 = vmatprep.subr.bf16.mxu0 0
      %2166 = vmatpush1.bf16.xpose.msra.mxu0 %v1393
      %2167 = vmatprep.subr.bf16.mxu0 0
      %2168 = vmatpush1.bf16.xpose.msra.mxu0 0
      %2169 = vmatprep.subr.bf16.mxu0 0
      %2170 = vmatpush1.bf16.xpose.msra.mxu0 0
      %2171 = vmatprep.subr.bf16.mxu0 0
      %2172 = vmatpush1.bf16.xpose.msra.mxu0 0
      %2173 = vmatprep.subr.bf16.mxu0 0
      %2174 = vmatpush1.bf16.xpose.msra.mxu0 0
      %2175 = vmatprep.subr.bf16.mxu0 0
      %2176 = vmatpush1.bf16.xpose.msra.mxu0 0
      %2177 = vmatprep.subr.bf16.mxu0 0
      %2178 = vmatpush1.bf16.xpose.msra.mxu0 0
      %2179 = vmatprep.subr.bf16.mxu0 0
      %2180 = vmatpush1.bf16.xpose.msra.mxu0 0
      %2181 = vmatprep.subr.bf16.mxu0 0
      %2182 = vmatpush1.bf16.xpose.msra.mxu0 0
      %2183 = vmatprep.mubr.bf16.mxu0 0
      %2184 = vmatmul.mubr.bf16.gmra.mrb[0].mxu0 %v1037
      %v2185 = vpop.f32.mrb[0].mxu0
      %v2186 = vadd.f32 0.0, %v2185
      %v2187 = vpop.f32.mrb[0].mxu0
      %v2188 = vpop.f32.mrb[0].mxu0
      %v2189 = vadd.f32 0.0, %v2188
      %v2190 = vpop.f32.mrb[0].mxu0
      %2191 = vmatprep.mubr.bf16.mxu0 0
      %2192 = vmatmul.mubr.bf16.gmra.mrb[0].mxu0 %v1041
      %v2193 = vpop.f32.mrb[0].mxu0
      %v2194 = vadd.f32 0.0, %v2193
      %v2195 = vpop.f32.mrb[0].mxu0
      %v2196 = vpop.f32.mrb[0].mxu0
      %v2197 = vadd.f32 0.0, %v2196
      %v2198 = vpop.f32.mrb[0].mxu0
      %2199 = vmatprep.mubr.bf16.mxu0 0
      %2200 = vmatmul.mubr.bf16.gmra.mrb[0].mxu0 %v1045
      %v2201 = vpop.f32.mrb[0].mxu0
      %v2202 = vadd.f32 0.0, %v2201
      %v2203 = vpop.f32.mrb[0].mxu0
      %v2204 = vpop.f32.mrb[0].mxu0
      %v2205 = vadd.f32 0.0, %v2204
      %v2206 = vpop.f32.mrb[0].mxu0
      %2207 = vmatprep.mubr.bf16.mxu0 0
      %2208 = vmatmul.mubr.bf16.gmra.mrb[0].mxu0 %v1049
      %v2209 = vpop.f32.mrb[0].mxu0
      %v2210 = vadd.f32 0.0, %v2209
      %v2211 = vpop.f32.mrb[0].mxu0
      %v2212 = vpop.f32.mrb[0].mxu0
      %v2213 = vadd.f32 0.0, %v2212
      %v2214 = vpop.f32.mrb[0].mxu0
      %2215 = vmatprep.mubr.bf16.mxu0 0
      %2216 = vmatmul.mubr.bf16.gmra.mrb[0].mxu0 %v1053
      %v2217 = vpop.f32.mrb[0].mxu0
      %v2218 = vadd.f32 0.0, %v2217
      %v2219 = vpop.f32.mrb[0].mxu0
      %v2220 = vpop.f32.mrb[0].mxu0
      %v2221 = vadd.f32 0.0, %v2220
      %v2222 = vpop.f32.mrb[0].mxu0
      %2223 = vmatprep.mubr.bf16.mxu0 0
      %2224 = vmatmul.mubr.bf16.gmra.mrb[0].mxu0 %v1057
      %v2225 = vpop.f32.mrb[0].mxu0
      %v2226 = vadd.f32 0.0, %v2225
      %v2227 = vpop.f32.mrb[0].mxu0
      %v2228 = vpop.f32.mrb[0].mxu0
      %v2229 = vadd.f32 0.0, %v2228
      %v2230 = vpop.f32.mrb[0].mxu0
      %2231 = vmatprep.mubr.bf16.mxu0 0
      %2232 = vmatmul.mubr.bf16.gmra.mrb[0].mxu0 %v1061
      %v2233 = vpop.f32.mrb[0].mxu0
      %v2234 = vadd.f32 0.0, %v2233
      %v2235 = vpop.f32.mrb[0].mxu0
      %v2236 = vpop.f32.mrb[0].mxu0
      %v2237 = vadd.f32 0.0, %v2236
      %v2238 = vpop.f32.mrb[0].mxu0
      %2239 = vmatprep.mubr.bf16.mxu0 0
      %2240 = vmatmul.mubr.bf16.gmra.mrb[0].mxu0 %v1065
      %v2241 = vpop.f32.mrb[0].mxu0
      %v2242 = vadd.f32 0.0, %v2241
      %v2243 = vpop.f32.mrb[0].mxu0
      %v2244 = vpop.f32.mrb[0].mxu0
      %v2245 = vadd.f32 0.0, %v2244
      %v2246 = vpop.f32.mrb[0].mxu0
      %2247 = vdwg.mxu0
      %v2248 = vsel %vm1765, -1e+30, %v2186
      %v2249 = vsel %vm1766, -1e+30, %v2189
      %v2250 = vsel %vm1767, -1e+30, %v2194
      %v2251 = vsel %vm1768, -1e+30, %v2197
      %v2252 = vsel %vm1769, -1e+30, %v2202
      %v2253 = vsel %vm1770, -1e+30, %v2205
      %v2254 = vsel %vm1771, -1e+30, %v2210
      %v2255 = vsel %vm1772, -1e+30, %v2213
      %v2256 = vsel %vm1773, -1e+30, %v2218
      %v2257 = vsel %vm1774, -1e+30, %v2221
      %v2258 = vsel %vm1775, -1e+30, %v2226
      %v2259 = vsel %vm1776, -1e+30, %v2229
      %v2260 = vsel %vm1777, -1e+30, %v2234
      %v2261 = vsel %vm1778, -1e+30, %v2237
      %v2262 = vsel %vm1779, -1e+30, %v2242
      %v2263 = vsel %vm1780, -1e+30, %v2245
      %2264 = vmax.xlane.f32.xlu0 %v2248
      %v2265 = vpop.xlane.xlu0 %2264
      %2266 = vmax.xlane.f32.xlu0 %v2249
      %v2267 = vpop.xlane.xlu0 %2266
      %2268 = vmax.xlane.f32.xlu0 %v2250
      %v2269 = vpop.xlane.xlu0 %2268
      %2270 = vmax.xlane.f32.xlu0 %v2251
      %v2271 = vpop.xlane.xlu0 %2270
      %2272 = vmax.xlane.f32.xlu0 %v2252
      %v2273 = vpop.xlane.xlu0 %2272
      %2274 = vmax.xlane.f32.xlu0 %v2253
      %v2275 = vpop.xlane.xlu0 %2274
      %2276 = vmax.xlane.f32.xlu0 %v2254
      %v2277 = vpop.xlane.xlu0 %2276
      %2278 = vmax.xlane.f32.xlu0 %v2255
      %v2279 = vpop.xlane.xlu0 %2278
      %2280 = vmax.xlane.f32.xlu0 %v2256
      %v2281 = vpop.xlane.xlu0 %2280
      %2282 = vmax.xlane.f32.xlu0 %v2257
      %v2283 = vpop.xlane.xlu0 %2282
      %2284 = vmax.xlane.f32.xlu0 %v2258
      %v2285 = vpop.xlane.xlu0 %2284
      %2286 = vmax.xlane.f32.xlu0 %v2259
      %v2287 = vpop.xlane.xlu0 %2286
      %2288 = vmax.xlane.f32.xlu0 %v2260
      %v2289 = vpop.xlane.xlu0 %2288
      %2290 = vmax.xlane.f32.xlu0 %v2261
      %v2291 = vpop.xlane.xlu0 %2290
      %2292 = vmax.xlane.f32.xlu0 %v2262
      %v2293 = vpop.xlane.xlu0 %2292
      %2294 = vmax.xlane.f32.xlu0 %v2263
      %v2295 = vpop.xlane.xlu0 %2294
      %v2296 = vsub.f32 %v2248, %v2265
      %v2297 = vsub.f32 %v2249, %v2267
      %v2298 = vsub.f32 %v2250, %v2269
      %v2299 = vsub.f32 %v2251, %v2271
      %v2300 = vsub.f32 %v2252, %v2273
      %v2301 = vsub.f32 %v2253, %v2275
      %v2302 = vsub.f32 %v2254, %v2277
      %v2303 = vsub.f32 %v2255, %v2279
      %v2304 = vsub.f32 %v2256, %v2281
      %v2305 = vsub.f32 %v2257, %v2283
      %v2306 = vsub.f32 %v2258, %v2285
      %v2307 = vsub.f32 %v2259, %v2287
      %v2308 = vsub.f32 %v2260, %v2289
      %v2309 = vsub.f32 %v2261, %v2291
      %v2310 = vsub.f32 %v2262, %v2293
      %v2311 = vsub.f32 %v2263, %v2295
      %v2312 = vmul.f32 %v2296, 1.442695
      %v2313 = vpow.pop %v2312
      %v2314 = vmul.f32 %v2297, 1.442695
      %v2315 = vpow.pop %v2314
      %v2316 = vmul.f32 %v2298, 1.442695
      %v2317 = vpow.pop %v2316
      %v2318 = vmul.f32 %v2299, 1.442695
      %v2319 = vpow.pop %v2318
      %v2320 = vmul.f32 %v2300, 1.442695
      %v2321 = vpow.pop %v2320
      %v2322 = vmul.f32 %v2301, 1.442695
      %v2323 = vpow.pop %v2322
      %v2324 = vmul.f32 %v2302, 1.442695
      %v2325 = vpow.pop %v2324
      %v2326 = vmul.f32 %v2303, 1.442695
      %v2327 = vpow.pop %v2326
      %v2328 = vmul.f32 %v2304, 1.442695
      %v2329 = vpow.pop %v2328
      %v2330 = vmul.f32 %v2305, 1.442695
      %v2331 = vpow.pop %v2330
      %v2332 = vmul.f32 %v2306, 1.442695
      %v2333 = vpow.pop %v2332
      %v2334 = vmul.f32 %v2307, 1.442695
      %v2335 = vpow.pop %v2334
      %v2336 = vmul.f32 %v2308, 1.442695
      %v2337 = vpow.pop %v2336
      %v2338 = vmul.f32 %v2309, 1.442695
      %v2339 = vpow.pop %v2338
      %v2340 = vmul.f32 %v2310, 1.442695
      %v2341 = vpow.pop %v2340
      %v2342 = vmul.f32 %v2311, 1.442695
      %v2343 = vpow.pop %v2342
      %2344 = vadd.xlane.f32.xlu0 %v2313
      %v2345 = vpop.xlane.xlu0 %2344
      %2346 = vadd.xlane.f32.xlu0 %v2315
      %v2347 = vpop.xlane.xlu0 %2346
      %2348 = vadd.xlane.f32.xlu0 %v2317
      %v2349 = vpop.xlane.xlu0 %2348
      %2350 = vadd.xlane.f32.xlu0 %v2319
      %v2351 = vpop.xlane.xlu0 %2350
      %2352 = vadd.xlane.f32.xlu0 %v2321
      %v2353 = vpop.xlane.xlu0 %2352
      %2354 = vadd.xlane.f32.xlu0 %v2323
      %v2355 = vpop.xlane.xlu0 %2354
      %2356 = vadd.xlane.f32.xlu0 %v2325
      %v2357 = vpop.xlane.xlu0 %2356
      %2358 = vadd.xlane.f32.xlu0 %v2327
      %v2359 = vpop.xlane.xlu0 %2358
      %2360 = vadd.xlane.f32.xlu0 %v2329
      %v2361 = vpop.xlane.xlu0 %2360
      %2362 = vadd.xlane.f32.xlu0 %v2331
      %v2363 = vpop.xlane.xlu0 %2362
      %2364 = vadd.xlane.f32.xlu0 %v2333
      %v2365 = vpop.xlane.xlu0 %2364
      %2366 = vadd.xlane.f32.xlu0 %v2335
      %v2367 = vpop.xlane.xlu0 %2366
      %2368 = vadd.xlane.f32.xlu0 %v2337
      %v2369 = vpop.xlane.xlu0 %2368
      %2370 = vadd.xlane.f32.xlu0 %v2339
      %v2371 = vpop.xlane.xlu0 %2370
      %2372 = vadd.xlane.f32.xlu0 %v2341
      %v2373 = vpop.xlane.xlu0 %2372
      %2374 = vadd.xlane.f32.xlu0 %v2343
      %v2375 = vpop.xlane.xlu0 %2374
      %v2376 = vrcp.pop %v2345
      %v2377 = vrcp.pop %v2347
      %v2378 = vrcp.pop %v2349
      %v2379 = vrcp.pop %v2351
      %v2380 = vrcp.pop %v2353
      %v2381 = vrcp.pop %v2355
      %v2382 = vrcp.pop %v2357
      %v2383 = vrcp.pop %v2359
      %v2384 = vrcp.pop %v2361
      %v2385 = vrcp.pop %v2363
      %v2386 = vrcp.pop %v2365
      %v2387 = vrcp.pop %v2367
      %v2388 = vrcp.pop %v2369
      %v2389 = vrcp.pop %v2371
      %v2390 = vrcp.pop %v2373
      %v2391 = vrcp.pop %v2375
      %v2392 = vmul.f32 %v2313, %v2376
      %v2393 = vmul.f32 %v2315, %v2377
      %v2394 = vmul.f32 %v2317, %v2378
      %v2395 = vmul.f32 %v2319, %v2379
      %v2396 = vmul.f32 %v2321, %v2380
      %v2397 = vmul.f32 %v2323, %v2381
      %v2398 = vmul.f32 %v2325, %v2382
      %v2399 = vmul.f32 %v2327, %v2383
      %v2400 = vmul.f32 %v2329, %v2384
      %v2401 = vmul.f32 %v2331, %v2385
      %v2402 = vmul.f32 %v2333, %v2386
      %v2403 = vmul.f32 %v2335, %v2387
      %v2404 = vmul.f32 %v2337, %v2388
      %v2405 = vmul.f32 %v2339, %v2389
      %v2406 = vmul.f32 %v2341, %v2390
      %v2407 = vmul.f32 %v2343, %v2391
      %v2408 = vpack.c.bf16 %v2393, %v2392
      %v2409 = vpack.c.bf16 %v2395, %v2394
      %v2410 = vpack.c.bf16 %v2397, %v2396
      %v2411 = vpack.c.bf16 %v2399, %v2398
      %v2412 = vpack.c.bf16 %v2401, %v2400
      %v2413 = vpack.c.bf16 %v2403, %v2402
      %v2414 = vpack.c.bf16 %v2405, %v2404
      %v2415 = vpack.c.bf16 %v2407, %v2406
      %2416 = vmatprep.subr.bf16.mxu0 0
      %2417 = vmatpush1.bf16.msra.mxu0 %v1693
      %2418 = vmatprep.subr.bf16.mxu0 0
      %2419 = vmatpush1.bf16.msra.mxu0 %v1697
      %2420 = vmatprep.subr.bf16.mxu0 0
      %2421 = vmatpush1.bf16.msra.mxu0 %v1701
      %2422 = vmatprep.subr.bf16.mxu0 0
      %2423 = vmatpush1.bf16.msra.mxu0 %v1705
      %2424 = vmatprep.subr.bf16.mxu0 0
      %2425 = vmatpush1.bf16.msra.mxu0 %v1709
      %2426 = vmatprep.subr.bf16.mxu0 0
      %2427 = vmatpush1.bf16.msra.mxu0 %v1713
      %2428 = vmatprep.subr.bf16.mxu0 0
      %2429 = vmatpush1.bf16.msra.mxu0 %v1717
      %2430 = vmatprep.subr.bf16.mxu0 0
      %2431 = vmatpush1.bf16.msra.mxu0 %v1721
      %2432 = vmatprep.subr.bf16.mxu0 0
      %2433 = vmatpush1.bf16.msra.mxu0 0
      %2434 = vmatprep.subr.bf16.mxu0 0
      %2435 = vmatpush1.bf16.msra.mxu0 0
      %2436 = vmatprep.subr.bf16.mxu0 0
      %2437 = vmatpush1.bf16.msra.mxu0 0
      %2438 = vmatprep.subr.bf16.mxu0 0
      %2439 = vmatpush1.bf16.msra.mxu0 0
      %2440 = vmatprep.subr.bf16.mxu0 0
      %2441 = vmatpush1.bf16.msra.mxu0 0
      %2442 = vmatprep.subr.bf16.mxu0 0
      %2443 = vmatpush1.bf16.msra.mxu0 0
      %2444 = vmatprep.subr.bf16.mxu0 0
      %2445 = vmatpush1.bf16.msra.mxu0 0
      %2446 = vmatprep.subr.bf16.mxu0 0
      %2447 = vmatpush1.bf16.msra.mxu0 0
      %2448 = vmatprep.mubr.bf16.mxu0 0
      %2449 = vmatmul.mubr.bf16.gmra.mrb[0].mxu0 %v2408
      %v2450 = vpop.f32.mrb[0].mxu0
      %v2451 = vadd.f32 0.0, %v2450
      %v2452 = vpop.f32.mrb[0].mxu0
      %v2453 = vpop.f32.mrb[0].mxu0
      %v2454 = vadd.f32 0.0, %v2453
      %v2455 = vpop.f32.mrb[0].mxu0
      %2456 = vmatprep.mubr.bf16.mxu0 0
      %2457 = vmatmul.mubr.bf16.gmra.mrb[0].mxu0 %v2409
      %v2458 = vpop.f32.mrb[0].mxu0
      %v2459 = vadd.f32 0.0, %v2458
      %v2460 = vpop.f32.mrb[0].mxu0
      %v2461 = vpop.f32.mrb[0].mxu0
      %v2462 = vadd.f32 0.0, %v2461
      %v2463 = vpop.f32.mrb[0].mxu0
      %2464 = vmatprep.mubr.bf16.mxu0 0
      %2465 = vmatmul.mubr.bf16.gmra.mrb[0].mxu0 %v2410
      %v2466 = vpop.f32.mrb[0].mxu0
      %v2467 = vadd.f32 0.0, %v2466
      %v2468 = vpop.f32.mrb[0].mxu0
      %v2469 = vpop.f32.mrb[0].mxu0
      %v2470 = vadd.f32 0.0, %v2469
      %v2471 = vpop.f32.mrb[0].mxu0
      %2472 = vmatprep.mubr.bf16.mxu0 0
      %2473 = vmatmul.mubr.bf16.gmra.mrb[0].mxu0 %v2411
      %v2474 = vpop.f32.mrb[0].mxu0
      %v2475 = vadd.f32 0.0, %v2474
      %v2476 = vpop.f32.mrb[0].mxu0
      %v2477 = vpop.f32.mrb[0].mxu0
      %v2478 = vadd.f32 0.0, %v2477
      %v2479 = vpop.f32.mrb[0].mxu0
      %2480 = vmatprep.mubr.bf16.mxu0 0
      %2481 = vmatmul.mubr.bf16.gmra.mrb[0].mxu0 %v2412
      %v2482 = vpop.f32.mrb[0].mxu0
      %v2483 = vadd.f32 0.0, %v2482
      %v2484 = vpop.f32.mrb[0].mxu0
      %v2485 = vpop.f32.mrb[0].mxu0
      %v2486 = vadd.f32 0.0, %v2485
      %v2487 = vpop.f32.mrb[0].mxu0
      %2488 = vmatprep.mubr.bf16.mxu0 0
      %2489 = vmatmul.mubr.bf16.gmra.mrb[0].mxu0 %v2413
      %v2490 = vpop.f32.mrb[0].mxu0
      %v2491 = vadd.f32 0.0, %v2490
      %v2492 = vpop.f32.mrb[0].mxu0
      %v2493 = vpop.f32.mrb[0].mxu0
      %v2494 = vadd.f32 0.0, %v2493
      %v2495 = vpop.f32.mrb[0].mxu0
      %2496 = vmatprep.mubr.bf16.mxu0 0
      %2497 = vmatmul.mubr.bf16.gmra.mrb[0].mxu0 %v2414
      %v2498 = vpop.f32.mrb[0].mxu0
      %v2499 = vadd.f32 0.0, %v2498
      %v2500 = vpop.f32.mrb[0].mxu0
      %v2501 = vpop.f32.mrb[0].mxu0
      %v2502 = vadd.f32 0.0, %v2501
      %v2503 = vpop.f32.mrb[0].mxu0
      %2504 = vmatprep.mubr.bf16.mxu0 0
      %2505 = vmatmul.mubr.bf16.gmra.mrb[0].mxu0 %v2415
      %v2506 = vpop.f32.mrb[0].mxu0
      %v2507 = vadd.f32 0.0, %v2506
      %v2508 = vpop.f32.mrb[0].mxu0
      %v2509 = vpop.f32.mrb[0].mxu0
      %v2510 = vadd.f32 0.0, %v2509
      %v2511 = vpop.f32.mrb[0].mxu0
      %2512 = vdwg.mxu0
      %v2513 = vpack.c.bf16 %v2454, %v2451
      %v2514 = vpack.c.bf16 %v2462, %v2459
      %v2515 = vpack.c.bf16 %v2470, %v2467
      %v2516 = vpack.c.bf16 %v2478, %v2475
      %v2517 = vpack.c.bf16 %v2486, %v2483
      %v2518 = vpack.c.bf16 %v2494, %v2491
      %v2519 = vpack.c.bf16 %v2502, %v2499
      %v2520 = vpack.c.bf16 %v2510, %v2507
      %2521 = vmatprep.subr.bf16.mxu0 0
      %2522 = vmatpush1.bf16.xpose.msra.mxu0 %v1366
      %2523 = vmatprep.subr.bf16.mxu0 0
      %2524 = vmatpush1.bf16.xpose.msra.mxu0 %v1370
      %2525 = vmatprep.subr.bf16.mxu0 0
      %2526 = vmatpush1.bf16.xpose.msra.mxu0 %v1374
      %2527 = vmatprep.subr.bf16.mxu0 0
      %2528 = vmatpush1.bf16.xpose.msra.mxu0 %v1378
      %2529 = vmatprep.subr.bf16.mxu0 0
      %2530 = vmatpush1.bf16.xpose.msra.mxu0 %v1382
      %2531 = vmatprep.subr.bf16.mxu0 0
      %2532 = vmatpush1.bf16.xpose.msra.mxu0 %v1386
      %2533 = vmatprep.subr.bf16.mxu0 0
      %2534 = vmatpush1.bf16.xpose.msra.mxu0 %v1390
      %2535 = vmatprep.subr.bf16.mxu0 0
      %2536 = vmatpush1.bf16.xpose.msra.mxu0 %v1394
      %2537 = vmatprep.subr.bf16.mxu0 0
      %2538 = vmatpush1.bf16.xpose.msra.mxu0 0
      %2539 = vmatprep.subr.bf16.mxu0 0
      %2540 = vmatpush1.bf16.xpose.msra.mxu0 0
      %2541 = vmatprep.subr.bf16.mxu0 0
      %2542 = vmatpush1.bf16.xpose.msra.mxu0 0
      %2543 = vmatprep.subr.bf16.mxu0 0
      %2544 = vmatpush1.bf16.xpose.msra.mxu0 0
      %2545 = vmatprep.subr.bf16.mxu0 0
      %2546 = vmatpush1.bf16.xpose.msra.mxu0 0
      %2547 = vmatprep.subr.bf16.mxu0 0
      %2548 = vmatpush1.bf16.xpose.msra.mxu0 0
      %2549 = vmatprep.subr.bf16.mxu0 0
      %2550 = vmatpush1.bf16.xpose.msra.mxu0 0
      %2551 = vmatprep.subr.bf16.mxu0 0
      %2552 = vmatpush1.bf16.xpose.msra.mxu0 0
      %2553 = vmatprep.mubr.bf16.mxu0 0
      %2554 = vmatmul.mubr.bf16.gmra.mrb[0].mxu0 %v1038
      %v2555 = vpop.f32.mrb[0].mxu0
      %v2556 = vadd.f32 0.0, %v2555
      %v2557 = vpop.f32.mrb[0].mxu0
      %v2558 = vpop.f32.mrb[0].mxu0
      %v2559 = vadd.f32 0.0, %v2558
      %v2560 = vpop.f32.mrb[0].mxu0
      %2561 = vmatprep.mubr.bf16.mxu0 0
      %2562 = vmatmul.mubr.bf16.gmra.mrb[0].mxu0 %v1042
      %v2563 = vpop.f32.mrb[0].mxu0
      %v2564 = vadd.f32 0.0, %v2563
      %v2565 = vpop.f32.mrb[0].mxu0
      %v2566 = vpop.f32.mrb[0].mxu0
      %v2567 = vadd.f32 0.0, %v2566
      %v2568 = vpop.f32.mrb[0].mxu0
      %2569 = vmatprep.mubr.bf16.mxu0 0
      %2570 = vmatmul.mubr.bf16.gmra.mrb[0].mxu0 %v1046
      %v2571 = vpop.f32.mrb[0].mxu0
      %v2572 = vadd.f32 0.0, %v2571
      %v2573 = vpop.f32.mrb[0].mxu0
      %v2574 = vpop.f32.mrb[0].mxu0
      %v2575 = vadd.f32 0.0, %v2574
      %v2576 = vpop.f32.mrb[0].mxu0
      %2577 = vmatprep.mubr.bf16.mxu0 0
      %2578 = vmatmul.mubr.bf16.gmra.mrb[0].mxu0 %v1050
      %v2579 = vpop.f32.mrb[0].mxu0
      %v2580 = vadd.f32 0.0, %v2579
      %v2581 = vpop.f32.mrb[0].mxu0
      %v2582 = vpop.f32.mrb[0].mxu0
      %v2583 = vadd.f32 0.0, %v2582
      %v2584 = vpop.f32.mrb[0].mxu0
      %2585 = vmatprep.mubr.bf16.mxu0 0
      %2586 = vmatmul.mubr.bf16.gmra.mrb[0].mxu0 %v1054
      %v2587 = vpop.f32.mrb[0].mxu0
      %v2588 = vadd.f32 0.0, %v2587
      %v2589 = vpop.f32.mrb[0].mxu0
      %v2590 = vpop.f32.mrb[0].mxu0
      %v2591 = vadd.f32 0.0, %v2590
      %v2592 = vpop.f32.mrb[0].mxu0
      %2593 = vmatprep.mubr.bf16.mxu0 0
      %2594 = vmatmul.mubr.bf16.gmra.mrb[0].mxu0 %v1058
      %v2595 = vpop.f32.mrb[0].mxu0
      %v2596 = vadd.f32 0.0, %v2595
      %v2597 = vpop.f32.mrb[0].mxu0
      %v2598 = vpop.f32.mrb[0].mxu0
      %v2599 = vadd.f32 0.0, %v2598
      %v2600 = vpop.f32.mrb[0].mxu0
      %2601 = vmatprep.mubr.bf16.mxu0 0
      %2602 = vmatmul.mubr.bf16.gmra.mrb[0].mxu0 %v1062
      %v2603 = vpop.f32.mrb[0].mxu0
      %v2604 = vadd.f32 0.0, %v2603
      %v2605 = vpop.f32.mrb[0].mxu0
      %v2606 = vpop.f32.mrb[0].mxu0
      %v2607 = vadd.f32 0.0, %v2606
      %v2608 = vpop.f32.mrb[0].mxu0
      %2609 = vmatprep.mubr.bf16.mxu0 0
      %2610 = vmatmul.mubr.bf16.gmra.mrb[0].mxu0 %v1066
      %v2611 = vpop.f32.mrb[0].mxu0
      %v2612 = vadd.f32 0.0, %v2611
      %v2613 = vpop.f32.mrb[0].mxu0
      %v2614 = vpop.f32.mrb[0].mxu0
      %v2615 = vadd.f32 0.0, %v2614
      %v2616 = vpop.f32.mrb[0].mxu0
      %2617 = vdwg.mxu0
      %v2618 = vsel %vm1765, -1e+30, %v2556
      %v2619 = vsel %vm1766, -1e+30, %v2559
      %v2620 = vsel %vm1767, -1e+30, %v2564
      %v2621 = vsel %vm1768, -1e+30, %v2567
      %v2622 = vsel %vm1769, -1e+30, %v2572
      %v2623 = vsel %vm1770, -1e+30, %v2575
      %v2624 = vsel %vm1771, -1e+30, %v2580
      %v2625 = vsel %vm1772, -1e+30, %v2583
      %v2626 = vsel %vm1773, -1e+30, %v2588
      %v2627 = vsel %vm1774, -1e+30, %v2591
      %v2628 = vsel %vm1775, -1e+30, %v2596
      %v2629 = vsel %vm1776, -1e+30, %v2599
      %v2630 = vsel %vm1777, -1e+30, %v2604
      %v2631 = vsel %vm1778, -1e+30, %v2607
      %v2632 = vsel %vm1779, -1e+30, %v2612
      %v2633 = vsel %vm1780, -1e+30, %v2615
      %2634 = vmax.xlane.f32.xlu0 %v2618
      %v2635 = vpop.xlane.xlu0 %2634
      %2636 = vmax.xlane.f32.xlu0 %v2619
      %v2637 = vpop.xlane.xlu0 %2636
      %2638 = vmax.xlane.f32.xlu0 %v2620
      %v2639 = vpop.xlane.xlu0 %2638
      %2640 = vmax.xlane.f32.xlu0 %v2621
      %v2641 = vpop.xlane.xlu0 %2640
      %2642 = vmax.xlane.f32.xlu0 %v2622
      %v2643 = vpop.xlane.xlu0 %2642
      %2644 = vmax.xlane.f32.xlu0 %v2623
      %v2645 = vpop.xlane.xlu0 %2644
      %2646 = vmax.xlane.f32.xlu0 %v2624
      %v2647 = vpop.xlane.xlu0 %2646
      %2648 = vmax.xlane.f32.xlu0 %v2625
      %v2649 = vpop.xlane.xlu0 %2648
      %2650 = vmax.xlane.f32.xlu0 %v2626
      %v2651 = vpop.xlane.xlu0 %2650
      %2652 = vmax.xlane.f32.xlu0 %v2627
      %v2653 = vpop.xlane.xlu0 %2652
      %2654 = vmax.xlane.f32.xlu0 %v2628
      %v2655 = vpop.xlane.xlu0 %2654
      %2656 = vmax.xlane.f32.xlu0 %v2629
      %v2657 = vpop.xlane.xlu0 %2656
      %2658 = vmax.xlane.f32.xlu0 %v2630
      %v2659 = vpop.xlane.xlu0 %2658
      %2660 = vmax.xlane.f32.xlu0 %v2631
      %v2661 = vpop.xlane.xlu0 %2660
      %2662 = vmax.xlane.f32.xlu0 %v2632
      %v2663 = vpop.xlane.xlu0 %2662
      %2664 = vmax.xlane.f32.xlu0 %v2633
      %v2665 = vpop.xlane.xlu0 %2664
      %v2666 = vsub.f32 %v2618, %v2635
      %v2667 = vsub.f32 %v2619, %v2637
      %v2668 = vsub.f32 %v2620, %v2639
      %v2669 = vsub.f32 %v2621, %v2641
      %v2670 = vsub.f32 %v2622, %v2643
      %v2671 = vsub.f32 %v2623, %v2645
      %v2672 = vsub.f32 %v2624, %v2647
      %v2673 = vsub.f32 %v2625, %v2649
      %v2674 = vsub.f32 %v2626, %v2651
      %v2675 = vsub.f32 %v2627, %v2653
      %v2676 = vsub.f32 %v2628, %v2655
      %v2677 = vsub.f32 %v2629, %v2657
      %v2678 = vsub.f32 %v2630, %v2659
      %v2679 = vsub.f32 %v2631, %v2661
      %v2680 = vsub.f32 %v2632, %v2663
      %v2681 = vsub.f32 %v2633, %v2665
      %v2682 = vmul.f32 %v2666, 1.442695
      %v2683 = vpow.pop %v2682
      %v2684 = vmul.f32 %v2667, 1.442695
      %v2685 = vpow.pop %v2684
      %v2686 = vmul.f32 %v2668, 1.442695
      %v2687 = vpow.pop %v2686
      %v2688 = vmul.f32 %v2669, 1.442695
      %v2689 = vpow.pop %v2688
      %v2690 = vmul.f32 %v2670, 1.442695
      %v2691 = vpow.pop %v2690
      %v2692 = vmul.f32 %v2671, 1.442695
      %v2693 = vpow.pop %v2692
      %v2694 = vmul.f32 %v2672, 1.442695
      %v2695 = vpow.pop %v2694
      %v2696 = vmul.f32 %v2673, 1.442695
      %v2697 = vpow.pop %v2696
      %v2698 = vmul.f32 %v2674, 1.442695
      %v2699 = vpow.pop %v2698
      %v2700 = vmul.f32 %v2675, 1.442695
      %v2701 = vpow.pop %v2700
      %v2702 = vmul.f32 %v2676, 1.442695
      %v2703 = vpow.pop %v2702
      %v2704 = vmul.f32 %v2677, 1.442695
      %v2705 = vpow.pop %v2704
      %v2706 = vmul.f32 %v2678, 1.442695
      %v2707 = vpow.pop %v2706
      %v2708 = vmul.f32 %v2679, 1.442695
      %v2709 = vpow.pop %v2708
      %v2710 = vmul.f32 %v2680, 1.442695
      %v2711 = vpow.pop %v2710
      %v2712 = vmul.f32 %v2681, 1.442695
      %v2713 = vpow.pop %v2712
      %2714 = vadd.xlane.f32.xlu0 %v2683
      %v2715 = vpop.xlane.xlu0 %2714
      %2716 = vadd.xlane.f32.xlu0 %v2685
      %v2717 = vpop.xlane.xlu0 %2716
      %2718 = vadd.xlane.f32.xlu0 %v2687
      %v2719 = vpop.xlane.xlu0 %2718
      %2720 = vadd.xlane.f32.xlu0 %v2689
      %v2721 = vpop.xlane.xlu0 %2720
      %2722 = vadd.xlane.f32.xlu0 %v2691
      %v2723 = vpop.xlane.xlu0 %2722
      %2724 = vadd.xlane.f32.xlu0 %v2693
      %v2725 = vpop.xlane.xlu0 %2724
      %2726 = vadd.xlane.f32.xlu0 %v2695
      %v2727 = vpop.xlane.xlu0 %2726
      %2728 = vadd.xlane.f32.xlu0 %v2697
      %v2729 = vpop.xlane.xlu0 %2728
      %2730 = vadd.xlane.f32.xlu0 %v2699
      %v2731 = vpop.xlane.xlu0 %2730
      %2732 = vadd.xlane.f32.xlu0 %v2701
      %v2733 = vpop.xlane.xlu0 %2732
      %2734 = vadd.xlane.f32.xlu0 %v2703
      %v2735 = vpop.xlane.xlu0 %2734
      %2736 = vadd.xlane.f32.xlu0 %v2705
      %v2737 = vpop.xlane.xlu0 %2736
      %2738 = vadd.xlane.f32.xlu0 %v2707
      %v2739 = vpop.xlane.xlu0 %2738
      %2740 = vadd.xlane.f32.xlu0 %v2709
      %v2741 = vpop.xlane.xlu0 %2740
      %2742 = vadd.xlane.f32.xlu0 %v2711
      %v2743 = vpop.xlane.xlu0 %2742
      %2744 = vadd.xlane.f32.xlu0 %v2713
      %v2745 = vpop.xlane.xlu0 %2744
      %v2746 = vrcp.pop %v2715
      %v2747 = vrcp.pop %v2717
      %v2748 = vrcp.pop %v2719
      %v2749 = vrcp.pop %v2721
      %v2750 = vrcp.pop %v2723
      %v2751 = vrcp.pop %v2725
      %v2752 = vrcp.pop %v2727
      %v2753 = vrcp.pop %v2729
      %v2754 = vrcp.pop %v2731
      %v2755 = vrcp.pop %v2733
      %v2756 = vrcp.pop %v2735
      %v2757 = vrcp.pop %v2737
      %v2758 = vrcp.pop %v2739
      %v2759 = vrcp.pop %v2741
      %v2760 = vrcp.pop %v2743
      %v2761 = vrcp.pop %v2745
      %v2762 = vmul.f32 %v2683, %v2746
      %v2763 = vmul.f32 %v2685, %v2747
      %v2764 = vmul.f32 %v2687, %v2748
      %v2765 = vmul.f32 %v2689, %v2749
      %v2766 = vmul.f32 %v2691, %v2750
      %v2767 = vmul.f32 %v2693, %v2751
      %v2768 = vmul.f32 %v2695, %v2752
      %v2769 = vmul.f32 %v2697, %v2753
      %v2770 = vmul.f32 %v2699, %v2754
      %v2771 = vmul.f32 %v2701, %v2755
      %v2772 = vmul.f32 %v2703, %v2756
      %v2773 = vmul.f32 %v2705, %v2757
      %v2774 = vmul.f32 %v2707, %v2758
      %v2775 = vmul.f32 %v2709, %v2759
      %v2776 = vmul.f32 %v2711, %v2760
      %v2777 = vmul.f32 %v2713, %v2761
      %v2778 = vpack.c.bf16 %v2763, %v2762
      %v2779 = vpack.c.bf16 %v2765, %v2764
      %v2780 = vpack.c.bf16 %v2767, %v2766
      %v2781 = vpack.c.bf16 %v2769, %v2768
      %v2782 = vpack.c.bf16 %v2771, %v2770
      %v2783 = vpack.c.bf16 %v2773, %v2772
      %v2784 = vpack.c.bf16 %v2775, %v2774
      %v2785 = vpack.c.bf16 %v2777, %v2776
      %2786 = vmatprep.subr.bf16.mxu0 0
      %2787 = vmatpush1.bf16.msra.mxu0 %v1694
      %2788 = vmatprep.subr.bf16.mxu0 0
      %2789 = vmatpush1.bf16.msra.mxu0 %v1698
      %2790 = vmatprep.subr.bf16.mxu0 0
      %2791 = vmatpush1.bf16.msra.mxu0 %v1702
      %2792 = vmatprep.subr.bf16.mxu0 0
      %2793 = vmatpush1.bf16.msra.mxu0 %v1706
      %2794 = vmatprep.subr.bf16.mxu0 0
      %2795 = vmatpush1.bf16.msra.mxu0 %v1710
      %2796 = vmatprep.subr.bf16.mxu0 0
      %2797 = vmatpush1.bf16.msra.mxu0 %v1714
      %2798 = vmatprep.subr.bf16.mxu0 0
      %2799 = vmatpush1.bf16.msra.mxu0 %v1718
      %2800 = vmatprep.subr.bf16.mxu0 0
      %2801 = vmatpush1.bf16.msra.mxu0 %v1722
      %2802 = vmatprep.subr.bf16.mxu0 0
      %2803 = vmatpush1.bf16.msra.mxu0 0
      %2804 = vmatprep.subr.bf16.mxu0 0
      %2805 = vmatpush1.bf16.msra.mxu0 0
      %2806 = vmatprep.subr.bf16.mxu0 0
      %2807 = vmatpush1.bf16.msra.mxu0 0
      %2808 = vmatprep.subr.bf16.mxu0 0
      %2809 = vmatpush1.bf16.msra.mxu0 0
      %2810 = vmatprep.subr.bf16.mxu0 0
      %2811 = vmatpush1.bf16.msra.mxu0 0
      %2812 = vmatprep.subr.bf16.mxu0 0
      %2813 = vmatpush1.bf16.msra.mxu0 0
      %2814 = vmatprep.subr.bf16.mxu0 0
      %2815 = vmatpush1.bf16.msra.mxu0 0
      %2816 = vmatprep.subr.bf16.mxu0 0
      %2817 = vmatpush1.bf16.msra.mxu0 0
      %2818 = vmatprep.mubr.bf16.mxu0 0
      %2819 = vmatmul.mubr.bf16.gmra.mrb[0].mxu0 %v2778
      %v2820 = vpop.f32.mrb[0].mxu0
      %v2821 = vadd.f32 0.0, %v2820
      %v2822 = vpop.f32.mrb[0].mxu0
      %v2823 = vpop.f32.mrb[0].mxu0
      %v2824 = vadd.f32 0.0, %v2823
      %v2825 = vpop.f32.mrb[0].mxu0
      %2826 = vmatprep.mubr.bf16.mxu0 0
      %2827 = vmatmul.mubr.bf16.gmra.mrb[0].mxu0 %v2779
      %v2828 = vpop.f32.mrb[0].mxu0
      %v2829 = vadd.f32 0.0, %v2828
      %v2830 = vpop.f32.mrb[0].mxu0
      %v2831 = vpop.f32.mrb[0].mxu0
      %v2832 = vadd.f32 0.0, %v2831
      %v2833 = vpop.f32.mrb[0].mxu0
      %2834 = vmatprep.mubr.bf16.mxu0 0
      %2835 = vmatmul.mubr.bf16.gmra.mrb[0].mxu0 %v2780
      %v2836 = vpop.f32.mrb[0].mxu0
      %v2837 = vadd.f32 0.0, %v2836
      %v2838 = vpop.f32.mrb[0].mxu0
      %v2839 = vpop.f32.mrb[0].mxu0
      %v2840 = vadd.f32 0.0, %v2839
      %v2841 = vpop.f32.mrb[0].mxu0
      %2842 = vmatprep.mubr.bf16.mxu0 0
      %2843 = vmatmul.mubr.bf16.gmra.mrb[0].mxu0 %v2781
      %v2844 = vpop.f32.mrb[0].mxu0
      %v2845 = vadd.f32 0.0, %v2844
      %v2846 = vpop.f32.mrb[0].mxu0
      %v2847 = vpop.f32.mrb[0].mxu0
      %v2848 = vadd.f32 0.0, %v2847
      %v2849 = vpop.f32.mrb[0].mxu0
      %2850 = vmatprep.mubr.bf16.mxu0 0
      %2851 = vmatmul.mubr.bf16.gmra.mrb[0].mxu0 %v2782
      %v2852 = vpop.f32.mrb[0].mxu0
      %v2853 = vadd.f32 0.0, %v2852
      %v2854 = vpop.f32.mrb[0].mxu0
      %v2855 = vpop.f32.mrb[0].mxu0
      %v2856 = vadd.f32 0.0, %v2855
      %v2857 = vpop.f32.mrb[0].mxu0
      %2858 = vmatprep.mubr.bf16.mxu0 0
      %2859 = vmatmul.mubr.bf16.gmra.mrb[0].mxu0 %v2783
      %v2860 = vpop.f32.mrb[0].mxu0
      %v2861 = vadd.f32 0.0, %v2860
      %v2862 = vpop.f32.mrb[0].mxu0
      %v2863 = vpop.f32.mrb[0].mxu0
      %v2864 = vadd.f32 0.0, %v2863
      %v2865 = vpop.f32.mrb[0].mxu0
      %2866 = vmatprep.mubr.bf16.mxu0 0
      %2867 = vmatmul.mubr.bf16.gmra.mrb[0].mxu0 %v2784
      %v2868 = vpop.f32.mrb[0].mxu0
      %v2869 = vadd.f32 0.0, %v2868
      %v2870 = vpop.f32.mrb[0].mxu0
      %v2871 = vpop.f32.mrb[0].mxu0
      %v2872 = vadd.f32 0.0, %v2871
      %v2873 = vpop.f32.mrb[0].mxu0
      %2874 = vmatprep.mubr.bf16.mxu0 0
      %2875 = vmatmul.mubr.bf16.gmra.mrb[0].mxu0 %v2785
      %v2876 = vpop.f32.mrb[0].mxu0
      %v2877 = vadd.f32 0.0, %v2876
      %v2878 = vpop.f32.mrb[0].mxu0
      %v2879 = vpop.f32.mrb[0].mxu0
      %v2880 = vadd.f32 0.0, %v2879
      %v2881 = vpop.f32.mrb[0].mxu0
      %2882 = vdwg.mxu0
      %v2883 = vpack.c.bf16 %v2824, %v2821
      %v2884 = vpack.c.bf16 %v2832, %v2829
      %v2885 = vpack.c.bf16 %v2840, %v2837
      %v2886 = vpack.c.bf16 %v2848, %v2845
      %v2887 = vpack.c.bf16 %v2856, %v2853
      %v2888 = vpack.c.bf16 %v2864, %v2861
      %v2889 = vpack.c.bf16 %v2872, %v2869
      %v2890 = vpack.c.bf16 %v2880, %v2877
      %2891 = vmatprep.subr.bf16.mxu0 0
      %2892 = vmatpush1.bf16.xpose.msra.mxu0 %v1367
      %2893 = vmatprep.subr.bf16.mxu0 0
      %2894 = vmatpush1.bf16.xpose.msra.mxu0 %v1371
      %2895 = vmatprep.subr.bf16.mxu0 0
      %2896 = vmatpush1.bf16.xpose.msra.mxu0 %v1375
      %2897 = vmatprep.subr.bf16.mxu0 0
      %2898 = vmatpush1.bf16.xpose.msra.mxu0 %v1379
      %2899 = vmatprep.subr.bf16.mxu0 0
      %2900 = vmatpush1.bf16.xpose.msra.mxu0 %v1383
      %2901 = vmatprep.subr.bf16.mxu0 0
      %2902 = vmatpush1.bf16.xpose.msra.mxu0 %v1387
      %2903 = vmatprep.subr.bf16.mxu0 0
      %2904 = vmatpush1.bf16.xpose.msra.mxu0 %v1391
      %2905 = vmatprep.subr.bf16.mxu0 0
      %2906 = vmatpush1.bf16.xpose.msra.mxu0 %v1395
      %2907 = vmatprep.subr.bf16.mxu0 0
      %2908 = vmatpush1.bf16.xpose.msra.mxu0 0
      %2909 = vmatprep.subr.bf16.mxu0 0
      %2910 = vmatpush1.bf16.xpose.msra.mxu0 0
      %2911 = vmatprep.subr.bf16.mxu0 0
      %2912 = vmatpush1.bf16.xpose.msra.mxu0 0
      %2913 = vmatprep.subr.bf16.mxu0 0
      %2914 = vmatpush1.bf16.xpose.msra.mxu0 0
      %2915 = vmatprep.subr.bf16.mxu0 0
      %2916 = vmatpush1.bf16.xpose.msra.mxu0 0
      %2917 = vmatprep.subr.bf16.mxu0 0
      %2918 = vmatpush1.bf16.xpose.msra.mxu0 0
      %2919 = vmatprep.subr.bf16.mxu0 0
      %2920 = vmatpush1.bf16.xpose.msra.mxu0 0
      %2921 = vmatprep.subr.bf16.mxu0 0
      %2922 = vmatpush1.bf16.xpose.msra.mxu0 0
      %2923 = vmatprep.mubr.bf16.mxu0 0
      %2924 = vmatmul.mubr.bf16.gmra.mrb[0].mxu0 %v1039
      %v2925 = vpop.f32.mrb[0].mxu0
      %v2926 = vadd.f32 0.0, %v2925
      %v2927 = vpop.f32.mrb[0].mxu0
      %v2928 = vpop.f32.mrb[0].mxu0
      %v2929 = vadd.f32 0.0, %v2928
      %v2930 = vpop.f32.mrb[0].mxu0
      %2931 = vmatprep.mubr.bf16.mxu0 0
      %2932 = vmatmul.mubr.bf16.gmra.mrb[0].mxu0 %v1043
      %v2933 = vpop.f32.mrb[0].mxu0
      %v2934 = vadd.f32 0.0, %v2933
      %v2935 = vpop.f32.mrb[0].mxu0
      %v2936 = vpop.f32.mrb[0].mxu0
      %v2937 = vadd.f32 0.0, %v2936
      %v2938 = vpop.f32.mrb[0].mxu0
      %2939 = vmatprep.mubr.bf16.mxu0 0
      %2940 = vmatmul.mubr.bf16.gmra.mrb[0].mxu0 %v1047
      %v2941 = vpop.f32.mrb[0].mxu0
      %v2942 = vadd.f32 0.0, %v2941
      %v2943 = vpop.f32.mrb[0].mxu0
      %v2944 = vpop.f32.mrb[0].mxu0
      %v2945 = vadd.f32 0.0, %v2944
      %v2946 = vpop.f32.mrb[0].mxu0
      %2947 = vmatprep.mubr.bf16.mxu0 0
      %2948 = vmatmul.mubr.bf16.gmra.mrb[0].mxu0 %v1051
      %v2949 = vpop.f32.mrb[0].mxu0
      %v2950 = vadd.f32 0.0, %v2949
      %v2951 = vpop.f32.mrb[0].mxu0
      %v2952 = vpop.f32.mrb[0].mxu0
      %v2953 = vadd.f32 0.0, %v2952
      %v2954 = vpop.f32.mrb[0].mxu0
      %2955 = vmatprep.mubr.bf16.mxu0 0
      %2956 = vmatmul.mubr.bf16.gmra.mrb[0].mxu0 %v1055
      %v2957 = vpop.f32.mrb[0].mxu0
      %v2958 = vadd.f32 0.0, %v2957
      %v2959 = vpop.f32.mrb[0].mxu0
      %v2960 = vpop.f32.mrb[0].mxu0
      %v2961 = vadd.f32 0.0, %v2960
      %v2962 = vpop.f32.mrb[0].mxu0
      %2963 = vmatprep.mubr.bf16.mxu0 0
      %2964 = vmatmul.mubr.bf16.gmra.mrb[0].mxu0 %v1059
      %v2965 = vpop.f32.mrb[0].mxu0
      %v2966 = vadd.f32 0.0, %v2965
      %v2967 = vpop.f32.mrb[0].mxu0
      %v2968 = vpop.f32.mrb[0].mxu0
      %v2969 = vadd.f32 0.0, %v2968
      %v2970 = vpop.f32.mrb[0].mxu0
      %2971 = vmatprep.mubr.bf16.mxu0 0
      %2972 = vmatmul.mubr.bf16.gmra.mrb[0].mxu0 %v1063
      %v2973 = vpop.f32.mrb[0].mxu0
      %v2974 = vadd.f32 0.0, %v2973
      %v2975 = vpop.f32.mrb[0].mxu0
      %v2976 = vpop.f32.mrb[0].mxu0
      %v2977 = vadd.f32 0.0, %v2976
      %v2978 = vpop.f32.mrb[0].mxu0
      %2979 = vmatprep.mubr.bf16.mxu0 0
      %2980 = vmatmul.mubr.bf16.gmra.mrb[0].mxu0 %v1067
      %v2981 = vpop.f32.mrb[0].mxu0
      %v2982 = vadd.f32 0.0, %v2981
      %v2983 = vpop.f32.mrb[0].mxu0
      %v2984 = vpop.f32.mrb[0].mxu0
      %v2985 = vadd.f32 0.0, %v2984
      %v2986 = vpop.f32.mrb[0].mxu0
      %2987 = vdwg.mxu0
      %v2988 = vsel %vm1765, -1e+30, %v2926
      %v2989 = vsel %vm1766, -1e+30, %v2929
      %v2990 = vsel %vm1767, -1e+30, %v2934
      %v2991 = vsel %vm1768, -1e+30, %v2937
      %v2992 = vsel %vm1769, -1e+30, %v2942
      %v2993 = vsel %vm1770, -1e+30, %v2945
      %v2994 = vsel %vm1771, -1e+30, %v2950
      %v2995 = vsel %vm1772, -1e+30, %v2953
      %v2996 = vsel %vm1773, -1e+30, %v2958
      %v2997 = vsel %vm1774, -1e+30, %v2961
      %v2998 = vsel %vm1775, -1e+30, %v2966
      %v2999 = vsel %vm1776, -1e+30, %v2969
      %v3000 = vsel %vm1777, -1e+30, %v2974
      %v3001 = vsel %vm1778, -1e+30, %v2977
      %v3002 = vsel %vm1779, -1e+30, %v2982
      %v3003 = vsel %vm1780, -1e+30, %v2985
      %3004 = vmax.xlane.f32.xlu0 %v2988
      %v3005 = vpop.xlane.xlu0 %3004
      %3006 = vmax.xlane.f32.xlu0 %v2989
      %v3007 = vpop.xlane.xlu0 %3006
      %3008 = vmax.xlane.f32.xlu0 %v2990
      %v3009 = vpop.xlane.xlu0 %3008
      %3010 = vmax.xlane.f32.xlu0 %v2991
      %v3011 = vpop.xlane.xlu0 %3010
      %3012 = vmax.xlane.f32.xlu0 %v2992
      %v3013 = vpop.xlane.xlu0 %3012
      %3014 = vmax.xlane.f32.xlu0 %v2993
      %v3015 = vpop.xlane.xlu0 %3014
      %3016 = vmax.xlane.f32.xlu0 %v2994
      %v3017 = vpop.xlane.xlu0 %3016
      %3018 = vmax.xlane.f32.xlu0 %v2995
      %v3019 = vpop.xlane.xlu0 %3018
      %3020 = vmax.xlane.f32.xlu0 %v2996
      %v3021 = vpop.xlane.xlu0 %3020
      %3022 = vmax.xlane.f32.xlu0 %v2997
      %v3023 = vpop.xlane.xlu0 %3022
      %3024 = vmax.xlane.f32.xlu0 %v2998
      %v3025 = vpop.xlane.xlu0 %3024
      %3026 = vmax.xlane.f32.xlu0 %v2999
      %v3027 = vpop.xlane.xlu0 %3026
      %3028 = vmax.xlane.f32.xlu0 %v3000
      %v3029 = vpop.xlane.xlu0 %3028
      %3030 = vmax.xlane.f32.xlu0 %v3001
      %v3031 = vpop.xlane.xlu0 %3030
      %3032 = vmax.xlane.f32.xlu0 %v3002
      %v3033 = vpop.xlane.xlu0 %3032
      %3034 = vmax.xlane.f32.xlu0 %v3003
      %v3035 = vpop.xlane.xlu0 %3034
      %v3036 = vsub.f32 %v2988, %v3005
      %v3037 = vsub.f32 %v2989, %v3007
      %v3038 = vsub.f32 %v2990, %v3009
      %v3039 = vsub.f32 %v2991, %v3011
      %v3040 = vsub.f32 %v2992, %v3013
      %v3041 = vsub.f32 %v2993, %v3015
      %v3042 = vsub.f32 %v2994, %v3017
      %v3043 = vsub.f32 %v2995, %v3019
      %v3044 = vsub.f32 %v2996, %v3021
      %v3045 = vsub.f32 %v2997, %v3023
      %v3046 = vsub.f32 %v2998, %v3025
      %v3047 = vsub.f32 %v2999, %v3027
      %v3048 = vsub.f32 %v3000, %v3029
      %v3049 = vsub.f32 %v3001, %v3031
      %v3050 = vsub.f32 %v3002, %v3033
      %v3051 = vsub.f32 %v3003, %v3035
      %v3052 = vmul.f32 %v3036, 1.442695
      %v3053 = vpow.pop %v3052
      %v3054 = vmul.f32 %v3037, 1.442695
      %v3055 = vpow.pop %v3054
      %v3056 = vmul.f32 %v3038, 1.442695
      %v3057 = vpow.pop %v3056
      %v3058 = vmul.f32 %v3039, 1.442695
      %v3059 = vpow.pop %v3058
      %v3060 = vmul.f32 %v3040, 1.442695
      %v3061 = vpow.pop %v3060
      %v3062 = vmul.f32 %v3041, 1.442695
      %v3063 = vpow.pop %v3062
      %v3064 = vmul.f32 %v3042, 1.442695
      %v3065 = vpow.pop %v3064
      %v3066 = vmul.f32 %v3043, 1.442695
      %v3067 = vpow.pop %v3066
      %v3068 = vmul.f32 %v3044, 1.442695
      %v3069 = vpow.pop %v3068
      %v3070 = vmul.f32 %v3045, 1.442695
      %v3071 = vpow.pop %v3070
      %v3072 = vmul.f32 %v3046, 1.442695
      %v3073 = vpow.pop %v3072
      %v3074 = vmul.f32 %v3047, 1.442695
      %v3075 = vpow.pop %v3074
      %v3076 = vmul.f32 %v3048, 1.442695
      %v3077 = vpow.pop %v3076
      %v3078 = vmul.f32 %v3049, 1.442695
      %v3079 = vpow.pop %v3078
      %v3080 = vmul.f32 %v3050, 1.442695
      %v3081 = vpow.pop %v3080
      %v3082 = vmul.f32 %v3051, 1.442695
      %v3083 = vpow.pop %v3082
      %3084 = vadd.xlane.f32.xlu0 %v3053
      %v3085 = vpop.xlane.xlu0 %3084
      %3086 = vadd.xlane.f32.xlu0 %v3055
      %v3087 = vpop.xlane.xlu0 %3086
      %3088 = vadd.xlane.f32.xlu0 %v3057
      %v3089 = vpop.xlane.xlu0 %3088
      %3090 = vadd.xlane.f32.xlu0 %v3059
      %v3091 = vpop.xlane.xlu0 %3090
      %3092 = vadd.xlane.f32.xlu0 %v3061
      %v3093 = vpop.xlane.xlu0 %3092
      %3094 = vadd.xlane.f32.xlu0 %v3063
      %v3095 = vpop.xlane.xlu0 %3094
      %3096 = vadd.xlane.f32.xlu0 %v3065
      %v3097 = vpop.xlane.xlu0 %3096
      %3098 = vadd.xlane.f32.xlu0 %v3067
      %v3099 = vpop.xlane.xlu0 %3098
      %3100 = vadd.xlane.f32.xlu0 %v3069
      %v3101 = vpop.xlane.xlu0 %3100
      %3102 = vadd.xlane.f32.xlu0 %v3071
      %v3103 = vpop.xlane.xlu0 %3102
      %3104 = vadd.xlane.f32.xlu0 %v3073
      %v3105 = vpop.xlane.xlu0 %3104
      %3106 = vadd.xlane.f32.xlu0 %v3075
      %v3107 = vpop.xlane.xlu0 %3106
      %3108 = vadd.xlane.f32.xlu0 %v3077
      %v3109 = vpop.xlane.xlu0 %3108
      %3110 = vadd.xlane.f32.xlu0 %v3079
      %v3111 = vpop.xlane.xlu0 %3110
      %3112 = vadd.xlane.f32.xlu0 %v3081
      %v3113 = vpop.xlane.xlu0 %3112
      %3114 = vadd.xlane.f32.xlu0 %v3083
      %v3115 = vpop.xlane.xlu0 %3114
      %v3116 = vrcp.pop %v3085
      %v3117 = vrcp.pop %v3087
      %v3118 = vrcp.pop %v3089
      %v3119 = vrcp.pop %v3091
      %v3120 = vrcp.pop %v3093
      %v3121 = vrcp.pop %v3095
      %v3122 = vrcp.pop %v3097
      %v3123 = vrcp.pop %v3099
      %v3124 = vrcp.pop %v3101
      %v3125 = vrcp.pop %v3103
      %v3126 = vrcp.pop %v3105
      %v3127 = vrcp.pop %v3107
      %v3128 = vrcp.pop %v3109
      %v3129 = vrcp.pop %v3111
      %v3130 = vrcp.pop %v3113
      %v3131 = vrcp.pop %v3115
      %v3132 = vmul.f32 %v3053, %v3116
      %v3133 = vmul.f32 %v3055, %v3117
      %v3134 = vmul.f32 %v3057, %v3118
      %v3135 = vmul.f32 %v3059, %v3119
      %v3136 = vmul.f32 %v3061, %v3120
      %v3137 = vmul.f32 %v3063, %v3121
      %v3138 = vmul.f32 %v3065, %v3122
      %v3139 = vmul.f32 %v3067, %v3123
      %v3140 = vmul.f32 %v3069, %v3124
      %v3141 = vmul.f32 %v3071, %v3125
      %v3142 = vmul.f32 %v3073, %v3126
      %v3143 = vmul.f32 %v3075, %v3127
      %v3144 = vmul.f32 %v3077, %v3128
      %v3145 = vmul.f32 %v3079, %v3129
      %v3146 = vmul.f32 %v3081, %v3130
      %v3147 = vmul.f32 %v3083, %v3131
      %v3148 = vpack.c.bf16 %v3133, %v3132
      %v3149 = vpack.c.bf16 %v3135, %v3134
      %v3150 = vpack.c.bf16 %v3137, %v3136
      %v3151 = vpack.c.bf16 %v3139, %v3138
      %v3152 = vpack.c.bf16 %v3141, %v3140
      %v3153 = vpack.c.bf16 %v3143, %v3142
      %v3154 = vpack.c.bf16 %v3145, %v3144
      %v3155 = vpack.c.bf16 %v3147, %v3146
      %3156 = vmatprep.subr.bf16.mxu0 0
      %3157 = vmatpush1.bf16.msra.mxu0 %v1695
      %3158 = vmatprep.subr.bf16.mxu0 0
      %3159 = vmatpush1.bf16.msra.mxu0 %v1699
      %3160 = vmatprep.subr.bf16.mxu0 0
      %3161 = vmatpush1.bf16.msra.mxu0 %v1703
      %3162 = vmatprep.subr.bf16.mxu0 0
      %3163 = vmatpush1.bf16.msra.mxu0 %v1707
      %3164 = vmatprep.subr.bf16.mxu0 0
      %3165 = vmatpush1.bf16.msra.mxu0 %v1711
      %3166 = vmatprep.subr.bf16.mxu0 0
      %3167 = vmatpush1.bf16.msra.mxu0 %v1715
      %3168 = vmatprep.subr.bf16.mxu0 0
      %3169 = vmatpush1.bf16.msra.mxu0 %v1719
      %3170 = vmatprep.subr.bf16.mxu0 0
      %3171 = vmatpush1.bf16.msra.mxu0 %v1723
      %3172 = vmatprep.subr.bf16.mxu0 0
      %3173 = vmatpush1.bf16.msra.mxu0 0
      %3174 = vmatprep.subr.bf16.mxu0 0
      %3175 = vmatpush1.bf16.msra.mxu0 0
      %3176 = vmatprep.subr.bf16.mxu0 0
      %3177 = vmatpush1.bf16.msra.mxu0 0
      %3178 = vmatprep.subr.bf16.mxu0 0
      %3179 = vmatpush1.bf16.msra.mxu0 0
      %3180 = vmatprep.subr.bf16.mxu0 0
      %3181 = vmatpush1.bf16.msra.mxu0 0
      %3182 = vmatprep.subr.bf16.mxu0 0
      %3183 = vmatpush1.bf16.msra.mxu0 0
      %3184 = vmatprep.subr.bf16.mxu0 0
      %3185 = vmatpush1.bf16.msra.mxu0 0
      %3186 = vmatprep.subr.bf16.mxu0 0
      %3187 = vmatpush1.bf16.msra.mxu0 0
      %3188 = vmatprep.mubr.bf16.mxu0 0
      %3189 = vmatmul.mubr.bf16.gmra.mrb[0].mxu0 %v3148
      %v3190 = vpop.f32.mrb[0].mxu0
      %v3191 = vadd.f32 0.0, %v3190
      %v3192 = vpop.f32.mrb[0].mxu0
      %v3193 = vpop.f32.mrb[0].mxu0
      %v3194 = vadd.f32 0.0, %v3193
      %v3195 = vpop.f32.mrb[0].mxu0
      %3196 = vmatprep.mubr.bf16.mxu0 0
      %3197 = vmatmul.mubr.bf16.gmra.mrb[0].mxu0 %v3149
      %v3198 = vpop.f32.mrb[0].mxu0
      %v3199 = vadd.f32 0.0, %v3198
      %v3200 = vpop.f32.mrb[0].mxu0
      %v3201 = vpop.f32.mrb[0].mxu0
      %v3202 = vadd.f32 0.0, %v3201
      %v3203 = vpop.f32.mrb[0].mxu0
      %3204 = vmatprep.mubr.bf16.mxu0 0
      %3205 = vmatmul.mubr.bf16.gmra.mrb[0].mxu0 %v3150
      %v3206 = vpop.f32.mrb[0].mxu0
      %v3207 = vadd.f32 0.0, %v3206
      %v3208 = vpop.f32.mrb[0].mxu0
      %v3209 = vpop.f32.mrb[0].mxu0
      %v3210 = vadd.f32 0.0, %v3209
      %v3211 = vpop.f32.mrb[0].mxu0
      %3212 = vmatprep.mubr.bf16.mxu0 0
      %3213 = vmatmul.mubr.bf16.gmra.mrb[0].mxu0 %v3151
      %v3214 = vpop.f32.mrb[0].mxu0
      %v3215 = vadd.f32 0.0, %v3214
      %v3216 = vpop.f32.mrb[0].mxu0
      %v3217 = vpop.f32.mrb[0].mxu0
      %v3218 = vadd.f32 0.0, %v3217
      %v3219 = vpop.f32.mrb[0].mxu0
      %3220 = vmatprep.mubr.bf16.mxu0 0
      %3221 = vmatmul.mubr.bf16.gmra.mrb[0].mxu0 %v3152
      %v3222 = vpop.f32.mrb[0].mxu0
      %v3223 = vadd.f32 0.0, %v3222
      %v3224 = vpop.f32.mrb[0].mxu0
      %v3225 = vpop.f32.mrb[0].mxu0
      %v3226 = vadd.f32 0.0, %v3225
      %v3227 = vpop.f32.mrb[0].mxu0
      %3228 = vmatprep.mubr.bf16.mxu0 0
      %3229 = vmatmul.mubr.bf16.gmra.mrb[0].mxu0 %v3153
      %v3230 = vpop.f32.mrb[0].mxu0
      %v3231 = vadd.f32 0.0, %v3230
      %v3232 = vpop.f32.mrb[0].mxu0
      %v3233 = vpop.f32.mrb[0].mxu0
      %v3234 = vadd.f32 0.0, %v3233
      %v3235 = vpop.f32.mrb[0].mxu0
      %3236 = vmatprep.mubr.bf16.mxu0 0
      %3237 = vmatmul.mubr.bf16.gmra.mrb[0].mxu0 %v3154
      %v3238 = vpop.f32.mrb[0].mxu0
      %v3239 = vadd.f32 0.0, %v3238
      %v3240 = vpop.f32.mrb[0].mxu0
      %v3241 = vpop.f32.mrb[0].mxu0
      %v3242 = vadd.f32 0.0, %v3241
      %v3243 = vpop.f32.mrb[0].mxu0
      %3244 = vmatprep.mubr.bf16.mxu0 0
      %3245 = vmatmul.mubr.bf16.gmra.mrb[0].mxu0 %v3155
      %v3246 = vpop.f32.mrb[0].mxu0
      %v3247 = vadd.f32 0.0, %v3246
      %v3248 = vpop.f32.mrb[0].mxu0
      %v3249 = vpop.f32.mrb[0].mxu0
      %v3250 = vadd.f32 0.0, %v3249
      %v3251 = vpop.f32.mrb[0].mxu0
      %3252 = vdwg.mxu0
      %v3253 = vpack.c.bf16 %v3194, %v3191
      %v3254 = vpack.c.bf16 %v3202, %v3199
      %v3255 = vpack.c.bf16 %v3210, %v3207
      %v3256 = vpack.c.bf16 %v3218, %v3215
      %v3257 = vpack.c.bf16 %v3226, %v3223
      %v3258 = vpack.c.bf16 %v3234, %v3231
      %v3259 = vpack.c.bf16 %v3242, %v3239
      %v3260 = vpack.c.bf16 %v3250, %v3247
      %v3261 = vld [vmem:[%s9] sm:$0xf]
      %v3262 = vld [vmem:[%s9 + $0x4] sm:$0xf]
      %v3263 = vld [vmem:[%s9 + $0x8] sm:$0xf]
      %v3264 = vld [vmem:[%s9 + $0xc] sm:$0xf]
      %v3265 = vld [vmem:[%s9 + $0x10] sm:$0xf]
      %v3266 = vld [vmem:[%s9 + $0x14] sm:$0xf]
      %v3267 = vld [vmem:[%s9 + $0x18] sm:$0xf]
      %v3268 = vld [vmem:[%s9 + $0x1c] sm:$0xf]
      %v3269 = vld [vmem:[%s9 + $0x20] sm:$0xf]
      %v3270 = vld [vmem:[%s9 + $0x24] sm:$0xf]
      %v3271 = vld [vmem:[%s9 + $0x28] sm:$0xf]
      %v3272 = vld [vmem:[%s9 + $0x2c] sm:$0xf]
      %v3273 = vld [vmem:[%s9 + $0x30] sm:$0xf]
      %v3274 = vld [vmem:[%s9 + $0x34] sm:$0xf]
      %v3275 = vld [vmem:[%s9 + $0x38] sm:$0xf]
      %v3276 = vld [vmem:[%s9 + $0x3c] sm:$0xf]
      %v3277 = vld [vmem:[%s9 + $0x40] sm:$0xf]
      %v3278 = vld [vmem:[%s9 + $0x44] sm:$0xf]
      %v3279 = vld [vmem:[%s9 + $0x48] sm:$0xf]
      %v3280 = vld [vmem:[%s9 + $0x4c] sm:$0xf]
      %v3281 = vld [vmem:[%s9 + $0x50] sm:$0xf]
      %v3282 = vld [vmem:[%s9 + $0x54] sm:$0xf]
      %v3283 = vld [vmem:[%s9 + $0x58] sm:$0xf]
      %v3284 = vld [vmem:[%s9 + $0x5c] sm:$0xf]
      %v3285 = vld [vmem:[%s9 + $0x60] sm:$0xf]
      %v3286 = vld [vmem:[%s9 + $0x64] sm:$0xf]
      %v3287 = vld [vmem:[%s9 + $0x68] sm:$0xf]
      %v3288 = vld [vmem:[%s9 + $0x6c] sm:$0xf]
      %v3289 = vld [vmem:[%s9 + $0x70] sm:$0xf]
      %v3290 = vld [vmem:[%s9 + $0x74] sm:$0xf]
      %v3291 = vld [vmem:[%s9 + $0x78] sm:$0xf]
      %v3292 = vld [vmem:[%s9 + $0x7c] sm:$0xf]
      %v3293 = vld [vmem:[%s9 + $0x80] sm:$0xf]
      %v3294 = vld [vmem:[%s9 + $0x84] sm:$0xf]
      %v3295 = vld [vmem:[%s9 + $0x88] sm:$0xf]
      %v3296 = vld [vmem:[%s9 + $0x8c] sm:$0xf]
      %v3297 = vld [vmem:[%s9 + $0x90] sm:$0xf]
      %v3298 = vld [vmem:[%s9 + $0x94] sm:$0xf]
      %v3299 = vld [vmem:[%s9 + $0x98] sm:$0xf]
      %v3300 = vld [vmem:[%s9 + $0x9c] sm:$0xf]
      %v3301 = vld [vmem:[%s9 + $0xa0] sm:$0xf]
      %v3302 = vld [vmem:[%s9 + $0xa4] sm:$0xf]
      %v3303 = vld [vmem:[%s9 + $0xa8] sm:$0xf]
      %v3304 = vld [vmem:[%s9 + $0xac] sm:$0xf]
      %v3305 = vld [vmem:[%s9 + $0xb0] sm:$0xf]
      %v3306 = vld [vmem:[%s9 + $0xb4] sm:$0xf]
      %v3307 = vld [vmem:[%s9 + $0xb8] sm:$0xf]
      %v3308 = vld [vmem:[%s9 + $0xbc] sm:$0xf]
      %v3309 = vld [vmem:[%s9 + $0xc0] sm:$0xf]
      %v3310 = vld [vmem:[%s9 + $0xc4] sm:$0xf]
      %v3311 = vld [vmem:[%s9 + $0xc8] sm:$0xf]
      %v3312 = vld [vmem:[%s9 + $0xcc] sm:$0xf]
      %v3313 = vld [vmem:[%s9 + $0xd0] sm:$0xf]
      %v3314 = vld [vmem:[%s9 + $0xd4] sm:$0xf]
      %v3315 = vld [vmem:[%s9 + $0xd8] sm:$0xf]
      %v3316 = vld [vmem:[%s9 + $0xdc] sm:$0xf]
      %v3317 = vld [vmem:[%s9 + $0xe0] sm:$0xf]
      %v3318 = vld [vmem:[%s9 + $0xe4] sm:$0xf]
      %v3319 = vld [vmem:[%s9 + $0xe8] sm:$0xf]
      %v3320 = vld [vmem:[%s9 + $0xec] sm:$0xf]
      %v3321 = vld [vmem:[%s9 + $0xf0] sm:$0xf]
      %v3322 = vld [vmem:[%s9 + $0xf4] sm:$0xf]
      %v3323 = vld [vmem:[%s9 + $0xf8] sm:$0xf]
      %v3324 = vld [vmem:[%s9 + $0xfc] sm:$0xf]
      %v3325 = vld [vmem:[%s10] sm:$0x1]
      %v3327 = vlaneseq
      %v3328 = vshrl.u32 %v3327, 7
      %v3329 = vsub.s32 0, %v3328
      %v3330 = vrot.slane %v3325, %v3329
      %v3396 = vunpack.c.l.b16 %v3261
      %v3397 = vunpack.c.l.b16 %v3262
      %v3398 = vunpack.c.l.b16 %v3263
      %v3399 = vunpack.c.l.b16 %v3264
      %v3400 = vunpack.c.l.b16 %v3265
      %v3401 = vunpack.c.l.b16 %v3266
      %v3402 = vunpack.c.l.b16 %v3267
      %v3403 = vunpack.c.l.b16 %v3268
      %v3404 = vunpack.c.l.b16 %v3269
      %v3405 = vunpack.c.l.b16 %v3270
      %v3406 = vunpack.c.l.b16 %v3271
      %v3407 = vunpack.c.l.b16 %v3272
      %v3408 = vunpack.c.l.b16 %v3273
      %v3409 = vunpack.c.l.b16 %v3274
      %v3410 = vunpack.c.l.b16 %v3275
      %v3411 = vunpack.c.l.b16 %v3276
      %v3412 = vunpack.c.l.b16 %v3277
      %v3413 = vunpack.c.l.b16 %v3278
      %v3414 = vunpack.c.l.b16 %v3279
      %v3415 = vunpack.c.l.b16 %v3280
      %v3416 = vunpack.c.l.b16 %v3281
      %v3417 = vunpack.c.l.b16 %v3282
      %v3418 = vunpack.c.l.b16 %v3283
      %v3419 = vunpack.c.l.b16 %v3284
      %v3420 = vunpack.c.l.b16 %v3285
      %v3421 = vunpack.c.l.b16 %v3286
      %v3422 = vunpack.c.l.b16 %v3287
      %v3423 = vunpack.c.l.b16 %v3288
      %v3424 = vunpack.c.l.b16 %v3289
      %v3425 = vunpack.c.l.b16 %v3290
      %v3426 = vunpack.c.l.b16 %v3291
      %v3427 = vunpack.c.l.b16 %v3292
      %v3428 = vunpack.c.l.b16 %v3293
      %v3429 = vunpack.c.l.b16 %v3294
      %v3430 = vunpack.c.l.b16 %v3295
      %v3431 = vunpack.c.l.b16 %v3296
      %v3432 = vunpack.c.l.b16 %v3297
      %v3433 = vunpack.c.l.b16 %v3298
      %v3434 = vunpack.c.l.b16 %v3299
      %v3435 = vunpack.c.l.b16 %v3300
      %v3436 = vunpack.c.l.b16 %v3301
      %v3437 = vunpack.c.l.b16 %v3302
      %v3438 = vunpack.c.l.b16 %v3303
      %v3439 = vunpack.c.l.b16 %v3304
      %v3440 = vunpack.c.l.b16 %v3305
      %v3441 = vunpack.c.l.b16 %v3306
      %v3442 = vunpack.c.l.b16 %v3307
      %v3443 = vunpack.c.l.b16 %v3308
      %v3444 = vunpack.c.l.b16 %v3309
      %v3445 = vunpack.c.l.b16 %v3310
      %v3446 = vunpack.c.l.b16 %v3311
      %v3447 = vunpack.c.l.b16 %v3312
      %v3448 = vunpack.c.l.b16 %v3313
      %v3449 = vunpack.c.l.b16 %v3314
      %v3450 = vunpack.c.l.b16 %v3315
      %v3451 = vunpack.c.l.b16 %v3316
      %v3452 = vunpack.c.l.b16 %v3317
      %v3453 = vunpack.c.l.b16 %v3318
      %v3454 = vunpack.c.l.b16 %v3319
      %v3455 = vunpack.c.l.b16 %v3320
      %v3456 = vunpack.c.l.b16 %v3321
      %v3457 = vunpack.c.l.b16 %v3322
      %v3458 = vunpack.c.l.b16 %v3323
      %v3459 = vunpack.c.l.b16 %v3324
      %v3460 = vpack.c.b16 %v3397, %v3396
      %v3461 = vpack.c.b16 %v3399, %v3398
      %v3462 = vpack.c.b16 %v3401, %v3400
      %v3463 = vpack.c.b16 %v3403, %v3402
      %v3464 = vpack.c.b16 %v3405, %v3404
      %v3465 = vpack.c.b16 %v3407, %v3406
      %v3466 = vpack.c.b16 %v3409, %v3408
      %v3467 = vpack.c.b16 %v3411, %v3410
      %v3468 = vpack.c.b16 %v3413, %v3412
      %v3469 = vpack.c.b16 %v3415, %v3414
      %v3470 = vpack.c.b16 %v3417, %v3416
      %v3471 = vpack.c.b16 %v3419, %v3418
      %v3472 = vpack.c.b16 %v3421, %v3420
      %v3473 = vpack.c.b16 %v3423, %v3422
      %v3474 = vpack.c.b16 %v3425, %v3424
      %v3475 = vpack.c.b16 %v3427, %v3426
      %v3476 = vpack.c.b16 %v3429, %v3428
      %v3477 = vpack.c.b16 %v3431, %v3430
      %v3478 = vpack.c.b16 %v3433, %v3432
      %v3479 = vpack.c.b16 %v3435, %v3434
      %v3480 = vpack.c.b16 %v3437, %v3436
      %v3481 = vpack.c.b16 %v3439, %v3438
      %v3482 = vpack.c.b16 %v3441, %v3440
      %v3483 = vpack.c.b16 %v3443, %v3442
      %v3484 = vpack.c.b16 %v3445, %v3444
      %v3485 = vpack.c.b16 %v3447, %v3446
      %v3486 = vpack.c.b16 %v3449, %v3448
      %v3487 = vpack.c.b16 %v3451, %v3450
      %v3488 = vpack.c.b16 %v3453, %v3452
      %v3489 = vpack.c.b16 %v3455, %v3454
      %v3490 = vpack.c.b16 %v3457, %v3456
      %v3491 = vpack.c.b16 %v3459, %v3458
      %3524 = vmatprep.subr.bf16.mxu0 0
      %3525 = vmatpush1.bf16.msra.mxu0 %v3460
      %3526 = vmatprep.subr.bf16.mxu0 0
      %3527 = vmatpush1.bf16.msra.mxu0 %v3461
      %3528 = vmatprep.subr.bf16.mxu0 0
      %3529 = vmatpush1.bf16.msra.mxu0 %v3462
      %3530 = vmatprep.subr.bf16.mxu0 0
      %3531 = vmatpush1.bf16.msra.mxu0 %v3463
      %3532 = vmatprep.subr.bf16.mxu0 0
      %3533 = vmatpush1.bf16.msra.mxu0 %v3464
      %3534 = vmatprep.subr.bf16.mxu0 0
      %3535 = vmatpush1.bf16.msra.mxu0 %v3465
      %3536 = vmatprep.subr.bf16.mxu0 0
      %3537 = vmatpush1.bf16.msra.mxu0 %v3466
      %3538 = vmatprep.subr.bf16.mxu0 0
      %3539 = vmatpush1.bf16.msra.mxu0 %v3467
      %3540 = vmatprep.subr.bf16.mxu0 0
      %3541 = vmatpush1.bf16.msra.mxu0 %v3468
      %3542 = vmatprep.subr.bf16.mxu0 0
      %3543 = vmatpush1.bf16.msra.mxu0 %v3469
      %3544 = vmatprep.subr.bf16.mxu0 0
      %3545 = vmatpush1.bf16.msra.mxu0 %v3470
      %3546 = vmatprep.subr.bf16.mxu0 0
      %3547 = vmatpush1.bf16.msra.mxu0 %v3471
      %3548 = vmatprep.subr.bf16.mxu0 0
      %3549 = vmatpush1.bf16.msra.mxu0 %v3472
      %3550 = vmatprep.subr.bf16.mxu0 0
      %3551 = vmatpush1.bf16.msra.mxu0 %v3473
      %3552 = vmatprep.subr.bf16.mxu0 0
      %3553 = vmatpush1.bf16.msra.mxu0 %v3474
      %3554 = vmatprep.subr.bf16.mxu0 0
      %3555 = vmatpush1.bf16.msra.mxu0 %v3475
      %3556 = vmatprep.mubr.bf16.mxu0 %v2513
      %3557 = vmatmul.mubr.bf16.gmra.mrb[0].mxu0 %v2143
      %v3558 = vpop.f32.mrb[0].mxu0
      %v3559 = vadd.f32 %v3330, %v3558
      %v3560 = vpop.f32.mrb[0].mxu0
      %v3561 = vpop.f32.mrb[0].mxu0
      %v3562 = vadd.f32 %v3330, %v3561
      %v3563 = vpop.f32.mrb[0].mxu0
      %3564 = vmatprep.mubr.bf16.mxu0 %v2514
      %3565 = vmatmul.mubr.bf16.gmra.mrb[0].mxu0 %v2144
      %v3566 = vpop.f32.mrb[0].mxu0
      %v3567 = vadd.f32 %v3330, %v3566
      %v3568 = vpop.f32.mrb[0].mxu0
      %v3569 = vpop.f32.mrb[0].mxu0
      %v3570 = vadd.f32 %v3330, %v3569
      %v3571 = vpop.f32.mrb[0].mxu0
      %3572 = vmatprep.mubr.bf16.mxu0 %v2515
      %3573 = vmatmul.mubr.bf16.gmra.mrb[0].mxu0 %v2145
      %v3574 = vpop.f32.mrb[0].mxu0
      %v3575 = vadd.f32 %v3330, %v3574
      %v3576 = vpop.f32.mrb[0].mxu0
      %v3577 = vpop.f32.mrb[0].mxu0
      %v3578 = vadd.f32 %v3330, %v3577
      %v3579 = vpop.f32.mrb[0].mxu0
      %3580 = vmatprep.mubr.bf16.mxu0 %v2516
      %3581 = vmatmul.mubr.bf16.gmra.mrb[0].mxu0 %v2146
      %v3582 = vpop.f32.mrb[0].mxu0
      %v3583 = vadd.f32 %v3330, %v3582
      %v3584 = vpop.f32.mrb[0].mxu0
      %v3585 = vpop.f32.mrb[0].mxu0
      %v3586 = vadd.f32 %v3330, %v3585
      %v3587 = vpop.f32.mrb[0].mxu0
      %3588 = vmatprep.mubr.bf16.mxu0 %v2517
      %3589 = vmatmul.mubr.bf16.gmra.mrb[0].mxu0 %v2147
      %v3590 = vpop.f32.mrb[0].mxu0
      %v3591 = vadd.f32 %v3330, %v3590
      %v3592 = vpop.f32.mrb[0].mxu0
      %v3593 = vpop.f32.mrb[0].mxu0
      %v3594 = vadd.f32 %v3330, %v3593
      %v3595 = vpop.f32.mrb[0].mxu0
      %3596 = vmatprep.mubr.bf16.mxu0 %v2518
      %3597 = vmatmul.mubr.bf16.gmra.mrb[0].mxu0 %v2148
      %v3598 = vpop.f32.mrb[0].mxu0
      %v3599 = vadd.f32 %v3330, %v3598
      %v3600 = vpop.f32.mrb[0].mxu0
      %v3601 = vpop.f32.mrb[0].mxu0
      %v3602 = vadd.f32 %v3330, %v3601
      %v3603 = vpop.f32.mrb[0].mxu0
      %3604 = vmatprep.mubr.bf16.mxu0 %v2519
      %3605 = vmatmul.mubr.bf16.gmra.mrb[0].mxu0 %v2149
      %v3606 = vpop.f32.mrb[0].mxu0
      %v3607 = vadd.f32 %v3330, %v3606
      %v3608 = vpop.f32.mrb[0].mxu0
      %v3609 = vpop.f32.mrb[0].mxu0
      %v3610 = vadd.f32 %v3330, %v3609
      %v3611 = vpop.f32.mrb[0].mxu0
      %3612 = vmatprep.mubr.bf16.mxu0 %v2520
      %3613 = vmatmul.mubr.bf16.gmra.mrb[0].mxu0 %v2150
      %v3614 = vpop.f32.mrb[0].mxu0
      %v3615 = vadd.f32 %v3330, %v3614
      %v3616 = vpop.f32.mrb[0].mxu0
      %v3617 = vpop.f32.mrb[0].mxu0
      %v3618 = vadd.f32 %v3330, %v3617
      %v3619 = vpop.f32.mrb[0].mxu0
      %3620 = vdwg.mxu0
      %3621 = vmatprep.subr.bf16.mxu0 0
      %3622 = vmatpush1.bf16.msra.mxu0 %v3476
      %3623 = vmatprep.subr.bf16.mxu0 0
      %3624 = vmatpush1.bf16.msra.mxu0 %v3477
      %3625 = vmatprep.subr.bf16.mxu0 0
      %3626 = vmatpush1.bf16.msra.mxu0 %v3478
      %3627 = vmatprep.subr.bf16.mxu0 0
      %3628 = vmatpush1.bf16.msra.mxu0 %v3479
      %3629 = vmatprep.subr.bf16.mxu0 0
      %3630 = vmatpush1.bf16.msra.mxu0 %v3480
      %3631 = vmatprep.subr.bf16.mxu0 0
      %3632 = vmatpush1.bf16.msra.mxu0 %v3481
      %3633 = vmatprep.subr.bf16.mxu0 0
      %3634 = vmatpush1.bf16.msra.mxu0 %v3482
      %3635 = vmatprep.subr.bf16.mxu0 0
      %3636 = vmatpush1.bf16.msra.mxu0 %v3483
      %3637 = vmatprep.subr.bf16.mxu0 0
      %3638 = vmatpush1.bf16.msra.mxu0 %v3484
      %3639 = vmatprep.subr.bf16.mxu0 0
      %3640 = vmatpush1.bf16.msra.mxu0 %v3485
      %3641 = vmatprep.subr.bf16.mxu0 0
      %3642 = vmatpush1.bf16.msra.mxu0 %v3486
      %3643 = vmatprep.subr.bf16.mxu0 0
      %3644 = vmatpush1.bf16.msra.mxu0 %v3487
      %3645 = vmatprep.subr.bf16.mxu0 0
      %3646 = vmatpush1.bf16.msra.mxu0 %v3488
      %3647 = vmatprep.subr.bf16.mxu0 0
      %3648 = vmatpush1.bf16.msra.mxu0 %v3489
      %3649 = vmatprep.subr.bf16.mxu0 0
      %3650 = vmatpush1.bf16.msra.mxu0 %v3490
      %3651 = vmatprep.subr.bf16.mxu0 0
      %3652 = vmatpush1.bf16.msra.mxu0 %v3491
      %3653 = vmatprep.mubr.bf16.mxu0 %v3253
      %3654 = vmatmul.mubr.bf16.gmra.mrb[0].mxu0 %v2883
      %v3655 = vpop.f32.mrb[0].mxu0
      %v3656 = vadd.f32 %v3559, %v3655
      %v3657 = vpop.f32.mrb[0].mxu0
      %v3658 = vpop.f32.mrb[0].mxu0
      %v3659 = vadd.f32 %v3562, %v3658
      %v3660 = vpop.f32.mrb[0].mxu0
      %3661 = vmatprep.mubr.bf16.mxu0 %v3254
      %3662 = vmatmul.mubr.bf16.gmra.mrb[0].mxu0 %v2884
      %v3663 = vpop.f32.mrb[0].mxu0
      %v3664 = vadd.f32 %v3567, %v3663
      %v3665 = vpop.f32.mrb[0].mxu0
      %v3666 = vpop.f32.mrb[0].mxu0
      %v3667 = vadd.f32 %v3570, %v3666
      %v3668 = vpop.f32.mrb[0].mxu0
      %3669 = vmatprep.mubr.bf16.mxu0 %v3255
      %3670 = vmatmul.mubr.bf16.gmra.mrb[0].mxu0 %v2885
      %v3671 = vpop.f32.mrb[0].mxu0
      %v3672 = vadd.f32 %v3575, %v3671
      %v3673 = vpop.f32.mrb[0].mxu0
      %v3674 = vpop.f32.mrb[0].mxu0
      %v3675 = vadd.f32 %v3578, %v3674
      %v3676 = vpop.f32.mrb[0].mxu0
      %3677 = vmatprep.mubr.bf16.mxu0 %v3256
      %3678 = vmatmul.mubr.bf16.gmra.mrb[0].mxu0 %v2886
      %v3679 = vpop.f32.mrb[0].mxu0
      %v3680 = vadd.f32 %v3583, %v3679
      %v3681 = vpop.f32.mrb[0].mxu0
      %v3682 = vpop.f32.mrb[0].mxu0
      %v3683 = vadd.f32 %v3586, %v3682
      %v3684 = vpop.f32.mrb[0].mxu0
      %3685 = vmatprep.mubr.bf16.mxu0 %v3257
      %3686 = vmatmul.mubr.bf16.gmra.mrb[0].mxu0 %v2887
      %v3687 = vpop.f32.mrb[0].mxu0
      %v3688 = vadd.f32 %v3591, %v3687
      %v3689 = vpop.f32.mrb[0].mxu0
      %v3690 = vpop.f32.mrb[0].mxu0
      %v3691 = vadd.f32 %v3594, %v3690
      %v3692 = vpop.f32.mrb[0].mxu0
      %3693 = vmatprep.mubr.bf16.mxu0 %v3258
      %3694 = vmatmul.mubr.bf16.gmra.mrb[0].mxu0 %v2888
      %v3695 = vpop.f32.mrb[0].mxu0
      %v3696 = vadd.f32 %v3599, %v3695
      %v3697 = vpop.f32.mrb[0].mxu0
      %v3698 = vpop.f32.mrb[0].mxu0
      %v3699 = vadd.f32 %v3602, %v3698
      %v3700 = vpop.f32.mrb[0].mxu0
      %3701 = vmatprep.mubr.bf16.mxu0 %v3259
      %3702 = vmatmul.mubr.bf16.gmra.mrb[0].mxu0 %v2889
      %v3703 = vpop.f32.mrb[0].mxu0
      %v3704 = vadd.f32 %v3607, %v3703
      %v3705 = vpop.f32.mrb[0].mxu0
      %v3706 = vpop.f32.mrb[0].mxu0
      %v3707 = vadd.f32 %v3610, %v3706
      %v3708 = vpop.f32.mrb[0].mxu0
      %3709 = vmatprep.mubr.bf16.mxu0 %v3260
      %3710 = vmatmul.mubr.bf16.gmra.mrb[0].mxu0 %v2890
      %v3711 = vpop.f32.mrb[0].mxu0
      %v3712 = vadd.f32 %v3615, %v3711
      %v3713 = vpop.f32.mrb[0].mxu0
      %v3714 = vpop.f32.mrb[0].mxu0
      %v3715 = vadd.f32 %v3618, %v3714
      %v3716 = vpop.f32.mrb[0].mxu0
      %3717 = vdwg.mxu0
      %v3718 = vadd.f32 %v689, %v3656
      %v3719 = vadd.f32 %v690, %v3659
      %v3720 = vadd.f32 %v691, %v3664
      %v3721 = vadd.f32 %v692, %v3667
      %v3722 = vadd.f32 %v693, %v3672
      %v3723 = vadd.f32 %v694, %v3675
      %v3724 = vadd.f32 %v695, %v3680
      %v3725 = vadd.f32 %v696, %v3683
      %v3726 = vadd.f32 %v697, %v3688
      %v3727 = vadd.f32 %v698, %v3691
      %v3728 = vadd.f32 %v699, %v3696
      %v3729 = vadd.f32 %v700, %v3699
      %v3730 = vadd.f32 %v701, %v3704
      %v3731 = vadd.f32 %v702, %v3707
      %v3732 = vadd.f32 %v703, %v3712
      %v3733 = vadd.f32 %v704, %v3715
      %v3734 = vld [vmem:[%s11] sm:$0x1]
      %v3735 = vld [vmem:[%s12] sm:$0x1]
      %v3736 = vsel %vm785, %v3718, 0.0
      %3737 = vadd.xlane.f32.xlu0 %v3736
      %v3738 = vpop.xlane.xlu0 %3737
      %v3739 = vsel %vm785, %v3719, 0.0
      %3740 = vadd.xlane.f32.xlu0 %v3739
      %v3741 = vpop.xlane.xlu0 %3740
      %v3742 = vsel %vm785, %v3720, 0.0
      %3743 = vadd.xlane.f32.xlu0 %v3742
      %v3744 = vpop.xlane.xlu0 %3743
      %v3745 = vsel %vm785, %v3721, 0.0
      %3746 = vadd.xlane.f32.xlu0 %v3745
      %v3747 = vpop.xlane.xlu0 %3746
      %v3748 = vsel %vm785, %v3722, 0.0
      %3749 = vadd.xlane.f32.xlu0 %v3748
      %v3750 = vpop.xlane.xlu0 %3749
      %v3751 = vsel %vm785, %v3723, 0.0
      %3752 = vadd.xlane.f32.xlu0 %v3751
      %v3753 = vpop.xlane.xlu0 %3752
      %v3754 = vsel %vm785, %v3724, 0.0
      %3755 = vadd.xlane.f32.xlu0 %v3754
      %v3756 = vpop.xlane.xlu0 %3755
      %v3757 = vsel %vm785, %v3725, 0.0
      %3758 = vadd.xlane.f32.xlu0 %v3757
      %v3759 = vpop.xlane.xlu0 %3758
      %v3760 = vsel %vm785, %v3726, 0.0
      %3761 = vadd.xlane.f32.xlu0 %v3760
      %v3762 = vpop.xlane.xlu0 %3761
      %v3763 = vsel %vm785, %v3727, 0.0
      %3764 = vadd.xlane.f32.xlu0 %v3763
      %v3765 = vpop.xlane.xlu0 %3764
      %v3766 = vsel %vm785, %v3728, 0.0
      %3767 = vadd.xlane.f32.xlu0 %v3766
      %v3768 = vpop.xlane.xlu0 %3767
      %v3769 = vsel %vm785, %v3729, 0.0
      %3770 = vadd.xlane.f32.xlu0 %v3769
      %v3771 = vpop.xlane.xlu0 %3770
      %v3772 = vsel %vm785, %v3730, 0.0
      %3773 = vadd.xlane.f32.xlu0 %v3772
      %v3774 = vpop.xlane.xlu0 %3773
      %v3775 = vsel %vm785, %v3731, 0.0
      %3776 = vadd.xlane.f32.xlu0 %v3775
      %v3777 = vpop.xlane.xlu0 %3776
      %v3778 = vsel %vm785, %v3732, 0.0
      %3779 = vadd.xlane.f32.xlu0 %v3778
      %v3780 = vpop.xlane.xlu0 %3779
      %v3781 = vsel %vm785, %v3733, 0.0
      %3782 = vadd.xlane.f32.xlu0 %v3781
      %v3783 = vpop.xlane.xlu0 %3782
      %v3784 = vrcp.pop 32.0
      %v3785 = vmul.f32 %v3738, %v3784
      %v3786 = vmul.f32 %v3741, %v3784
      %v3787 = vmul.f32 %v3744, %v3784
      %v3788 = vmul.f32 %v3747, %v3784
      %v3789 = vmul.f32 %v3750, %v3784
      %v3790 = vmul.f32 %v3753, %v3784
      %v3791 = vmul.f32 %v3756, %v3784
      %v3792 = vmul.f32 %v3759, %v3784
      %v3793 = vmul.f32 %v3762, %v3784
      %v3794 = vmul.f32 %v3765, %v3784
      %v3795 = vmul.f32 %v3768, %v3784
      %v3796 = vmul.f32 %v3771, %v3784
      %v3797 = vmul.f32 %v3774, %v3784
      %v3798 = vmul.f32 %v3777, %v3784
      %v3799 = vmul.f32 %v3780, %v3784
      %v3800 = vmul.f32 %v3783, %v3784
      %v3801 = vsub.f32 %v3718, %v3785
      %v3802 = vsub.f32 %v3719, %v3786
      %v3803 = vsub.f32 %v3720, %v3787
      %v3804 = vsub.f32 %v3721, %v3788
      %v3805 = vsub.f32 %v3722, %v3789
      %v3806 = vsub.f32 %v3723, %v3790
      %v3807 = vsub.f32 %v3724, %v3791
      %v3808 = vsub.f32 %v3725, %v3792
      %v3809 = vsub.f32 %v3726, %v3793
      %v3810 = vsub.f32 %v3727, %v3794
      %v3811 = vsub.f32 %v3728, %v3795
      %v3812 = vsub.f32 %v3729, %v3796
      %v3813 = vsub.f32 %v3730, %v3797
      %v3814 = vsub.f32 %v3731, %v3798
      %v3815 = vsub.f32 %v3732, %v3799
      %v3816 = vsub.f32 %v3733, %v3800
      %v3817 = vmul.f32 %v3801, %v3801
      %v3818 = vmul.f32 %v3802, %v3802
      %v3819 = vmul.f32 %v3803, %v3803
      %v3820 = vmul.f32 %v3804, %v3804
      %v3821 = vmul.f32 %v3805, %v3805
      %v3822 = vmul.f32 %v3806, %v3806
      %v3823 = vmul.f32 %v3807, %v3807
      %v3824 = vmul.f32 %v3808, %v3808
      %v3825 = vmul.f32 %v3809, %v3809
      %v3826 = vmul.f32 %v3810, %v3810
      %v3827 = vmul.f32 %v3811, %v3811
      %v3828 = vmul.f32 %v3812, %v3812
      %v3829 = vmul.f32 %v3813, %v3813
      %v3830 = vmul.f32 %v3814, %v3814
      %v3831 = vmul.f32 %v3815, %v3815
      %v3832 = vmul.f32 %v3816, %v3816
      %v3833 = vsel %vm785, %v3817, 0.0
      %3834 = vadd.xlane.f32.xlu0 %v3833
      %v3835 = vpop.xlane.xlu0 %3834
      %v3836 = vsel %vm785, %v3818, 0.0
      %3837 = vadd.xlane.f32.xlu0 %v3836
      %v3838 = vpop.xlane.xlu0 %3837
      %v3839 = vsel %vm785, %v3819, 0.0
      %3840 = vadd.xlane.f32.xlu0 %v3839
      %v3841 = vpop.xlane.xlu0 %3840
      %v3842 = vsel %vm785, %v3820, 0.0
      %3843 = vadd.xlane.f32.xlu0 %v3842
      %v3844 = vpop.xlane.xlu0 %3843
      %v3845 = vsel %vm785, %v3821, 0.0
      %3846 = vadd.xlane.f32.xlu0 %v3845
      %v3847 = vpop.xlane.xlu0 %3846
      %v3848 = vsel %vm785, %v3822, 0.0
      %3849 = vadd.xlane.f32.xlu0 %v3848
      %v3850 = vpop.xlane.xlu0 %3849
      %v3851 = vsel %vm785, %v3823, 0.0
      %3852 = vadd.xlane.f32.xlu0 %v3851
      %v3853 = vpop.xlane.xlu0 %3852
      %v3854 = vsel %vm785, %v3824, 0.0
      %3855 = vadd.xlane.f32.xlu0 %v3854
      %v3856 = vpop.xlane.xlu0 %3855
      %v3857 = vsel %vm785, %v3825, 0.0
      %3858 = vadd.xlane.f32.xlu0 %v3857
      %v3859 = vpop.xlane.xlu0 %3858
      %v3860 = vsel %vm785, %v3826, 0.0
      %3861 = vadd.xlane.f32.xlu0 %v3860
      %v3862 = vpop.xlane.xlu0 %3861
      %v3863 = vsel %vm785, %v3827, 0.0
      %3864 = vadd.xlane.f32.xlu0 %v3863
      %v3865 = vpop.xlane.xlu0 %3864
      %v3866 = vsel %vm785, %v3828, 0.0
      %3867 = vadd.xlane.f32.xlu0 %v3866
      %v3868 = vpop.xlane.xlu0 %3867
      %v3869 = vsel %vm785, %v3829, 0.0
      %3870 = vadd.xlane.f32.xlu0 %v3869
      %v3871 = vpop.xlane.xlu0 %3870
      %v3872 = vsel %vm785, %v3830, 0.0
      %3873 = vadd.xlane.f32.xlu0 %v3872
      %v3874 = vpop.xlane.xlu0 %3873
      %v3875 = vsel %vm785, %v3831, 0.0
      %3876 = vadd.xlane.f32.xlu0 %v3875
      %v3877 = vpop.xlane.xlu0 %3876
      %v3878 = vsel %vm785, %v3832, 0.0
      %3879 = vadd.xlane.f32.xlu0 %v3878
      %v3880 = vpop.xlane.xlu0 %3879
      %v3881 = vmul.f32 %v3835, %v3784
      %v3882 = vmul.f32 %v3838, %v3784
      %v3883 = vmul.f32 %v3841, %v3784
      %v3884 = vmul.f32 %v3844, %v3784
      %v3885 = vmul.f32 %v3847, %v3784
      %v3886 = vmul.f32 %v3850, %v3784
      %v3887 = vmul.f32 %v3853, %v3784
      %v3888 = vmul.f32 %v3856, %v3784
      %v3889 = vmul.f32 %v3859, %v3784
      %v3890 = vmul.f32 %v3862, %v3784
      %v3891 = vmul.f32 %v3865, %v3784
      %v3892 = vmul.f32 %v3868, %v3784
      %v3893 = vmul.f32 %v3871, %v3784
      %v3894 = vmul.f32 %v3874, %v3784
      %v3895 = vmul.f32 %v3877, %v3784
      %v3896 = vmul.f32 %v3880, %v3784
      %v3897 = vadd.f32 %v3881, 1e-05
      %v3898 = vadd.f32 %v3882, 1e-05
      %v3899 = vadd.f32 %v3883, 1e-05
      %v3900 = vadd.f32 %v3884, 1e-05
      %v3901 = vadd.f32 %v3885, 1e-05
      %v3902 = vadd.f32 %v3886, 1e-05
      %v3903 = vadd.f32 %v3887, 1e-05
      %v3904 = vadd.f32 %v3888, 1e-05
      %v3905 = vadd.f32 %v3889, 1e-05
      %v3906 = vadd.f32 %v3890, 1e-05
      %v3907 = vadd.f32 %v3891, 1e-05
      %v3908 = vadd.f32 %v3892, 1e-05
      %v3909 = vadd.f32 %v3893, 1e-05
      %v3910 = vadd.f32 %v3894, 1e-05
      %v3911 = vadd.f32 %v3895, 1e-05
      %v3912 = vadd.f32 %v3896, 1e-05
      %v3913 = vrsqrt.pop %v3897
      %v3914 = vrsqrt.pop %v3898
      %v3915 = vrsqrt.pop %v3899
      %v3916 = vrsqrt.pop %v3900
      %v3917 = vrsqrt.pop %v3901
      %v3918 = vrsqrt.pop %v3902
      %v3919 = vrsqrt.pop %v3903
      %v3920 = vrsqrt.pop %v3904
      %v3921 = vrsqrt.pop %v3905
      %v3922 = vrsqrt.pop %v3906
      %v3923 = vrsqrt.pop %v3907
      %v3924 = vrsqrt.pop %v3908
      %v3925 = vrsqrt.pop %v3909
      %v3926 = vrsqrt.pop %v3910
      %v3927 = vrsqrt.pop %v3911
      %v3928 = vrsqrt.pop %v3912
      %v3929 = vmul.f32 %v3801, %v3913
      %v3930 = vmul.f32 %v3802, %v3914
      %v3931 = vmul.f32 %v3803, %v3915
      %v3932 = vmul.f32 %v3804, %v3916
      %v3933 = vmul.f32 %v3805, %v3917
      %v3934 = vmul.f32 %v3806, %v3918
      %v3935 = vmul.f32 %v3807, %v3919
      %v3936 = vmul.f32 %v3808, %v3920
      %v3937 = vmul.f32 %v3809, %v3921
      %v3938 = vmul.f32 %v3810, %v3922
      %v3939 = vmul.f32 %v3811, %v3923
      %v3940 = vmul.f32 %v3812, %v3924
      %v3941 = vmul.f32 %v3813, %v3925
      %v3942 = vmul.f32 %v3814, %v3926
      %v3943 = vmul.f32 %v3815, %v3927
      %v3944 = vmul.f32 %v3816, %v3928
      %v3946 = vlaneseq
      %v3947 = vshrl.u32 %v3946, 7
      %v3948 = vsub.s32 0, %v3947
      %v3949 = vrot.slane %v3734, %v3948
      %v3951 = vmul.f32 %v3929, %v3949
      %v3952 = vmul.f32 %v3930, %v3949
      %v3953 = vmul.f32 %v3931, %v3949
      %v3954 = vmul.f32 %v3932, %v3949
      %v3955 = vmul.f32 %v3933, %v3949
      %v3956 = vmul.f32 %v3934, %v3949
      %v3957 = vmul.f32 %v3935, %v3949
      %v3958 = vmul.f32 %v3936, %v3949
      %v3959 = vmul.f32 %v3937, %v3949
      %v3960 = vmul.f32 %v3938, %v3949
      %v3961 = vmul.f32 %v3939, %v3949
      %v3962 = vmul.f32 %v3940, %v3949
      %v3963 = vmul.f32 %v3941, %v3949
      %v3964 = vmul.f32 %v3942, %v3949
      %v3965 = vmul.f32 %v3943, %v3949
      %v3966 = vmul.f32 %v3944, %v3949
      %v3968 = vlaneseq
      %v3969 = vshrl.u32 %v3968, 7
      %v3970 = vsub.s32 0, %v3969
      %v3971 = vrot.slane %v3735, %v3970
      %v3973 = vadd.f32 %v3951, %v3971
      %v3974 = vadd.f32 %v3952, %v3971
      %v3975 = vadd.f32 %v3953, %v3971
      %v3976 = vadd.f32 %v3954, %v3971
      %v3977 = vadd.f32 %v3955, %v3971
      %v3978 = vadd.f32 %v3956, %v3971
      %v3979 = vadd.f32 %v3957, %v3971
      %v3980 = vadd.f32 %v3958, %v3971
      %v3981 = vadd.f32 %v3959, %v3971
      %v3982 = vadd.f32 %v3960, %v3971
      %v3983 = vadd.f32 %v3961, %v3971
      %v3984 = vadd.f32 %v3962, %v3971
      %v3985 = vadd.f32 %v3963, %v3971
      %v3986 = vadd.f32 %v3964, %v3971
      %v3987 = vadd.f32 %v3965, %v3971
      %v3988 = vadd.f32 %v3966, %v3971
      %v3989 = vpack.c.bf16 %v3974, %v3973
      %v3990 = vpack.c.bf16 %v3976, %v3975
      %v3991 = vpack.c.bf16 %v3978, %v3977
      %v3992 = vpack.c.bf16 %v3980, %v3979
      %v3993 = vpack.c.bf16 %v3982, %v3981
      %v3994 = vpack.c.bf16 %v3984, %v3983
      %v3995 = vpack.c.bf16 %v3986, %v3985
      %v3996 = vpack.c.bf16 %v3988, %v3987
      %v3997 = vld [vmem:[%s13] sm:$0xf]
      %v3998 = vld [vmem:[%s13 + $0x4] sm:$0xf]
      %v3999 = vld [vmem:[%s13 + $0x8] sm:$0xf]
      %v4000 = vld [vmem:[%s13 + $0xc] sm:$0xf]
      %v4001 = vld [vmem:[%s14] sm:$0x1]
      %v4003 = vlaneseq
      %v4004 = vshrl.u32 %v4003, 7
      %v4005 = vsub.s32 0, %v4004
      %v4006 = vrot.slane %v4001, %v4005
      %v4012 = vunpack.c.l.b16 %v3997
      %v4013 = vunpack.c.l.b16 %v3998
      %v4014 = vunpack.c.l.b16 %v3999
      %v4015 = vunpack.c.l.b16 %v4000
      %v4016 = vpack.c.b16 %v4013, %v4012
      %v4017 = vpack.c.b16 %v4015, %v4014
      %v4021 = vsel %vm785, %v3989, 0
      %v4024 = vsel %vm785, %v3990, 0
      %v4027 = vsel %vm785, %v3991, 0
      %v4030 = vsel %vm785, %v3992, 0
      %v4033 = vsel %vm785, %v3993, 0
      %v4036 = vsel %vm785, %v3994, 0
      %v4039 = vsel %vm785, %v3995, 0
      %v4042 = vsel %vm785, %v3996, 0
      %4044 = vmatprep.subr.bf16.mxu0 0
      %4045 = vmatpush1.bf16.msra.mxu0 %v4016
      %4046 = vmatprep.subr.bf16.mxu0 0
      %4047 = vmatpush1.bf16.msra.mxu0 %v4017
      %4048 = vmatprep.subr.bf16.mxu0 0
      %4049 = vmatpush1.bf16.msra.mxu0 0
      %4050 = vmatprep.subr.bf16.mxu0 0
      %4051 = vmatpush1.bf16.msra.mxu0 0
      %4052 = vmatprep.subr.bf16.mxu0 0
      %4053 = vmatpush1.bf16.msra.mxu0 0
      %4054 = vmatprep.subr.bf16.mxu0 0
      %4055 = vmatpush1.bf16.msra.mxu0 0
      %4056 = vmatprep.subr.bf16.mxu0 0
      %4057 = vmatpush1.bf16.msra.mxu0 0
      %4058 = vmatprep.subr.bf16.mxu0 0
      %4059 = vmatpush1.bf16.msra.mxu0 0
      %4060 = vmatprep.subr.bf16.mxu0 0
      %4061 = vmatpush1.bf16.msra.mxu0 0
      %4062 = vmatprep.subr.bf16.mxu0 0
      %4063 = vmatpush1.bf16.msra.mxu0 0
      %4064 = vmatprep.subr.bf16.mxu0 0
      %4065 = vmatpush1.bf16.msra.mxu0 0
      %4066 = vmatprep.subr.bf16.mxu0 0
      %4067 = vmatpush1.bf16.msra.mxu0 0
      %4068 = vmatprep.subr.bf16.mxu0 0
      %4069 = vmatpush1.bf16.msra.mxu0 0
      %4070 = vmatprep.subr.bf16.mxu0 0
      %4071 = vmatpush1.bf16.msra.mxu0 0
      %4072 = vmatprep.subr.bf16.mxu0 0
      %4073 = vmatpush1.bf16.msra.mxu0 0
      %4074 = vmatprep.subr.bf16.mxu0 0
      %4075 = vmatpush1.bf16.msra.mxu0 0
      %4076 = vmatprep.mubr.bf16.mxu0 0
      %4077 = vmatmul.mubr.bf16.gmra.mrb[0].mxu0 %v4021
      %v4078 = vpop.f32.mrb[0].mxu0
      %v4079 = vadd.f32 %v4006, %v4078
      %v4080 = vpop.f32.mrb[0].mxu0
      %v4081 = vpop.f32.mrb[0].mxu0
      %v4082 = vadd.f32 %v4006, %v4081
      %v4083 = vpop.f32.mrb[0].mxu0
      %4084 = vmatprep.mubr.bf16.mxu0 0
      %4085 = vmatmul.mubr.bf16.gmra.mrb[0].mxu0 %v4024
      %v4086 = vpop.f32.mrb[0].mxu0
      %v4087 = vadd.f32 %v4006, %v4086
      %v4088 = vpop.f32.mrb[0].mxu0
      %v4089 = vpop.f32.mrb[0].mxu0
      %v4090 = vadd.f32 %v4006, %v4089
      %v4091 = vpop.f32.mrb[0].mxu0
      %4092 = vmatprep.mubr.bf16.mxu0 0
      %4093 = vmatmul.mubr.bf16.gmra.mrb[0].mxu0 %v4027
      %v4094 = vpop.f32.mrb[0].mxu0
      %v4095 = vadd.f32 %v4006, %v4094
      %v4096 = vpop.f32.mrb[0].mxu0
      %v4097 = vpop.f32.mrb[0].mxu0
      %v4098 = vadd.f32 %v4006, %v4097
      %v4099 = vpop.f32.mrb[0].mxu0
      %4100 = vmatprep.mubr.bf16.mxu0 0
      %4101 = vmatmul.mubr.bf16.gmra.mrb[0].mxu0 %v4030
      %v4102 = vpop.f32.mrb[0].mxu0
      %v4103 = vadd.f32 %v4006, %v4102
      %v4104 = vpop.f32.mrb[0].mxu0
      %v4105 = vpop.f32.mrb[0].mxu0
      %v4106 = vadd.f32 %v4006, %v4105
      %v4107 = vpop.f32.mrb[0].mxu0
      %4108 = vmatprep.mubr.bf16.mxu0 0
      %4109 = vmatmul.mubr.bf16.gmra.mrb[0].mxu0 %v4033
      %v4110 = vpop.f32.mrb[0].mxu0
      %v4111 = vadd.f32 %v4006, %v4110
      %v4112 = vpop.f32.mrb[0].mxu0
      %v4113 = vpop.f32.mrb[0].mxu0
      %v4114 = vadd.f32 %v4006, %v4113
      %v4115 = vpop.f32.mrb[0].mxu0
      %4116 = vmatprep.mubr.bf16.mxu0 0
      %4117 = vmatmul.mubr.bf16.gmra.mrb[0].mxu0 %v4036
      %v4118 = vpop.f32.mrb[0].mxu0
      %v4119 = vadd.f32 %v4006, %v4118
      %v4120 = vpop.f32.mrb[0].mxu0
      %v4121 = vpop.f32.mrb[0].mxu0
      %v4122 = vadd.f32 %v4006, %v4121
      %v4123 = vpop.f32.mrb[0].mxu0
      %4124 = vmatprep.mubr.bf16.mxu0 0
      %4125 = vmatmul.mubr.bf16.gmra.mrb[0].mxu0 %v4039
      %v4126 = vpop.f32.mrb[0].mxu0
      %v4127 = vadd.f32 %v4006, %v4126
      %v4128 = vpop.f32.mrb[0].mxu0
      %v4129 = vpop.f32.mrb[0].mxu0
      %v4130 = vadd.f32 %v4006, %v4129
      %v4131 = vpop.f32.mrb[0].mxu0
      %4132 = vmatprep.mubr.bf16.mxu0 0
      %4133 = vmatmul.mubr.bf16.gmra.mrb[0].mxu0 %v4042
      %v4134 = vpop.f32.mrb[0].mxu0
      %v4135 = vadd.f32 %v4006, %v4134
      %v4136 = vpop.f32.mrb[0].mxu0
      %v4137 = vpop.f32.mrb[0].mxu0
      %v4138 = vadd.f32 %v4006, %v4137
      %v4139 = vpop.f32.mrb[0].mxu0
      %4140 = vdwg.mxu0
      %v4141 = vmax.f32 %v4079, 0.0
      %v4142 = vmax.f32 %v4082, 0.0
      %v4143 = vmax.f32 %v4087, 0.0
      %v4144 = vmax.f32 %v4090, 0.0
      %v4145 = vmax.f32 %v4095, 0.0
      %v4146 = vmax.f32 %v4098, 0.0
      %v4147 = vmax.f32 %v4103, 0.0
      %v4148 = vmax.f32 %v4106, 0.0
      %v4149 = vmax.f32 %v4111, 0.0
      %v4150 = vmax.f32 %v4114, 0.0
      %v4151 = vmax.f32 %v4119, 0.0
      %v4152 = vmax.f32 %v4122, 0.0
      %v4153 = vmax.f32 %v4127, 0.0
      %v4154 = vmax.f32 %v4130, 0.0
      %v4155 = vmax.f32 %v4135, 0.0
      %v4156 = vmax.f32 %v4138, 0.0
      %v4157 = vpack.c.bf16 %v4142, %v4141
      %v4158 = vpack.c.bf16 %v4144, %v4143
      %v4159 = vpack.c.bf16 %v4146, %v4145
      %v4160 = vpack.c.bf16 %v4148, %v4147
      %v4161 = vpack.c.bf16 %v4150, %v4149
      %v4162 = vpack.c.bf16 %v4152, %v4151
      %v4163 = vpack.c.bf16 %v4154, %v4153
      %v4164 = vpack.c.bf16 %v4156, %v4155
      %v4165 = vld [vmem:[%s15] sm:$0xf]
      %v4166 = vld [vmem:[%s15 + $0x4] sm:$0xf]
      %v4167 = vld [vmem:[%s15 + $0x8] sm:$0xf]
      %v4168 = vld [vmem:[%s15 + $0xc] sm:$0xf]
      %v4169 = vld [vmem:[%s16] sm:$0x1]
      %v4171 = vlaneseq
      %v4172 = vshrl.u32 %v4171, 7
      %v4173 = vsub.s32 0, %v4172
      %v4174 = vrot.slane %v4169, %v4173
      %v4180 = vunpack.c.l.b16 %v4165
      %v4181 = vunpack.c.l.b16 %v4166
      %v4182 = vunpack.c.l.b16 %v4167
      %v4183 = vunpack.c.l.b16 %v4168
      %v4184 = vpack.c.b16 %v4181, %v4180
      %v4185 = vpack.c.b16 %v4183, %v4182
      %v4189 = vsel %vm785, %v4157, 0
      %v4192 = vsel %vm785, %v4158, 0
      %v4195 = vsel %vm785, %v4159, 0
      %v4198 = vsel %vm785, %v4160, 0
      %v4201 = vsel %vm785, %v4161, 0
      %v4204 = vsel %vm785, %v4162, 0
      %v4207 = vsel %vm785, %v4163, 0
      %v4210 = vsel %vm785, %v4164, 0
      %4212 = vmatprep.subr.bf16.mxu0 0
      %4213 = vmatpush1.bf16.msra.mxu0 %v4184
      %4214 = vmatprep.subr.bf16.mxu0 0
      %4215 = vmatpush1.bf16.msra.mxu0 %v4185
      %4216 = vmatprep.subr.bf16.mxu0 0
      %4217 = vmatpush1.bf16.msra.mxu0 0
      %4218 = vmatprep.subr.bf16.mxu0 0
      %4219 = vmatpush1.bf16.msra.mxu0 0
      %4220 = vmatprep.subr.bf16.mxu0 0
      %4221 = vmatpush1.bf16.msra.mxu0 0
      %4222 = vmatprep.subr.bf16.mxu0 0
      %4223 = vmatpush1.bf16.msra.mxu0 0
      %4224 = vmatprep.subr.bf16.mxu0 0
      %4225 = vmatpush1.bf16.msra.mxu0 0
      %4226 = vmatprep.subr.bf16.mxu0 0
      %4227 = vmatpush1.bf16.msra.mxu0 0
      %4228 = vmatprep.subr.bf16.mxu0 0
      %4229 = vmatpush1.bf16.msra.mxu0 0
      %4230 = vmatprep.subr.bf16.mxu0 0
      %4231 = vmatpush1.bf16.msra.mxu0 0
      %4232 = vmatprep.subr.bf16.mxu0 0
      %4233 = vmatpush1.bf16.msra.mxu0 0
      %4234 = vmatprep.subr.bf16.mxu0 0
      %4235 = vmatpush1.bf16.msra.mxu0 0
      %4236 = vmatprep.subr.bf16.mxu0 0
      %4237 = vmatpush1.bf16.msra.mxu0 0
      %4238 = vmatprep.subr.bf16.mxu0 0
      %4239 = vmatpush1.bf16.msra.mxu0 0
      %4240 = vmatprep.subr.bf16.mxu0 0
      %4241 = vmatpush1.bf16.msra.mxu0 0
      %4242 = vmatprep.subr.bf16.mxu0 0
      %4243 = vmatpush1.bf16.msra.mxu0 0
      %4244 = vmatprep.mubr.bf16.mxu0 0
      %4245 = vmatmul.mubr.bf16.gmra.mrb[0].mxu0 %v4189
      %v4246 = vpop.f32.mrb[0].mxu0
      %v4247 = vadd.f32 %v4174, %v4246
      %v4248 = vpop.f32.mrb[0].mxu0
      %v4249 = vpop.f32.mrb[0].mxu0
      %v4250 = vadd.f32 %v4174, %v4249
      %v4251 = vpop.f32.mrb[0].mxu0
      %4252 = vmatprep.mubr.bf16.mxu0 0
      %4253 = vmatmul.mubr.bf16.gmra.mrb[0].mxu0 %v4192
      %v4254 = vpop.f32.mrb[0].mxu0
      %v4255 = vadd.f32 %v4174, %v4254
      %v4256 = vpop.f32.mrb[0].mxu0
      %v4257 = vpop.f32.mrb[0].mxu0
      %v4258 = vadd.f32 %v4174, %v4257
      %v4259 = vpop.f32.mrb[0].mxu0
      %4260 = vmatprep.mubr.bf16.mxu0 0
      %4261 = vmatmul.mubr.bf16.gmra.mrb[0].mxu0 %v4195
      %v4262 = vpop.f32.mrb[0].mxu0
      %v4263 = vadd.f32 %v4174, %v4262
      %v4264 = vpop.f32.mrb[0].mxu0
      %v4265 = vpop.f32.mrb[0].mxu0
      %v4266 = vadd.f32 %v4174, %v4265
      %v4267 = vpop.f32.mrb[0].mxu0
      %4268 = vmatprep.mubr.bf16.mxu0 0
      %4269 = vmatmul.mubr.bf16.gmra.mrb[0].mxu0 %v4198
      %v4270 = vpop.f32.mrb[0].mxu0
      %v4271 = vadd.f32 %v4174, %v4270
      %v4272 = vpop.f32.mrb[0].mxu0
      %v4273 = vpop.f32.mrb[0].mxu0
      %v4274 = vadd.f32 %v4174, %v4273
      %v4275 = vpop.f32.mrb[0].mxu0
      %4276 = vmatprep.mubr.bf16.mxu0 0
      %4277 = vmatmul.mubr.bf16.gmra.mrb[0].mxu0 %v4201
      %v4278 = vpop.f32.mrb[0].mxu0
      %v4279 = vadd.f32 %v4174, %v4278
      %v4280 = vpop.f32.mrb[0].mxu0
      %v4281 = vpop.f32.mrb[0].mxu0
      %v4282 = vadd.f32 %v4174, %v4281
      %v4283 = vpop.f32.mrb[0].mxu0
      %4284 = vmatprep.mubr.bf16.mxu0 0
      %4285 = vmatmul.mubr.bf16.gmra.mrb[0].mxu0 %v4204
      %v4286 = vpop.f32.mrb[0].mxu0
      %v4287 = vadd.f32 %v4174, %v4286
      %v4288 = vpop.f32.mrb[0].mxu0
      %v4289 = vpop.f32.mrb[0].mxu0
      %v4290 = vadd.f32 %v4174, %v4289
      %v4291 = vpop.f32.mrb[0].mxu0
      %4292 = vmatprep.mubr.bf16.mxu0 0
      %4293 = vmatmul.mubr.bf16.gmra.mrb[0].mxu0 %v4207
      %v4294 = vpop.f32.mrb[0].mxu0
      %v4295 = vadd.f32 %v4174, %v4294
      %v4296 = vpop.f32.mrb[0].mxu0
      %v4297 = vpop.f32.mrb[0].mxu0
      %v4298 = vadd.f32 %v4174, %v4297
      %v4299 = vpop.f32.mrb[0].mxu0
      %4300 = vmatprep.mubr.bf16.mxu0 0
      %4301 = vmatmul.mubr.bf16.gmra.mrb[0].mxu0 %v4210
      %v4302 = vpop.f32.mrb[0].mxu0
      %v4303 = vadd.f32 %v4174, %v4302
      %v4304 = vpop.f32.mrb[0].mxu0
      %v4305 = vpop.f32.mrb[0].mxu0
      %v4306 = vadd.f32 %v4174, %v4305
      %v4307 = vpop.f32.mrb[0].mxu0
      %4308 = vdwg.mxu0
      %v4309 = vadd.f32 %v3973, %v4247
      %v4310 = vadd.f32 %v3974, %v4250
      %v4311 = vadd.f32 %v3975, %v4255
      %v4312 = vadd.f32 %v3976, %v4258
      %v4313 = vadd.f32 %v3977, %v4263
      %v4314 = vadd.f32 %v3978, %v4266
      %v4315 = vadd.f32 %v3979, %v4271
      %v4316 = vadd.f32 %v3980, %v4274
      %v4317 = vadd.f32 %v3981, %v4279
      %v4318 = vadd.f32 %v3982, %v4282
      %v4319 = vadd.f32 %v3983, %v4287
      %v4320 = vadd.f32 %v3984, %v4290
      %v4321 = vadd.f32 %v3985, %v4295
      %v4322 = vadd.f32 %v3986, %v4298
      %v4323 = vadd.f32 %v3987, %v4303
      %v4324 = vadd.f32 %v3988, %v4306
      %v4325 = vld [vmem:[%s17] sm:$0x1]
      %v4326 = vld [vmem:[%s18] sm:$0x1]
      %v4327 = vsel %vm785, %v4309, 0.0
      %4328 = vadd.xlane.f32.xlu0 %v4327
      %v4329 = vpop.xlane.xlu0 %4328
      %v4330 = vsel %vm785, %v4310, 0.0
      %4331 = vadd.xlane.f32.xlu0 %v4330
      %v4332 = vpop.xlane.xlu0 %4331
      %v4333 = vsel %vm785, %v4311, 0.0
      %4334 = vadd.xlane.f32.xlu0 %v4333
      %v4335 = vpop.xlane.xlu0 %4334
      %v4336 = vsel %vm785, %v4312, 0.0
      %4337 = vadd.xlane.f32.xlu0 %v4336
      %v4338 = vpop.xlane.xlu0 %4337
      %v4339 = vsel %vm785, %v4313, 0.0
      %4340 = vadd.xlane.f32.xlu0 %v4339
      %v4341 = vpop.xlane.xlu0 %4340
      %v4342 = vsel %vm785, %v4314, 0.0
      %4343 = vadd.xlane.f32.xlu0 %v4342
      %v4344 = vpop.xlane.xlu0 %4343
      %v4345 = vsel %vm785, %v4315, 0.0
      %4346 = vadd.xlane.f32.xlu0 %v4345
      %v4347 = vpop.xlane.xlu0 %4346
      %v4348 = vsel %vm785, %v4316, 0.0
      %4349 = vadd.xlane.f32.xlu0 %v4348
      %v4350 = vpop.xlane.xlu0 %4349
      %v4351 = vsel %vm785, %v4317, 0.0
      %4352 = vadd.xlane.f32.xlu0 %v4351
      %v4353 = vpop.xlane.xlu0 %4352
      %v4354 = vsel %vm785, %v4318, 0.0
      %4355 = vadd.xlane.f32.xlu0 %v4354
      %v4356 = vpop.xlane.xlu0 %4355
      %v4357 = vsel %vm785, %v4319, 0.0
      %4358 = vadd.xlane.f32.xlu0 %v4357
      %v4359 = vpop.xlane.xlu0 %4358
      %v4360 = vsel %vm785, %v4320, 0.0
      %4361 = vadd.xlane.f32.xlu0 %v4360
      %v4362 = vpop.xlane.xlu0 %4361
      %v4363 = vsel %vm785, %v4321, 0.0
      %4364 = vadd.xlane.f32.xlu0 %v4363
      %v4365 = vpop.xlane.xlu0 %4364
      %v4366 = vsel %vm785, %v4322, 0.0
      %4367 = vadd.xlane.f32.xlu0 %v4366
      %v4368 = vpop.xlane.xlu0 %4367
      %v4369 = vsel %vm785, %v4323, 0.0
      %4370 = vadd.xlane.f32.xlu0 %v4369
      %v4371 = vpop.xlane.xlu0 %4370
      %v4372 = vsel %vm785, %v4324, 0.0
      %4373 = vadd.xlane.f32.xlu0 %v4372
      %v4374 = vpop.xlane.xlu0 %4373
      %v4375 = vmul.f32 %v4329, %v3784
      %v4376 = vmul.f32 %v4332, %v3784
      %v4377 = vmul.f32 %v4335, %v3784
      %v4378 = vmul.f32 %v4338, %v3784
      %v4379 = vmul.f32 %v4341, %v3784
      %v4380 = vmul.f32 %v4344, %v3784
      %v4381 = vmul.f32 %v4347, %v3784
      %v4382 = vmul.f32 %v4350, %v3784
      %v4383 = vmul.f32 %v4353, %v3784
      %v4384 = vmul.f32 %v4356, %v3784
      %v4385 = vmul.f32 %v4359, %v3784
      %v4386 = vmul.f32 %v4362, %v3784
      %v4387 = vmul.f32 %v4365, %v3784
      %v4388 = vmul.f32 %v4368, %v3784
      %v4389 = vmul.f32 %v4371, %v3784
      %v4390 = vmul.f32 %v4374, %v3784
      %v4391 = vsub.f32 %v4309, %v4375
      %v4392 = vsub.f32 %v4310, %v4376
      %v4393 = vsub.f32 %v4311, %v4377
      %v4394 = vsub.f32 %v4312, %v4378
      %v4395 = vsub.f32 %v4313, %v4379
      %v4396 = vsub.f32 %v4314, %v4380
      %v4397 = vsub.f32 %v4315, %v4381
      %v4398 = vsub.f32 %v4316, %v4382
      %v4399 = vsub.f32 %v4317, %v4383
      %v4400 = vsub.f32 %v4318, %v4384
      %v4401 = vsub.f32 %v4319, %v4385
      %v4402 = vsub.f32 %v4320, %v4386
      %v4403 = vsub.f32 %v4321, %v4387
      %v4404 = vsub.f32 %v4322, %v4388
      %v4405 = vsub.f32 %v4323, %v4389
      %v4406 = vsub.f32 %v4324, %v4390
      %v4407 = vmul.f32 %v4391, %v4391
      %v4408 = vmul.f32 %v4392, %v4392
      %v4409 = vmul.f32 %v4393, %v4393
      %v4410 = vmul.f32 %v4394, %v4394
      %v4411 = vmul.f32 %v4395, %v4395
      %v4412 = vmul.f32 %v4396, %v4396
      %v4413 = vmul.f32 %v4397, %v4397
      %v4414 = vmul.f32 %v4398, %v4398
      %v4415 = vmul.f32 %v4399, %v4399
      %v4416 = vmul.f32 %v4400, %v4400
      %v4417 = vmul.f32 %v4401, %v4401
      %v4418 = vmul.f32 %v4402, %v4402
      %v4419 = vmul.f32 %v4403, %v4403
      %v4420 = vmul.f32 %v4404, %v4404
      %v4421 = vmul.f32 %v4405, %v4405
      %v4422 = vmul.f32 %v4406, %v4406
      %v4423 = vsel %vm785, %v4407, 0.0
      %4424 = vadd.xlane.f32.xlu0 %v4423
      %v4425 = vpop.xlane.xlu0 %4424
      %v4426 = vsel %vm785, %v4408, 0.0
      %4427 = vadd.xlane.f32.xlu0 %v4426
      %v4428 = vpop.xlane.xlu0 %4427
      %v4429 = vsel %vm785, %v4409, 0.0
      %4430 = vadd.xlane.f32.xlu0 %v4429
      %v4431 = vpop.xlane.xlu0 %4430
      %v4432 = vsel %vm785, %v4410, 0.0
      %4433 = vadd.xlane.f32.xlu0 %v4432
      %v4434 = vpop.xlane.xlu0 %4433
      %v4435 = vsel %vm785, %v4411, 0.0
      %4436 = vadd.xlane.f32.xlu0 %v4435
      %v4437 = vpop.xlane.xlu0 %4436
      %v4438 = vsel %vm785, %v4412, 0.0
      %4439 = vadd.xlane.f32.xlu0 %v4438
      %v4440 = vpop.xlane.xlu0 %4439
      %v4441 = vsel %vm785, %v4413, 0.0
      %4442 = vadd.xlane.f32.xlu0 %v4441
      %v4443 = vpop.xlane.xlu0 %4442
      %v4444 = vsel %vm785, %v4414, 0.0
      %4445 = vadd.xlane.f32.xlu0 %v4444
      %v4446 = vpop.xlane.xlu0 %4445
      %v4447 = vsel %vm785, %v4415, 0.0
      %4448 = vadd.xlane.f32.xlu0 %v4447
      %v4449 = vpop.xlane.xlu0 %4448
      %v4450 = vsel %vm785, %v4416, 0.0
      %4451 = vadd.xlane.f32.xlu0 %v4450
      %v4452 = vpop.xlane.xlu0 %4451
      %v4453 = vsel %vm785, %v4417, 0.0
      %4454 = vadd.xlane.f32.xlu0 %v4453
      %v4455 = vpop.xlane.xlu0 %4454
      %v4456 = vsel %vm785, %v4418, 0.0
      %4457 = vadd.xlane.f32.xlu0 %v4456
      %v4458 = vpop.xlane.xlu0 %4457
      %v4459 = vsel %vm785, %v4419, 0.0
      %4460 = vadd.xlane.f32.xlu0 %v4459
      %v4461 = vpop.xlane.xlu0 %4460
      %v4462 = vsel %vm785, %v4420, 0.0
      %4463 = vadd.xlane.f32.xlu0 %v4462
      %v4464 = vpop.xlane.xlu0 %4463
      %v4465 = vsel %vm785, %v4421, 0.0
      %4466 = vadd.xlane.f32.xlu0 %v4465
      %v4467 = vpop.xlane.xlu0 %4466
      %v4468 = vsel %vm785, %v4422, 0.0
      %4469 = vadd.xlane.f32.xlu0 %v4468
      %v4470 = vpop.xlane.xlu0 %4469
      %v4471 = vmul.f32 %v4425, %v3784
      %v4472 = vmul.f32 %v4428, %v3784
      %v4473 = vmul.f32 %v4431, %v3784
      %v4474 = vmul.f32 %v4434, %v3784
      %v4475 = vmul.f32 %v4437, %v3784
      %v4476 = vmul.f32 %v4440, %v3784
      %v4477 = vmul.f32 %v4443, %v3784
      %v4478 = vmul.f32 %v4446, %v3784
      %v4479 = vmul.f32 %v4449, %v3784
      %v4480 = vmul.f32 %v4452, %v3784
      %v4481 = vmul.f32 %v4455, %v3784
      %v4482 = vmul.f32 %v4458, %v3784
      %v4483 = vmul.f32 %v4461, %v3784
      %v4484 = vmul.f32 %v4464, %v3784
      %v4485 = vmul.f32 %v4467, %v3784
      %v4486 = vmul.f32 %v4470, %v3784
      %v4487 = vadd.f32 %v4471, 1e-05
      %v4488 = vadd.f32 %v4472, 1e-05
      %v4489 = vadd.f32 %v4473, 1e-05
      %v4490 = vadd.f32 %v4474, 1e-05
      %v4491 = vadd.f32 %v4475, 1e-05
      %v4492 = vadd.f32 %v4476, 1e-05
      %v4493 = vadd.f32 %v4477, 1e-05
      %v4494 = vadd.f32 %v4478, 1e-05
      %v4495 = vadd.f32 %v4479, 1e-05
      %v4496 = vadd.f32 %v4480, 1e-05
      %v4497 = vadd.f32 %v4481, 1e-05
      %v4498 = vadd.f32 %v4482, 1e-05
      %v4499 = vadd.f32 %v4483, 1e-05
      %v4500 = vadd.f32 %v4484, 1e-05
      %v4501 = vadd.f32 %v4485, 1e-05
      %v4502 = vadd.f32 %v4486, 1e-05
      %v4503 = vrsqrt.pop %v4487
      %v4504 = vrsqrt.pop %v4488
      %v4505 = vrsqrt.pop %v4489
      %v4506 = vrsqrt.pop %v4490
      %v4507 = vrsqrt.pop %v4491
      %v4508 = vrsqrt.pop %v4492
      %v4509 = vrsqrt.pop %v4493
      %v4510 = vrsqrt.pop %v4494
      %v4511 = vrsqrt.pop %v4495
      %v4512 = vrsqrt.pop %v4496
      %v4513 = vrsqrt.pop %v4497
      %v4514 = vrsqrt.pop %v4498
      %v4515 = vrsqrt.pop %v4499
      %v4516 = vrsqrt.pop %v4500
      %v4517 = vrsqrt.pop %v4501
      %v4518 = vrsqrt.pop %v4502
      %v4519 = vmul.f32 %v4391, %v4503
      %v4520 = vmul.f32 %v4392, %v4504
      %v4521 = vmul.f32 %v4393, %v4505
      %v4522 = vmul.f32 %v4394, %v4506
      %v4523 = vmul.f32 %v4395, %v4507
      %v4524 = vmul.f32 %v4396, %v4508
      %v4525 = vmul.f32 %v4397, %v4509
      %v4526 = vmul.f32 %v4398, %v4510
      %v4527 = vmul.f32 %v4399, %v4511
      %v4528 = vmul.f32 %v4400, %v4512
      %v4529 = vmul.f32 %v4401, %v4513
      %v4530 = vmul.f32 %v4402, %v4514
      %v4531 = vmul.f32 %v4403, %v4515
      %v4532 = vmul.f32 %v4404, %v4516
      %v4533 = vmul.f32 %v4405, %v4517
      %v4534 = vmul.f32 %v4406, %v4518
      %v4536 = vlaneseq
      %v4537 = vshrl.u32 %v4536, 7
      %v4538 = vsub.s32 0, %v4537
      %v4539 = vrot.slane %v4325, %v4538
      %v4541 = vmul.f32 %v4519, %v4539
      %v4542 = vmul.f32 %v4520, %v4539
      %v4543 = vmul.f32 %v4521, %v4539
      %v4544 = vmul.f32 %v4522, %v4539
      %v4545 = vmul.f32 %v4523, %v4539
      %v4546 = vmul.f32 %v4524, %v4539
      %v4547 = vmul.f32 %v4525, %v4539
      %v4548 = vmul.f32 %v4526, %v4539
      %v4549 = vmul.f32 %v4527, %v4539
      %v4550 = vmul.f32 %v4528, %v4539
      %v4551 = vmul.f32 %v4529, %v4539
      %v4552 = vmul.f32 %v4530, %v4539
      %v4553 = vmul.f32 %v4531, %v4539
      %v4554 = vmul.f32 %v4532, %v4539
      %v4555 = vmul.f32 %v4533, %v4539
      %v4556 = vmul.f32 %v4534, %v4539
      %v4558 = vlaneseq
      %v4559 = vshrl.u32 %v4558, 7
      %v4560 = vsub.s32 0, %v4559
      %v4561 = vrot.slane %v4326, %v4560
      %v4563 = vadd.f32 %v4541, %v4561
      %v4564 = vadd.f32 %v4542, %v4561
      %v4565 = vadd.f32 %v4543, %v4561
      %v4566 = vadd.f32 %v4544, %v4561
      %v4567 = vadd.f32 %v4545, %v4561
      %v4568 = vadd.f32 %v4546, %v4561
      %v4569 = vadd.f32 %v4547, %v4561
      %v4570 = vadd.f32 %v4548, %v4561
      %v4571 = vadd.f32 %v4549, %v4561
      %v4572 = vadd.f32 %v4550, %v4561
      %v4573 = vadd.f32 %v4551, %v4561
      %v4574 = vadd.f32 %v4552, %v4561
      %v4575 = vadd.f32 %v4553, %v4561
      %v4576 = vadd.f32 %v4554, %v4561
      %v4577 = vadd.f32 %v4555, %v4561
      %v4578 = vadd.f32 %v4556, %v4561
      %4579 = vst.msk [vmem:[%s628] sm:$0xff] %vm785, %v4563
      %4580 = vst.msk [vmem:[%s628 + $0x8] sm:$0xff] %vm785, %v4564
      %4581 = vst.msk [vmem:[%s628 + $0x10] sm:$0xff] %vm785, %v4565
      %4582 = vst.msk [vmem:[%s628 + $0x18] sm:$0xff] %vm785, %v4566
      %4583 = vst.msk [vmem:[%s628 + $0x20] sm:$0xff] %vm785, %v4567
      %4584 = vst.msk [vmem:[%s628 + $0x28] sm:$0xff] %vm785, %v4568
      %4585 = vst.msk [vmem:[%s628 + $0x30] sm:$0xff] %vm785, %v4569
      %4586 = vst.msk [vmem:[%s628 + $0x38] sm:$0xff] %vm785, %v4570
      %4587 = vst.msk [vmem:[%s628 + $0x40] sm:$0xff] %vm785, %v4571
      %4588 = vst.msk [vmem:[%s628 + $0x48] sm:$0xff] %vm785, %v4572
      %4589 = vst.msk [vmem:[%s628 + $0x50] sm:$0xff] %vm785, %v4573
      %4590 = vst.msk [vmem:[%s628 + $0x58] sm:$0xff] %vm785, %v4574
      %4591 = vst.msk [vmem:[%s628 + $0x60] sm:$0xff] %vm785, %v4575
      %4592 = vst.msk [vmem:[%s628 + $0x68] sm:$0xff] %vm785, %v4576
      %4593 = vst.msk [vmem:[%s628 + $0x70] sm:$0xff] %vm785, %v4577
      %4594 = vst.msk [vmem:[%s628 + $0x78] sm:$0xff] %vm785, %v4578
      %p4595 = scmp.lt.s32.totalorder %s34, 1
      %s4596 = scalar_select %p4595, %s34, 1
      %s4597 = smul.addr %s4596, 16
      %s4598 = smul.addr %s4597, 8
      %s4599 = scalar_lea.vmem %s19, %s4598
      // Predicated region
      $region101: #{tpu_custom_call.1} parent=95 // pred_check
        %p4600 = pneg %p469
      $region102: #{tpu_custom_call.1} parent=95 // pred_check_branch
        %4602 = sbr.rel (%p4600) target = $region104
      $region103: #{tpu_custom_call.1} parent=95 // pred_region
        _
      $region104: #{tpu_custom_call.1} parent=95 // pred_fallthru
        _
    $region96: #{tpu_custom_call.1} parent=5 // pred_fallthru
      _
    %p4603 = scmp.le.s32.totalorder 2, %s25
    // Predicated region
    $region105: #{tpu_custom_call.1} parent=5 // pred_check
      %p4604 = pneg %p4603
    $region106: #{tpu_custom_call.1} parent=5 // pred_check_branch
      %4606 = sbr.rel (%p4604) target = $region108
    $region107: #{tpu_custom_call.1} parent=5 // pred_region
      %s4607 = ssub.s32 %s25, 2
      // Predicated region
      $region109: #{tpu_custom_call.1} parent=107 // pred_check
        %p4608 = pneg %p475
      $region110: #{tpu_custom_call.1} parent=107 // pred_check_branch
        %4610 = sbr.rel (%p4608) target = $region112
      $region111: #{tpu_custom_call.1} parent=107 // pred_region
        %p4611 = scmp.lt.s32.totalorder %s36, 1
        %s4612 = scalar_select %p4611, %s36, 1
        %s4613 = smul.addr %s4612, 16
        %s4614 = smul.addr %s4613, 8
        %s4615 = scalar_lea.vmem %s19, %s4614
      $region112: #{tpu_custom_call.1} parent=107 // pred_fallthru
        _
    $region108: #{tpu_custom_call.1} parent=5 // pred_fallthru
      _
  $region6: #{tpu_custom_call.1} parent=0 // loop_footer
    %s29 = sadd.s32 1, %s25
  $region7: #{tpu_custom_call.1} parent=0 // loop_footer_branch
    %24 = sbr.rel target = $region3
  $region8: #{tpu_custom_call.1} parent=0 // loop_exit
    _

</llo_original>
